<compile_context>
chip_gen: v6e
topology: v6e:2x2x1
jax: 0.10.0
libtpu: 0.0.40
codegen_flags: <defaults>
</compile_context>

<pallas_src>
import math

import numpy as np
import jax
import jax.numpy as jnp
from jax import lax
from jax.experimental import pallas as pl
from jax.experimental.pallas import tpu as pltpu

D_MODEL = 320   # config['coarse']['d_model'] implied by the 320-ch 1x1 conv
PATCH = 8       # PixelShuffle(8) / coarse stride

# Tile targets (fit in default scoped VMEM on v5e/v6e/v7x with double
# buffering).
TL_TARGET = 512     # token tile for 1x1-conv / projection kernels
TQ_TARGET = 512     # flash-attention query tile (raised: K/V re-read per q-tile)
TKV_TARGET = 1024   # flash-attention key/value tile
TH_TARGET = 64      # image-row tile for the loss kernel (v5e-safe at wide W)


def _pick_tile(n, target, mult=16):
    """Largest divisor of n that is <= target and a multiple of `mult`;
    the full-dim fallback is guarded so it can't silently blow up VMEM."""
    if n <= target:
        return n
    start = target - (target % mult)
    for t in range(start, 0, -mult):
        if n % t == 0:
            return t
    if n <= 4 * target:
        return n
    raise ValueError(
        f"cannot tile dim {n}: no divisor <= {target} that is a multiple of {mult}")


# --------------------------------------------------------------------------
# Pallas kernels
# --------------------------------------------------------------------------
def _matmul_bias_kernel(x_ref, w_ref, b_ref, o_ref):
    """x @ w + b over one (TL, Cout) tile (== 1x1 conv)."""
    y = jnp.dot(x_ref[0], w_ref[...], preferred_element_type=jnp.float32)
    y = y + b_ref[...].astype(jnp.float32)
    o_ref[0] = y.astype(o_ref.dtype)


def matmul_bias(x, w, b, out_dtype=None, tl_target=TL_TARGET):
    """x: (N, L, Cin), w: (Cin, Cout), b: (Cout,) -> (N, L, Cout)."""
    n, L, cin = x.shape
    cout = w.shape[1]
    out_dtype = out_dtype or x.dtype
    tl = _pick_tile(L, tl_target, mult=16)
    return pl.pallas_call(
        _matmul_bias_kernel,
        out_shape=jax.ShapeDtypeStruct((n, L, cout), out_dtype),
        grid=(n, L // tl),
        in_specs=[
            pl.BlockSpec((1, tl, cin), lambda i, j: (i, j, 0)),
            pl.BlockSpec((cin, cout), lambda i, j: (0, 0)),
            pl.BlockSpec((1, cout), lambda i, j: (0, 0)),
        ],
        out_specs=pl.BlockSpec((1, tl, cout), lambda i, j: (i, j, 0)),
        compiler_params=pltpu.CompilerParams(
            dimension_semantics=("parallel", "parallel")),
    )(x, w, b.reshape(1, cout))


def _kv_proj_kernel(x_ref, w_ref, b_ref, k_ref, v_ref):
    """One activation tile -> K and V via a single concatenated-weight dot
    (fewer 256-wide MXU passes on v6e/v7x), slice-stored into two outputs."""
    x = x_ref[0]                                        # (TL, Cin) bf16
    y = jnp.dot(x, w_ref[...], preferred_element_type=jnp.float32)
    y = y + b_ref[...].astype(jnp.float32)              # (TL, 2*D)
    d = k_ref.shape[-1]
    k_ref[0] = y[:, :d].astype(k_ref.dtype)
    v_ref[0] = y[:, d:].astype(v_ref.dtype)


def kv_proj(x, w_cat, b_cat, d_k, tl_target=TL_TARGET):
    """x: (N, L, Cin); w_cat: (Cin, d_k + d_v); returns (K, V)."""
    n, L, cin = x.shape
    cout = w_cat.shape[1]
    d_v = cout - d_k
    tl = _pick_tile(L, tl_target, mult=16)
    return pl.pallas_call(
        _kv_proj_kernel,
        out_shape=(jax.ShapeDtypeStruct((n, L, d_k), x.dtype),
                   jax.ShapeDtypeStruct((n, L, d_v), x.dtype)),
        grid=(n, L // tl),
        in_specs=[
            pl.BlockSpec((1, tl, cin), lambda i, j: (i, j, 0)),
            pl.BlockSpec((cin, cout), lambda i, j: (0, 0)),
            pl.BlockSpec((1, cout), lambda i, j: (0, 0)),
        ],
        out_specs=(pl.BlockSpec((1, tl, d_k), lambda i, j: (i, j, 0)),
                   pl.BlockSpec((1, tl, d_v), lambda i, j: (i, j, 0))),
        compiler_params=pltpu.CompilerParams(
            dimension_semantics=("parallel", "parallel")),
    )(x, w_cat, b_cat.reshape(1, cout))


def _online_softmax_step(q, k, v, m_sc, l_sc, acc_sc):
    """One flash-attention KV step. q:(TQ,d), k:(TKV,d), v:(TKV,dv) bf16."""
    # QK^T without transposing K (contract last dims on the MXU).
    s = lax.dot_general(q, k, (((1,), (1,)), ((), ())),
                        preferred_element_type=jnp.float32)        # (TQ,TKV) f32
    m_prev = m_sc[...]
    m_new = jnp.maximum(m_prev, jnp.max(s, axis=-1, keepdims=True))
    alpha = jnp.exp(m_prev - m_new)
    p = jnp.exp(s - m_new)
    l_sc[...] = alpha * l_sc[...] + jnp.sum(p, axis=-1, keepdims=True)
    acc_sc[...] = alpha * acc_sc[...] + jnp.dot(
        p.astype(v.dtype), v, preferred_element_type=jnp.float32)
    m_sc[...] = m_new


def _attn_block_kernel(xq_ref, k_ref, v_ref, wq_ref, bq_ref, wo_ref, bo_ref,
                       o_ref, q_sc, m_sc, l_sc, acc_sc):
    """Fused attention block: Q-proj (kv==0) -> online softmax over kv tiles
    -> O-proj + bias + residual epilogue (kv==last). Q and the raw attention
    output never round-trip to HBM."""
    kv = pl.program_id(2)

    @pl.when(kv == 0)
    def _():
        q = jnp.dot(xq_ref[0], wq_ref[...], preferred_element_type=jnp.float32)
        q = q + bq_ref[...].astype(jnp.float32)   # 1/sqrt(d) folded into Wq/bq
        q_sc[...] = q.astype(q_sc.dtype)
        m_sc[...] = jnp.full_like(m_sc, -jnp.inf)
        l_sc[...] = jnp.zeros_like(l_sc)
        acc_sc[...] = jnp.zeros_like(acc_sc)

    _online_softmax_step(q_sc[...], k_ref[0], v_ref[0], m_sc, l_sc, acc_sc)

    @pl.when(kv == pl.num_programs(2) - 1)
    def _():
        inv = pl.reciprocal(l_sc[...], approx=True)                 # EUP
        attn = (acc_sc[...] * inv).astype(jnp.bfloat16)             # (TQ, dv)
        y = jnp.dot(attn, wo_ref[...], preferred_element_type=jnp.float32)
        y = y + bo_ref[...].astype(jnp.float32) + xq_ref[0].astype(jnp.float32)
        o_ref[0] = y.astype(o_ref.dtype)


def attn_block_fused(xq, k, v, wq, bq, wo, bo,
                     tq_target=TQ_TARGET, tkv_target=TKV_TARGET):
    """out = softmax((xq@Wq+bq) k^T) v @ Wo + bo + xq, flash-style tiled."""
    n, L, d = xq.shape
    _, S, dk = k.shape
    dv = v.shape[-1]
    tq = _pick_tile(L, tq_target, mult=16)
    tkv = _pick_tile(S, tkv_target, mult=16)
    return pl.pallas_call(
        _attn_block_kernel,
        out_shape=jax.ShapeDtypeStruct((n, L, d), xq.dtype),
        grid=(n, L // tq, S // tkv),
        in_specs=[
            pl.BlockSpec((1, tq, d), lambda b, i, j: (b, i, 0)),
            pl.BlockSpec((1, tkv, dk), lambda b, i, j: (b, j, 0)),
            pl.BlockSpec((1, tkv, dv), lambda b, i, j: (b, j, 0)),
            pl.BlockSpec((d, dk), lambda b, i, j: (0, 0)),
            pl.BlockSpec((1, dk), lambda b, i, j: (0, 0)),
            pl.BlockSpec((dv, d), lambda b, i, j: (0, 0)),
            pl.BlockSpec((1, d), lambda b, i, j: (0, 0)),
        ],
        out_specs=pl.BlockSpec((1, tq, d), lambda b, i, j: (b, i, 0)),
        scratch_shapes=[
            pltpu.VMEM((tq, dk), jnp.bfloat16),   # projected q (resident per q-tile)
            pltpu.VMEM((tq, 1), jnp.float32),     # running max
            pltpu.VMEM((tq, 1), jnp.float32),     # running sum
            pltpu.VMEM((tq, dv), jnp.float32),    # accumulator
        ],
        compiler_params=pltpu.CompilerParams(
            dimension_semantics=("parallel", "parallel", "arbitrary")),
    )(xq, k, v, wq, bq.reshape(1, dk), wo, bo.reshape(1, d))


def _make_align_refine_kernel(scale):
    """Cross-view alignment softmax(xq kv^T * scale) kv fused with the
    640->256 refiner 1x1 conv (split weight); the aligned features never
    touch HBM.  K and V are the same tensor (single DMA)."""
    def kernel(xq_ref, kv_ref, w2a_ref, w2b_ref, b2_ref, o_ref,
               q_sc, m_sc, l_sc, acc_sc):
        kv = pl.program_id(2)

        @pl.when(kv == 0)
        def _():
            # temperature applied ONCE per q-tile, not per kv step
            q_sc[...] = xq_ref[0] * jnp.asarray(scale, q_sc.dtype)
            m_sc[...] = jnp.full_like(m_sc, -jnp.inf)
            l_sc[...] = jnp.zeros_like(l_sc)
            acc_sc[...] = jnp.zeros_like(acc_sc)

        kv_blk = kv_ref[0]
        _online_softmax_step(q_sc[...], kv_blk, kv_blk, m_sc, l_sc, acc_sc)

        @pl.when(kv == pl.num_programs(2) - 1)
        def _():
            inv = pl.reciprocal(l_sc[...], approx=True)
            f2 = (acc_sc[...] * inv).astype(jnp.bfloat16)   # aligned features
            y = jnp.dot(xq_ref[0], w2a_ref[...], preferred_element_type=jnp.float32)
            y = y + jnp.dot(f2, w2b_ref[...], preferred_element_type=jnp.float32)
            y = y + b2_ref[...].astype(jnp.float32)
            o_ref[0] = y.astype(o_ref.dtype)
    return kernel


def align_refine(xq, kv, w2a, w2b, b2, scale,
                 tq_target=TQ_TARGET, tkv_target=TKV_TARGET):
    n, L, d = xq.shape
    _, S, _ = kv.shape
    cout = w2a.shape[1]
    tq = _pick_tile(L, tq_target, mult=16)
    tkv = _pick_tile(S, tkv_target, mult=16)
    return pl.pallas_call(
        _make_align_refine_kernel(float(scale)),
        out_shape=jax.ShapeDtypeStruct((n, L, cout), jnp.bfloat16),
        grid=(n, L // tq, S // tkv),
        in_specs=[
            pl.BlockSpec((1, tq, d), lambda b, i, j: (b, i, 0)),
            pl.BlockSpec((1, tkv, d), lambda b, i, j: (b, j, 0)),   # K == V
            pl.BlockSpec((d, cout), lambda b, i, j: (0, 0)),
            pl.BlockSpec((d, cout), lambda b, i, j: (0, 0)),
            pl.BlockSpec((1, cout), lambda b, i, j: (0, 0)),
        ],
        out_specs=pl.BlockSpec((1, tq, cout), lambda b, i, j: (b, i, 0)),
        scratch_shapes=[
            pltpu.VMEM((tq, d), jnp.bfloat16),
            pltpu.VMEM((tq, 1), jnp.float32),
            pltpu.VMEM((tq, 1), jnp.float32),
            pltpu.VMEM((tq, d), jnp.float32),
        ],
        compiler_params=pltpu.CompilerParams(
            dimension_semantics=("parallel", "parallel", "arbitrary")),
    )(xq, kv, w2a, w2b, b2.reshape(1, cout))


def _masked_l1_kernel(img_ref, rec_ref, ref_ref, mp_ref, mn_ref, o_ref,
                      lp_sc, p_sc, ln_sc, n_sc, lpr_sc):
    t = pl.program_id(1)

    @pl.when(t == 0)
    def _():
        lp_sc[...] = jnp.zeros_like(lp_sc)
        p_sc[...] = jnp.zeros_like(p_sc)
        ln_sc[...] = jnp.zeros_like(ln_sc)
        n_sc[...] = jnp.zeros_like(n_sc)
        lpr_sc[...] = jnp.zeros_like(lpr_sc)

    img = img_ref[0].astype(jnp.float32)       # (3, TH, W)
    rec = rec_ref[0].astype(jnp.float32)
    refd = ref_ref[0].astype(jnp.float32)
    mp = mp_ref[0]                             # (TH, W)
    mn = mn_ref[0]

    l1 = jnp.sum(jnp.abs(img - rec), axis=0)   # channel sum -> (TH, W)
    l1r = jnp.sum(jnp.abs(img - refd), axis=0)

    # accumulate scalar partial sums in VMEM scratch (no per-tile output RMW)
    lp_sc[...] += jnp.sum(l1 * mp, keepdims=True)
    p_sc[...] += jnp.sum(mp, keepdims=True)
    ln_sc[...] += jnp.sum(l1 * mn, keepdims=True)
    n_sc[...] += jnp.sum(mn, keepdims=True)
    lpr_sc[...] += jnp.sum(l1r * mp, keepdims=True)

    @pl.when(t == pl.num_programs(1) - 1)
    def _():
        lane = lax.broadcasted_iota(jnp.int32, (1, 128), 1)
        vals = (jnp.where(lane == 0, lp_sc[...], 0.0)
                + jnp.where(lane == 1, p_sc[...], 0.0)
                + jnp.where(lane == 2, ln_sc[...], 0.0)
                + jnp.where(lane == 3, n_sc[...], 0.0)
                + jnp.where(lane == 4, lpr_sc[...], 0.0))
        o_ref[0] = vals                                   # single lane-dense store


def masked_l1_sums(img, rec, refined, mask_pos, mask_neg, th_target=TH_TARGET):
    """img: (N,3,H,W) f32; rec/refined: (N,3,H,W) (any float); masks: (N,H,W).
    Returns the five scalar sums (|img-rec|*mp, mp, |img-rec|*mn, mn,
    |img-refined|*mp) in one pass over the images."""
    n, c, H, W = img.shape
    th = _pick_tile(H, th_target, mult=8)
    out = pl.pallas_call(
        _masked_l1_kernel,
        out_shape=jax.ShapeDtypeStruct((n, 1, 128), jnp.float32),
        grid=(n, H // th),
        in_specs=[
            pl.BlockSpec((1, c, th, W), lambda b, t: (b, 0, t, 0)),
            pl.BlockSpec((1, c, th, W), lambda b, t: (b, 0, t, 0)),
            pl.BlockSpec((1, c, th, W), lambda b, t: (b, 0, t, 0)),
            pl.BlockSpec((1, th, W), lambda b, t: (b, t, 0)),
            pl.BlockSpec((1, th, W), lambda b, t: (b, t, 0)),
        ],
        out_specs=pl.BlockSpec((1, 1, 128), lambda b, t: (b, 0, 0)),
        scratch_shapes=[pltpu.VMEM((1, 1), jnp.float32)] * 5,
        compiler_params=pltpu.CompilerParams(
            dimension_semantics=("parallel", "arbitrary")),
    )(img, rec, refined, mask_pos, mask_neg)
    sums = jnp.sum(out, axis=0).reshape(128)
    return sums[0], sums[1], sums[2], sums[3], sums[4]


# --------------------------------------------------------------------------
# Parameters (deterministic, synthetic); weights bf16, biases f32.
# --------------------------------------------------------------------------
def init_params(key):
    keys = jax.random.split(key, 16)

    def lin(k, cin, cout, scale=0.02):
        w = scale * jax.random.normal(k, (cin, cout), jnp.float32)
        return w.astype(jnp.bfloat16), jnp.zeros((cout,), jnp.float32)

    p = {}
    p['patch_embed'] = lin(keys[0], 3 * PATCH * PATCH, D_MODEL)
    inv_sqrt_d = 1.0 / math.sqrt(D_MODEL)
    idx = 1
    for name in ('self', 'cross'):
        wq, bq = lin(keys[idx], D_MODEL, D_MODEL); idx += 1
        # fold the 1/sqrt(d) attention temperature into the Q projection
        p[f'{name}_q'] = ((wq.astype(jnp.float32) * inv_sqrt_d).astype(jnp.bfloat16),
                          bq * inv_sqrt_d)
        wk, bk = lin(keys[idx], D_MODEL, D_MODEL); idx += 1
        wv, bv = lin(keys[idx], D_MODEL, D_MODEL); idx += 1
        # concatenated K|V weight -> one wide MXU dot per activation tile
        p[f'{name}_kv'] = (jnp.concatenate([wk, wv], axis=1),
                           jnp.concatenate([bk, bv], axis=0))
        p[f'{name}_o'] = lin(keys[idx], D_MODEL, D_MODEL); idx += 1
    p['out_conv_pair'] = lin(keys[idx], D_MODEL, PATCH * PATCH * 3); idx += 1    # 320->192
    # refiner 640->256 1x1 conv split into two 320->256 halves (no concat)
    w2a, b2 = lin(keys[idx], D_MODEL, PATCH * PATCH * 4); idx += 1
    w2b, _ = lin(keys[idx], D_MODEL, PATCH * PATCH * 4); idx += 1
    p['out_conv_refiner'] = (w2a, w2b, b2)
    return p


# --------------------------------------------------------------------------
# Submodule stand-ins / glue
# --------------------------------------------------------------------------
def backbone(params, img):
    # TODO(synk): build_backbone (ResNet-FPN) source not provided; stand-in is
    # an 8x8 stride-8 patch embedding driven by the Pallas matmul kernel.
    n, c, H, W = img.shape
    h, w = H // PATCH, W // PATCH
    x = img.reshape(n, c, h, PATCH, w, PATCH)
    x = x.transpose(0, 2, 4, 1, 3, 5).reshape(n, h * w, c * PATCH * PATCH)
    w_pe, b_pe = params['patch_embed']
    return matmul_bias(x.astype(jnp.bfloat16), w_pe, b_pe)      # (N, h*w, 320) bf16


def sine_pos_encoding(d_model, h, w):
    # PositionEncodingSine (parameter-free, deterministic); computed host-side.
    pe = np.zeros((d_model, h, w), dtype=np.float32)
    y_pos = np.cumsum(np.ones((h, w), np.float32), axis=0)[None]
    x_pos = np.cumsum(np.ones((h, w), np.float32), axis=1)[None]
    div = np.exp(np.arange(0, d_model // 2, 2, dtype=np.float32)
                 * (-math.log(10000.0) / (d_model // 2)))[:, None, None]
    pe[0::4] = np.sin(x_pos * div)
    pe[1::4] = np.cos(x_pos * div)
    pe[2::4] = np.sin(y_pos * div)
    pe[3::4] = np.cos(y_pos * div)
    return jnp.asarray(pe)


def loftr_coarse(params, x0, x1):
    # TODO(synk): LocalFeatureTransformer internals (config-dependent linear
    # attention, LayerNorm, FFN) not provided; simplified to one shared
    # self + cross full-attention round with residuals, all matmuls in Pallas.
    def block(prefix, xq, xkv):
        wkv, bkv = params[f'{prefix}_kv']
        k, v = kv_proj(xkv, wkv, bkv, D_MODEL)      # K/V span the full sequence
        wq, bq = params[f'{prefix}_q']
        wo, bo = params[f'{prefix}_o']
        # Q-proj, online softmax, O-proj + residual fused in one kernel.
        return attn_block_fused(xq, k, v, wq, bq, wo, bo)

    x0 = block('self', x0, x0)
    x1 = block('self', x1, x1)
    x0n = block('cross', x0, x1)
    x1n = block('cross', x1, x0)
    return x0n, x1n


def pixel_shuffle_from_tokens(x, h, w, c_out, r):
    """x: (N, h*w, c_out*r*r) tokens (1x1 conv output) -> NCHW
    (N, c_out, h*r, w*r), matching torch.nn.PixelShuffle channel ordering."""
    n = x.shape[0]
    x = x.reshape(n, h, w, c_out, r, r)
    x = x.transpose(0, 3, 1, 4, 2, 5)
    return x.reshape(n, c_out, h * r, w * r)


# --------------------------------------------------------------------------
# Forward (mirrors LoFTRWConfSinview.forward)
# --------------------------------------------------------------------------
def forward(params, img, mask, img2, masksup=None):
    n, _, H, W = img.shape
    hm, wm = mask.shape[1], mask.shape[2]
    ph, pw = H // hm, W // wm
    assert ph == pw
    h, w = H // PATCH, W // PATCH
    L = h * w

    # full-resolution mask (repeat_interleave over both spatial dims)
    mask_up = jnp.repeat(jnp.repeat(mask, ph, axis=1), pw, axis=2)     # (N,H,W)

    feats_c = backbone(params, img * mask_up[:, None])   # maskedin=True (stand-in)
    feats_c1 = backbone(params, img2)                    # maskedin=False

    pe = sine_pos_encoding(D_MODEL, h, w).reshape(D_MODEL, L).T[None]
    pe = pe.astype(jnp.bfloat16)
    feats_c = feats_c + pe
    feats_c1 = feats_c1 + pe

    feats_c, feats_c1 = loftr_coarse(params, feats_c, feats_c1)        # (N,L,C) bf16

    # rgb reconstruction: 1x1 conv (Pallas matmul, bf16 out) + PixelShuffle(8)
    w1, b1 = params['out_conv_pair']
    rgb_tokens = matmul_bias(feats_c, w1, b1, out_dtype=jnp.bfloat16)
    rgb_recon = pixel_shuffle_from_tokens(rgb_tokens, h, w, 3, PATCH)  # (N,3,H,W)

    # cross-view alignment softmax(feats_c feats_c1^T / 0.1) feats_c1 fused
    # with the 640->256 refiner conv (aligned features never hit HBM).
    # NOTE: PyTorch's isnan-fallback branch is unnecessary (stable online softmax).
    w2a, w2b, b2 = params['out_conv_refiner']
    d_tokens = align_refine(feats_c, feats_c1, w2a, w2b, b2, scale=1.0 / 0.1)
    d = pixel_shuffle_from_tokens(d_tokens, h, w, 4, PATCH)            # (N,4,H,W) bf16
    reliability = jax.nn.sigmoid(d[:, :-3])                            # (N,1,H,W)
    delta_rgb = d[:, -3:]                                              # (N,3,H,W)
    rgb_recon_refined = (jax.lax.stop_gradient(rgb_recon) * (1.0 - reliability)
                         + delta_rgb * reliability)

    if masksup is None:
        masksup = jnp.ones((n, H, W), jnp.float32)
    mask_pos = mask_up * masksup
    mask_neg = 1.0 - mask_up

    in_chans = 3
    s_lp, s_p, s_ln, s_n, s_lpr = masked_l1_sums(
        img, rgb_recon, rgb_recon_refined, mask_pos, mask_neg)
    loss = s_lp / (s_p + 1e-5) / in_chans
    loss = loss + (s_ln / (s_n + 1e-5) / in_chans) * 0.05
    loss = loss + (s_lpr / (s_p + 1e-5) / in_chans) * 0.25

    return loss, rgb_recon, rgb_recon_refined, reliability


# --------------------------------------------------------------------------
if __name__ == "__main__":
    key = jax.random.PRNGKey(0)
    kp, k1, k2, k3 = jax.random.split(key, 4)
    params = init_params(kp)

    N, H, W = 2, 32, 32
    img = jax.random.normal(k1, (N, 3, H, W), jnp.float32)
    img2 = jax.random.normal(k2, (N, 3, H, W), jnp.float32)
    mask = (jax.random.uniform(k3, (N, H // PATCH, W // PATCH)) > 0.3).astype(jnp.float32)

    loss, rgb_recon, rgb_recon_refined, reliability = jax.jit(forward)(
        params, img, mask, img2)
    jax.block_until_ready((loss, rgb_recon, rgb_recon_refined, reliability))

    assert rgb_recon.shape == (N, 3, H, W)
    assert rgb_recon_refined.shape == (N, 3, H, W)
    assert reliability.shape == (N, 1, H, W)
    assert loss.shape == ()
    assert bool(jnp.isfinite(loss))
    print("KERNEL_OK")
</pallas_src>

<mosaic_0001>
module attributes {stable_mosaic.version = 11 : i64} {
  func.func @_matmul_bias_kernel(%arg0: i32, %arg1: i32, %arg2: memref<1x16x192xbf16, #tpu.memory_space<vmem>>, %arg3: memref<192x320xbf16, #tpu.memory_space<vmem>>, %arg4: memref<1x320xf32, #tpu.memory_space<vmem>>, %arg5: memref<1x16x320xbf16, #tpu.memory_space<vmem>>) attributes {dimension_semantics = [#tpu.dimension_semantics<parallel>, #tpu.dimension_semantics<parallel>], iteration_bounds = array<i64: 2, 1>, scalar_prefetch = 0 : i64, scratch_operands = 0 : i64, tpu.core_type = #tpu.core_type<tc>, window_params = [{transform_indices = @transform_0, window_bounds = array<i64: 1, 16, 192>}, {pipeline_mode = #tpu.pipeline_mode<synchronous>, transform_indices = @transform_1, window_bounds = array<i64: 192, 320>}, {pipeline_mode = #tpu.pipeline_mode<synchronous>, transform_indices = @transform_2, window_bounds = array<i64: 1, 320>}, {transform_indices = @transform_3, window_bounds = array<i64: 1, 16, 320>}]} {
    %c0 = arith.constant 0 : index
    %c0_0 = arith.constant 0 : index
    %c0_1 = arith.constant 0 : index
    %0 = vector.load %arg2[%c0, %c0_0, %c0_1] : memref<1x16x192xbf16, #tpu.memory_space<vmem>>, vector<1x16x192xbf16>
    %1 = vector.shape_cast %0 : vector<1x16x192xbf16> to vector<16x192xbf16>
    %c0_2 = arith.constant 0 : index
    %c0_3 = arith.constant 0 : index
    %2 = vector.load %arg3[%c0_2, %c0_3] : memref<192x320xbf16, #tpu.memory_space<vmem>>, vector<192x320xbf16>
    %cst = arith.constant dense<0.000000e+00> : vector<16x320xf32>
    %3 = tpu.matmul %1, %2, %cst {dimension_numbers = #tpu.dot_dimension_numbers<[1], [0], [0], [1], [0, 0, 1, 1], [], []>} : vector<16x192xbf16>, vector<192x320xbf16>, vector<16x320xf32> -> vector<16x320xf32>
    %c0_4 = arith.constant 0 : index
    %c0_5 = arith.constant 0 : index
    %4 = vector.load %arg4[%c0_4, %c0_5] : memref<1x320xf32, #tpu.memory_space<vmem>>, vector<1x320xf32>
    %5 = vector.broadcast %4 : vector<1x320xf32> to vector<16x320xf32>
    %6 = arith.addf %3, %5 : vector<16x320xf32>
    %7 = arith.truncf %6 : vector<16x320xf32> to vector<16x320xbf16>
    %c0_6 = arith.constant 0 : index
    %c0_7 = arith.constant 0 : index
    %c0_8 = arith.constant 0 : index
    %8 = vector.load %arg5[%c0_6, %c0_7, %c0_8] : memref<1x16x320xbf16, #tpu.memory_space<vmem>>, vector<1x16x320xbf16>
    %9 = vector.shape_cast %8 : vector<1x16x320xbf16> to vector<16x320xbf16>
    %10 = vector.shape_cast %7 : vector<16x320xbf16> to vector<1x16x320xbf16>
    tpu.vector_store %arg5[%c0_6, %c0_7, %c0_8], %10 {strides = array<i32>} : memref<1x16x320xbf16, #tpu.memory_space<vmem>>, vector<1x16x320xbf16>,
    return
  }
  func.func @transform_0(%arg0: i32, %arg1: i32) -> (i32, i32, i32) {
    %c0_i32 = arith.constant 0 : i32
    %c0_i32_0 = arith.constant 0 : i32
    return %arg0, %arg1, %c0_i32 : i32, i32, i32
  }
  func.func @transform_1(%arg0: i32, %arg1: i32) -> (i32, i32) {
    %c0_i32 = arith.constant 0 : i32
    %c0_i32_0 = arith.constant 0 : i32
    %c0_i32_1 = arith.constant 0 : i32
    return %c0_i32, %c0_i32_0 : i32, i32
  }
  func.func @transform_2(%arg0: i32, %arg1: i32) -> (i32, i32) {
    %c0_i32 = arith.constant 0 : i32
    %c0_i32_0 = arith.constant 0 : i32
    %c0_i32_1 = arith.constant 0 : i32
    return %c0_i32, %c0_i32_0 : i32, i32
  }
  func.func @transform_3(%arg0: i32, %arg1: i32) -> (i32, i32, i32) {
    %c0_i32 = arith.constant 0 : i32
    %c0_i32_0 = arith.constant 0 : i32
    return %arg0, %arg1, %c0_i32 : i32, i32, i32
  }
}

module attributes {stable_mosaic.version = 11 : i64} {
  func.func @_kv_proj_kernel(%arg0: i32, %arg1: i32, %arg2: memref<1x16x320xbf16, #tpu.memory_space<vmem>>, %arg3: memref<320x640xbf16, #tpu.memory_space<vmem>>, %arg4: memref<1x640xf32, #tpu.memory_space<vmem>>, %arg5: memref<1x16x320xbf16, #tpu.memory_space<vmem>>, %arg6: memref<1x16x320xbf16, #tpu.memory_space<vmem>>) attributes {dimension_semantics = [#tpu.dimension_semantics<parallel>, #tpu.dimension_semantics<parallel>], iteration_bounds = array<i64: 2, 1>, scalar_prefetch = 0 : i64, scratch_operands = 0 : i64, tpu.core_type = #tpu.core_type<tc>, window_params = [{transform_indices = @transform_0, window_bounds = array<i64: 1, 16, 320>}, {pipeline_mode = #tpu.pipeline_mode<synchronous>, transform_indices = @transform_1, window_bounds = array<i64: 320, 640>}, {pipeline_mode = #tpu.pipeline_mode<synchronous>, transform_indices = @transform_2, window_bounds = array<i64: 1, 640>}, {transform_indices = @transform_3, window_bounds = array<i64: 1, 16, 320>}, {transform_indices = @transform_4, window_bounds = array<i64: 1, 16, 320>}]} {
    %c0 = arith.constant 0 : index
    %c0_0 = arith.constant 0 : index
    %c0_1 = arith.constant 0 : index
    %0 = vector.load %arg2[%c0, %c0_0, %c0_1] : memref<1x16x320xbf16, #tpu.memory_space<vmem>>, vector<1x16x320xbf16>
    %1 = vector.shape_cast %0 : vector<1x16x320xbf16> to vector<16x320xbf16>
    %c0_2 = arith.constant 0 : index
    %c0_3 = arith.constant 0 : index
    %2 = vector.load %arg3[%c0_2, %c0_3] : memref<320x640xbf16, #tpu.memory_space<vmem>>, vector<320x640xbf16>
    %cst = arith.constant dense<0.000000e+00> : vector<16x640xf32>
    %3 = tpu.matmul %1, %2, %cst {dimension_numbers = #tpu.dot_dimension_numbers<[1], [0], [0], [1], [0, 0, 1, 1], [], []>} : vector<16x320xbf16>, vector<320x640xbf16>, vector<16x640xf32> -> vector<16x640xf32>
    %c0_4 = arith.constant 0 : index
    %c0_5 = arith.constant 0 : index
    %4 = vector.load %arg4[%c0_4, %c0_5] : memref<1x640xf32, #tpu.memory_space<vmem>>, vector<1x640xf32>
    %5 = vector.broadcast %4 : vector<1x640xf32> to vector<16x640xf32>
    %6 = arith.addf %3, %5 : vector<16x640xf32>
    %7 = vector.extract_strided_slice %6 {offsets = [0, 0], sizes = [16, 320], strides = [1, 1]} : vector<16x640xf32> to vector<16x320xf32>
    %8 = arith.truncf %7 : vector<16x320xf32> to vector<16x320xbf16>
    %c0_6 = arith.constant 0 : index
    %c0_7 = arith.constant 0 : index
    %c0_8 = arith.constant 0 : index
    %9 = vector.load %arg5[%c0_6, %c0_7, %c0_8] : memref<1x16x320xbf16, #tpu.memory_space<vmem>>, vector<1x16x320xbf16>
    %10 = vector.shape_cast %9 : vector<1x16x320xbf16> to vector<16x320xbf16>
    %11 = vector.shape_cast %8 : vector<16x320xbf16> to vector<1x16x320xbf16>
    tpu.vector_store %arg5[%c0_6, %c0_7, %c0_8], %11 {strides = array<i32>} : memref<1x16x320xbf16, #tpu.memory_space<vmem>>, vector<1x16x320xbf16>,
    %12 = vector.extract_strided_slice %6 {offsets = [0, 320], sizes = [16, 320], strides = [1, 1]} : vector<16x640xf32> to vector<16x320xf32>
    %13 = arith.truncf %12 : vector<16x320xf32> to vector<16x320xbf16>
    %c0_9 = arith.constant 0 : index
    %c0_10 = arith.constant 0 : index
    %c0_11 = arith.constant 0 : index
    %14 = vector.load %arg6[%c0_9, %c0_10, %c0_11] : memref<1x16x320xbf16, #tpu.memory_space<vmem>>, vector<1x16x320xbf16>
    %15 = vector.shape_cast %14 : vector<1x16x320xbf16> to vector<16x320xbf16>
    %16 = vector.shape_cast %13 : vector<16x320xbf16> to vector<1x16x320xbf16>
    tpu.vector_store %arg6[%c0_9, %c0_10, %c0_11], %16 {strides = array<i32>} : memref<1x16x320xbf16, #tpu.memory_space<vmem>>, vector<1x16x320xbf16>,
    return
  }
  func.func @transform_0(%arg0: i32, %arg1: i32) -> (i32, i32, i32) {
    %c0_i32 = arith.constant 0 : i32
    %c0_i32_0 = arith.constant 0 : i32
    return %arg0, %arg1, %c0_i32 : i32, i32, i32
  }
  func.func @transform_1(%arg0: i32, %arg1: i32) -> (i32, i32) {
    %c0_i32 = arith.constant 0 : i32
    %c0_i32_0 = arith.constant 0 : i32
    %c0_i32_1 = arith.constant 0 : i32
    return %c0_i32, %c0_i32_0 : i32, i32
  }
  func.func @transform_2(%arg0: i32, %arg1: i32) -> (i32, i32) {
    %c0_i32 = arith.constant 0 : i32
    %c0_i32_0 = arith.constant 0 : i32
    %c0_i32_1 = arith.constant 0 : i32
    return %c0_i32, %c0_i32_0 : i32, i32
  }
  func.func @transform_3(%arg0: i32, %arg1: i32) -> (i32, i32, i32) {
    %c0_i32 = arith.constant 0 : i32
    %c0_i32_0 = arith.constant 0 : i32
    return %arg0, %arg1, %c0_i32 : i32, i32, i32
  }
  func.func @transform_4(%arg0: i32, %arg1: i32) -> (i32, i32, i32) {
    %c0_i32 = arith.constant 0 : i32
    %c0_i32_0 = arith.constant 0 : i32
    return %arg0, %arg1, %c0_i32 : i32, i32, i32
  }
}

module attributes {stable_mosaic.version = 11 : i64} {
  func.func @kernel(%arg0: i32, %arg1: i32, %arg2: i32, %arg3: memref<1x16x320xbf16, #tpu.memory_space<vmem>>, %arg4: memref<1x16x320xbf16, #tpu.memory_space<vmem>>, %arg5: memref<320x256xbf16, #tpu.memory_space<vmem>>, %arg6: memref<320x256xbf16, #tpu.memory_space<vmem>>, %arg7: memref<1x256xf32, #tpu.memory_space<vmem>>, %arg8: memref<1x16x256xbf16, #tpu.memory_space<vmem>>, %arg9: memref<16x320xbf16, #tpu.memory_space<vmem>>, %arg10: memref<16x1xf32, #tpu.memory_space<vmem>>, %arg11: memref<16x1xf32, #tpu.memory_space<vmem>>, %arg12: memref<16x320xf32, #tpu.memory_space<vmem>>) attributes {dimension_semantics = [#tpu.dimension_semantics<parallel>, #tpu.dimension_semantics<parallel>, #tpu.dimension_semantics<arbitrary>], iteration_bounds = array<i64: 2, 1, 1>, scalar_prefetch = 0 : i64, scratch_operands = 4 : i64, tpu.core_type = #tpu.core_type<tc>, window_params = [{transform_indices = @transform_0, window_bounds = array<i64: 1, 16, 320>}, {transform_indices = @transform_1, window_bounds = array<i64: 1, 16, 320>}, {pipeline_mode = #tpu.pipeline_mode<synchronous>, transform_indices = @transform_2, window_bounds = array<i64: 320, 256>}, {pipeline_mode = #tpu.pipeline_mode<synchronous>, transform_indices = @transform_3, window_bounds = array<i64: 320, 256>}, {pipeline_mode = #tpu.pipeline_mode<synchronous>, transform_indices = @transform_4, window_bounds = array<i64: 1, 256>}, {transform_indices = @transform_5, window_bounds = array<i64: 1, 16, 256>}]} {
    %c0_i32 = arith.constant 0 : i32
    %0 = arith.cmpi eq, %arg2, %c0_i32 : i32
    %1 = arith.extui %0 : i1 to i32
    %c0_i32_0 = arith.constant 0 : i32
    %2 = arith.cmpi ne, %1, %c0_i32_0 : i32
    scf.if %2 {
      %c0_22 = arith.constant 0 : index
      %c0_23 = arith.constant 0 : index
      %c0_24 = arith.constant 0 : index
      %33 = vector.load %arg3[%c0_22, %c0_23, %c0_24] : memref<1x16x320xbf16, #tpu.memory_space<vmem>>, vector<1x16x320xbf16>
      %34 = vector.shape_cast %33 : vector<1x16x320xbf16> to vector<16x320xbf16>
      %cst_25 = arith.constant 1.000000e+01 : bf16
      %35 = vector.broadcast %cst_25 : bf16 to vector<16x320xbf16>
      %36 = arith.mulf %34, %35 : vector<16x320xbf16>
      %c0_26 = arith.constant 0 : index
      %c0_27 = arith.constant 0 : index
      %37 = vector.load %arg9[%c0_26, %c0_27] : memref<16x320xbf16, #tpu.memory_space<vmem>>, vector<16x320xbf16>
      tpu.vector_store %arg9[%c0_26, %c0_27], %36 {strides = array<i32>} : memref<16x320xbf16, #tpu.memory_space<vmem>>, vector<16x320xbf16>,
      %cst_28 = arith.constant 0xFF800000 : f32
      %38 = vector.broadcast %cst_28 : f32 to vector<16x1xf32>
      %c0_29 = arith.constant 0 : index
      %c0_30 = arith.constant 0 : index
      %39 = vector.load %arg10[%c0_29, %c0_30] : memref<16x1xf32, #tpu.memory_space<vmem>>, vector<16x1xf32>
      tpu.vector_store %arg10[%c0_29, %c0_30], %38 {strides = array<i32>} : memref<16x1xf32, #tpu.memory_space<vmem>>, vector<16x1xf32>,
      %cst_31 = arith.constant 0.000000e+00 : f32
      %40 = vector.broadcast %cst_31 : f32 to vector<16x1xf32>
      %c0_32 = arith.constant 0 : index
      %c0_33 = arith.constant 0 : index
      %41 = vector.load %arg11[%c0_32, %c0_33] : memref<16x1xf32, #tpu.memory_space<vmem>>, vector<16x1xf32>
      tpu.vector_store %arg11[%c0_32, %c0_33], %40 {strides = array<i32>} : memref<16x1xf32, #tpu.memory_space<vmem>>, vector<16x1xf32>,
      %cst_34 = arith.constant 0.000000e+00 : f32
      %42 = vector.broadcast %cst_34 : f32 to vector<16x320xf32>
      %c0_35 = arith.constant 0 : index
      %c0_36 = arith.constant 0 : index
      %43 = vector.load %arg12[%c0_35, %c0_36] : memref<16x320xf32, #tpu.memory_space<vmem>>, vector<16x320xf32>
      tpu.vector_store %arg12[%c0_35, %c0_36], %42 {strides = array<i32>} : memref<16x320xf32, #tpu.memory_space<vmem>>, vector<16x320xf32>,
    } else {
    }
    %c0 = arith.constant 0 : index
    %c0_1 = arith.constant 0 : index
    %c0_2 = arith.constant 0 : index
    %3 = vector.load %arg4[%c0, %c0_1, %c0_2] : memref<1x16x320xbf16, #tpu.memory_space<vmem>>, vector<1x16x320xbf16>
    %4 = vector.shape_cast %3 : vector<1x16x320xbf16> to vector<16x320xbf16>
    %c0_3 = arith.constant 0 : index
    %c0_4 = arith.constant 0 : index
    %5 = vector.load %arg9[%c0_3, %c0_4] : memref<16x320xbf16, #tpu.memory_space<vmem>>, vector<16x320xbf16>
    %cst = arith.constant dense<0.000000e+00> : vector<16x16xf32>
    %6 = tpu.matmul %5, %4, %cst {dimension_numbers = #tpu.dot_dimension_numbers<[1], [1], [0], [0], [0, 0, 1, 0], [], []>} : vector<16x320xbf16>, vector<16x320xbf16>, vector<16x16xf32> -> vector<16x16xf32>
    %c0_5 = arith.constant 0 : index
    %c0_6 = arith.constant 0 : index
    %7 = vector.load %arg10[%c0_5, %c0_6] : memref<16x1xf32, #tpu.memory_space<vmem>>, vector<16x1xf32>
    %cst_7 = arith.constant dense<0xFF800000> : vector<16xf32>
    %8 = vector.multi_reduction <maximumf>, %6, %cst_7 [1] : vector<16x16xf32> to vector<16xf32>
    %9 = vector.shape_cast %8 : vector<16xf32> to vector<16x1xf32>
    %10 = arith.maximumf %7, %9 : vector<16x1xf32>
    %11 = arith.subf %7, %10 : vector<16x1xf32>
    %12 = math.exp %11 : vector<16x1xf32>
    %13 = vector.broadcast %10 : vector<16x1xf32> to vector<16x16xf32>
    %14 = arith.subf %6, %13 : vector<16x16xf32>
    %15 = math.exp %14 : vector<16x16xf32>
    %c0_8 = arith.constant 0 : index
    %c0_9 = arith.constant 0 : index
    %16 = vector.load %arg11[%c0_8, %c0_9] : memref<16x1xf32, #tpu.memory_space<vmem>>, vector<16x1xf32>
    %17 = arith.mulf %12, %16 : vector<16x1xf32>
    %cst_10 = arith.constant dense<0.000000e+00> : vector<16xf32>
    %18 = vector.multi_reduction <add>, %15, %cst_10 [1] : vector<16x16xf32> to vector<16xf32>
    %19 = vector.shape_cast %18 : vector<16xf32> to vector<16x1xf32>
    %20 = arith.addf %17, %19 : vector<16x1xf32>
    %c0_11 = arith.constant 0 : index
    %c0_12 = arith.constant 0 : index
    %21 = vector.load %arg11[%c0_11, %c0_12] : memref<16x1xf32, #tpu.memory_space<vmem>>, vector<16x1xf32>
    tpu.vector_store %arg11[%c0_11, %c0_12], %20 {strides = array<i32>} : memref<16x1xf32, #tpu.memory_space<vmem>>, vector<16x1xf32>,
    %c0_13 = arith.constant 0 : index
    %c0_14 = arith.constant 0 : index
    %22 = vector.load %arg12[%c0_13, %c0_14] : memref<16x320xf32, #tpu.memory_space<vmem>>, vector<16x320xf32>
    %23 = vector.broadcast %12 : vector<16x1xf32> to vector<16x320xf32>
    %24 = arith.mulf %23, %22 : vector<16x320xf32>
    %25 = arith.truncf %15 : vector<16x16xf32> to vector<16x16xbf16>
    %cst_15 = arith.constant dense<0.000000e+00> : vector<16x320xf32>
    %26 = tpu.matmul %25, %4, %cst_15 {dimension_numbers = #tpu.dot_dimension_numbers<[1], [0], [0], [1], [0, 0, 1, 1], [], []>} : vector<16x16xbf16>, vector<16x320xbf16>, vector<16x320xf32> -> vector<16x320xf32>
    %27 = arith.addf %24, %26 : vector<16x320xf32>
    %c0_16 = arith.constant 0 : index
    %c0_17 = arith.constant 0 : index
    %28 = vector.load %arg12[%c0_16, %c0_17] : memref<16x320xf32, #tpu.memory_space<vmem>>, vector<16x320xf32>
    tpu.vector_store %arg12[%c0_16, %c0_17], %27 {strides = array<i32>} : memref<16x320xf32, #tpu.memory_space<vmem>>, vector<16x320xf32>,
    %c0_18 = arith.constant 0 : index
    %c0_19 = arith.constant 0 : index
    %29 = vector.load %arg10[%c0_18, %c0_19] : memref<16x1xf32, #tpu.memory_space<vmem>>, vector<16x1xf32>
    tpu.vector_store %arg10[%c0_18, %c0_19], %10 {strides = array<i32>} : memref<16x1xf32, #tpu.memory_space<vmem>>, vector<16x1xf32>,
    %c0_i32_20 = arith.constant 0 : i32
    %30 = arith.cmpi eq, %arg2, %c0_i32_20 : i32
    %31 = arith.extui %30 : i1 to i32
    %c0_i32_21 = arith.constant 0 : i32
    %32 = arith.cmpi ne, %31, %c0_i32_21 : i32
    scf.if %32 {
      %c0_22 = arith.constant 0 : index
      %c0_23 = arith.constant 0 : index
      %33 = vector.load %arg11[%c0_22, %c0_23] : memref<16x1xf32, #tpu.memory_space<vmem>>, vector<16x1xf32>
      %34 = tpu.reciprocal %33 {approx = true} : vector<16x1xf32> -> vector<16x1xf32>
      %c0_24 = arith.constant 0 : index
      %c0_25 = arith.constant 0 : index
      %35 = vector.load %arg12[%c0_24, %c0_25] : memref<16x320xf32, #tpu.memory_space<vmem>>, vector<16x320xf32>
      %36 = vector.broadcast %34 : vector<16x1xf32> to vector<16x320xf32>
      %37 = arith.mulf %35, %36 : vector<16x320xf32>
      %38 = arith.truncf %37 : vector<16x320xf32> to vector<16x320xbf16>
      %c0_26 = arith.constant 0 : index
      %c0_27 = arith.constant 0 : index
      %c0_28 = arith.constant 0 : index
      %39 = vector.load %arg3[%c0_26, %c0_27, %c0_28] : memref<1x16x320xbf16, #tpu.memory_space<vmem>>, vector<1x16x320xbf16>
      %40 = vector.shape_cast %39 : vector<1x16x320xbf16> to vector<16x320xbf16>
      %c0_29 = arith.constant 0 : index
      %c0_30 = arith.constant 0 : index
      %41 = vector.load %arg5[%c0_29, %c0_30] : memref<320x256xbf16, #tpu.memory_space<vmem>>, vector<320x256xbf16>
      %cst_31 = arith.constant dense<0.000000e+00> : vector<16x256xf32>
      %42 = tpu.matmul %40, %41, %cst_31 {dimension_numbers = #tpu.dot_dimension_numbers<[1], [0], [0], [1], [0, 0, 1, 1], [], []>} : vector<16x320xbf16>, vector<320x256xbf16>, vector<16x256xf32> -> vector<16x256xf32>
      %c0_32 = arith.constant 0 : index
      %c0_33 = arith.constant 0 : index
      %43 = vector.load %arg6[%c0_32, %c0_33] : memref<320x256xbf16, #tpu.memory_space<vmem>>, vector<320x256xbf16>
      %cst_34 = arith.constant dense<0.000000e+00> : vector<16x256xf32>
      %44 = tpu.matmul %38, %43, %cst_34 {dimension_numbers = #tpu.dot_dimension_numbers<[1], [0], [0], [1], [0, 0, 1, 1], [], []>} : vector<16x320xbf16>, vector<320x256xbf16>, vector<16x256xf32> -> vector<16x256xf32>
      %45 = arith.addf %42, %44 : vector<16x256xf32>
      %c0_35 = arith.constant 0 : index
      %c0_36 = arith.constant 0 : index
      %46 = vector.load %arg7[%c0_35, %c0_36] : memref<1x256xf32, #tpu.memory_space<vmem>>, vector<1x256xf32>
      %47 = vector.broadcast %46 : vector<1x256xf32> to vector<16x256xf32>
      %48 = arith.addf %45, %47 : vector<16x256xf32>
      %49 = arith.truncf %48 : vector<16x256xf32> to vector<16x256xbf16>
      %c0_37 = arith.constant 0 : index
      %c0_38 = arith.constant 0 : index
      %c0_39 = arith.constant 0 : index
      %50 = vector.load %arg8[%c0_37, %c0_38, %c0_39] : memref<1x16x256xbf16, #tpu.memory_space<vmem>>, vector<1x16x256xbf16>
      %51 = vector.shape_cast %50 : vector<1x16x256xbf16> to vector<16x256xbf16>
      %52 = vector.shape_cast %49 : vector<16x256xbf16> to vector<1x16x256xbf16>
      tpu.vector_store %arg8[%c0_37, %c0_38, %c0_39], %52 {strides = array<i32>} : memref<1x16x256xbf16, #tpu.memory_space<vmem>>, vector<1x16x256xbf16>,
    } else {
    }
    return
  }
  func.func @transform_0(%arg0: i32, %arg1: i32, %arg2: i32) -> (i32, i32, i32) {
    %c0_i32 = arith.constant 0 : i32
    %c0_i32_0 = arith.constant 0 : i32
    return %arg0, %arg1, %c0_i32 : i32, i32, i32
  }
  func.func @transform_1(%arg0: i32, %arg1: i32, %arg2: i32) -> (i32, i32, i32) {
    %c0_i32 = arith.constant 0 : i32
    %c0_i32_0 = arith.constant 0 : i32
    return %arg0, %arg2, %c0_i32 : i32, i32, i32
  }
  func.func @transform_2(%arg0: i32, %arg1: i32, %arg2: i32) -> (i32, i32) {
    %c0_i32 = arith.constant 0 : i32
    %c0_i32_0 = arith.constant 0 : i32
    %c0_i32_1 = arith.constant 0 : i32
    return %c0_i32, %c0_i32_0 : i32, i32
  }
  func.func @transform_3(%arg0: i32, %arg1: i32, %arg2: i32) -> (i32, i32) {
    %c0_i32 = arith.constant 0 : i32
    %c0_i32_0 = arith.constant 0 : i32
    %c0_i32_1 = arith.constant 0 : i32
    return %c0_i32, %c0_i32_0 : i32, i32
  }
  func.func @transform_4(%arg0: i32, %arg1: i32, %arg2: i32) -> (i32, i32) {
    %c0_i32 = arith.constant 0 : i32
    %c0_i32_0 = arith.constant 0 : i32
    %c0_i32_1 = arith.constant 0 : i32
    return %c0_i32, %c0_i32_0 : i32, i32
  }
  func.func @transform_5(%arg0: i32, %arg1: i32, %arg2: i32) -> (i32, i32, i32) {
    %c0_i32 = arith.constant 0 : i32
    %c0_i32_0 = arith.constant 0 : i32
    return %arg0, %arg1, %c0_i32 : i32, i32, i32
  }
}

module attributes {stable_mosaic.version = 11 : i64} {
  func.func @_attn_block_kernel(%arg0: i32, %arg1: i32, %arg2: i32, %arg3: memref<1x16x320xbf16, #tpu.memory_space<vmem>>, %arg4: memref<1x16x320xbf16, #tpu.memory_space<vmem>>, %arg5: memref<1x16x320xbf16, #tpu.memory_space<vmem>>, %arg6: memref<320x320xbf16, #tpu.memory_space<vmem>>, %arg7: memref<1x320xf32, #tpu.memory_space<vmem>>, %arg8: memref<320x320xbf16, #tpu.memory_space<vmem>>, %arg9: memref<1x320xf32, #tpu.memory_space<vmem>>, %arg10: memref<1x16x320xbf16, #tpu.memory_space<vmem>>, %arg11: memref<16x320xbf16, #tpu.memory_space<vmem>>, %arg12: memref<16x1xf32, #tpu.memory_space<vmem>>, %arg13: memref<16x1xf32, #tpu.memory_space<vmem>>, %arg14: memref<16x320xf32, #tpu.memory_space<vmem>>) attributes {dimension_semantics = [#tpu.dimension_semantics<parallel>, #tpu.dimension_semantics<parallel>, #tpu.dimension_semantics<arbitrary>], iteration_bounds = array<i64: 2, 1, 1>, scalar_prefetch = 0 : i64, scratch_operands = 4 : i64, tpu.core_type = #tpu.core_type<tc>, window_params = [{transform_indices = @transform_0, window_bounds = array<i64: 1, 16, 320>}, {transform_indices = @transform_1, window_bounds = array<i64: 1, 16, 320>}, {transform_indices = @transform_2, window_bounds = array<i64: 1, 16, 320>}, {pipeline_mode = #tpu.pipeline_mode<synchronous>, transform_indices = @transform_3, window_bounds = array<i64: 320, 320>}, {pipeline_mode = #tpu.pipeline_mode<synchronous>, transform_indices = @transform_4, window_bounds = array<i64: 1, 320>}, {pipeline_mode = #tpu.pipeline_mode<synchronous>, transform_indices = @transform_5, window_bounds = array<i64: 320, 320>}, {pipeline_mode = #tpu.pipeline_mode<synchronous>, transform_indices = @transform_6, window_bounds = array<i64: 1, 320>}, {transform_indices = @transform_7, window_bounds = array<i64: 1, 16, 320>}]} {
    %c0_i32 = arith.constant 0 : i32
    %0 = arith.cmpi eq, %arg2, %c0_i32 : i32
    %1 = arith.extui %0 : i1 to i32
    %c0_i32_0 = arith.constant 0 : i32
    %2 = arith.cmpi ne, %1, %c0_i32_0 : i32
    scf.if %2 {
      %c0_25 = arith.constant 0 : index
      %c0_26 = arith.constant 0 : index
      %c0_27 = arith.constant 0 : index
      %35 = vector.load %arg3[%c0_25, %c0_26, %c0_27] : memref<1x16x320xbf16, #tpu.memory_space<vmem>>, vector<1x16x320xbf16>
      %36 = vector.shape_cast %35 : vector<1x16x320xbf16> to vector<16x320xbf16>
      %c0_28 = arith.constant 0 : index
      %c0_29 = arith.constant 0 : index
      %37 = vector.load %arg6[%c0_28, %c0_29] : memref<320x320xbf16, #tpu.memory_space<vmem>>, vector<320x320xbf16>
      %cst_30 = arith.constant dense<0.000000e+00> : vector<16x320xf32>
      %38 = tpu.matmul %36, %37, %cst_30 {dimension_numbers = #tpu.dot_dimension_numbers<[1], [0], [0], [1], [0, 0, 1, 1], [], []>} : vector<16x320xbf16>, vector<320x320xbf16>, vector<16x320xf32> -> vector<16x320xf32>
      %c0_31 = arith.constant 0 : index
      %c0_32 = arith.constant 0 : index
      %39 = vector.load %arg7[%c0_31, %c0_32] : memref<1x320xf32, #tpu.memory_space<vmem>>, vector<1x320xf32>
      %40 = vector.broadcast %39 : vector<1x320xf32> to vector<16x320xf32>
      %41 = arith.addf %38, %40 : vector<16x320xf32>
      %42 = arith.truncf %41 : vector<16x320xf32> to vector<16x320xbf16>
      %c0_33 = arith.constant 0 : index
      %c0_34 = arith.constant 0 : index
      %43 = vector.load %arg11[%c0_33, %c0_34] : memref<16x320xbf16, #tpu.memory_space<vmem>>, vector<16x320xbf16>
      tpu.vector_store %arg11[%c0_33, %c0_34], %42 {strides = array<i32>} : memref<16x320xbf16, #tpu.memory_space<vmem>>, vector<16x320xbf16>,
      %cst_35 = arith.constant 0xFF800000 : f32
      %44 = vector.broadcast %cst_35 : f32 to vector<16x1xf32>
      %c0_36 = arith.constant 0 : index
      %c0_37 = arith.constant 0 : index
      %45 = vector.load %arg12[%c0_36, %c0_37] : memref<16x1xf32, #tpu.memory_space<vmem>>, vector<16x1xf32>
      tpu.vector_store %arg12[%c0_36, %c0_37], %44 {strides = array<i32>} : memref<16x1xf32, #tpu.memory_space<vmem>>, vector<16x1xf32>,
      %cst_38 = arith.constant 0.000000e+00 : f32
      %46 = vector.broadcast %cst_38 : f32 to vector<16x1xf32>
      %c0_39 = arith.constant 0 : index
      %c0_40 = arith.constant 0 : index
      %47 = vector.load %arg13[%c0_39, %c0_40] : memref<16x1xf32, #tpu.memory_space<vmem>>, vector<16x1xf32>
      tpu.vector_store %arg13[%c0_39, %c0_40], %46 {strides = array<i32>} : memref<16x1xf32, #tpu.memory_space<vmem>>, vector<16x1xf32>,
      %cst_41 = arith.constant 0.000000e+00 : f32
      %48 = vector.broadcast %cst_41 : f32 to vector<16x320xf32>
      %c0_42 = arith.constant 0 : index
      %c0_43 = arith.constant 0 : index
      %49 = vector.load %arg14[%c0_42, %c0_43] : memref<16x320xf32, #tpu.memory_space<vmem>>, vector<16x320xf32>
      tpu.vector_store %arg14[%c0_42, %c0_43], %48 {strides = array<i32>} : memref<16x320xf32, #tpu.memory_space<vmem>>, vector<16x320xf32>,
    } else {
    }
    %c0 = arith.constant 0 : index
    %c0_1 = arith.constant 0 : index
    %3 = vector.load %arg11[%c0, %c0_1] : memref<16x320xbf16, #tpu.memory_space<vmem>>, vector<16x320xbf16>
    %c0_2 = arith.constant 0 : index
    %c0_3 = arith.constant 0 : index
    %c0_4 = arith.constant 0 : index
    %4 = vector.load %arg4[%c0_2, %c0_3, %c0_4] : memref<1x16x320xbf16, #tpu.memory_space<vmem>>, vector<1x16x320xbf16>
    %5 = vector.shape_cast %4 : vector<1x16x320xbf16> to vector<16x320xbf16>
    %c0_5 = arith.constant 0 : index
    %c0_6 = arith.constant 0 : index
    %c0_7 = arith.constant 0 : index
    %6 = vector.load %arg5[%c0_5, %c0_6, %c0_7] : memref<1x16x320xbf16, #tpu.memory_space<vmem>>, vector<1x16x320xbf16>
    %7 = vector.shape_cast %6 : vector<1x16x320xbf16> to vector<16x320xbf16>
    %cst = arith.constant dense<0.000000e+00> : vector<16x16xf32>
    %8 = tpu.matmul %3, %5, %cst {dimension_numbers = #tpu.dot_dimension_numbers<[1], [1], [0], [0], [0, 0, 1, 0], [], []>} : vector<16x320xbf16>, vector<16x320xbf16>, vector<16x16xf32> -> vector<16x16xf32>
    %c0_8 = arith.constant 0 : index
    %c0_9 = arith.constant 0 : index
    %9 = vector.load %arg12[%c0_8, %c0_9] : memref<16x1xf32, #tpu.memory_space<vmem>>, vector<16x1xf32>
    %cst_10 = arith.constant dense<0xFF800000> : vector<16xf32>
    %10 = vector.multi_reduction <maximumf>, %8, %cst_10 [1] : vector<16x16xf32> to vector<16xf32>
    %11 = vector.shape_cast %10 : vector<16xf32> to vector<16x1xf32>
    %12 = arith.maximumf %9, %11 : vector<16x1xf32>
    %13 = arith.subf %9, %12 : vector<16x1xf32>
    %14 = math.exp %13 : vector<16x1xf32>
    %15 = vector.broadcast %12 : vector<16x1xf32> to vector<16x16xf32>
    %16 = arith.subf %8, %15 : vector<16x16xf32>
    %17 = math.exp %16 : vector<16x16xf32>
    %c0_11 = arith.constant 0 : index
    %c0_12 = arith.constant 0 : index
    %18 = vector.load %arg13[%c0_11, %c0_12] : memref<16x1xf32, #tpu.memory_space<vmem>>, vector<16x1xf32>
    %19 = arith.mulf %14, %18 : vector<16x1xf32>
    %cst_13 = arith.constant dense<0.000000e+00> : vector<16xf32>
    %20 = vector.multi_reduction <add>, %17, %cst_13 [1] : vector<16x16xf32> to vector<16xf32>
    %21 = vector.shape_cast %20 : vector<16xf32> to vector<16x1xf32>
    %22 = arith.addf %19, %21 : vector<16x1xf32>
    %c0_14 = arith.constant 0 : index
    %c0_15 = arith.constant 0 : index
    %23 = vector.load %arg13[%c0_14, %c0_15] : memref<16x1xf32, #tpu.memory_space<vmem>>, vector<16x1xf32>
    tpu.vector_store %arg13[%c0_14, %c0_15], %22 {strides = array<i32>} : memref<16x1xf32, #tpu.memory_space<vmem>>, vector<16x1xf32>,
    %c0_16 = arith.constant 0 : index
    %c0_17 = arith.constant 0 : index
    %24 = vector.load %arg14[%c0_16, %c0_17] : memref<16x320xf32, #tpu.memory_space<vmem>>, vector<16x320xf32>
    %25 = vector.broadcast %14 : vector<16x1xf32> to vector<16x320xf32>
    %26 = arith.mulf %25, %24 : vector<16x320xf32>
    %27 = arith.truncf %17 : vector<16x16xf32> to vector<16x16xbf16>
    %cst_18 = arith.constant dense<0.000000e+00> : vector<16x320xf32>
    %28 = tpu.matmul %27, %7, %cst_18 {dimension_numbers = #tpu.dot_dimension_numbers<[1], [0], [0], [1], [0, 0, 1, 1], [], []>} : vector<16x16xbf16>, vector<16x320xbf16>, vector<16x320xf32> -> vector<16x320xf32>
    %29 = arith.addf %26, %28 : vector<16x320xf32>
    %c0_19 = arith.constant 0 : index
    %c0_20 = arith.constant 0 : index
    %30 = vector.load %arg14[%c0_19, %c0_20] : memref<16x320xf32, #tpu.memory_space<vmem>>, vector<16x320xf32>
    tpu.vector_store %arg14[%c0_19, %c0_20], %29 {strides = array<i32>} : memref<16x320xf32, #tpu.memory_space<vmem>>, vector<16x320xf32>,
    %c0_21 = arith.constant 0 : index
    %c0_22 = arith.constant 0 : index
    %31 = vector.load %arg12[%c0_21, %c0_22] : memref<16x1xf32, #tpu.memory_space<vmem>>, vector<16x1xf32>
    tpu.vector_store %arg12[%c0_21, %c0_22], %12 {strides = array<i32>} : memref<16x1xf32, #tpu.memory_space<vmem>>, vector<16x1xf32>,
    %c0_i32_23 = arith.constant 0 : i32
    %32 = arith.cmpi eq, %arg2, %c0_i32_23 : i32
    %33 = arith.extui %32 : i1 to i32
    %c0_i32_24 = arith.constant 0 : i32
    %34 = arith.cmpi ne, %33, %c0_i32_24 : i32
    scf.if %34 {
      %c0_25 = arith.constant 0 : index
      %c0_26 = arith.constant 0 : index
      %35 = vector.load %arg13[%c0_25, %c0_26] : memref<16x1xf32, #tpu.memory_space<vmem>>, vector<16x1xf32>
      %36 = tpu.reciprocal %35 {approx = true} : vector<16x1xf32> -> vector<16x1xf32>
      %c0_27 = arith.constant 0 : index
      %c0_28 = arith.constant 0 : index
      %37 = vector.load %arg14[%c0_27, %c0_28] : memref<16x320xf32, #tpu.memory_space<vmem>>, vector<16x320xf32>
      %38 = vector.broadcast %36 : vector<16x1xf32> to vector<16x320xf32>
      %39 = arith.mulf %37, %38 : vector<16x320xf32>
      %40 = arith.truncf %39 : vector<16x320xf32> to vector<16x320xbf16>
      %c0_29 = arith.constant 0 : index
      %c0_30 = arith.constant 0 : index
      %41 = vector.load %arg8[%c0_29, %c0_30] : memref<320x320xbf16, #tpu.memory_space<vmem>>, vector<320x320xbf16>
      %cst_31 = arith.constant dense<0.000000e+00> : vector<16x320xf32>
      %42 = tpu.matmul %40, %41, %cst_31 {dimension_numbers = #tpu.dot_dimension_numbers<[1], [0], [0], [1], [0, 0, 1, 1], [], []>} : vector<16x320xbf16>, vector<320x320xbf16>, vector<16x320xf32> -> vector<16x320xf32>
      %c0_32 = arith.constant 0 : index
      %c0_33 = arith.constant 0 : index
      %43 = vector.load %arg9[%c0_32, %c0_33] : memref<1x320xf32, #tpu.memory_space<vmem>>, vector<1x320xf32>
      %44 = vector.broadcast %43 : vector<1x320xf32> to vector<16x320xf32>
      %45 = arith.addf %42, %44 : vector<16x320xf32>
      %c0_34 = arith.constant 0 : index
      %c0_35 = arith.constant 0 : index
      %c0_36 = arith.constant 0 : index
      %46 = vector.load %arg3[%c0_34, %c0_35, %c0_36] : memref<1x16x320xbf16, #tpu.memory_space<vmem>>, vector<1x16x320xbf16>
      %47 = vector.shape_cast %46 : vector<1x16x320xbf16> to vector<16x320xbf16>
      %48 = arith.extf %47 : vector<16x320xbf16> to vector<16x320xf32>
      %49 = arith.addf %45, %48 : vector<16x320xf32>
      %50 = arith.truncf %49 : vector<16x320xf32> to vector<16x320xbf16>
      %c0_37 = arith.constant 0 : index
      %c0_38 = arith.constant 0 : index
      %c0_39 = arith.constant 0 : index
      %51 = vector.load %arg10[%c0_37, %c0_38, %c0_39] : memref<1x16x320xbf16, #tpu.memory_space<vmem>>, vector<1x16x320xbf16>
      %52 = vector.shape_cast %51 : vector<1x16x320xbf16> to vector<16x320xbf16>
      %53 = vector.shape_cast %50 : vector<16x320xbf16> to vector<1x16x320xbf16>
      tpu.vector_store %arg10[%c0_37, %c0_38, %c0_39], %53 {strides = array<i32>} : memref<1x16x320xbf16, #tpu.memory_space<vmem>>, vector<1x16x320xbf16>,
    } else {
    }
    return
  }
  func.func @transform_0(%arg0: i32, %arg1: i32, %arg2: i32) -> (i32, i32, i32) {
    %c0_i32 = arith.constant 0 : i32
    %c0_i32_0 = arith.constant 0 : i32
    return %arg0, %arg1, %c0_i32 : i32, i32, i32
  }
  func.func @transform_1(%arg0: i32, %arg1: i32, %arg2: i32) -> (i32, i32, i32) {
    %c0_i32 = arith.constant 0 : i32
    %c0_i32_0 = arith.constant 0 : i32
    return %arg0, %arg2, %c0_i32 : i32, i32, i32
  }
  func.func @transform_2(%arg0: i32, %arg1: i32, %arg2: i32) -> (i32, i32, i32) {
    %c0_i32 = arith.constant 0 : i32
    %c0_i32_0 = arith.constant 0 : i32
    return %arg0, %arg2, %c0_i32 : i32, i32, i32
  }
  func.func @transform_3(%arg0: i32, %arg1: i32, %arg2: i32) -> (i32, i32) {
    %c0_i32 = arith.constant 0 : i32
    %c0_i32_0 = arith.constant 0 : i32
    %c0_i32_1 = arith.constant 0 : i32
    return %c0_i32, %c0_i32_0 : i32, i32
  }
  func.func @transform_4(%arg0: i32, %arg1: i32, %arg2: i32) -> (i32, i32) {
    %c0_i32 = arith.constant 0 : i32
    %c0_i32_0 = arith.constant 0 : i32
    %c0_i32_1 = arith.constant 0 : i32
    return %c0_i32, %c0_i32_0 : i32, i32
  }
  func.func @transform_5(%arg0: i32, %arg1: i32, %arg2: i32) -> (i32, i32) {
    %c0_i32 = arith.constant 0 : i32
    %c0_i32_0 = arith.constant 0 : i32
    %c0_i32_1 = arith.constant 0 : i32
    return %c0_i32, %c0_i32_0 : i32, i32
  }
  func.func @transform_6(%arg0: i32, %arg1: i32, %arg2: i32) -> (i32, i32) {
    %c0_i32 = arith.constant 0 : i32
    %c0_i32_0 = arith.constant 0 : i32
    %c0_i32_1 = arith.constant 0 : i32
    return %c0_i32, %c0_i32_0 : i32, i32
  }
  func.func @transform_7(%arg0: i32, %arg1: i32, %arg2: i32) -> (i32, i32, i32) {
    %c0_i32 = arith.constant 0 : i32
    %c0_i32_0 = arith.constant 0 : i32
    return %arg0, %arg1, %c0_i32 : i32, i32, i32
  }
}

module attributes {stable_mosaic.version = 11 : i64} {
  func.func @_matmul_bias_kernel(%arg0: i32, %arg1: i32, %arg2: memref<1x16x320xbf16, #tpu.memory_space<vmem>>, %arg3: memref<320x192xbf16, #tpu.memory_space<vmem>>, %arg4: memref<1x192xf32, #tpu.memory_space<vmem>>, %arg5: memref<1x16x192xbf16, #tpu.memory_space<vmem>>) attributes {dimension_semantics = [#tpu.dimension_semantics<parallel>, #tpu.dimension_semantics<parallel>], iteration_bounds = array<i64: 2, 1>, scalar_prefetch = 0 : i64, scratch_operands = 0 : i64, tpu.core_type = #tpu.core_type<tc>, window_params = [{transform_indices = @transform_0, window_bounds = array<i64: 1, 16, 320>}, {pipeline_mode = #tpu.pipeline_mode<synchronous>, transform_indices = @transform_1, window_bounds = array<i64: 320, 192>}, {pipeline_mode = #tpu.pipeline_mode<synchronous>, transform_indices = @transform_2, window_bounds = array<i64: 1, 192>}, {transform_indices = @transform_3, window_bounds = array<i64: 1, 16, 192>}]} {
    %c0 = arith.constant 0 : index
    %c0_0 = arith.constant 0 : index
    %c0_1 = arith.constant 0 : index
    %0 = vector.load %arg2[%c0, %c0_0, %c0_1] : memref<1x16x320xbf16, #tpu.memory_space<vmem>>, vector<1x16x320xbf16>
    %1 = vector.shape_cast %0 : vector<1x16x320xbf16> to vector<16x320xbf16>
    %c0_2 = arith.constant 0 : index
    %c0_3 = arith.constant 0 : index
    %2 = vector.load %arg3[%c0_2, %c0_3] : memref<320x192xbf16, #tpu.memory_space<vmem>>, vector<320x192xbf16>
    %cst = arith.constant dense<0.000000e+00> : vector<16x192xf32>
    %3 = tpu.matmul %1, %2, %cst {dimension_numbers = #tpu.dot_dimension_numbers<[1], [0], [0], [1], [0, 0, 1, 1], [], []>} : vector<16x320xbf16>, vector<320x192xbf16>, vector<16x192xf32> -> vector<16x192xf32>
    %c0_4 = arith.constant 0 : index
    %c0_5 = arith.constant 0 : index
    %4 = vector.load %arg4[%c0_4, %c0_5] : memref<1x192xf32, #tpu.memory_space<vmem>>, vector<1x192xf32>
    %5 = vector.broadcast %4 : vector<1x192xf32> to vector<16x192xf32>
    %6 = arith.addf %3, %5 : vector<16x192xf32>
    %7 = arith.truncf %6 : vector<16x192xf32> to vector<16x192xbf16>
    %c0_6 = arith.constant 0 : index
    %c0_7 = arith.constant 0 : index
    %c0_8 = arith.constant 0 : index
    %8 = vector.load %arg5[%c0_6, %c0_7, %c0_8] : memref<1x16x192xbf16, #tpu.memory_space<vmem>>, vector<1x16x192xbf16>
    %9 = vector.shape_cast %8 : vector<1x16x192xbf16> to vector<16x192xbf16>
    %10 = vector.shape_cast %7 : vector<16x192xbf16> to vector<1x16x192xbf16>
    tpu.vector_store %arg5[%c0_6, %c0_7, %c0_8], %10 {strides = array<i32>} : memref<1x16x192xbf16, #tpu.memory_space<vmem>>, vector<1x16x192xbf16>,
    return
  }
  func.func @transform_0(%arg0: i32, %arg1: i32) -> (i32, i32, i32) {
    %c0_i32 = arith.constant 0 : i32
    %c0_i32_0 = arith.constant 0 : i32
    return %arg0, %arg1, %c0_i32 : i32, i32, i32
  }
  func.func @transform_1(%arg0: i32, %arg1: i32) -> (i32, i32) {
    %c0_i32 = arith.constant 0 : i32
    %c0_i32_0 = arith.constant 0 : i32
    %c0_i32_1 = arith.constant 0 : i32
    return %c0_i32, %c0_i32_0 : i32, i32
  }
  func.func @transform_2(%arg0: i32, %arg1: i32) -> (i32, i32) {
    %c0_i32 = arith.constant 0 : i32
    %c0_i32_0 = arith.constant 0 : i32
    %c0_i32_1 = arith.constant 0 : i32
    return %c0_i32, %c0_i32_0 : i32, i32
  }
  func.func @transform_3(%arg0: i32, %arg1: i32) -> (i32, i32, i32) {
    %c0_i32 = arith.constant 0 : i32
    %c0_i32_0 = arith.constant 0 : i32
    return %arg0, %arg1, %c0_i32 : i32, i32, i32
  }
}

module attributes {stable_mosaic.version = 11 : i64} {
  func.func @_masked_l1_kernel(%arg0: i32, %arg1: i32, %arg2: memref<1x3x32x32xf32, #tpu.memory_space<vmem>>, %arg3: memref<1x3x32x32xbf16, #tpu.memory_space<vmem>>, %arg4: memref<1x3x32x32xbf16, #tpu.memory_space<vmem>>, %arg5: memref<1x32x32xf32, #tpu.memory_space<vmem>>, %arg6: memref<1x32x32xf32, #tpu.memory_space<vmem>>, %arg7: memref<1x1x128xf32, #tpu.memory_space<vmem>>, %arg8: memref<1x1xf32, #tpu.memory_space<vmem>>, %arg9: memref<1x1xf32, #tpu.memory_space<vmem>>, %arg10: memref<1x1xf32, #tpu.memory_space<vmem>>, %arg11: memref<1x1xf32, #tpu.memory_space<vmem>>, %arg12: memref<1x1xf32, #tpu.memory_space<vmem>>) attributes {dimension_semantics = [#tpu.dimension_semantics<parallel>, #tpu.dimension_semantics<arbitrary>], iteration_bounds = array<i64: 2, 1>, scalar_prefetch = 0 : i64, scratch_operands = 5 : i64, tpu.core_type = #tpu.core_type<tc>, window_params = [{transform_indices = @transform_0, window_bounds = array<i64: 1, 3, 32, 32>}, {transform_indices = @transform_1, window_bounds = array<i64: 1, 3, 32, 32>}, {transform_indices = @transform_2, window_bounds = array<i64: 1, 3, 32, 32>}, {transform_indices = @transform_3, window_bounds = array<i64: 1, 32, 32>}, {transform_indices = @transform_4, window_bounds = array<i64: 1, 32, 32>}, {transform_indices = @transform_5, window_bounds = array<i64: 1, 1, 128>}]} {
    %c0_i32 = arith.constant 0 : i32
    %0 = arith.cmpi eq, %arg1, %c0_i32 : i32
    %1 = arith.extui %0 : i1 to i32
    %c0_i32_0 = arith.constant 0 : i32
    %2 = arith.cmpi ne, %1, %c0_i32_0 : i32
    scf.if %2 {
      %cst_46 = arith.constant 0.000000e+00 : f32
      %67 = vector.broadcast %cst_46 : f32 to vector<1x1xf32>
      %c0_47 = arith.constant 0 : index
      %c0_48 = arith.constant 0 : index
      %68 = vector.load %arg8[%c0_47, %c0_48] : memref<1x1xf32, #tpu.memory_space<vmem>>, vector<1x1xf32>
      tpu.vector_store %arg8[%c0_47, %c0_48], %67 {strides = array<i32>} : memref<1x1xf32, #tpu.memory_space<vmem>>, vector<1x1xf32>,
      %cst_49 = arith.constant 0.000000e+00 : f32
      %69 = vector.broadcast %cst_49 : f32 to vector<1x1xf32>
      %c0_50 = arith.constant 0 : index
      %c0_51 = arith.constant 0 : index
      %70 = vector.load %arg9[%c0_50, %c0_51] : memref<1x1xf32, #tpu.memory_space<vmem>>, vector<1x1xf32>
      tpu.vector_store %arg9[%c0_50, %c0_51], %69 {strides = array<i32>} : memref<1x1xf32, #tpu.memory_space<vmem>>, vector<1x1xf32>,
      %cst_52 = arith.constant 0.000000e+00 : f32
      %71 = vector.broadcast %cst_52 : f32 to vector<1x1xf32>
      %c0_53 = arith.constant 0 : index
      %c0_54 = arith.constant 0 : index
      %72 = vector.load %arg10[%c0_53, %c0_54] : memref<1x1xf32, #tpu.memory_space<vmem>>, vector<1x1xf32>
      tpu.vector_store %arg10[%c0_53, %c0_54], %71 {strides = array<i32>} : memref<1x1xf32, #tpu.memory_space<vmem>>, vector<1x1xf32>,
      %cst_55 = arith.constant 0.000000e+00 : f32
      %73 = vector.broadcast %cst_55 : f32 to vector<1x1xf32>
      %c0_56 = arith.constant 0 : index
      %c0_57 = arith.constant 0 : index
      %74 = vector.load %arg11[%c0_56, %c0_57] : memref<1x1xf32, #tpu.memory_space<vmem>>, vector<1x1xf32>
      tpu.vector_store %arg11[%c0_56, %c0_57], %73 {strides = array<i32>} : memref<1x1xf32, #tpu.memory_space<vmem>>, vector<1x1xf32>,
      %cst_58 = arith.constant 0.000000e+00 : f32
      %75 = vector.broadcast %cst_58 : f32 to vector<1x1xf32>
      %c0_59 = arith.constant 0 : index
      %c0_60 = arith.constant 0 : index
      %76 = vector.load %arg12[%c0_59, %c0_60] : memref<1x1xf32, #tpu.memory_space<vmem>>, vector<1x1xf32>
      tpu.vector_store %arg12[%c0_59, %c0_60], %75 {strides = array<i32>} : memref<1x1xf32, #tpu.memory_space<vmem>>, vector<1x1xf32>,
    } else {
    }
    %c0 = arith.constant 0 : index
    %c0_1 = arith.constant 0 : index
    %c0_2 = arith.constant 0 : index
    %c0_3 = arith.constant 0 : index
    %3 = vector.load %arg2[%c0, %c0_1, %c0_2, %c0_3] : memref<1x3x32x32xf32, #tpu.memory_space<vmem>>, vector<1x3x32x32xf32>
    %4 = vector.shape_cast %3 : vector<1x3x32x32xf32> to vector<3x32x32xf32>
    %c0_4 = arith.constant 0 : index
    %c0_5 = arith.constant 0 : index
    %c0_6 = arith.constant 0 : index
    %c0_7 = arith.constant 0 : index
    %5 = vector.load %arg3[%c0_4, %c0_5, %c0_6, %c0_7] : memref<1x3x32x32xbf16, #tpu.memory_space<vmem>>, vector<1x3x32x32xbf16>
    %6 = vector.shape_cast %5 : vector<1x3x32x32xbf16> to vector<3x32x32xbf16>
    %7 = arith.extf %6 : vector<3x32x32xbf16> to vector<3x32x32xf32>
    %c0_8 = arith.constant 0 : index
    %c0_9 = arith.constant 0 : index
    %c0_10 = arith.constant 0 : index
    %c0_11 = arith.constant 0 : index
    %8 = vector.load %arg4[%c0_8, %c0_9, %c0_10, %c0_11] : memref<1x3x32x32xbf16, #tpu.memory_space<vmem>>, vector<1x3x32x32xbf16>
    %9 = vector.shape_cast %8 : vector<1x3x32x32xbf16> to vector<3x32x32xbf16>
    %10 = arith.extf %9 : vector<3x32x32xbf16> to vector<3x32x32xf32>
    %c0_12 = arith.constant 0 : index
    %c0_13 = arith.constant 0 : index
    %c0_14 = arith.constant 0 : index
    %11 = vector.load %arg5[%c0_12, %c0_13, %c0_14] : memref<1x32x32xf32, #tpu.memory_space<vmem>>, vector<1x32x32xf32>
    %12 = vector.shape_cast %11 : vector<1x32x32xf32> to vector<32x32xf32>
    %c0_15 = arith.constant 0 : index
    %c0_16 = arith.constant 0 : index
    %c0_17 = arith.constant 0 : index
    %13 = vector.load %arg6[%c0_15, %c0_16, %c0_17] : memref<1x32x32xf32, #tpu.memory_space<vmem>>, vector<1x32x32xf32>
    %14 = vector.shape_cast %13 : vector<1x32x32xf32> to vector<32x32xf32>
    %15 = arith.subf %4, %7 : vector<3x32x32xf32>
    %16 = math.absf %15 : vector<3x32x32xf32>
    %cst = arith.constant dense<0.000000e+00> : vector<32x32xf32>
    %17 = vector.multi_reduction <add>, %16, %cst [0] : vector<3x32x32xf32> to vector<32x32xf32>
    %18 = arith.subf %4, %10 : vector<3x32x32xf32>
    %19 = math.absf %18 : vector<3x32x32xf32>
    %cst_18 = arith.constant dense<0.000000e+00> : vector<32x32xf32>
    %20 = vector.multi_reduction <add>, %19, %cst_18 [0] : vector<3x32x32xf32> to vector<32x32xf32>
    %c0_19 = arith.constant 0 : index
    %c0_20 = arith.constant 0 : index
    %21 = vector.load %arg8[%c0_19, %c0_20] : memref<1x1xf32, #tpu.memory_space<vmem>>, vector<1x1xf32>
    %22 = arith.mulf %17, %12 : vector<32x32xf32>
    %23 = vector.shape_cast %22 : vector<32x32xf32> to vector<1x32x32xf32>
    %cst_21 = arith.constant dense<0.000000e+00> : vector<1xf32>
    %24 = vector.multi_reduction <add>, %23, %cst_21 [1, 2] : vector<1x32x32xf32> to vector<1xf32>
    %25 = vector.shape_cast %24 : vector<1xf32> to vector<1x1x1xf32>
    %26 = vector.extract %25[0, 0, 0] : f32 from vector<1x1x1xf32>
    %27 = vector.broadcast %26 : f32 to vector<1x1xf32>
    %28 = arith.addf %21, %27 : vector<1x1xf32>
    %c0_22 = arith.constant 0 : index
    %c0_23 = arith.constant 0 : index
    %29 = vector.load %arg8[%c0_22, %c0_23] : memref<1x1xf32, #tpu.memory_space<vmem>>, vector<1x1xf32>
    tpu.vector_store %arg8[%c0_22, %c0_23], %28 {strides = array<i32>} : memref<1x1xf32, #tpu.memory_space<vmem>>, vector<1x1xf32>,
    %c0_24 = arith.constant 0 : index
    %c0_25 = arith.constant 0 : index
    %30 = vector.load %arg9[%c0_24, %c0_25] : memref<1x1xf32, #tpu.memory_space<vmem>>, vector<1x1xf32>
    %31 = vector.shape_cast %12 : vector<32x32xf32> to vector<1x32x32xf32>
    %cst_26 = arith.constant dense<0.000000e+00> : vector<1xf32>
    %32 = vector.multi_reduction <add>, %31, %cst_26 [1, 2] : vector<1x32x32xf32> to vector<1xf32>
    %33 = vector.shape_cast %32 : vector<1xf32> to vector<1x1x1xf32>
    %34 = vector.extract %33[0, 0, 0] : f32 from vector<1x1x1xf32>
    %35 = vector.broadcast %34 : f32 to vector<1x1xf32>
    %36 = arith.addf %30, %35 : vector<1x1xf32>
    %c0_27 = arith.constant 0 : index
    %c0_28 = arith.constant 0 : index
    %37 = vector.load %arg9[%c0_27, %c0_28] : memref<1x1xf32, #tpu.memory_space<vmem>>, vector<1x1xf32>
    tpu.vector_store %arg9[%c0_27, %c0_28], %36 {strides = array<i32>} : memref<1x1xf32, #tpu.memory_space<vmem>>, vector<1x1xf32>,
    %c0_29 = arith.constant 0 : index
    %c0_30 = arith.constant 0 : index
    %38 = vector.load %arg10[%c0_29, %c0_30] : memref<1x1xf32, #tpu.memory_space<vmem>>, vector<1x1xf32>
    %39 = arith.mulf %17, %14 : vector<32x32xf32>
    %40 = vector.shape_cast %39 : vector<32x32xf32> to vector<1x32x32xf32>
    %cst_31 = arith.constant dense<0.000000e+00> : vector<1xf32>
    %41 = vector.multi_reduction <add>, %40, %cst_31 [1, 2] : vector<1x32x32xf32> to vector<1xf32>
    %42 = vector.shape_cast %41 : vector<1xf32> to vector<1x1x1xf32>
    %43 = vector.extract %42[0, 0, 0] : f32 from vector<1x1x1xf32>
    %44 = vector.broadcast %43 : f32 to vector<1x1xf32>
    %45 = arith.addf %38, %44 : vector<1x1xf32>
    %c0_32 = arith.constant 0 : index
    %c0_33 = arith.constant 0 : index
    %46 = vector.load %arg10[%c0_32, %c0_33] : memref<1x1xf32, #tpu.memory_space<vmem>>, vector<1x1xf32>
    tpu.vector_store %arg10[%c0_32, %c0_33], %45 {strides = array<i32>} : memref<1x1xf32, #tpu.memory_space<vmem>>, vector<1x1xf32>,
    %c0_34 = arith.constant 0 : index
    %c0_35 = arith.constant 0 : index
    %47 = vector.load %arg11[%c0_34, %c0_35] : memref<1x1xf32, #tpu.memory_space<vmem>>, vector<1x1xf32>
    %48 = vector.shape_cast %14 : vector<32x32xf32> to vector<1x32x32xf32>
    %cst_36 = arith.constant dense<0.000000e+00> : vector<1xf32>
    %49 = vector.multi_reduction <add>, %48, %cst_36 [1, 2] : vector<1x32x32xf32> to vector<1xf32>
    %50 = vector.shape_cast %49 : vector<1xf32> to vector<1x1x1xf32>
    %51 = vector.extract %50[0, 0, 0] : f32 from vector<1x1x1xf32>
    %52 = vector.broadcast %51 : f32 to vector<1x1xf32>
    %53 = arith.addf %47, %52 : vector<1x1xf32>
    %c0_37 = arith.constant 0 : index
    %c0_38 = arith.constant 0 : index
    %54 = vector.load %arg11[%c0_37, %c0_38] : memref<1x1xf32, #tpu.memory_space<vmem>>, vector<1x1xf32>
    tpu.vector_store %arg11[%c0_37, %c0_38], %53 {strides = array<i32>} : memref<1x1xf32, #tpu.memory_space<vmem>>, vector<1x1xf32>,
    %c0_39 = arith.constant 0 : index
    %c0_40 = arith.constant 0 : index
    %55 = vector.load %arg12[%c0_39, %c0_40] : memref<1x1xf32, #tpu.memory_space<vmem>>, vector<1x1xf32>
    %56 = arith.mulf %20, %12 : vector<32x32xf32>
    %57 = vector.shape_cast %56 : vector<32x32xf32> to vector<1x32x32xf32>
    %cst_41 = arith.constant dense<0.000000e+00> : vector<1xf32>
    %58 = vector.multi_reduction <add>, %57, %cst_41 [1, 2] : vector<1x32x32xf32> to vector<1xf32>
    %59 = vector.shape_cast %58 : vector<1xf32> to vector<1x1x1xf32>
    %60 = vector.extract %59[0, 0, 0] : f32 from vector<1x1x1xf32>
    %61 = vector.broadcast %60 : f32 to vector<1x1xf32>
    %62 = arith.addf %55, %61 : vector<1x1xf32>
    %c0_42 = arith.constant 0 : index
    %c0_43 = arith.constant 0 : index
    %63 = vector.load %arg12[%c0_42, %c0_43] : memref<1x1xf32, #tpu.memory_space<vmem>>, vector<1x1xf32>
    tpu.vector_store %arg12[%c0_42, %c0_43], %62 {strides = array<i32>} : memref<1x1xf32, #tpu.memory_space<vmem>>, vector<1x1xf32>,
    %c0_i32_44 = arith.constant 0 : i32
    %64 = arith.cmpi eq, %arg1, %c0_i32_44 : i32
    %65 = arith.extui %64 : i1 to i32
    %c0_i32_45 = arith.constant 0 : i32
    %66 = arith.cmpi ne, %65, %c0_i32_45 : i32
    scf.if %66 {
      %67 = tpu.iota {dimensions = array<i32: 1>} : vector<1x128xi32>
      %c0_i32_46 = arith.constant 0 : i32
      %68 = vector.broadcast %c0_i32_46 : i32 to vector<1x128xi32>
      %69 = arith.cmpi eq, %67, %68 : vector<1x128xi32>
      %c0_47 = arith.constant 0 : index
      %c0_48 = arith.constant 0 : index
      %70 = vector.load %arg8[%c0_47, %c0_48] : memref<1x1xf32, #tpu.memory_space<vmem>>, vector<1x1xf32>
      %cst_49 = arith.constant 0.000000e+00 : f32
      %71 = vector.shape_cast %70 : vector<1x1xf32> to vector<1x1xf32>
      %72 = vector.broadcast %71 : vector<1x1xf32> to vector<1x128xf32>
      %73 = vector.broadcast %cst_49 : f32 to vector<1x128xf32>
      %74 = arith.select %69, %72, %73 : vector<1x128xi1>, vector<1x128xf32>
      %c1_i32 = arith.constant 1 : i32
      %75 = vector.broadcast %c1_i32 : i32 to vector<1x128xi32>
      %76 = arith.cmpi eq, %67, %75 : vector<1x128xi32>
      %c0_50 = arith.constant 0 : index
      %c0_51 = arith.constant 0 : index
      %77 = vector.load %arg9[%c0_50, %c0_51] : memref<1x1xf32, #tpu.memory_space<vmem>>, vector<1x1xf32>
      %cst_52 = arith.constant 0.000000e+00 : f32
      %78 = vector.shape_cast %77 : vector<1x1xf32> to vector<1x1xf32>
      %79 = vector.broadcast %78 : vector<1x1xf32> to vector<1x128xf32>
      %80 = vector.broadcast %cst_52 : f32 to vector<1x128xf32>
      %81 = arith.select %76, %79, %80 : vector<1x128xi1>, vector<1x128xf32>
      %82 = arith.addf %74, %81 : vector<1x128xf32>
      %c2_i32 = arith.constant 2 : i32
      %83 = vector.broadcast %c2_i32 : i32 to vector<1x128xi32>
      %84 = arith.cmpi eq, %67, %83 : vector<1x128xi32>
      %c0_53 = arith.constant 0 : index
      %c0_54 = arith.constant 0 : index
      %85 = vector.load %arg10[%c0_53, %c0_54] : memref<1x1xf32, #tpu.memory_space<vmem>>, vector<1x1xf32>
      %cst_55 = arith.constant 0.000000e+00 : f32
      %86 = vector.shape_cast %85 : vector<1x1xf32> to vector<1x1xf32>
      %87 = vector.broadcast %86 : vector<1x1xf32> to vector<1x128xf32>
      %88 = vector.broadcast %cst_55 : f32 to vector<1x128xf32>
      %89 = arith.select %84, %87, %88 : vector<1x128xi1>, vector<1x128xf32>
      %90 = arith.addf %82, %89 : vector<1x128xf32>
      %c3_i32 = arith.constant 3 : i32
      %91 = vector.broadcast %c3_i32 : i32 to vector<1x128xi32>
      %92 = arith.cmpi eq, %67, %91 : vector<1x128xi32>
      %c0_56 = arith.constant 0 : index
      %c0_57 = arith.constant 0 : index
      %93 = vector.load %arg11[%c0_56, %c0_57] : memref<1x1xf32, #tpu.memory_space<vmem>>, vector<1x1xf32>
      %cst_58 = arith.constant 0.000000e+00 : f32
      %94 = vector.shape_cast %93 : vector<1x1xf32> to vector<1x1xf32>
      %95 = vector.broadcast %94 : vector<1x1xf32> to vector<1x128xf32>
      %96 = vector.broadcast %cst_58 : f32 to vector<1x128xf32>
      %97 = arith.select %92, %95, %96 : vector<1x128xi1>, vector<1x128xf32>
      %98 = arith.addf %90, %97 : vector<1x128xf32>
      %c4_i32 = arith.constant 4 : i32
      %99 = vector.broadcast %c4_i32 : i32 to vector<1x128xi32>
      %100 = arith.cmpi eq, %67, %99 : vector<1x128xi32>
      %c0_59 = arith.constant 0 : index
      %c0_60 = arith.constant 0 : index
      %101 = vector.load %arg12[%c0_59, %c0_60] : memref<1x1xf32, #tpu.memory_space<vmem>>, vector<1x1xf32>
      %cst_61 = arith.constant 0.000000e+00 : f32
      %102 = vector.shape_cast %101 : vector<1x1xf32> to vector<1x1xf32>
      %103 = vector.broadcast %102 : vector<1x1xf32> to vector<1x128xf32>
      %104 = vector.broadcast %cst_61 : f32 to vector<1x128xf32>
      %105 = arith.select %100, %103, %104 : vector<1x128xi1>, vector<1x128xf32>
      %106 = arith.addf %98, %105 : vector<1x128xf32>
      %c0_62 = arith.constant 0 : index
      %c0_63 = arith.constant 0 : index
      %c0_64 = arith.constant 0 : index
      %107 = vector.load %arg7[%c0_62, %c0_63, %c0_64] : memref<1x1x128xf32, #tpu.memory_space<vmem>>, vector<1x1x128xf32>
      %108 = vector.shape_cast %107 : vector<1x1x128xf32> to vector<1x128xf32>
      %109 = vector.shape_cast %106 : vector<1x128xf32> to vector<1x1x128xf32>
      tpu.vector_store %arg7[%c0_62, %c0_63, %c0_64], %109 {strides = array<i32>} : memref<1x1x128xf32, #tpu.memory_space<vmem>>, vector<1x1x128xf32>,
    } else {
    }
    return
  }
  func.func @transform_0(%arg0: i32, %arg1: i32) -> (i32, i32, i32, i32) {
    %c0_i32 = arith.constant 0 : i32
    %c0_i32_0 = arith.constant 0 : i32
    %c0_i32_1 = arith.constant 0 : i32
    return %arg0, %c0_i32, %arg1, %c0_i32_0 : i32, i32, i32, i32
  }
  func.func @transform_1(%arg0: i32, %arg1: i32) -> (i32, i32, i32, i32) {
    %c0_i32 = arith.constant 0 : i32
    %c0_i32_0 = arith.constant 0 : i32
    %c0_i32_1 = arith.constant 0 : i32
    return %arg0, %c0_i32, %arg1, %c0_i32_0 : i32, i32, i32, i32
  }
  func.func @transform_2(%arg0: i32, %arg1: i32) -> (i32, i32, i32, i32) {
    %c0_i32 = arith.constant 0 : i32
    %c0_i32_0 = arith.constant 0 : i32
    %c0_i32_1 = arith.constant 0 : i32
    return %arg0, %c0_i32, %arg1, %c0_i32_0 : i32, i32, i32, i32
  }
  func.func @transform_3(%arg0: i32, %arg1: i32) -> (i32, i32, i32) {
    %c0_i32 = arith.constant 0 : i32
    %c0_i32_0 = arith.constant 0 : i32
    return %arg0, %arg1, %c0_i32 : i32, i32, i32
  }
  func.func @transform_4(%arg0: i32, %arg1: i32) -> (i32, i32, i32) {
    %c0_i32 = arith.constant 0 : i32
    %c0_i32_0 = arith.constant 0 : i32
    return %arg0, %arg1, %c0_i32 : i32, i32, i32
  }
  func.func @transform_5(%arg0: i32, %arg1: i32) -> (i32, i32, i32) {
    %c0_i32 = arith.constant 0 : i32
    %c0_i32_0 = arith.constant 0 : i32
    %c0_i32_1 = arith.constant 0 : i32
    return %arg0, %c0_i32, %c0_i32_0 : i32, i32, i32
  }
}

</mosaic_0001>

<llo_original>
// kernel: forward.13
$region0: #{forward.13}
  #allocation0 [shape = 'u32[]', space=smem, size = 0x4, offset = 0x4, fixed_abs, tag = 'smem constant byte address 0x4 - core index']
  #allocation1 [shape = 'u32[144,128]{1,0:T(1,128)}', space=vmem, size = 0x12000, scoped, tag = 'internal scratch']
  %s0 = inlined_call_operand.vmem [shape: bf16[2,16,192], index: 0, kind: input, shape index: {}]
  %s1 = inlined_call_operand.vmem [shape: bf16[192,320], index: 1, kind: input, shape index: {}]
  %s2 = inlined_call_operand.vmem [shape: f32[1,320], index: 2, kind: input, shape index: {}]
  %s3 = inlined_call_operand.vmem [shape: bf16[2,16,320], index: 3, kind: output, shape index: {}]
  %s4 = sld [smem:[#allocation0]]
  $region45: #{forward.13} parent=0
    _
  %s6 = ssub.s32 1, %s4
  %s7 = scalar_select 0, %s6, %s4
  loop: start=0, step=1, limit=4
  $region2: #{forward.13} parent=0 // loop_pre_header
    _
  $region3: #{forward.13} parent=0 // loop_header
    %s9 = sphi 0, %s13
    %p10 = scmp.ge.s32.totalorder %s9, 4
    %s16 = sphi 0, %s28
    %s17 = sphi 0, %s24
    %s18 = sphi 0, %s16
    %s19 = sphi 0, %s17
    %s20 = sphi 0, %s18
    %s21 = sphi 0, %s19
    %s33 = sphi 0, %s35
    %s36 = sphi 0, %s33
    %s37 = sphi 0, %s36
    %s53 = sphi 0, %s37
    %s57 = sphi 0, %s57
    %s59 = sphi 0, %s57
    %s60 = sphi 0, %s59
    %s74 = sphi 0, %s60
    %s78 = sphi 0, %s78
    %s80 = sphi 0, %s78
    %s81 = sphi 0, %s80
    %s95 = sphi 0, %s81
    %s103 = sphi 0, %s105
    %s106 = sphi 0, %s103
    %s107 = sphi 0, %s106
    %s123 = sphi 0, %s107
  $region4: #{forward.13} parent=0 // loop_header_branch
    %12 = sbr.rel (%p10) target = $region8
  $region5: #{forward.13} parent=0 // loop_body
    %s14 = ssub.s32 %s9, 1
    %s15 = ssub.s32 %s9, 2
    %s22 = sadd.s32 1, %s17
    %p23 = scmp.ge.s32.totalorder %s22, 1
    %s24 = scalar_select %p23, 0, %s22
    %s25 = sadd.s32 1, %s16
    %s26 = scalar_select %p23, %s25, %s16
    %p27 = scmp.ge.s32.totalorder %s26, 2
    %s28 = scalar_select %p27, 0, %s26
    %s29 = ssub.s32 %s16, %s28
    %s30 = ssub.s32 %s17, %s24
    %s31 = sor.u32 %s29, %s30
    %p32 = scmp.eq.s32.totalorder %s31, 0
    %s34 = sadd.s32 %s33, 1
    %s35 = scalar_select %p32, %s33, %s34
    %p38 = pneg %p32
    %p39 = scmp.eq.s32.totalorder %s9, 1
    %p40 = por %p38, %p39
    %p41 = scmp.ne.s32.totalorder %s33, %s36
    %p42 = scmp.eq.s32.totalorder %s9, 0
    %p43 = por %p41, %p42
    %p44 = scmp.ne.s32.totalorder %s33, %s36
    %p45 = scmp.eq.s32.totalorder %s14, 1
    %p46 = por %p44, %p45
    %p47 = scmp.ne.s32.totalorder %s36, %s37
    %p48 = scmp.eq.s32.totalorder %s14, 0
    %p49 = por %p47, %p48
    %p50 = scmp.ne.s32.totalorder %s36, %s37
    %p51 = scmp.eq.s32.totalorder %s15, 1
    %p52 = por %p50, %p51
    %p54 = scmp.ne.s32.totalorder %s37, %s53
    %p55 = scmp.eq.s32.totalorder %s15, 0
    %p56 = por %p54, %p55
    %s58 = sadd.s32 %s57, 1
    %p61 = scmp.eq.s32.totalorder %s9, 1
    %p62 = scmp.ne.s32.totalorder %s57, %s59
    %p63 = scmp.eq.s32.totalorder %s9, 0
    %p64 = por %p62, %p63
    %p65 = scmp.ne.s32.totalorder %s57, %s59
    %p66 = scmp.eq.s32.totalorder %s14, 1
    %p67 = por %p65, %p66
    %p68 = scmp.ne.s32.totalorder %s59, %s60
    %p69 = scmp.eq.s32.totalorder %s14, 0
    %p70 = por %p68, %p69
    %p71 = scmp.ne.s32.totalorder %s59, %s60
    %p72 = scmp.eq.s32.totalorder %s15, 1
    %p73 = por %p71, %p72
    %p75 = scmp.ne.s32.totalorder %s60, %s74
    %p76 = scmp.eq.s32.totalorder %s15, 0
    %p77 = por %p75, %p76
    %s79 = sadd.s32 %s78, 1
    %p82 = scmp.eq.s32.totalorder %s9, 1
    %p83 = scmp.ne.s32.totalorder %s78, %s80
    %p84 = scmp.eq.s32.totalorder %s9, 0
    %p85 = por %p83, %p84
    %p86 = scmp.ne.s32.totalorder %s78, %s80
    %p87 = scmp.eq.s32.totalorder %s14, 1
    %p88 = por %p86, %p87
    %p89 = scmp.ne.s32.totalorder %s80, %s81
    %p90 = scmp.eq.s32.totalorder %s14, 0
    %p91 = por %p89, %p90
    %p92 = scmp.ne.s32.totalorder %s80, %s81
    %p93 = scmp.eq.s32.totalorder %s15, 1
    %p94 = por %p92, %p93
    %p96 = scmp.ne.s32.totalorder %s81, %s95
    %p97 = scmp.eq.s32.totalorder %s15, 0
    %p98 = por %p96, %p97
    %s99 = ssub.s32 %s16, %s28
    %s100 = ssub.s32 %s17, %s24
    %s101 = sor.u32 %s99, %s100
    %p102 = scmp.eq.s32.totalorder %s101, 0
    %s104 = sadd.s32 %s103, 1
    %s105 = scalar_select %p102, %s103, %s104
    %p108 = pneg %p102
    %p109 = scmp.eq.s32.totalorder %s9, 1
    %p110 = por %p108, %p109
    %p111 = scmp.ne.s32.totalorder %s103, %s106
    %p112 = scmp.eq.s32.totalorder %s9, 0
    %p113 = por %p111, %p112
    %p114 = scmp.ne.s32.totalorder %s103, %s106
    %p115 = scmp.eq.s32.totalorder %s14, 1
    %p116 = por %p114, %p115
    %p117 = scmp.ne.s32.totalorder %s106, %s107
    %p118 = scmp.eq.s32.totalorder %s14, 0
    %p119 = por %p117, %p118
    %p120 = scmp.ne.s32.totalorder %s106, %s107
    %p121 = scmp.eq.s32.totalorder %s15, 1
    %p122 = por %p120, %p121
    %p124 = scmp.ne.s32.totalorder %s107, %s123
    %p125 = scmp.eq.s32.totalorder %s15, 0
    %p126 = por %p124, %p125
    %p127 = scmp.le.s32.totalorder 1, %s9
    %p128 = scmp.lt.s32.totalorder %s9, 3
    %p129 = pnand %p127, %p128
    %p130 = pneg %p129
    // Predicated region
    $region9: #{forward.13} parent=5 // pred_check
      _
    $region10: #{forward.13} parent=5 // pred_check_branch
      %132 = sbr.rel (%p129) target = $region12
    $region11: #{forward.13} parent=5 // pred_region
      %s133 = ssub.s32 %s9, 1
      // Predicated region
      $region13: #{forward.13} parent=11 // pred_check
        %p134 = pneg %p70
      $region14: #{forward.13} parent=11 // pred_check_branch
        %136 = sbr.rel (%p134) target = $region16
      $region15: #{forward.13} parent=11 // pred_region
        _
      $region16: #{forward.13} parent=11 // pred_fallthru
        _
      // Predicated region
      $region17: #{forward.13} parent=11 // pred_check
        %p137 = pneg %p91
      $region18: #{forward.13} parent=11 // pred_check_branch
        %139 = sbr.rel (%p137) target = $region20
      $region19: #{forward.13} parent=11 // pred_region
        _
      $region20: #{forward.13} parent=11 // pred_fallthru
        _
    $region12: #{forward.13} parent=5 // pred_fallthru
      _
    %p140 = scmp.lt.s32.totalorder %s9, 2
    // Predicated region
    $region21: #{forward.13} parent=5 // pred_check
      %p141 = pneg %p140
    $region22: #{forward.13} parent=5 // pred_check_branch
      %143 = sbr.rel (%p141) target = $region24
    $region23: #{forward.13} parent=5 // pred_region
      // Predicated region
      $region25: #{forward.13} parent=23 // pred_check
        %p144 = pneg %p43
      $region26: #{forward.13} parent=23 // pred_check_branch
        %146 = sbr.rel (%p144) target = $region28
      $region27: #{forward.13} parent=23 // pred_region
        %s147 = smul.u32 2, %s17
        %p148 = scmp.lt.s32.totalorder %s16, 1
        %s149 = scalar_select %p148, %s16, 1
        %p150 = scmp.lt.s32.totalorder %s147, 1
        %s151 = scalar_select %p150, %s147, 1
        %s152 = smul.addr %s151, 2
        %s153 = smul.addr %s149, 4
        %s154 = sadd.s32 %s152, %s153
        %s155 = smul.addr %s154, 4
        %s156 = scalar_lea.vmem %s0, %s155
        %s157 = smul.u32 2, %s17
      $region28: #{forward.13} parent=23 // pred_fallthru
        _
    $region24: #{forward.13} parent=5 // pred_fallthru
      _
    %p158 = scmp.le.s32.totalorder 1, %s9
    %p159 = scmp.lt.s32.totalorder %s9, 3
    %p160 = pnand %p158, %p159
    %p161 = pneg %p160
    // Predicated region
    $region29: #{forward.13} parent=5 // pred_check
      _
    $region30: #{forward.13} parent=5 // pred_check_branch
      %163 = sbr.rel (%p160) target = $region32
    $region31: #{forward.13} parent=5 // pred_region
      %s164 = ssub.s32 %s9, 1
      %s165 = smul.u32 2, %s19
      %p166 = scmp.lt.s32.totalorder %s18, 1
      %s167 = scalar_select %p166, %s18, 1
      %p168 = scmp.lt.s32.totalorder %s165, 1
      %s169 = scalar_select %p168, %s165, 1
      %s170 = smul.addr %s169, 2
      %s171 = smul.addr %s167, 4
      %s172 = sadd.s32 %s170, %s171
      %s173 = smul.addr %s172, 4
      %s174 = scalar_lea.vmem %s0, %s173
      %p175 = pneg %p49
      %p176 = pneg %p46
      %p177 = pneg %p70
      %p178 = pneg %p67
      %p179 = pneg %p91
      %p180 = pneg %p88
      %p181 = pneg %p119
      %p182 = pneg %p116
      %s183 = smul.u32 2, %s19
      %p184 = scmp.lt.s32.totalorder %s18, 1
      %s185 = scalar_select %p184, %s18, 1
      %p186 = scmp.lt.s32.totalorder %s183, 1
      %s187 = scalar_select %p186, %s183, 1
      %s188 = smul.addr %s187, 3
      %s189 = smul.addr %s185, 6
      %s190 = sadd.s32 %s188, %s189
      %s191 = smul.addr %s190, 4
      %s192 = scalar_lea.vmem %s3, %s191
      %s193 = smul.u32 2, %s19
      %p194 = scmp.lt.s32.totalorder %s18, 1
      %s195 = scalar_select %p194, %s18, 1
      %p196 = scmp.lt.s32.totalorder %s193, 1
      %s197 = scalar_select %p196, %s193, 1
      %s198 = smul.addr %s197, 2
      %s199 = smul.addr %s195, 4
      %s200 = sadd.s32 %s198, %s199
      %s201 = smul.addr %s200, 4
      %s202 = scalar_lea.vmem %s0, %s201
      %s203 = smul.u32 2, %s19
      %s204 = smul.u32 2, %s19
      %p205 = scmp.lt.s32.totalorder %s18, 1
      %s206 = scalar_select %p205, %s18, 1
      %p207 = scmp.lt.s32.totalorder %s204, 1
      %s208 = scalar_select %p207, %s204, 1
      %s209 = smul.addr %s208, 3
      %s210 = smul.addr %s206, 6
      %s211 = sadd.s32 %s209, %s210
      %s212 = smul.addr %s211, 4
      %s213 = scalar_lea.vmem %s3, %s212
      %s214 = smul.u32 2, %s19
      %v216 = vld [vmem:[%s202] sm:$0xff]
      %v217 = vld [vmem:[%s202 + $0x8] sm:$0xff]
      %v218 = vld [vmem:[%s1] sm:$0xff]
      %v219 = vld [vmem:[%s1 + $0x8] sm:$0xf]
      %v220 = vld [vmem:[%s1 + $0xc] sm:$0xff]
      %v221 = vld [vmem:[%s1 + $0x14] sm:$0xf]
      %v222 = vld [vmem:[%s1 + $0x18] sm:$0xff]
      %v223 = vld [vmem:[%s1 + $0x20] sm:$0xf]
      %v224 = vld [vmem:[%s1 + $0x24] sm:$0xff]
      %v225 = vld [vmem:[%s1 + $0x2c] sm:$0xf]
      %v226 = vld [vmem:[%s1 + $0x30] sm:$0xff]
      %v227 = vld [vmem:[%s1 + $0x38] sm:$0xf]
      %v228 = vld [vmem:[%s1 + $0x3c] sm:$0xff]
      %v229 = vld [vmem:[%s1 + $0x44] sm:$0xf]
      %v230 = vld [vmem:[%s1 + $0x48] sm:$0xff]
      %v231 = vld [vmem:[%s1 + $0x50] sm:$0xf]
      %v232 = vld [vmem:[%s1 + $0x54] sm:$0xff]
      %v233 = vld [vmem:[%s1 + $0x5c] sm:$0xf]
      %v234 = vld [vmem:[%s1 + $0x60] sm:$0xff]
      %v235 = vld [vmem:[%s1 + $0x68] sm:$0xf]
      %v236 = vld [vmem:[%s1 + $0x6c] sm:$0xff]
      %v237 = vld [vmem:[%s1 + $0x74] sm:$0xf]
      %v238 = vld [vmem:[%s1 + $0x78] sm:$0xff]
      %v239 = vld [vmem:[%s1 + $0x80] sm:$0xf]
      %v240 = vld [vmem:[%s1 + $0x84] sm:$0xff]
      %v241 = vld [vmem:[%s1 + $0x8c] sm:$0xf]
      %v242 = vld [vmem:[%s1 + $0x90] sm:$0xff]
      %v243 = vld [vmem:[%s1 + $0x98] sm:$0xf]
      %v244 = vld [vmem:[%s1 + $0x9c] sm:$0xff]
      %v245 = vld [vmem:[%s1 + $0xa4] sm:$0xf]
      %v246 = vld [vmem:[%s1 + $0xa8] sm:$0xff]
      %v247 = vld [vmem:[%s1 + $0xb0] sm:$0xf]
      %v248 = vld [vmem:[%s1 + $0xb4] sm:$0xff]
      %v249 = vld [vmem:[%s1 + $0xbc] sm:$0xf]
      %v250 = vld [vmem:[%s1 + $0xc0] sm:$0xff]
      %v251 = vld [vmem:[%s1 + $0xc8] sm:$0xf]
      %v252 = vld [vmem:[%s1 + $0xcc] sm:$0xff]
      %v253 = vld [vmem:[%s1 + $0xd4] sm:$0xf]
      %v254 = vld [vmem:[%s1 + $0xd8] sm:$0xff]
      %v255 = vld [vmem:[%s1 + $0xe0] sm:$0xf]
      %v256 = vld [vmem:[%s1 + $0xe4] sm:$0xff]
      %v257 = vld [vmem:[%s1 + $0xec] sm:$0xf]
      %v258 = vld [vmem:[%s1 + $0xf0] sm:$0xff]
      %v259 = vld [vmem:[%s1 + $0xf8] sm:$0xf]
      %v260 = vld [vmem:[%s1 + $0xfc] sm:$0xff]
      %v261 = vld [vmem:[%s1 + $0x104] sm:$0xf]
      %v262 = vld [vmem:[%s1 + $0x108] sm:$0xff]
      %v263 = vld [vmem:[%s1 + $0x110] sm:$0xf]
      %v264 = vld [vmem:[%s1 + $0x114] sm:$0xff]
      %v265 = vld [vmem:[%s1 + $0x11c] sm:$0xf]
      %v266 = vld [vmem:[%s2] sm:$0x7]
      %v268 = vlaneseq
      %v269 = vshrl.u32 %v268, 7
      %v270 = vsub.s32 0, %v269
      %v271 = vrot.slane %v266, %v270
      %v272 = vlaneseq
      %v273 = vshrl.u32 %v272, 7
      %v274 = vsub.s32 1, %v273
      %v275 = vrot.slane %v266, %v274
      %v276 = vlaneseq
      %v277 = vshrl.u32 %v276, 7
      %v278 = vsub.s32 2, %v277
      %v279 = vrot.slane %v266, %v278
      %v285 = vunpack.c.l.b16 %v216
      %v286 = vunpack.c.h.b16 %v216
      %v287 = vunpack.c.l.b16 %v217
      %v288 = vunpack.c.h.b16 %v217
      %v289 = vpack.c.b16 %v287, %v285
      %v290 = vpack.c.b16 %v288, %v286
      %v340 = vunpack.c.l.b16 %v218
      %v341 = vunpack.c.h.b16 %v218
      %v342 = vunpack.c.l.b16 %v219
      %v343 = vunpack.c.l.b16 %v220
      %v344 = vunpack.c.h.b16 %v220
      %v345 = vunpack.c.l.b16 %v221
      %v346 = vunpack.c.l.b16 %v222
      %v347 = vunpack.c.h.b16 %v222
      %v348 = vunpack.c.l.b16 %v223
      %v349 = vunpack.c.l.b16 %v224
      %v350 = vunpack.c.h.b16 %v224
      %v351 = vunpack.c.l.b16 %v225
      %v352 = vunpack.c.l.b16 %v226
      %v353 = vunpack.c.h.b16 %v226
      %v354 = vunpack.c.l.b16 %v227
      %v355 = vunpack.c.l.b16 %v228
      %v356 = vunpack.c.h.b16 %v228
      %v357 = vunpack.c.l.b16 %v229
      %v358 = vunpack.c.l.b16 %v230
      %v359 = vunpack.c.h.b16 %v230
      %v360 = vunpack.c.l.b16 %v231
      %v361 = vunpack.c.l.b16 %v232
      %v362 = vunpack.c.h.b16 %v232
      %v363 = vunpack.c.l.b16 %v233
      %v364 = vunpack.c.l.b16 %v234
      %v365 = vunpack.c.h.b16 %v234
      %v366 = vunpack.c.l.b16 %v235
      %v367 = vunpack.c.l.b16 %v236
      %v368 = vunpack.c.h.b16 %v236
      %v369 = vunpack.c.l.b16 %v237
      %v370 = vunpack.c.l.b16 %v238
      %v371 = vunpack.c.h.b16 %v238
      %v372 = vunpack.c.l.b16 %v239
      %v373 = vunpack.c.l.b16 %v240
      %v374 = vunpack.c.h.b16 %v240
      %v375 = vunpack.c.l.b16 %v241
      %v376 = vunpack.c.l.b16 %v242
      %v377 = vunpack.c.h.b16 %v242
      %v378 = vunpack.c.l.b16 %v243
      %v379 = vunpack.c.l.b16 %v244
      %v380 = vunpack.c.h.b16 %v244
      %v381 = vunpack.c.l.b16 %v245
      %v382 = vunpack.c.l.b16 %v246
      %v383 = vunpack.c.h.b16 %v246
      %v384 = vunpack.c.l.b16 %v247
      %v385 = vunpack.c.l.b16 %v248
      %v386 = vunpack.c.h.b16 %v248
      %v387 = vunpack.c.l.b16 %v249
      %v388 = vunpack.c.l.b16 %v250
      %v389 = vunpack.c.h.b16 %v250
      %v390 = vunpack.c.l.b16 %v251
      %v391 = vunpack.c.l.b16 %v252
      %v392 = vunpack.c.h.b16 %v252
      %v393 = vunpack.c.l.b16 %v253
      %v394 = vunpack.c.l.b16 %v254
      %v395 = vunpack.c.h.b16 %v254
      %v396 = vunpack.c.l.b16 %v255
      %v397 = vunpack.c.l.b16 %v256
      %v398 = vunpack.c.h.b16 %v256
      %v399 = vunpack.c.l.b16 %v257
      %v400 = vunpack.c.l.b16 %v258
      %v401 = vunpack.c.h.b16 %v258
      %v402 = vunpack.c.l.b16 %v259
      %v403 = vunpack.c.l.b16 %v260
      %v404 = vunpack.c.h.b16 %v260
      %v405 = vunpack.c.l.b16 %v261
      %v406 = vunpack.c.l.b16 %v262
      %v407 = vunpack.c.h.b16 %v262
      %v408 = vunpack.c.l.b16 %v263
      %v409 = vunpack.c.l.b16 %v264
      %v410 = vunpack.c.h.b16 %v264
      %v411 = vunpack.c.l.b16 %v265
      %v412 = vpack.c.b16 %v343, %v340
      %v413 = vpack.c.b16 %v344, %v341
      %v414 = vpack.c.b16 %v345, %v342
      %v415 = vpack.c.b16 %v349, %v346
      %v416 = vpack.c.b16 %v350, %v347
      %v417 = vpack.c.b16 %v351, %v348
      %v418 = vpack.c.b16 %v355, %v352
      %v419 = vpack.c.b16 %v356, %v353
      %v420 = vpack.c.b16 %v357, %v354
      %v421 = vpack.c.b16 %v361, %v358
      %v422 = vpack.c.b16 %v362, %v359
      %v423 = vpack.c.b16 %v363, %v360
      %v424 = vpack.c.b16 %v367, %v364
      %v425 = vpack.c.b16 %v368, %v365
      %v426 = vpack.c.b16 %v369, %v366
      %v427 = vpack.c.b16 %v373, %v370
      %v428 = vpack.c.b16 %v374, %v371
      %v429 = vpack.c.b16 %v375, %v372
      %v430 = vpack.c.b16 %v379, %v376
      %v431 = vpack.c.b16 %v380, %v377
      %v432 = vpack.c.b16 %v381, %v378
      %v433 = vpack.c.b16 %v385, %v382
      %v434 = vpack.c.b16 %v386, %v383
      %v435 = vpack.c.b16 %v387, %v384
      %v436 = vpack.c.b16 %v391, %v388
      %v437 = vpack.c.b16 %v392, %v389
      %v438 = vpack.c.b16 %v393, %v390
      %v439 = vpack.c.b16 %v397, %v394
      %v440 = vpack.c.b16 %v398, %v395
      %v441 = vpack.c.b16 %v399, %v396
      %v442 = vpack.c.b16 %v403, %v400
      %v443 = vpack.c.b16 %v404, %v401
      %v444 = vpack.c.b16 %v405, %v402
      %v445 = vpack.c.b16 %v409, %v406
      %v446 = vpack.c.b16 %v410, %v407
      %v447 = vpack.c.b16 %v411, %v408
      %vm484 = vcmask 523264
      %v486 = vsel %vm484, %v290, 0
      %488 = vmatprep.subr.bf16.mxu0 %v434
      %489 = vmatpush1.bf16.msra.mxu0 %v433
      %490 = vmatprep.subr.bf16.mxu0 %v431
      %491 = vmatpush1.bf16.msra.mxu0 %v430
      %492 = vmatprep.subr.bf16.mxu0 %v428
      %493 = vmatpush1.bf16.msra.mxu0 %v427
      %494 = vmatprep.subr.bf16.mxu0 %v425
      %495 = vmatpush1.bf16.msra.mxu0 %v424
      %496 = vmatprep.subr.bf16.mxu0 %v422
      %497 = vmatpush1.bf16.msra.mxu0 %v421
      %498 = vmatprep.subr.bf16.mxu0 %v419
      %499 = vmatpush1.bf16.msra.mxu0 %v418
      %500 = vmatprep.subr.bf16.mxu0 %v416
      %501 = vmatpush1.bf16.msra.mxu0 %v415
      %502 = vmatprep.subr.bf16.mxu0 %v413
      %503 = vmatpush1.bf16.msra.mxu0 %v412
      %504 = vmatprep.subr.bf16.mxu0 0
      %505 = vmatpush2.bf16.msra.mxu0 0
      %506 = vmatprep.subr.bf16.mxu0 0
      %507 = vmatpush2.bf16.msra.mxu0 0
      %508 = vmatprep.subr.bf16.mxu0 0
      %509 = vmatpush2.bf16.msra.mxu0 0
      %510 = vmatprep.subr.bf16.mxu0 0
      %511 = vmatpush2.bf16.msra.mxu0 0
      %512 = vmatprep.subr.bf16.mxu0 %v446
      %513 = vmatpush2.bf16.msra.mxu0 %v445
      %514 = vmatprep.subr.bf16.mxu0 %v443
      %515 = vmatpush2.bf16.msra.mxu0 %v442
      %516 = vmatprep.subr.bf16.mxu0 %v440
      %517 = vmatpush2.bf16.msra.mxu0 %v439
      %518 = vmatprep.subr.bf16.mxu0 %v437
      %519 = vmatpush2.bf16.msra.mxu0 %v436
      %520 = vmatprep.mubr.bf16.mxu0 %v486
      %521 = vmatmul.mubr.bf16.gmra.mxu0 %v289
      %v522 = vpop.f32.mrf.mxu0
      %v523 = vadd.f32 %v271, %v522
      %v524 = vpop.f32.mrf.mxu0
      %v525 = vadd.f32 %v275, %v524
      %v526 = vpop.f32.mrf.mxu0
      %v527 = vadd.f32 %v271, %v526
      %v528 = vpop.f32.mrf.mxu0
      %v529 = vadd.f32 %v275, %v528
      %530 = vdwg.mxu0
      %531 = vmatprep.subr.bf16.mxu0 0
      %532 = vmatpush1.bf16.msra.mxu0 %v435
      %533 = vmatprep.subr.bf16.mxu0 0
      %534 = vmatpush1.bf16.msra.mxu0 %v432
      %535 = vmatprep.subr.bf16.mxu0 0
      %536 = vmatpush1.bf16.msra.mxu0 %v429
      %537 = vmatprep.subr.bf16.mxu0 0
      %538 = vmatpush1.bf16.msra.mxu0 %v426
      %539 = vmatprep.subr.bf16.mxu0 0
      %540 = vmatpush1.bf16.msra.mxu0 %v423
      %541 = vmatprep.subr.bf16.mxu0 0
      %542 = vmatpush1.bf16.msra.mxu0 %v420
      %543 = vmatprep.subr.bf16.mxu0 0
      %544 = vmatpush1.bf16.msra.mxu0 %v417
      %545 = vmatprep.subr.bf16.mxu0 0
      %546 = vmatpush1.bf16.msra.mxu0 %v414
      %547 = vmatprep.subr.bf16.mxu0 0
      %548 = vmatpush2.bf16.msra.mxu0 0
      %549 = vmatprep.subr.bf16.mxu0 0
      %550 = vmatpush2.bf16.msra.mxu0 0
      %551 = vmatprep.subr.bf16.mxu0 0
      %552 = vmatpush2.bf16.msra.mxu0 0
      %553 = vmatprep.subr.bf16.mxu0 0
      %554 = vmatpush2.bf16.msra.mxu0 0
      %555 = vmatprep.subr.bf16.mxu0 0
      %556 = vmatpush2.bf16.msra.mxu0 %v447
      %557 = vmatprep.subr.bf16.mxu0 0
      %558 = vmatpush2.bf16.msra.mxu0 %v444
      %559 = vmatprep.subr.bf16.mxu0 0
      %560 = vmatpush2.bf16.msra.mxu0 %v441
      %561 = vmatprep.subr.bf16.mxu0 0
      %562 = vmatpush2.bf16.msra.mxu0 %v438
      %563 = vmatprep.mubr.bf16.mxu0 %v486
      %564 = vmatmul.mubr.bf16.gmra.mxu0 %v289
      %v565 = vpop.f32.mrf.mxu0
      %v566 = vadd.f32 %v279, %v565
      %v567 = vpop.f32.mrf.mxu0
      %v568 = vpop.f32.mrf.mxu0
      %v569 = vadd.f32 %v279, %v568
      %v570 = vpop.f32.mrf.mxu0
      %571 = vdwg.mxu0
      %v572 = vpack.c.bf16 %v527, %v523
      %v573 = vpack.c.bf16 %v529, %v525
      %v574 = vpack.c.bf16 %v569, %v566
      %v578 = vunpack.c.l.b16 %v572
      %v579 = vunpack.c.l.b16 %v573
      %v580 = vunpack.c.l.b16 %v574
      %v581 = vunpack.c.h.b16 %v572
      %v582 = vunpack.c.h.b16 %v573
      %v583 = vunpack.c.h.b16 %v574
      %v584 = vpack.c.b16 %v579, %v578
      %v585 = vpack.c.b16 %v580, %v580
      %v586 = vpack.c.b16 %v582, %v581
      %v587 = vpack.c.b16 %v583, %v583
      %592 = vst [vmem:[%s213] sm:$0xff] %v584
      %vm593 = vcmask 519168
      %594 = vst.msk [vmem:[%s213 + $0x8] sm:$0xf] %vm593, %v585
      %595 = vst [vmem:[%s213 + $0xc] sm:$0xff] %v586
      %596 = vst.msk [vmem:[%s213 + $0x14] sm:$0xf] %vm593, %v587
      %s597 = smul.u32 2, %s19
      %p598 = scmp.lt.s32.totalorder %s18, 1
      %s599 = scalar_select %p598, %s18, 1
      %p600 = scmp.lt.s32.totalorder %s597, 1
      %s601 = scalar_select %p600, %s597, 1
      %s602 = smul.addr %s601, 3
      %s603 = smul.addr %s599, 6
      %s604 = sadd.s32 %s602, %s603
      %s605 = smul.addr %s604, 4
      %s606 = scalar_lea.vmem %s3, %s605
      // Predicated region
      $region33: #{forward.13} parent=31 // pred_check
        %p607 = pneg %p116
      $region34: #{forward.13} parent=31 // pred_check_branch
        %609 = sbr.rel (%p607) target = $region36
      $region35: #{forward.13} parent=31 // pred_region
        %s610 = smul.u32 2, %s19
      $region36: #{forward.13} parent=31 // pred_fallthru
        _
    $region32: #{forward.13} parent=5 // pred_fallthru
      _
    %p611 = scmp.le.s32.totalorder 2, %s9
    // Predicated region
    $region37: #{forward.13} parent=5 // pred_check
      %p612 = pneg %p611
    $region38: #{forward.13} parent=5 // pred_check_branch
      %614 = sbr.rel (%p612) target = $region40
    $region39: #{forward.13} parent=5 // pred_region
      %s615 = ssub.s32 %s9, 2
      // Predicated region
      $region41: #{forward.13} parent=39 // pred_check
        %p616 = pneg %p122
      $region42: #{forward.13} parent=39 // pred_check_branch
        %618 = sbr.rel (%p616) target = $region44
      $region43: #{forward.13} parent=39 // pred_region
        %s619 = smul.u32 2, %s21
        %p620 = scmp.lt.s32.totalorder %s20, 1
        %s621 = scalar_select %p620, %s20, 1
        %p622 = scmp.lt.s32.totalorder %s619, 1
        %s623 = scalar_select %p622, %s619, 1
        %s624 = smul.addr %s623, 3
        %s625 = smul.addr %s621, 6
        %s626 = sadd.s32 %s624, %s625
        %s627 = smul.addr %s626, 4
        %s628 = scalar_lea.vmem %s3, %s627
      $region44: #{forward.13} parent=39 // pred_fallthru
        _
    $region40: #{forward.13} parent=5 // pred_fallthru
      _
  $region6: #{forward.13} parent=0 // loop_footer
    %s13 = sadd.s32 1, %s9
  $region7: #{forward.13} parent=0 // loop_footer_branch
    %8 = sbr.rel target = $region3
  $region8: #{forward.13} parent=0 // loop_exit
    _

// kernel: forward.17
$region0: #{forward.17}
  #allocation0 [shape = 'u32[]', space=smem, size = 0x4, offset = 0x4, fixed_abs, tag = 'smem constant byte address 0x4 - core index']
  #allocation1 [shape = 'u32[144,128]{1,0:T(1,128)}', space=vmem, size = 0x12000, scoped, tag = 'internal scratch']
  %s0 = inlined_call_operand.vmem [shape: bf16[2,16,320], index: 0, kind: input, shape index: {}]
  %s1 = inlined_call_operand.vmem [shape: bf16[320,640], index: 1, kind: input, shape index: {}]
  %s2 = inlined_call_operand.vmem [shape: f32[1,640], index: 2, kind: input, shape index: {}]
  %s3 = inlined_call_operand.vmem [shape: bf16[2,16,320], index: 3, kind: output, shape index: {0}]
  %s4 = inlined_call_operand.vmem [shape: bf16[2,16,320], index: 4, kind: output, shape index: {1}]
  %5 = xla_tuple %s3, %s4
  %s6 = sld [smem:[#allocation0]]
  $region53: #{forward.17} parent=0
    _
  %s8 = ssub.s32 1, %s6
  %s9 = scalar_select 0, %s8, %s6
  loop: start=0, step=1, limit=4
  $region2: #{forward.17} parent=0 // loop_pre_header
    _
  $region3: #{forward.17} parent=0 // loop_header
    %s11 = sphi 0, %s15
    %p12 = scmp.ge.s32.totalorder %s11, 4
    %s18 = sphi 0, %s30
    %s19 = sphi 0, %s26
    %s20 = sphi 0, %s18
    %s21 = sphi 0, %s19
    %s22 = sphi 0, %s20
    %s23 = sphi 0, %s21
    %s35 = sphi 0, %s37
    %s38 = sphi 0, %s35
    %s39 = sphi 0, %s38
    %s55 = sphi 0, %s39
    %s59 = sphi 0, %s59
    %s61 = sphi 0, %s59
    %s62 = sphi 0, %s61
    %s76 = sphi 0, %s62
    %s80 = sphi 0, %s80
    %s82 = sphi 0, %s80
    %s83 = sphi 0, %s82
    %s97 = sphi 0, %s83
    %s105 = sphi 0, %s107
    %s108 = sphi 0, %s105
    %s109 = sphi 0, %s108
    %s125 = sphi 0, %s109
    %s133 = sphi 0, %s135
    %s136 = sphi 0, %s133
    %s137 = sphi 0, %s136
    %s153 = sphi 0, %s137
  $region4: #{forward.17} parent=0 // loop_header_branch
    %14 = sbr.rel (%p12) target = $region8
  $region5: #{forward.17} parent=0 // loop_body
    %s16 = ssub.s32 %s11, 1
    %s17 = ssub.s32 %s11, 2
    %s24 = sadd.s32 1, %s19
    %p25 = scmp.ge.s32.totalorder %s24, 1
    %s26 = scalar_select %p25, 0, %s24
    %s27 = sadd.s32 1, %s18
    %s28 = scalar_select %p25, %s27, %s18
    %p29 = scmp.ge.s32.totalorder %s28, 2
    %s30 = scalar_select %p29, 0, %s28
    %s31 = ssub.s32 %s18, %s30
    %s32 = ssub.s32 %s19, %s26
    %s33 = sor.u32 %s31, %s32
    %p34 = scmp.eq.s32.totalorder %s33, 0
    %s36 = sadd.s32 %s35, 1
    %s37 = scalar_select %p34, %s35, %s36
    %p40 = pneg %p34
    %p41 = scmp.eq.s32.totalorder %s11, 1
    %p42 = por %p40, %p41
    %p43 = scmp.ne.s32.totalorder %s35, %s38
    %p44 = scmp.eq.s32.totalorder %s11, 0
    %p45 = por %p43, %p44
    %p46 = scmp.ne.s32.totalorder %s35, %s38
    %p47 = scmp.eq.s32.totalorder %s16, 1
    %p48 = por %p46, %p47
    %p49 = scmp.ne.s32.totalorder %s38, %s39
    %p50 = scmp.eq.s32.totalorder %s16, 0
    %p51 = por %p49, %p50
    %p52 = scmp.ne.s32.totalorder %s38, %s39
    %p53 = scmp.eq.s32.totalorder %s17, 1
    %p54 = por %p52, %p53
    %p56 = scmp.ne.s32.totalorder %s39, %s55
    %p57 = scmp.eq.s32.totalorder %s17, 0
    %p58 = por %p56, %p57
    %s60 = sadd.s32 %s59, 1
    %p63 = scmp.eq.s32.totalorder %s11, 1
    %p64 = scmp.ne.s32.totalorder %s59, %s61
    %p65 = scmp.eq.s32.totalorder %s11, 0
    %p66 = por %p64, %p65
    %p67 = scmp.ne.s32.totalorder %s59, %s61
    %p68 = scmp.eq.s32.totalorder %s16, 1
    %p69 = por %p67, %p68
    %p70 = scmp.ne.s32.totalorder %s61, %s62
    %p71 = scmp.eq.s32.totalorder %s16, 0
    %p72 = por %p70, %p71
    %p73 = scmp.ne.s32.totalorder %s61, %s62
    %p74 = scmp.eq.s32.totalorder %s17, 1
    %p75 = por %p73, %p74
    %p77 = scmp.ne.s32.totalorder %s62, %s76
    %p78 = scmp.eq.s32.totalorder %s17, 0
    %p79 = por %p77, %p78
    %s81 = sadd.s32 %s80, 1
    %p84 = scmp.eq.s32.totalorder %s11, 1
    %p85 = scmp.ne.s32.totalorder %s80, %s82
    %p86 = scmp.eq.s32.totalorder %s11, 0
    %p87 = por %p85, %p86
    %p88 = scmp.ne.s32.totalorder %s80, %s82
    %p89 = scmp.eq.s32.totalorder %s16, 1
    %p90 = por %p88, %p89
    %p91 = scmp.ne.s32.totalorder %s82, %s83
    %p92 = scmp.eq.s32.totalorder %s16, 0
    %p93 = por %p91, %p92
    %p94 = scmp.ne.s32.totalorder %s82, %s83
    %p95 = scmp.eq.s32.totalorder %s17, 1
    %p96 = por %p94, %p95
    %p98 = scmp.ne.s32.totalorder %s83, %s97
    %p99 = scmp.eq.s32.totalorder %s17, 0
    %p100 = por %p98, %p99
    %s101 = ssub.s32 %s18, %s30
    %s102 = ssub.s32 %s19, %s26
    %s103 = sor.u32 %s101, %s102
    %p104 = scmp.eq.s32.totalorder %s103, 0
    %s106 = sadd.s32 %s105, 1
    %s107 = scalar_select %p104, %s105, %s106
    %p110 = pneg %p104
    %p111 = scmp.eq.s32.totalorder %s11, 1
    %p112 = por %p110, %p111
    %p113 = scmp.ne.s32.totalorder %s105, %s108
    %p114 = scmp.eq.s32.totalorder %s11, 0
    %p115 = por %p113, %p114
    %p116 = scmp.ne.s32.totalorder %s105, %s108
    %p117 = scmp.eq.s32.totalorder %s16, 1
    %p118 = por %p116, %p117
    %p119 = scmp.ne.s32.totalorder %s108, %s109
    %p120 = scmp.eq.s32.totalorder %s16, 0
    %p121 = por %p119, %p120
    %p122 = scmp.ne.s32.totalorder %s108, %s109
    %p123 = scmp.eq.s32.totalorder %s17, 1
    %p124 = por %p122, %p123
    %p126 = scmp.ne.s32.totalorder %s109, %s125
    %p127 = scmp.eq.s32.totalorder %s17, 0
    %p128 = por %p126, %p127
    %s129 = ssub.s32 %s18, %s30
    %s130 = ssub.s32 %s19, %s26
    %s131 = sor.u32 %s129, %s130
    %p132 = scmp.eq.s32.totalorder %s131, 0
    %s134 = sadd.s32 %s133, 1
    %s135 = scalar_select %p132, %s133, %s134
    %p138 = pneg %p132
    %p139 = scmp.eq.s32.totalorder %s11, 1
    %p140 = por %p138, %p139
    %p141 = scmp.ne.s32.totalorder %s133, %s136
    %p142 = scmp.eq.s32.totalorder %s11, 0
    %p143 = por %p141, %p142
    %p144 = scmp.ne.s32.totalorder %s133, %s136
    %p145 = scmp.eq.s32.totalorder %s16, 1
    %p146 = por %p144, %p145
    %p147 = scmp.ne.s32.totalorder %s136, %s137
    %p148 = scmp.eq.s32.totalorder %s16, 0
    %p149 = por %p147, %p148
    %p150 = scmp.ne.s32.totalorder %s136, %s137
    %p151 = scmp.eq.s32.totalorder %s17, 1
    %p152 = por %p150, %p151
    %p154 = scmp.ne.s32.totalorder %s137, %s153
    %p155 = scmp.eq.s32.totalorder %s17, 0
    %p156 = por %p154, %p155
    %p157 = scmp.le.s32.totalorder 1, %s11
    %p158 = scmp.lt.s32.totalorder %s11, 3
    %p159 = pnand %p157, %p158
    %p160 = pneg %p159
    // Predicated region
    $region9: #{forward.17} parent=5 // pred_check
      _
    $region10: #{forward.17} parent=5 // pred_check_branch
      %162 = sbr.rel (%p159) target = $region12
    $region11: #{forward.17} parent=5 // pred_region
      %s163 = ssub.s32 %s11, 1
      // Predicated region
      $region13: #{forward.17} parent=11 // pred_check
        %p164 = pneg %p72
      $region14: #{forward.17} parent=11 // pred_check_branch
        %166 = sbr.rel (%p164) target = $region16
      $region15: #{forward.17} parent=11 // pred_region
        _
      $region16: #{forward.17} parent=11 // pred_fallthru
        _
      // Predicated region
      $region17: #{forward.17} parent=11 // pred_check
        %p167 = pneg %p93
      $region18: #{forward.17} parent=11 // pred_check_branch
        %169 = sbr.rel (%p167) target = $region20
      $region19: #{forward.17} parent=11 // pred_region
        _
      $region20: #{forward.17} parent=11 // pred_fallthru
        _
    $region12: #{forward.17} parent=5 // pred_fallthru
      _
    %p170 = scmp.lt.s32.totalorder %s11, 2
    // Predicated region
    $region21: #{forward.17} parent=5 // pred_check
      %p171 = pneg %p170
    $region22: #{forward.17} parent=5 // pred_check_branch
      %173 = sbr.rel (%p171) target = $region24
    $region23: #{forward.17} parent=5 // pred_region
      // Predicated region
      $region25: #{forward.17} parent=23 // pred_check
        %p174 = pneg %p45
      $region26: #{forward.17} parent=23 // pred_check_branch
        %176 = sbr.rel (%p174) target = $region28
      $region27: #{forward.17} parent=23 // pred_region
        %s177 = smul.u32 2, %s19
        %p178 = scmp.lt.s32.totalorder %s18, 1
        %s179 = scalar_select %p178, %s18, 1
        %p180 = scmp.lt.s32.totalorder %s177, 1
        %s181 = scalar_select %p180, %s177, 1
        %s182 = smul.addr %s181, 3
        %s183 = smul.addr %s179, 6
        %s184 = sadd.s32 %s182, %s183
        %s185 = smul.addr %s184, 4
        %s186 = scalar_lea.vmem %s0, %s185
        %s187 = smul.u32 2, %s19
      $region28: #{forward.17} parent=23 // pred_fallthru
        _
    $region24: #{forward.17} parent=5 // pred_fallthru
      _
    %p188 = scmp.le.s32.totalorder 1, %s11
    %p189 = scmp.lt.s32.totalorder %s11, 3
    %p190 = pnand %p188, %p189
    %p191 = pneg %p190
    // Predicated region
    $region29: #{forward.17} parent=5 // pred_check
      _
    $region30: #{forward.17} parent=5 // pred_check_branch
      %193 = sbr.rel (%p190) target = $region32
    $region31: #{forward.17} parent=5 // pred_region
      %s194 = ssub.s32 %s11, 1
      %s195 = smul.u32 2, %s21
      %p196 = scmp.lt.s32.totalorder %s20, 1
      %s197 = scalar_select %p196, %s20, 1
      %p198 = scmp.lt.s32.totalorder %s195, 1
      %s199 = scalar_select %p198, %s195, 1
      %s200 = smul.addr %s199, 3
      %s201 = smul.addr %s197, 6
      %s202 = sadd.s32 %s200, %s201
      %s203 = smul.addr %s202, 4
      %s204 = scalar_lea.vmem %s0, %s203
      %p205 = pneg %p51
      %p206 = pneg %p48
      %p207 = pneg %p72
      %p208 = pneg %p69
      %p209 = pneg %p93
      %p210 = pneg %p90
      %p211 = pneg %p121
      %p212 = pneg %p118
      %s213 = smul.u32 2, %s21
      %p214 = scmp.lt.s32.totalorder %s20, 1
      %s215 = scalar_select %p214, %s20, 1
      %p216 = scmp.lt.s32.totalorder %s213, 1
      %s217 = scalar_select %p216, %s213, 1
      %s218 = smul.addr %s217, 3
      %s219 = smul.addr %s215, 6
      %s220 = sadd.s32 %s218, %s219
      %s221 = smul.addr %s220, 4
      %s222 = scalar_lea.vmem %s3, %s221
      %p223 = pneg %p149
      %p224 = pneg %p146
      %s225 = smul.u32 2, %s21
      %p226 = scmp.lt.s32.totalorder %s20, 1
      %s227 = scalar_select %p226, %s20, 1
      %p228 = scmp.lt.s32.totalorder %s225, 1
      %s229 = scalar_select %p228, %s225, 1
      %s230 = smul.addr %s229, 3
      %s231 = smul.addr %s227, 6
      %s232 = sadd.s32 %s230, %s231
      %s233 = smul.addr %s232, 4
      %s234 = scalar_lea.vmem %s4, %s233
      %s235 = smul.u32 2, %s21
      %p236 = scmp.lt.s32.totalorder %s20, 1
      %s237 = scalar_select %p236, %s20, 1
      %p238 = scmp.lt.s32.totalorder %s235, 1
      %s239 = scalar_select %p238, %s235, 1
      %s240 = smul.addr %s239, 3
      %s241 = smul.addr %s237, 6
      %s242 = sadd.s32 %s240, %s241
      %s243 = smul.addr %s242, 4
      %s244 = scalar_lea.vmem %s0, %s243
      %s245 = smul.u32 2, %s21
      %s246 = smul.u32 2, %s21
      %p247 = scmp.lt.s32.totalorder %s20, 1
      %s248 = scalar_select %p247, %s20, 1
      %p249 = scmp.lt.s32.totalorder %s246, 1
      %s250 = scalar_select %p249, %s246, 1
      %s251 = smul.addr %s250, 3
      %s252 = smul.addr %s248, 6
      %s253 = sadd.s32 %s251, %s252
      %s254 = smul.addr %s253, 4
      %s255 = scalar_lea.vmem %s3, %s254
      %s256 = smul.u32 2, %s21
      %s257 = smul.u32 2, %s21
      %p258 = scmp.lt.s32.totalorder %s20, 1
      %s259 = scalar_select %p258, %s20, 1
      %p260 = scmp.lt.s32.totalorder %s257, 1
      %s261 = scalar_select %p260, %s257, 1
      %s262 = smul.addr %s261, 3
      %s263 = smul.addr %s259, 6
      %s264 = sadd.s32 %s262, %s263
      %s265 = smul.addr %s264, 4
      %s266 = scalar_lea.vmem %s4, %s265
      %s267 = smul.u32 2, %s21
      %v269 = vld [vmem:[%s244] sm:$0xff]
      %v270 = vld [vmem:[%s244 + $0x8] sm:$0xf]
      %v271 = vld [vmem:[%s244 + $0xc] sm:$0xff]
      %v272 = vld [vmem:[%s244 + $0x14] sm:$0xf]
      %v273 = vld [vmem:[%s1] sm:$0xff]
      %v274 = vld [vmem:[%s1 + $0x8] sm:$0xff]
      %v275 = vld [vmem:[%s1 + $0x10] sm:$0xf]
      %v276 = vld [vmem:[%s1 + $0x14] sm:$0xff]
      %v277 = vld [vmem:[%s1 + $0x1c] sm:$0xff]
      %v278 = vld [vmem:[%s1 + $0x24] sm:$0xf]
      %v279 = vld [vmem:[%s1 + $0x28] sm:$0xff]
      %v280 = vld [vmem:[%s1 + $0x30] sm:$0xff]
      %v281 = vld [vmem:[%s1 + $0x38] sm:$0xf]
      %v282 = vld [vmem:[%s1 + $0x3c] sm:$0xff]
      %v283 = vld [vmem:[%s1 + $0x44] sm:$0xff]
      %v284 = vld [vmem:[%s1 + $0x4c] sm:$0xf]
      %v285 = vld [vmem:[%s1 + $0x50] sm:$0xff]
      %v286 = vld [vmem:[%s1 + $0x58] sm:$0xff]
      %v287 = vld [vmem:[%s1 + $0x60] sm:$0xf]
      %v288 = vld [vmem:[%s1 + $0x64] sm:$0xff]
      %v289 = vld [vmem:[%s1 + $0x6c] sm:$0xff]
      %v290 = vld [vmem:[%s1 + $0x74] sm:$0xf]
      %v291 = vld [vmem:[%s1 + $0x78] sm:$0xff]
      %v292 = vld [vmem:[%s1 + $0x80] sm:$0xff]
      %v293 = vld [vmem:[%s1 + $0x88] sm:$0xf]
      %v294 = vld [vmem:[%s1 + $0x8c] sm:$0xff]
      %v295 = vld [vmem:[%s1 + $0x94] sm:$0xff]
      %v296 = vld [vmem:[%s1 + $0x9c] sm:$0xf]
      %v297 = vld [vmem:[%s1 + $0xa0] sm:$0xff]
      %v298 = vld [vmem:[%s1 + $0xa8] sm:$0xff]
      %v299 = vld [vmem:[%s1 + $0xb0] sm:$0xf]
      %v300 = vld [vmem:[%s1 + $0xb4] sm:$0xff]
      %v301 = vld [vmem:[%s1 + $0xbc] sm:$0xff]
      %v302 = vld [vmem:[%s1 + $0xc4] sm:$0xf]
      %v303 = vld [vmem:[%s1 + $0xc8] sm:$0xff]
      %v304 = vld [vmem:[%s1 + $0xd0] sm:$0xff]
      %v305 = vld [vmem:[%s1 + $0xd8] sm:$0xf]
      %v306 = vld [vmem:[%s1 + $0xdc] sm:$0xff]
      %v307 = vld [vmem:[%s1 + $0xe4] sm:$0xff]
      %v308 = vld [vmem:[%s1 + $0xec] sm:$0xf]
      %v309 = vld [vmem:[%s1 + $0xf0] sm:$0xff]
      %v310 = vld [vmem:[%s1 + $0xf8] sm:$0xff]
      %v311 = vld [vmem:[%s1 + $0x100] sm:$0xf]
      %v312 = vld [vmem:[%s1 + $0x104] sm:$0xff]
      %v313 = vld [vmem:[%s1 + $0x10c] sm:$0xff]
      %v314 = vld [vmem:[%s1 + $0x114] sm:$0xf]
      %v315 = vld [vmem:[%s1 + $0x118] sm:$0xff]
      %v316 = vld [vmem:[%s1 + $0x120] sm:$0xff]
      %v317 = vld [vmem:[%s1 + $0x128] sm:$0xf]
      %v318 = vld [vmem:[%s1 + $0x12c] sm:$0xff]
      %v319 = vld [vmem:[%s1 + $0x134] sm:$0xff]
      %v320 = vld [vmem:[%s1 + $0x13c] sm:$0xf]
      %v321 = vld [vmem:[%s1 + $0x140] sm:$0xff]
      %v322 = vld [vmem:[%s1 + $0x148] sm:$0xff]
      %v323 = vld [vmem:[%s1 + $0x150] sm:$0xf]
      %v324 = vld [vmem:[%s1 + $0x154] sm:$0xff]
      %v325 = vld [vmem:[%s1 + $0x15c] sm:$0xff]
      %v326 = vld [vmem:[%s1 + $0x164] sm:$0xf]
      %v327 = vld [vmem:[%s1 + $0x168] sm:$0xff]
      %v328 = vld [vmem:[%s1 + $0x170] sm:$0xff]
      %v329 = vld [vmem:[%s1 + $0x178] sm:$0xf]
      %v330 = vld [vmem:[%s1 + $0x17c] sm:$0xff]
      %v331 = vld [vmem:[%s1 + $0x184] sm:$0xff]
      %v332 = vld [vmem:[%s1 + $0x18c] sm:$0xf]
      %v333 = vld [vmem:[%s1 + $0x190] sm:$0xff]
      %v334 = vld [vmem:[%s1 + $0x198] sm:$0xff]
      %v335 = vld [vmem:[%s1 + $0x1a0] sm:$0xf]
      %v336 = vld [vmem:[%s1 + $0x1a4] sm:$0xff]
      %v337 = vld [vmem:[%s1 + $0x1ac] sm:$0xff]
      %v338 = vld [vmem:[%s1 + $0x1b4] sm:$0xf]
      %v339 = vld [vmem:[%s1 + $0x1b8] sm:$0xff]
      %v340 = vld [vmem:[%s1 + $0x1c0] sm:$0xff]
      %v341 = vld [vmem:[%s1 + $0x1c8] sm:$0xf]
      %v342 = vld [vmem:[%s1 + $0x1cc] sm:$0xff]
      %v343 = vld [vmem:[%s1 + $0x1d4] sm:$0xff]
      %v344 = vld [vmem:[%s1 + $0x1dc] sm:$0xf]
      %v345 = vld [vmem:[%s1 + $0x1e0] sm:$0xff]
      %v346 = vld [vmem:[%s1 + $0x1e8] sm:$0xff]
      %v347 = vld [vmem:[%s1 + $0x1f0] sm:$0xf]
      %v348 = vld [vmem:[%s1 + $0x1f4] sm:$0xff]
      %v349 = vld [vmem:[%s1 + $0x1fc] sm:$0xff]
      %v350 = vld [vmem:[%s1 + $0x204] sm:$0xf]
      %v351 = vld [vmem:[%s1 + $0x208] sm:$0xff]
      %v352 = vld [vmem:[%s1 + $0x210] sm:$0xff]
      %v353 = vld [vmem:[%s1 + $0x218] sm:$0xf]
      %v354 = vld [vmem:[%s1 + $0x21c] sm:$0xff]
      %v355 = vld [vmem:[%s1 + $0x224] sm:$0xff]
      %v356 = vld [vmem:[%s1 + $0x22c] sm:$0xf]
      %v357 = vld [vmem:[%s1 + $0x230] sm:$0xff]
      %v358 = vld [vmem:[%s1 + $0x238] sm:$0xff]
      %v359 = vld [vmem:[%s1 + $0x240] sm:$0xf]
      %v360 = vld [vmem:[%s1 + $0x244] sm:$0xff]
      %v361 = vld [vmem:[%s1 + $0x24c] sm:$0xff]
      %v362 = vld [vmem:[%s1 + $0x254] sm:$0xf]
      %v363 = vld [vmem:[%s1 + $0x258] sm:$0xff]
      %v364 = vld [vmem:[%s1 + $0x260] sm:$0xff]
      %v365 = vld [vmem:[%s1 + $0x268] sm:$0xf]
      %v366 = vld [vmem:[%s1 + $0x26c] sm:$0xff]
      %v367 = vld [vmem:[%s1 + $0x274] sm:$0xff]
      %v368 = vld [vmem:[%s1 + $0x27c] sm:$0xf]
      %v369 = vld [vmem:[%s1 + $0x280] sm:$0xff]
      %v370 = vld [vmem:[%s1 + $0x288] sm:$0xff]
      %v371 = vld [vmem:[%s1 + $0x290] sm:$0xf]
      %v372 = vld [vmem:[%s1 + $0x294] sm:$0xff]
      %v373 = vld [vmem:[%s1 + $0x29c] sm:$0xff]
      %v374 = vld [vmem:[%s1 + $0x2a4] sm:$0xf]
      %v375 = vld [vmem:[%s1 + $0x2a8] sm:$0xff]
      %v376 = vld [vmem:[%s1 + $0x2b0] sm:$0xff]
      %v377 = vld [vmem:[%s1 + $0x2b8] sm:$0xf]
      %v378 = vld [vmem:[%s1 + $0x2bc] sm:$0xff]
      %v379 = vld [vmem:[%s1 + $0x2c4] sm:$0xff]
      %v380 = vld [vmem:[%s1 + $0x2cc] sm:$0xf]
      %v381 = vld [vmem:[%s1 + $0x2d0] sm:$0xff]
      %v382 = vld [vmem:[%s1 + $0x2d8] sm:$0xff]
      %v383 = vld [vmem:[%s1 + $0x2e0] sm:$0xf]
      %v384 = vld [vmem:[%s1 + $0x2e4] sm:$0xff]
      %v385 = vld [vmem:[%s1 + $0x2ec] sm:$0xff]
      %v386 = vld [vmem:[%s1 + $0x2f4] sm:$0xf]
      %v387 = vld [vmem:[%s1 + $0x2f8] sm:$0xff]
      %v388 = vld [vmem:[%s1 + $0x300] sm:$0xff]
      %v389 = vld [vmem:[%s1 + $0x308] sm:$0xf]
      %v390 = vld [vmem:[%s1 + $0x30c] sm:$0xff]
      %v391 = vld [vmem:[%s1 + $0x314] sm:$0xff]
      %v392 = vld [vmem:[%s1 + $0x31c] sm:$0xf]
      %v393 = vld [vmem:[%s2] sm:$0x1f]
      %v395 = vlaneseq
      %v396 = vshrl.u32 %v395, 7
      %v397 = vsub.s32 0, %v396
      %v398 = vrot.slane %v393, %v397
      %v399 = vlaneseq
      %v400 = vshrl.u32 %v399, 7
      %v401 = vsub.s32 1, %v400
      %v402 = vrot.slane %v393, %v401
      %v403 = vlaneseq
      %v404 = vshrl.u32 %v403, 7
      %v405 = vsub.s32 2, %v404
      %v406 = vrot.slane %v393, %v405
      %v407 = vlaneseq
      %v408 = vshrl.u32 %v407, 7
      %v409 = vsub.s32 3, %v408
      %v410 = vrot.slane %v393, %v409
      %v411 = vlaneseq
      %v412 = vshrl.u32 %v411, 7
      %v413 = vsub.s32 4, %v412
      %v414 = vrot.slane %v393, %v413
      %v424 = vunpack.c.l.b16 %v269
      %v425 = vunpack.c.h.b16 %v269
      %v426 = vunpack.c.l.b16 %v270
      %v427 = vunpack.c.l.b16 %v271
      %v428 = vunpack.c.h.b16 %v271
      %v429 = vunpack.c.l.b16 %v272
      %v430 = vpack.c.b16 %v427, %v424
      %v431 = vpack.c.b16 %v428, %v425
      %v432 = vpack.c.b16 %v429, %v426
      %v555 = vunpack.c.l.b16 %v273
      %v556 = vunpack.c.h.b16 %v273
      %v557 = vunpack.c.l.b16 %v274
      %v558 = vunpack.c.h.b16 %v274
      %v559 = vunpack.c.l.b16 %v275
      %v560 = vunpack.c.l.b16 %v276
      %v561 = vunpack.c.h.b16 %v276
      %v562 = vunpack.c.l.b16 %v277
      %v563 = vunpack.c.h.b16 %v277
      %v564 = vunpack.c.l.b16 %v278
      %v565 = vunpack.c.l.b16 %v279
      %v566 = vunpack.c.h.b16 %v279
      %v567 = vunpack.c.l.b16 %v280
      %v568 = vunpack.c.h.b16 %v280
      %v569 = vunpack.c.l.b16 %v281
      %v570 = vunpack.c.l.b16 %v282
      %v571 = vunpack.c.h.b16 %v282
      %v572 = vunpack.c.l.b16 %v283
      %v573 = vunpack.c.h.b16 %v283
      %v574 = vunpack.c.l.b16 %v284
      %v575 = vunpack.c.l.b16 %v285
      %v576 = vunpack.c.h.b16 %v285
      %v577 = vunpack.c.l.b16 %v286
      %v578 = vunpack.c.h.b16 %v286
      %v579 = vunpack.c.l.b16 %v287
      %v580 = vunpack.c.l.b16 %v288
      %v581 = vunpack.c.h.b16 %v288
      %v582 = vunpack.c.l.b16 %v289
      %v583 = vunpack.c.h.b16 %v289
      %v584 = vunpack.c.l.b16 %v290
      %v585 = vunpack.c.l.b16 %v291
      %v586 = vunpack.c.h.b16 %v291
      %v587 = vunpack.c.l.b16 %v292
      %v588 = vunpack.c.h.b16 %v292
      %v589 = vunpack.c.l.b16 %v293
      %v590 = vunpack.c.l.b16 %v294
      %v591 = vunpack.c.h.b16 %v294
      %v592 = vunpack.c.l.b16 %v295
      %v593 = vunpack.c.h.b16 %v295
      %v594 = vunpack.c.l.b16 %v296
      %v595 = vunpack.c.l.b16 %v297
      %v596 = vunpack.c.h.b16 %v297
      %v597 = vunpack.c.l.b16 %v298
      %v598 = vunpack.c.h.b16 %v298
      %v599 = vunpack.c.l.b16 %v299
      %v600 = vunpack.c.l.b16 %v300
      %v601 = vunpack.c.h.b16 %v300
      %v602 = vunpack.c.l.b16 %v301
      %v603 = vunpack.c.h.b16 %v301
      %v604 = vunpack.c.l.b16 %v302
      %v605 = vunpack.c.l.b16 %v303
      %v606 = vunpack.c.h.b16 %v303
      %v607 = vunpack.c.l.b16 %v304
      %v608 = vunpack.c.h.b16 %v304
      %v609 = vunpack.c.l.b16 %v305
      %v610 = vunpack.c.l.b16 %v306
      %v611 = vunpack.c.h.b16 %v306
      %v612 = vunpack.c.l.b16 %v307
      %v613 = vunpack.c.h.b16 %v307
      %v614 = vunpack.c.l.b16 %v308
      %v615 = vunpack.c.l.b16 %v309
      %v616 = vunpack.c.h.b16 %v309
      %v617 = vunpack.c.l.b16 %v310
      %v618 = vunpack.c.h.b16 %v310
      %v619 = vunpack.c.l.b16 %v311
      %v620 = vunpack.c.l.b16 %v312
      %v621 = vunpack.c.h.b16 %v312
      %v622 = vunpack.c.l.b16 %v313
      %v623 = vunpack.c.h.b16 %v313
      %v624 = vunpack.c.l.b16 %v314
      %v625 = vunpack.c.l.b16 %v315
      %v626 = vunpack.c.h.b16 %v315
      %v627 = vunpack.c.l.b16 %v316
      %v628 = vunpack.c.h.b16 %v316
      %v629 = vunpack.c.l.b16 %v317
      %v630 = vunpack.c.l.b16 %v318
      %v631 = vunpack.c.h.b16 %v318
      %v632 = vunpack.c.l.b16 %v319
      %v633 = vunpack.c.h.b16 %v319
      %v634 = vunpack.c.l.b16 %v320
      %v635 = vunpack.c.l.b16 %v321
      %v636 = vunpack.c.h.b16 %v321
      %v637 = vunpack.c.l.b16 %v322
      %v638 = vunpack.c.h.b16 %v322
      %v639 = vunpack.c.l.b16 %v323
      %v640 = vunpack.c.l.b16 %v324
      %v641 = vunpack.c.h.b16 %v324
      %v642 = vunpack.c.l.b16 %v325
      %v643 = vunpack.c.h.b16 %v325
      %v644 = vunpack.c.l.b16 %v326
      %v645 = vunpack.c.l.b16 %v327
      %v646 = vunpack.c.h.b16 %v327
      %v647 = vunpack.c.l.b16 %v328
      %v648 = vunpack.c.h.b16 %v328
      %v649 = vunpack.c.l.b16 %v329
      %v650 = vunpack.c.l.b16 %v330
      %v651 = vunpack.c.h.b16 %v330
      %v652 = vunpack.c.l.b16 %v331
      %v653 = vunpack.c.h.b16 %v331
      %v654 = vunpack.c.l.b16 %v332
      %v655 = vunpack.c.l.b16 %v333
      %v656 = vunpack.c.h.b16 %v333
      %v657 = vunpack.c.l.b16 %v334
      %v658 = vunpack.c.h.b16 %v334
      %v659 = vunpack.c.l.b16 %v335
      %v660 = vunpack.c.l.b16 %v336
      %v661 = vunpack.c.h.b16 %v336
      %v662 = vunpack.c.l.b16 %v337
      %v663 = vunpack.c.h.b16 %v337
      %v664 = vunpack.c.l.b16 %v338
      %v665 = vunpack.c.l.b16 %v339
      %v666 = vunpack.c.h.b16 %v339
      %v667 = vunpack.c.l.b16 %v340
      %v668 = vunpack.c.h.b16 %v340
      %v669 = vunpack.c.l.b16 %v341
      %v670 = vunpack.c.l.b16 %v342
      %v671 = vunpack.c.h.b16 %v342
      %v672 = vunpack.c.l.b16 %v343
      %v673 = vunpack.c.h.b16 %v343
      %v674 = vunpack.c.l.b16 %v344
      %v675 = vunpack.c.l.b16 %v345
      %v676 = vunpack.c.h.b16 %v345
      %v677 = vunpack.c.l.b16 %v346
      %v678 = vunpack.c.h.b16 %v346
      %v679 = vunpack.c.l.b16 %v347
      %v680 = vunpack.c.l.b16 %v348
      %v681 = vunpack.c.h.b16 %v348
      %v682 = vunpack.c.l.b16 %v349
      %v683 = vunpack.c.h.b16 %v349
      %v684 = vunpack.c.l.b16 %v350
      %v685 = vunpack.c.l.b16 %v351
      %v686 = vunpack.c.h.b16 %v351
      %v687 = vunpack.c.l.b16 %v352
      %v688 = vunpack.c.h.b16 %v352
      %v689 = vunpack.c.l.b16 %v353
      %v690 = vunpack.c.l.b16 %v354
      %v691 = vunpack.c.h.b16 %v354
      %v692 = vunpack.c.l.b16 %v355
      %v693 = vunpack.c.h.b16 %v355
      %v694 = vunpack.c.l.b16 %v356
      %v695 = vunpack.c.l.b16 %v357
      %v696 = vunpack.c.h.b16 %v357
      %v697 = vunpack.c.l.b16 %v358
      %v698 = vunpack.c.h.b16 %v358
      %v699 = vunpack.c.l.b16 %v359
      %v700 = vunpack.c.l.b16 %v360
      %v701 = vunpack.c.h.b16 %v360
      %v702 = vunpack.c.l.b16 %v361
      %v703 = vunpack.c.h.b16 %v361
      %v704 = vunpack.c.l.b16 %v362
      %v705 = vunpack.c.l.b16 %v363
      %v706 = vunpack.c.h.b16 %v363
      %v707 = vunpack.c.l.b16 %v364
      %v708 = vunpack.c.h.b16 %v364
      %v709 = vunpack.c.l.b16 %v365
      %v710 = vunpack.c.l.b16 %v366
      %v711 = vunpack.c.h.b16 %v366
      %v712 = vunpack.c.l.b16 %v367
      %v713 = vunpack.c.h.b16 %v367
      %v714 = vunpack.c.l.b16 %v368
      %v715 = vunpack.c.l.b16 %v369
      %v716 = vunpack.c.h.b16 %v369
      %v717 = vunpack.c.l.b16 %v370
      %v718 = vunpack.c.h.b16 %v370
      %v719 = vunpack.c.l.b16 %v371
      %v720 = vunpack.c.l.b16 %v372
      %v721 = vunpack.c.h.b16 %v372
      %v722 = vunpack.c.l.b16 %v373
      %v723 = vunpack.c.h.b16 %v373
      %v724 = vunpack.c.l.b16 %v374
      %v725 = vunpack.c.l.b16 %v375
      %v726 = vunpack.c.h.b16 %v375
      %v727 = vunpack.c.l.b16 %v376
      %v728 = vunpack.c.h.b16 %v376
      %v729 = vunpack.c.l.b16 %v377
      %v730 = vunpack.c.l.b16 %v378
      %v731 = vunpack.c.h.b16 %v378
      %v732 = vunpack.c.l.b16 %v379
      %v733 = vunpack.c.h.b16 %v379
      %v734 = vunpack.c.l.b16 %v380
      %v735 = vunpack.c.l.b16 %v381
      %v736 = vunpack.c.h.b16 %v381
      %v737 = vunpack.c.l.b16 %v382
      %v738 = vunpack.c.h.b16 %v382
      %v739 = vunpack.c.l.b16 %v383
      %v740 = vunpack.c.l.b16 %v384
      %v741 = vunpack.c.h.b16 %v384
      %v742 = vunpack.c.l.b16 %v385
      %v743 = vunpack.c.h.b16 %v385
      %v744 = vunpack.c.l.b16 %v386
      %v745 = vunpack.c.l.b16 %v387
      %v746 = vunpack.c.h.b16 %v387
      %v747 = vunpack.c.l.b16 %v388
      %v748 = vunpack.c.h.b16 %v388
      %v749 = vunpack.c.l.b16 %v389
      %v750 = vunpack.c.l.b16 %v390
      %v751 = vunpack.c.h.b16 %v390
      %v752 = vunpack.c.l.b16 %v391
      %v753 = vunpack.c.h.b16 %v391
      %v754 = vunpack.c.l.b16 %v392
      %v755 = vpack.c.b16 %v560, %v555
      %v756 = vpack.c.b16 %v561, %v556
      %v757 = vpack.c.b16 %v562, %v557
      %v758 = vpack.c.b16 %v563, %v558
      %v759 = vpack.c.b16 %v564, %v559
      %v760 = vpack.c.b16 %v570, %v565
      %v761 = vpack.c.b16 %v571, %v566
      %v762 = vpack.c.b16 %v572, %v567
      %v763 = vpack.c.b16 %v573, %v568
      %v764 = vpack.c.b16 %v574, %v569
      %v765 = vpack.c.b16 %v580, %v575
      %v766 = vpack.c.b16 %v581, %v576
      %v767 = vpack.c.b16 %v582, %v577
      %v768 = vpack.c.b16 %v583, %v578
      %v769 = vpack.c.b16 %v584, %v579
      %v770 = vpack.c.b16 %v590, %v585
      %v771 = vpack.c.b16 %v591, %v586
      %v772 = vpack.c.b16 %v592, %v587
      %v773 = vpack.c.b16 %v593, %v588
      %v774 = vpack.c.b16 %v594, %v589
      %v775 = vpack.c.b16 %v600, %v595
      %v776 = vpack.c.b16 %v601, %v596
      %v777 = vpack.c.b16 %v602, %v597
      %v778 = vpack.c.b16 %v603, %v598
      %v779 = vpack.c.b16 %v604, %v599
      %v780 = vpack.c.b16 %v610, %v605
      %v781 = vpack.c.b16 %v611, %v606
      %v782 = vpack.c.b16 %v612, %v607
      %v783 = vpack.c.b16 %v613, %v608
      %v784 = vpack.c.b16 %v614, %v609
      %v785 = vpack.c.b16 %v620, %v615
      %v786 = vpack.c.b16 %v621, %v616
      %v787 = vpack.c.b16 %v622, %v617
      %v788 = vpack.c.b16 %v623, %v618
      %v789 = vpack.c.b16 %v624, %v619
      %v790 = vpack.c.b16 %v630, %v625
      %v791 = vpack.c.b16 %v631, %v626
      %v792 = vpack.c.b16 %v632, %v627
      %v793 = vpack.c.b16 %v633, %v628
      %v794 = vpack.c.b16 %v634, %v629
      %v795 = vpack.c.b16 %v640, %v635
      %v796 = vpack.c.b16 %v641, %v636
      %v797 = vpack.c.b16 %v642, %v637
      %v798 = vpack.c.b16 %v643, %v638
      %v799 = vpack.c.b16 %v644, %v639
      %v800 = vpack.c.b16 %v650, %v645
      %v801 = vpack.c.b16 %v651, %v646
      %v802 = vpack.c.b16 %v652, %v647
      %v803 = vpack.c.b16 %v653, %v648
      %v804 = vpack.c.b16 %v654, %v649
      %v805 = vpack.c.b16 %v660, %v655
      %v806 = vpack.c.b16 %v661, %v656
      %v807 = vpack.c.b16 %v662, %v657
      %v808 = vpack.c.b16 %v663, %v658
      %v809 = vpack.c.b16 %v664, %v659
      %v810 = vpack.c.b16 %v670, %v665
      %v811 = vpack.c.b16 %v671, %v666
      %v812 = vpack.c.b16 %v672, %v667
      %v813 = vpack.c.b16 %v673, %v668
      %v814 = vpack.c.b16 %v674, %v669
      %v815 = vpack.c.b16 %v680, %v675
      %v816 = vpack.c.b16 %v681, %v676
      %v817 = vpack.c.b16 %v682, %v677
      %v818 = vpack.c.b16 %v683, %v678
      %v819 = vpack.c.b16 %v684, %v679
      %v820 = vpack.c.b16 %v690, %v685
      %v821 = vpack.c.b16 %v691, %v686
      %v822 = vpack.c.b16 %v692, %v687
      %v823 = vpack.c.b16 %v693, %v688
      %v824 = vpack.c.b16 %v694, %v689
      %v825 = vpack.c.b16 %v700, %v695
      %v826 = vpack.c.b16 %v701, %v696
      %v827 = vpack.c.b16 %v702, %v697
      %v828 = vpack.c.b16 %v703, %v698
      %v829 = vpack.c.b16 %v704, %v699
      %v830 = vpack.c.b16 %v710, %v705
      %v831 = vpack.c.b16 %v711, %v706
      %v832 = vpack.c.b16 %v712, %v707
      %v833 = vpack.c.b16 %v713, %v708
      %v834 = vpack.c.b16 %v714, %v709
      %v835 = vpack.c.b16 %v720, %v715
      %v836 = vpack.c.b16 %v721, %v716
      %v837 = vpack.c.b16 %v722, %v717
      %v838 = vpack.c.b16 %v723, %v718
      %v839 = vpack.c.b16 %v724, %v719
      %v840 = vpack.c.b16 %v730, %v725
      %v841 = vpack.c.b16 %v731, %v726
      %v842 = vpack.c.b16 %v732, %v727
      %v843 = vpack.c.b16 %v733, %v728
      %v844 = vpack.c.b16 %v734, %v729
      %v845 = vpack.c.b16 %v740, %v735
      %v846 = vpack.c.b16 %v741, %v736
      %v847 = vpack.c.b16 %v742, %v737
      %v848 = vpack.c.b16 %v743, %v738
      %v849 = vpack.c.b16 %v744, %v739
      %v850 = vpack.c.b16 %v750, %v745
      %v851 = vpack.c.b16 %v751, %v746
      %v852 = vpack.c.b16 %v752, %v747
      %v853 = vpack.c.b16 %v753, %v748
      %v854 = vpack.c.b16 %v754, %v749
      %vm955 = vcmask 523264
      %v957 = vsel %vm955, %v432, 0
      %959 = vmatprep.subr.bf16.mxu0 %v791
      %960 = vmatpush1.bf16.msra.mxu0 %v790
      %961 = vmatprep.subr.bf16.mxu0 %v786
      %962 = vmatpush1.bf16.msra.mxu0 %v785
      %963 = vmatprep.subr.bf16.mxu0 %v781
      %964 = vmatpush1.bf16.msra.mxu0 %v780
      %965 = vmatprep.subr.bf16.mxu0 %v776
      %966 = vmatpush1.bf16.msra.mxu0 %v775
      %967 = vmatprep.subr.bf16.mxu0 %v771
      %968 = vmatpush1.bf16.msra.mxu0 %v770
      %969 = vmatprep.subr.bf16.mxu0 %v766
      %970 = vmatpush1.bf16.msra.mxu0 %v765
      %971 = vmatprep.subr.bf16.mxu0 %v761
      %972 = vmatpush1.bf16.msra.mxu0 %v760
      %973 = vmatprep.subr.bf16.mxu0 %v756
      %974 = vmatpush1.bf16.msra.mxu0 %v755
      %975 = vmatprep.subr.bf16.mxu0 %v831
      %976 = vmatpush2.bf16.msra.mxu0 %v830
      %977 = vmatprep.subr.bf16.mxu0 %v826
      %978 = vmatpush2.bf16.msra.mxu0 %v825
      %979 = vmatprep.subr.bf16.mxu0 %v821
      %980 = vmatpush2.bf16.msra.mxu0 %v820
      %981 = vmatprep.subr.bf16.mxu0 %v816
      %982 = vmatpush2.bf16.msra.mxu0 %v815
      %983 = vmatprep.subr.bf16.mxu0 %v811
      %984 = vmatpush2.bf16.msra.mxu0 %v810
      %985 = vmatprep.subr.bf16.mxu0 %v806
      %986 = vmatpush2.bf16.msra.mxu0 %v805
      %987 = vmatprep.subr.bf16.mxu0 %v801
      %988 = vmatpush2.bf16.msra.mxu0 %v800
      %989 = vmatprep.subr.bf16.mxu0 %v796
      %990 = vmatpush2.bf16.msra.mxu0 %v795
      %991 = vmatprep.mubr.bf16.mxu0 %v431
      %992 = vmatmul.mubr.bf16.gmra.mxu0 %v430
      %v993 = vpop.f32.mrf.mxu0
      %v994 = vadd.f32 %v398, %v993
      %v995 = vpop.f32.mrf.mxu0
      %v996 = vadd.f32 %v402, %v995
      %v997 = vpop.f32.mrf.mxu0
      %v998 = vadd.f32 %v398, %v997
      %v999 = vpop.f32.mrf.mxu0
      %v1000 = vadd.f32 %v402, %v999
      %1001 = vdwg.mxu0
      %1002 = vmatprep.subr.bf16.mxu0 0
      %1003 = vmatpush1.bf16.msra.mxu0 0
      %1004 = vmatprep.subr.bf16.mxu0 0
      %1005 = vmatpush1.bf16.msra.mxu0 0
      %1006 = vmatprep.subr.bf16.mxu0 0
      %1007 = vmatpush1.bf16.msra.mxu0 0
      %1008 = vmatprep.subr.bf16.mxu0 0
      %1009 = vmatpush1.bf16.msra.mxu0 0
      %1010 = vmatprep.subr.bf16.mxu0 %v851
      %1011 = vmatpush1.bf16.msra.mxu0 %v850
      %1012 = vmatprep.subr.bf16.mxu0 %v846
      %1013 = vmatpush1.bf16.msra.mxu0 %v845
      %1014 = vmatprep.subr.bf16.mxu0 %v841
      %1015 = vmatpush1.bf16.msra.mxu0 %v840
      %1016 = vmatprep.subr.bf16.mxu0 %v836
      %1017 = vmatpush1.bf16.msra.mxu0 %v835
      %1018 = vmatprep.subr.bf16.mxu0 0
      %1019 = vmatpush2.bf16.msra.mxu0 0
      %1020 = vmatprep.subr.bf16.mxu0 0
      %1021 = vmatpush2.bf16.msra.mxu0 0
      %1022 = vmatprep.subr.bf16.mxu0 0
      %1023 = vmatpush2.bf16.msra.mxu0 0
      %1024 = vmatprep.subr.bf16.mxu0 0
      %1025 = vmatpush2.bf16.msra.mxu0 0
      %1026 = vmatprep.subr.bf16.mxu0 0
      %1027 = vmatpush2.bf16.msra.mxu0 0
      %1028 = vmatprep.subr.bf16.mxu0 0
      %1029 = vmatpush2.bf16.msra.mxu0 0
      %1030 = vmatprep.subr.bf16.mxu0 0
      %1031 = vmatpush2.bf16.msra.mxu0 0
      %1032 = vmatprep.subr.bf16.mxu0 0
      %1033 = vmatpush2.bf16.msra.mxu0 0
      %1034 = vmatprep.mubr.bf16.mxu0 0
      %1035 = vmatmul.mubr.bf16.gmra.mxu0 %v957
      %v1036 = vpop.f32.mrf.mxu0
      %v1037 = vadd.f32 %v994, %v1036
      %v1038 = vpop.f32.mrf.mxu0
      %v1039 = vadd.f32 %v996, %v1038
      %v1040 = vpop.f32.mrf.mxu0
      %v1041 = vadd.f32 %v998, %v1040
      %v1042 = vpop.f32.mrf.mxu0
      %v1043 = vadd.f32 %v1000, %v1042
      %1044 = vdwg.mxu0
      %1045 = vmatprep.subr.bf16.mxu0 %v793
      %1046 = vmatpush1.bf16.msra.mxu0 %v792
      %1047 = vmatprep.subr.bf16.mxu0 %v788
      %1048 = vmatpush1.bf16.msra.mxu0 %v787
      %1049 = vmatprep.subr.bf16.mxu0 %v783
      %1050 = vmatpush1.bf16.msra.mxu0 %v782
      %1051 = vmatprep.subr.bf16.mxu0 %v778
      %1052 = vmatpush1.bf16.msra.mxu0 %v777
      %1053 = vmatprep.subr.bf16.mxu0 %v773
      %1054 = vmatpush1.bf16.msra.mxu0 %v772
      %1055 = vmatprep.subr.bf16.mxu0 %v768
      %1056 = vmatpush1.bf16.msra.mxu0 %v767
      %1057 = vmatprep.subr.bf16.mxu0 %v763
      %1058 = vmatpush1.bf16.msra.mxu0 %v762
      %1059 = vmatprep.subr.bf16.mxu0 %v758
      %1060 = vmatpush1.bf16.msra.mxu0 %v757
      %1061 = vmatprep.subr.bf16.mxu0 %v833
      %1062 = vmatpush2.bf16.msra.mxu0 %v832
      %1063 = vmatprep.subr.bf16.mxu0 %v828
      %1064 = vmatpush2.bf16.msra.mxu0 %v827
      %1065 = vmatprep.subr.bf16.mxu0 %v823
      %1066 = vmatpush2.bf16.msra.mxu0 %v822
      %1067 = vmatprep.subr.bf16.mxu0 %v818
      %1068 = vmatpush2.bf16.msra.mxu0 %v817
      %1069 = vmatprep.subr.bf16.mxu0 %v813
      %1070 = vmatpush2.bf16.msra.mxu0 %v812
      %1071 = vmatprep.subr.bf16.mxu0 %v808
      %1072 = vmatpush2.bf16.msra.mxu0 %v807
      %1073 = vmatprep.subr.bf16.mxu0 %v803
      %1074 = vmatpush2.bf16.msra.mxu0 %v802
      %1075 = vmatprep.subr.bf16.mxu0 %v798
      %1076 = vmatpush2.bf16.msra.mxu0 %v797
      %1077 = vmatprep.mubr.bf16.mxu0 %v431
      %1078 = vmatmul.mubr.bf16.gmra.mxu0 %v430
      %v1079 = vpop.f32.mrf.mxu0
      %v1080 = vadd.f32 %v406, %v1079
      %v1081 = vpop.f32.mrf.mxu0
      %v1082 = vadd.f32 %v410, %v1081
      %v1083 = vpop.f32.mrf.mxu0
      %v1084 = vadd.f32 %v406, %v1083
      %v1085 = vpop.f32.mrf.mxu0
      %v1086 = vadd.f32 %v410, %v1085
      %1087 = vdwg.mxu0
      %1088 = vmatprep.subr.bf16.mxu0 0
      %1089 = vmatpush1.bf16.msra.mxu0 0
      %1090 = vmatprep.subr.bf16.mxu0 0
      %1091 = vmatpush1.bf16.msra.mxu0 0
      %1092 = vmatprep.subr.bf16.mxu0 0
      %1093 = vmatpush1.bf16.msra.mxu0 0
      %1094 = vmatprep.subr.bf16.mxu0 0
      %1095 = vmatpush1.bf16.msra.mxu0 0
      %1096 = vmatprep.subr.bf16.mxu0 %v853
      %1097 = vmatpush1.bf16.msra.mxu0 %v852
      %1098 = vmatprep.subr.bf16.mxu0 %v848
      %1099 = vmatpush1.bf16.msra.mxu0 %v847
      %1100 = vmatprep.subr.bf16.mxu0 %v843
      %1101 = vmatpush1.bf16.msra.mxu0 %v842
      %1102 = vmatprep.subr.bf16.mxu0 %v838
      %1103 = vmatpush1.bf16.msra.mxu0 %v837
      %1104 = vmatprep.subr.bf16.mxu0 0
      %1105 = vmatpush2.bf16.msra.mxu0 0
      %1106 = vmatprep.subr.bf16.mxu0 0
      %1107 = vmatpush2.bf16.msra.mxu0 0
      %1108 = vmatprep.subr.bf16.mxu0 0
      %1109 = vmatpush2.bf16.msra.mxu0 0
      %1110 = vmatprep.subr.bf16.mxu0 0
      %1111 = vmatpush2.bf16.msra.mxu0 0
      %1112 = vmatprep.subr.bf16.mxu0 0
      %1113 = vmatpush2.bf16.msra.mxu0 0
      %1114 = vmatprep.subr.bf16.mxu0 0
      %1115 = vmatpush2.bf16.msra.mxu0 0
      %1116 = vmatprep.subr.bf16.mxu0 0
      %1117 = vmatpush2.bf16.msra.mxu0 0
      %1118 = vmatprep.subr.bf16.mxu0 0
      %1119 = vmatpush2.bf16.msra.mxu0 0
      %1120 = vmatprep.mubr.bf16.mxu0 0
      %1121 = vmatmul.mubr.bf16.gmra.mxu0 %v957
      %v1122 = vpop.f32.mrf.mxu0
      %v1123 = vadd.f32 %v1080, %v1122
      %v1124 = vpop.f32.mrf.mxu0
      %v1125 = vadd.f32 %v1082, %v1124
      %v1126 = vpop.f32.mrf.mxu0
      %v1127 = vadd.f32 %v1084, %v1126
      %v1128 = vpop.f32.mrf.mxu0
      %v1129 = vadd.f32 %v1086, %v1128
      %1130 = vdwg.mxu0
      %1131 = vmatprep.subr.bf16.mxu0 0
      %1132 = vmatpush1.bf16.msra.mxu0 %v794
      %1133 = vmatprep.subr.bf16.mxu0 0
      %1134 = vmatpush1.bf16.msra.mxu0 %v789
      %1135 = vmatprep.subr.bf16.mxu0 0
      %1136 = vmatpush1.bf16.msra.mxu0 %v784
      %1137 = vmatprep.subr.bf16.mxu0 0
      %1138 = vmatpush1.bf16.msra.mxu0 %v779
      %1139 = vmatprep.subr.bf16.mxu0 0
      %1140 = vmatpush1.bf16.msra.mxu0 %v774
      %1141 = vmatprep.subr.bf16.mxu0 0
      %1142 = vmatpush1.bf16.msra.mxu0 %v769
      %1143 = vmatprep.subr.bf16.mxu0 0
      %1144 = vmatpush1.bf16.msra.mxu0 %v764
      %1145 = vmatprep.subr.bf16.mxu0 0
      %1146 = vmatpush1.bf16.msra.mxu0 %v759
      %1147 = vmatprep.subr.bf16.mxu0 0
      %1148 = vmatpush2.bf16.msra.mxu0 %v834
      %1149 = vmatprep.subr.bf16.mxu0 0
      %1150 = vmatpush2.bf16.msra.mxu0 %v829
      %1151 = vmatprep.subr.bf16.mxu0 0
      %1152 = vmatpush2.bf16.msra.mxu0 %v824
      %1153 = vmatprep.subr.bf16.mxu0 0
      %1154 = vmatpush2.bf16.msra.mxu0 %v819
      %1155 = vmatprep.subr.bf16.mxu0 0
      %1156 = vmatpush2.bf16.msra.mxu0 %v814
      %1157 = vmatprep.subr.bf16.mxu0 0
      %1158 = vmatpush2.bf16.msra.mxu0 %v809
      %1159 = vmatprep.subr.bf16.mxu0 0
      %1160 = vmatpush2.bf16.msra.mxu0 %v804
      %1161 = vmatprep.subr.bf16.mxu0 0
      %1162 = vmatpush2.bf16.msra.mxu0 %v799
      %1163 = vmatprep.mubr.bf16.mxu0 %v431
      %1164 = vmatmul.mubr.bf16.gmra.mxu0 %v430
      %v1165 = vpop.f32.mrf.mxu0
      %v1166 = vadd.f32 %v414, %v1165
      %v1167 = vpop.f32.mrf.mxu0
      %v1168 = vpop.f32.mrf.mxu0
      %v1169 = vadd.f32 %v414, %v1168
      %v1170 = vpop.f32.mrf.mxu0
      %1171 = vdwg.mxu0
      %1172 = vmatprep.subr.bf16.mxu0 0
      %1173 = vmatpush1.bf16.msra.mxu0 0
      %1174 = vmatprep.subr.bf16.mxu0 0
      %1175 = vmatpush1.bf16.msra.mxu0 0
      %1176 = vmatprep.subr.bf16.mxu0 0
      %1177 = vmatpush1.bf16.msra.mxu0 0
      %1178 = vmatprep.subr.bf16.mxu0 0
      %1179 = vmatpush1.bf16.msra.mxu0 0
      %1180 = vmatprep.subr.bf16.mxu0 0
      %1181 = vmatpush1.bf16.msra.mxu0 %v854
      %1182 = vmatprep.subr.bf16.mxu0 0
      %1183 = vmatpush1.bf16.msra.mxu0 %v849
      %1184 = vmatprep.subr.bf16.mxu0 0
      %1185 = vmatpush1.bf16.msra.mxu0 %v844
      %1186 = vmatprep.subr.bf16.mxu0 0
      %1187 = vmatpush1.bf16.msra.mxu0 %v839
      %1188 = vmatprep.subr.bf16.mxu0 0
      %1189 = vmatpush2.bf16.msra.mxu0 0
      %1190 = vmatprep.subr.bf16.mxu0 0
      %1191 = vmatpush2.bf16.msra.mxu0 0
      %1192 = vmatprep.subr.bf16.mxu0 0
      %1193 = vmatpush2.bf16.msra.mxu0 0
      %1194 = vmatprep.subr.bf16.mxu0 0
      %1195 = vmatpush2.bf16.msra.mxu0 0
      %1196 = vmatprep.subr.bf16.mxu0 0
      %1197 = vmatpush2.bf16.msra.mxu0 0
      %1198 = vmatprep.subr.bf16.mxu0 0
      %1199 = vmatpush2.bf16.msra.mxu0 0
      %1200 = vmatprep.subr.bf16.mxu0 0
      %1201 = vmatpush2.bf16.msra.mxu0 0
      %1202 = vmatprep.subr.bf16.mxu0 0
      %1203 = vmatpush2.bf16.msra.mxu0 0
      %1204 = vmatprep.mubr.bf16.mxu0 0
      %1205 = vmatmul.mubr.bf16.gmra.mxu0 %v957
      %v1206 = vpop.f32.mrf.mxu0
      %v1207 = vadd.f32 %v1166, %v1206
      %v1208 = vpop.f32.mrf.mxu0
      %v1209 = vpop.f32.mrf.mxu0
      %v1210 = vadd.f32 %v1169, %v1209
      %v1211 = vpop.f32.mrf.mxu0
      %1212 = vdwg.mxu0
      %v1213 = vpack.c.bf16 %v1041, %v1037
      %v1214 = vpack.c.bf16 %v1043, %v1039
      %v1215 = vpack.c.bf16 %v1127, %v1123
      %v1219 = vunpack.c.l.b16 %v1213
      %v1220 = vunpack.c.l.b16 %v1214
      %v1221 = vunpack.c.l.b16 %v1215
      %v1222 = vunpack.c.h.b16 %v1213
      %v1223 = vunpack.c.h.b16 %v1214
      %v1224 = vunpack.c.h.b16 %v1215
      %v1225 = vpack.c.b16 %v1220, %v1219
      %v1226 = vpack.c.b16 %v1221, %v1221
      %v1227 = vpack.c.b16 %v1223, %v1222
      %v1228 = vpack.c.b16 %v1224, %v1224
      %1233 = vst [vmem:[%s255] sm:$0xff] %v1225
      %vm1234 = vcmask 519168
      %1235 = vst.msk [vmem:[%s255 + $0x8] sm:$0xf] %vm1234, %v1226
      %1236 = vst [vmem:[%s255 + $0xc] sm:$0xff] %v1227
      %1237 = vst.msk [vmem:[%s255 + $0x14] sm:$0xf] %vm1234, %v1228
      %v1238 = vpack.c.bf16 %v1129, %v1125
      %v1239 = vpack.c.bf16 %v1210, %v1207
      %v1242 = vunpack.c.l.b16 %v1238
      %v1243 = vunpack.c.l.b16 %v1239
      %v1244 = vunpack.c.h.b16 %v1238
      %v1245 = vunpack.c.h.b16 %v1239
      %v1246 = vpack.c.b16 %v1242, %v1221
      %v1247 = vpack.c.b16 %v1243, %v1243
      %v1248 = vpack.c.b16 %v1244, %v1224
      %v1249 = vpack.c.b16 %v1245, %v1245
      %1250 = vrot.lane.b32.xlu0 %v1246, 64
      %v1251 = vpop.permute.xlu0 %1250
      %1252 = vrot.lane.b32.xlu0 %v1247, 64
      %v1253 = vpop.permute.xlu0 %1252
      %1254 = vrot.lane.b32.xlu0 %v1248, 64
      %v1255 = vpop.permute.xlu0 %1254
      %1256 = vrot.lane.b32.xlu0 %v1249, 64
      %v1257 = vpop.permute.xlu0 %1256
      %v1258 = vrot.slane %v1251, 4
      %v1259 = vrot.slane %v1253, 4
      %v1260 = vrot.slane %v1255, 4
      %v1261 = vrot.slane %v1257, 4
      %vm1262 = vcmask 1043456
      %v1263 = vsel %vm1262, %v1258, %v1259
      %vm1264 = vcmask 523264
      %v1265 = vsel %vm1264, %v1251, %v1263
      %v1266 = vsel %vm1262, %v1260, %v1261
      %v1267 = vsel %vm1264, %v1255, %v1266
      %1272 = vst [vmem:[%s266] sm:$0xff] %v1265
      %1273 = vst.msk [vmem:[%s266 + $0x8] sm:$0xf] %vm1234, %v1253
      %1274 = vst [vmem:[%s266 + $0xc] sm:$0xff] %v1267
      %1275 = vst.msk [vmem:[%s266 + $0x14] sm:$0xf] %vm1234, %v1257
      %s1276 = smul.u32 2, %s21
      %p1277 = scmp.lt.s32.totalorder %s20, 1
      %s1278 = scalar_select %p1277, %s20, 1
      %p1279 = scmp.lt.s32.totalorder %s1276, 1
      %s1280 = scalar_select %p1279, %s1276, 1
      %s1281 = smul.addr %s1280, 3
      %s1282 = smul.addr %s1278, 6
      %s1283 = sadd.s32 %s1281, %s1282
      %s1284 = smul.addr %s1283, 4
      %s1285 = scalar_lea.vmem %s3, %s1284
      %s1286 = smul.u32 2, %s21
      %p1287 = scmp.lt.s32.totalorder %s20, 1
      %s1288 = scalar_select %p1287, %s20, 1
      %p1289 = scmp.lt.s32.totalorder %s1286, 1
      %s1290 = scalar_select %p1289, %s1286, 1
      %s1291 = smul.addr %s1290, 3
      %s1292 = smul.addr %s1288, 6
      %s1293 = sadd.s32 %s1291, %s1292
      %s1294 = smul.addr %s1293, 4
      %s1295 = scalar_lea.vmem %s4, %s1294
      // Predicated region
      $region33: #{forward.17} parent=31 // pred_check
        %p1296 = pneg %p118
      $region34: #{forward.17} parent=31 // pred_check_branch
        %1298 = sbr.rel (%p1296) target = $region36
      $region35: #{forward.17} parent=31 // pred_region
        %s1299 = smul.u32 2, %s21
      $region36: #{forward.17} parent=31 // pred_fallthru
        _
      // Predicated region
      $region37: #{forward.17} parent=31 // pred_check
        %p1300 = pneg %p146
      $region38: #{forward.17} parent=31 // pred_check_branch
        %1302 = sbr.rel (%p1300) target = $region40
      $region39: #{forward.17} parent=31 // pred_region
        %s1303 = smul.u32 2, %s21
      $region40: #{forward.17} parent=31 // pred_fallthru
        _
    $region32: #{forward.17} parent=5 // pred_fallthru
      _
    %p1304 = scmp.le.s32.totalorder 2, %s11
    // Predicated region
    $region41: #{forward.17} parent=5 // pred_check
      %p1305 = pneg %p1304
    $region42: #{forward.17} parent=5 // pred_check_branch
      %1307 = sbr.rel (%p1305) target = $region44
    $region43: #{forward.17} parent=5 // pred_region
      %s1308 = ssub.s32 %s11, 2
      // Predicated region
      $region45: #{forward.17} parent=43 // pred_check
        %p1309 = pneg %p124
      $region46: #{forward.17} parent=43 // pred_check_branch
        %1311 = sbr.rel (%p1309) target = $region48
      $region47: #{forward.17} parent=43 // pred_region
        %s1312 = smul.u32 2, %s23
        %p1313 = scmp.lt.s32.totalorder %s22, 1
        %s1314 = scalar_select %p1313, %s22, 1
        %p1315 = scmp.lt.s32.totalorder %s1312, 1
        %s1316 = scalar_select %p1315, %s1312, 1
        %s1317 = smul.addr %s1316, 3
        %s1318 = smul.addr %s1314, 6
        %s1319 = sadd.s32 %s1317, %s1318
        %s1320 = smul.addr %s1319, 4
        %s1321 = scalar_lea.vmem %s3, %s1320
      $region48: #{forward.17} parent=43 // pred_fallthru
        _
      // Predicated region
      $region49: #{forward.17} parent=43 // pred_check
        %p1322 = pneg %p152
      $region50: #{forward.17} parent=43 // pred_check_branch
        %1324 = sbr.rel (%p1322) target = $region52
      $region51: #{forward.17} parent=43 // pred_region
        %s1325 = smul.u32 2, %s23
        %p1326 = scmp.lt.s32.totalorder %s22, 1
        %s1327 = scalar_select %p1326, %s22, 1
        %p1328 = scmp.lt.s32.totalorder %s1325, 1
        %s1329 = scalar_select %p1328, %s1325, 1
        %s1330 = smul.addr %s1329, 3
        %s1331 = smul.addr %s1327, 6
        %s1332 = sadd.s32 %s1330, %s1331
        %s1333 = smul.addr %s1332, 4
        %s1334 = scalar_lea.vmem %s4, %s1333
      $region52: #{forward.17} parent=43 // pred_fallthru
        _
    $region44: #{forward.17} parent=5 // pred_fallthru
      _
  $region6: #{forward.17} parent=0 // loop_footer
    %s15 = sadd.s32 1, %s11
  $region7: #{forward.17} parent=0 // loop_footer_branch
    %10 = sbr.rel target = $region3
  $region8: #{forward.17} parent=0 // loop_exit
    _

// kernel: forward.24
$region0: #{forward.24}
  #allocation0 [shape = 'u32[]', space=smem, size = 0x4, offset = 0x4, fixed_abs, tag = 'smem constant byte address 0x4 - core index']
  #allocation1 [shape = 'u32[144,128]{1,0:T(1,128)}', space=vmem, size = 0x12000, scoped, tag = 'internal scratch']
  #allocation2 [shape = 'bf16[16,320]{1,0:T(8,128)(2,1)}', space=vmem, size = 0x3000, scoped, tag = 'scratch operand']
  #allocation3 [shape = 'f32[16,1]{1,0:T(8,128)}', space=vmem, size = 0x2000, scoped, tag = 'scratch operand']
  #allocation4 [shape = 'f32[16,1]{1,0:T(8,128)}', space=vmem, size = 0x2000, scoped, tag = 'scratch operand']
  #allocation5 [shape = 'f32[16,320]{1,0:T(8,128)}', space=vmem, size = 0x6000, scoped, tag = 'scratch operand']
  %s0 = inlined_call_operand.vmem [shape: bf16[2,16,320], index: 0, kind: input, shape index: {}]
  %s1 = inlined_call_operand.vmem [shape: bf16[2,16,320], index: 1, kind: input, shape index: {}]
  %s2 = inlined_call_operand.vmem [shape: bf16[320,256], index: 2, kind: input, shape index: {}]
  %s3 = inlined_call_operand.vmem [shape: bf16[320,256], index: 3, kind: input, shape index: {}]
  %s4 = inlined_call_operand.vmem [shape: f32[1,256], index: 4, kind: input, shape index: {}]
  %s5 = inlined_call_operand.vmem [shape: bf16[2,16,256], index: 5, kind: output, shape index: {}]
  %s6 = sld [smem:[#allocation0]]
  $region61: #{forward.24} parent=0
    _
  %s8 = ssub.s32 1, %s6
  %s9 = scalar_select 0, %s8, %s6
  loop: start=0, step=1, limit=4
  $region2: #{forward.24} parent=0 // loop_pre_header
    _
  $region3: #{forward.24} parent=0 // loop_header
    %s11 = sphi 0, %s15
    %p12 = scmp.ge.s32.totalorder %s11, 4
    %s18 = sphi 0, %s37
    %s19 = sphi 0, %s33
    %s20 = sphi 0, %s29
    %s21 = sphi 0, %s18
    %s22 = sphi 0, %s19
    %s23 = sphi 0, %s20
    %s24 = sphi 0, %s21
    %s25 = sphi 0, %s22
    %s26 = sphi 0, %s23
    %s42 = sphi 0, %s44
    %s45 = sphi 0, %s42
    %s46 = sphi 0, %s45
    %s62 = sphi 0, %s46
    %s70 = sphi 0, %s72
    %s73 = sphi 0, %s70
    %s74 = sphi 0, %s73
    %s90 = sphi 0, %s74
    %s94 = sphi 0, %s94
    %s96 = sphi 0, %s94
    %s97 = sphi 0, %s96
    %s111 = sphi 0, %s97
    %s115 = sphi 0, %s115
    %s117 = sphi 0, %s115
    %s118 = sphi 0, %s117
    %s132 = sphi 0, %s118
    %s136 = sphi 0, %s136
    %s138 = sphi 0, %s136
    %s139 = sphi 0, %s138
    %s153 = sphi 0, %s139
    %s161 = sphi 0, %s163
    %s164 = sphi 0, %s161
    %s165 = sphi 0, %s164
    %s181 = sphi 0, %s165
  $region4: #{forward.24} parent=0 // loop_header_branch
    %14 = sbr.rel (%p12) target = $region8
  $region5: #{forward.24} parent=0 // loop_body
    %s16 = ssub.s32 %s11, 1
    %s17 = ssub.s32 %s11, 2
    %s27 = sadd.s32 1, %s20
    %p28 = scmp.ge.s32.totalorder %s27, 1
    %s29 = scalar_select %p28, 0, %s27
    %s30 = sadd.s32 1, %s19
    %s31 = scalar_select %p28, %s30, %s19
    %p32 = scmp.ge.s32.totalorder %s31, 1
    %s33 = scalar_select %p32, 0, %s31
    %s34 = sadd.s32 1, %s18
    %s35 = scalar_select %p32, %s34, %s18
    %p36 = scmp.ge.s32.totalorder %s35, 2
    %s37 = scalar_select %p36, 0, %s35
    %s38 = ssub.s32 %s18, %s37
    %s39 = ssub.s32 %s19, %s33
    %s40 = sor.u32 %s38, %s39
    %p41 = scmp.eq.s32.totalorder %s40, 0
    %s43 = sadd.s32 %s42, 1
    %s44 = scalar_select %p41, %s42, %s43
    %p47 = pneg %p41
    %p48 = scmp.eq.s32.totalorder %s11, 1
    %p49 = por %p47, %p48
    %p50 = scmp.ne.s32.totalorder %s42, %s45
    %p51 = scmp.eq.s32.totalorder %s11, 0
    %p52 = por %p50, %p51
    %p53 = scmp.ne.s32.totalorder %s42, %s45
    %p54 = scmp.eq.s32.totalorder %s16, 1
    %p55 = por %p53, %p54
    %p56 = scmp.ne.s32.totalorder %s45, %s46
    %p57 = scmp.eq.s32.totalorder %s16, 0
    %p58 = por %p56, %p57
    %p59 = scmp.ne.s32.totalorder %s45, %s46
    %p60 = scmp.eq.s32.totalorder %s17, 1
    %p61 = por %p59, %p60
    %p63 = scmp.ne.s32.totalorder %s46, %s62
    %p64 = scmp.eq.s32.totalorder %s17, 0
    %p65 = por %p63, %p64
    %s66 = ssub.s32 %s18, %s37
    %s67 = ssub.s32 %s20, %s29
    %s68 = sor.u32 %s66, %s67
    %p69 = scmp.eq.s32.totalorder %s68, 0
    %s71 = sadd.s32 %s70, 1
    %s72 = scalar_select %p69, %s70, %s71
    %p75 = pneg %p69
    %p76 = scmp.eq.s32.totalorder %s11, 1
    %p77 = por %p75, %p76
    %p78 = scmp.ne.s32.totalorder %s70, %s73
    %p79 = scmp.eq.s32.totalorder %s11, 0
    %p80 = por %p78, %p79
    %p81 = scmp.ne.s32.totalorder %s70, %s73
    %p82 = scmp.eq.s32.totalorder %s16, 1
    %p83 = por %p81, %p82
    %p84 = scmp.ne.s32.totalorder %s73, %s74
    %p85 = scmp.eq.s32.totalorder %s16, 0
    %p86 = por %p84, %p85
    %p87 = scmp.ne.s32.totalorder %s73, %s74
    %p88 = scmp.eq.s32.totalorder %s17, 1
    %p89 = por %p87, %p88
    %p91 = scmp.ne.s32.totalorder %s74, %s90
    %p92 = scmp.eq.s32.totalorder %s17, 0
    %p93 = por %p91, %p92
    %s95 = sadd.s32 %s94, 1
    %p98 = scmp.eq.s32.totalorder %s11, 1
    %p99 = scmp.ne.s32.totalorder %s94, %s96
    %p100 = scmp.eq.s32.totalorder %s11, 0
    %p101 = por %p99, %p100
    %p102 = scmp.ne.s32.totalorder %s94, %s96
    %p103 = scmp.eq.s32.totalorder %s16, 1
    %p104 = por %p102, %p103
    %p105 = scmp.ne.s32.totalorder %s96, %s97
    %p106 = scmp.eq.s32.totalorder %s16, 0
    %p107 = por %p105, %p106
    %p108 = scmp.ne.s32.totalorder %s96, %s97
    %p109 = scmp.eq.s32.totalorder %s17, 1
    %p110 = por %p108, %p109
    %p112 = scmp.ne.s32.totalorder %s97, %s111
    %p113 = scmp.eq.s32.totalorder %s17, 0
    %p114 = por %p112, %p113
    %s116 = sadd.s32 %s115, 1
    %p119 = scmp.eq.s32.totalorder %s11, 1
    %p120 = scmp.ne.s32.totalorder %s115, %s117
    %p121 = scmp.eq.s32.totalorder %s11, 0
    %p122 = por %p120, %p121
    %p123 = scmp.ne.s32.totalorder %s115, %s117
    %p124 = scmp.eq.s32.totalorder %s16, 1
    %p125 = por %p123, %p124
    %p126 = scmp.ne.s32.totalorder %s117, %s118
    %p127 = scmp.eq.s32.totalorder %s16, 0
    %p128 = por %p126, %p127
    %p129 = scmp.ne.s32.totalorder %s117, %s118
    %p130 = scmp.eq.s32.totalorder %s17, 1
    %p131 = por %p129, %p130
    %p133 = scmp.ne.s32.totalorder %s118, %s132
    %p134 = scmp.eq.s32.totalorder %s17, 0
    %p135 = por %p133, %p134
    %s137 = sadd.s32 %s136, 1
    %p140 = scmp.eq.s32.totalorder %s11, 1
    %p141 = scmp.ne.s32.totalorder %s136, %s138
    %p142 = scmp.eq.s32.totalorder %s11, 0
    %p143 = por %p141, %p142
    %p144 = scmp.ne.s32.totalorder %s136, %s138
    %p145 = scmp.eq.s32.totalorder %s16, 1
    %p146 = por %p144, %p145
    %p147 = scmp.ne.s32.totalorder %s138, %s139
    %p148 = scmp.eq.s32.totalorder %s16, 0
    %p149 = por %p147, %p148
    %p150 = scmp.ne.s32.totalorder %s138, %s139
    %p151 = scmp.eq.s32.totalorder %s17, 1
    %p152 = por %p150, %p151
    %p154 = scmp.ne.s32.totalorder %s139, %s153
    %p155 = scmp.eq.s32.totalorder %s17, 0
    %p156 = por %p154, %p155
    %s157 = ssub.s32 %s18, %s37
    %s158 = ssub.s32 %s19, %s33
    %s159 = sor.u32 %s157, %s158
    %p160 = scmp.eq.s32.totalorder %s159, 0
    %s162 = sadd.s32 %s161, 1
    %s163 = scalar_select %p160, %s161, %s162
    %p166 = pneg %p160
    %p167 = scmp.eq.s32.totalorder %s11, 1
    %p168 = por %p166, %p167
    %p169 = scmp.ne.s32.totalorder %s161, %s164
    %p170 = scmp.eq.s32.totalorder %s11, 0
    %p171 = por %p169, %p170
    %p172 = scmp.ne.s32.totalorder %s161, %s164
    %p173 = scmp.eq.s32.totalorder %s16, 1
    %p174 = por %p172, %p173
    %p175 = scmp.ne.s32.totalorder %s164, %s165
    %p176 = scmp.eq.s32.totalorder %s16, 0
    %p177 = por %p175, %p176
    %p178 = scmp.ne.s32.totalorder %s164, %s165
    %p179 = scmp.eq.s32.totalorder %s17, 1
    %p180 = por %p178, %p179
    %p182 = scmp.ne.s32.totalorder %s165, %s181
    %p183 = scmp.eq.s32.totalorder %s17, 0
    %p184 = por %p182, %p183
    %p185 = scmp.le.s32.totalorder 1, %s11
    %p186 = scmp.lt.s32.totalorder %s11, 3
    %p187 = pnand %p185, %p186
    %p188 = pneg %p187
    // Predicated region
    $region9: #{forward.24} parent=5 // pred_check
      _
    $region10: #{forward.24} parent=5 // pred_check_branch
      %190 = sbr.rel (%p187) target = $region12
    $region11: #{forward.24} parent=5 // pred_region
      %s191 = ssub.s32 %s11, 1
      // Predicated region
      $region13: #{forward.24} parent=11 // pred_check
        %p192 = pneg %p107
      $region14: #{forward.24} parent=11 // pred_check_branch
        %194 = sbr.rel (%p192) target = $region16
      $region15: #{forward.24} parent=11 // pred_region
        _
      $region16: #{forward.24} parent=11 // pred_fallthru
        _
      // Predicated region
      $region17: #{forward.24} parent=11 // pred_check
        %p195 = pneg %p128
      $region18: #{forward.24} parent=11 // pred_check_branch
        %197 = sbr.rel (%p195) target = $region20
      $region19: #{forward.24} parent=11 // pred_region
        _
      $region20: #{forward.24} parent=11 // pred_fallthru
        _
      // Predicated region
      $region21: #{forward.24} parent=11 // pred_check
        %p198 = pneg %p149
      $region22: #{forward.24} parent=11 // pred_check_branch
        %200 = sbr.rel (%p198) target = $region24
      $region23: #{forward.24} parent=11 // pred_region
        _
      $region24: #{forward.24} parent=11 // pred_fallthru
        _
    $region12: #{forward.24} parent=5 // pred_fallthru
      _
    %p201 = scmp.lt.s32.totalorder %s11, 2
    // Predicated region
    $region25: #{forward.24} parent=5 // pred_check
      %p202 = pneg %p201
    $region26: #{forward.24} parent=5 // pred_check_branch
      %204 = sbr.rel (%p202) target = $region28
    $region27: #{forward.24} parent=5 // pred_region
      // Predicated region
      $region29: #{forward.24} parent=27 // pred_check
        %p205 = pneg %p52
      $region30: #{forward.24} parent=27 // pred_check_branch
        %207 = sbr.rel (%p205) target = $region32
      $region31: #{forward.24} parent=27 // pred_region
        %s208 = smul.u32 2, %s19
        %p209 = scmp.lt.s32.totalorder %s18, 1
        %s210 = scalar_select %p209, %s18, 1
        %p211 = scmp.lt.s32.totalorder %s208, 1
        %s212 = scalar_select %p211, %s208, 1
        %s213 = smul.addr %s212, 3
        %s214 = smul.addr %s210, 6
        %s215 = sadd.s32 %s213, %s214
        %s216 = smul.addr %s215, 4
        %s217 = scalar_lea.vmem %s0, %s216
        %s218 = smul.u32 2, %s19
      $region32: #{forward.24} parent=27 // pred_fallthru
        _
      // Predicated region
      $region33: #{forward.24} parent=27 // pred_check
        %p219 = pneg %p80
      $region34: #{forward.24} parent=27 // pred_check_branch
        %221 = sbr.rel (%p219) target = $region36
      $region35: #{forward.24} parent=27 // pred_region
        %s222 = smul.u32 2, %s20
        %p223 = scmp.lt.s32.totalorder %s18, 1
        %s224 = scalar_select %p223, %s18, 1
        %p225 = scmp.lt.s32.totalorder %s222, 1
        %s226 = scalar_select %p225, %s222, 1
        %s227 = smul.addr %s226, 3
        %s228 = smul.addr %s224, 6
        %s229 = sadd.s32 %s227, %s228
        %s230 = smul.addr %s229, 4
        %s231 = scalar_lea.vmem %s1, %s230
        %s232 = smul.u32 2, %s20
      $region36: #{forward.24} parent=27 // pred_fallthru
        _
    $region28: #{forward.24} parent=5 // pred_fallthru
      _
    %p233 = scmp.le.s32.totalorder 1, %s11
    %p234 = scmp.lt.s32.totalorder %s11, 3
    %p235 = pnand %p233, %p234
    %p236 = pneg %p235
    // Predicated region
    $region37: #{forward.24} parent=5 // pred_check
      _
    $region38: #{forward.24} parent=5 // pred_check_branch
      %238 = sbr.rel (%p235) target = $region40
    $region39: #{forward.24} parent=5 // pred_region
      %s239 = ssub.s32 %s11, 1
      %s240 = smul.u32 2, %s22
      %p241 = scmp.lt.s32.totalorder %s21, 1
      %s242 = scalar_select %p241, %s21, 1
      %p243 = scmp.lt.s32.totalorder %s240, 1
      %s244 = scalar_select %p243, %s240, 1
      %s245 = smul.addr %s244, 3
      %s246 = smul.addr %s242, 6
      %s247 = sadd.s32 %s245, %s246
      %s248 = smul.addr %s247, 4
      %s249 = scalar_lea.vmem %s0, %s248
      %p250 = pneg %p58
      %p251 = pneg %p55
      %s252 = smul.u32 2, %s23
      %p253 = scmp.lt.s32.totalorder %s21, 1
      %s254 = scalar_select %p253, %s21, 1
      %p255 = scmp.lt.s32.totalorder %s252, 1
      %s256 = scalar_select %p255, %s252, 1
      %s257 = smul.addr %s256, 3
      %s258 = smul.addr %s254, 6
      %s259 = sadd.s32 %s257, %s258
      %s260 = smul.addr %s259, 4
      %s261 = scalar_lea.vmem %s1, %s260
      %p262 = pneg %p86
      %p263 = pneg %p83
      %p264 = pneg %p107
      %p265 = pneg %p104
      %p266 = pneg %p128
      %p267 = pneg %p125
      %p268 = pneg %p149
      %p269 = pneg %p146
      %p270 = pneg %p177
      %p271 = pneg %p174
      %s272 = smul.u32 2, %s22
      %p273 = scmp.lt.s32.totalorder %s21, 1
      %s274 = scalar_select %p273, %s21, 1
      %p275 = scmp.lt.s32.totalorder %s272, 1
      %s276 = scalar_select %p275, %s272, 1
      %s277 = smul.addr %s276, 2
      %s278 = smul.addr %s274, 4
      %s279 = sadd.s32 %s277, %s278
      %s280 = smul.addr %s279, 4
      %s281 = scalar_lea.vmem %s5, %s280
      %s282 = smul.u32 2, %s22
      %p283 = scmp.lt.s32.totalorder %s21, 1
      %s284 = scalar_select %p283, %s21, 1
      %p285 = scmp.lt.s32.totalorder %s282, 1
      %s286 = scalar_select %p285, %s282, 1
      %s287 = smul.addr %s286, 3
      %s288 = smul.addr %s284, 6
      %s289 = sadd.s32 %s287, %s288
      %s290 = smul.addr %s289, 4
      %s291 = scalar_lea.vmem %s0, %s290
      %s292 = smul.u32 2, %s22
      %s293 = smul.u32 2, %s23
      %p294 = scmp.lt.s32.totalorder %s21, 1
      %s295 = scalar_select %p294, %s21, 1
      %p296 = scmp.lt.s32.totalorder %s293, 1
      %s297 = scalar_select %p296, %s293, 1
      %s298 = smul.addr %s297, 3
      %s299 = smul.addr %s295, 6
      %s300 = sadd.s32 %s298, %s299
      %s301 = smul.addr %s300, 4
      %s302 = scalar_lea.vmem %s1, %s301
      %s303 = smul.u32 2, %s23
      %s304 = smul.u32 2, %s22
      %p305 = scmp.lt.s32.totalorder %s21, 1
      %s306 = scalar_select %p305, %s21, 1
      %p307 = scmp.lt.s32.totalorder %s304, 1
      %s308 = scalar_select %p307, %s304, 1
      %s309 = smul.addr %s308, 2
      %s310 = smul.addr %s306, 4
      %s311 = sadd.s32 %s309, %s310
      %s312 = smul.addr %s311, 4
      %s313 = scalar_lea.vmem %s5, %s312
      %s314 = smul.u32 2, %s22
      %p317 = scmp.eq.s32.totalorder %s23, 0
      // Predicated region
      $region41: #{forward.24} parent=39 // pred_check
        %p318 = pneg %p317
      $region42: #{forward.24} parent=39 // pred_check_branch
        %320 = sbr.rel (%p318) target = $region44
      $region43: #{forward.24} parent=39 // pred_region
        %v321 = vld [vmem:[%s291] sm:$0xff]
        %v322 = vld [vmem:[%s291 + $0x8] sm:$0xf]
        %v323 = vld [vmem:[%s291 + $0xc] sm:$0xff]
        %v324 = vld [vmem:[%s291 + $0x14] sm:$0xf]
        %v325 = vmul.bf16 %v321, 1092632864
        %v326 = vmul.bf16 %v322, 1092632864
        %v327 = vmul.bf16 %v323, 1092632864
        %v328 = vmul.bf16 %v324, 1092632864
        %329 = vst [vmem:[#allocation2] sm:$0xff] %v325
        %vm330 = vcmask 519168
        %331 = vst.msk [vmem:[#allocation2 + $0x8] sm:$0xf] %vm330, %v326
        %332 = vst [vmem:[#allocation2 + $0xc] sm:$0xff] %v327
        %333 = vst.msk [vmem:[#allocation2 + $0x14] sm:$0xf] %vm330, %v328
        %vm334 = vcmask 7168
        %335 = vst.msk [vmem:[#allocation3] sm:$0xff] %vm334, -inf
        %336 = vst.msk [vmem:[#allocation3 + $0x8] sm:$0xff] %vm334, -inf
        %337 = vst.msk [vmem:[#allocation4] sm:$0xff] %vm334, 0.0
        %338 = vst.msk [vmem:[#allocation4 + $0x8] sm:$0xff] %vm334, 0.0
        %339 = vst [vmem:[#allocation5] sm:$0xff] 0.0
        %340 = vst [vmem:[#allocation5 + $0x8] sm:$0xff] 0.0
        %vm341 = vcmask 523264
        %342 = vst.msk [vmem:[#allocation5 + $0x10] sm:$0xff] %vm341, 0.0
        %343 = vst [vmem:[#allocation5 + $0x18] sm:$0xff] 0.0
        %344 = vst [vmem:[#allocation5 + $0x20] sm:$0xff] 0.0
        %345 = vst.msk [vmem:[#allocation5 + $0x28] sm:$0xff] %vm341, 0.0
      $region44: #{forward.24} parent=39 // pred_fallthru
        _
      %v346 = vld [vmem:[%s302] sm:$0xff]
      %v347 = vld [vmem:[%s302 + $0x8] sm:$0xf]
      %v348 = vld [vmem:[%s302 + $0xc] sm:$0xff]
      %v349 = vld [vmem:[%s302 + $0x14] sm:$0xf]
      %v350 = vld [vmem:[#allocation2] sm:$0xff]
      %v351 = vld [vmem:[#allocation2 + $0x8] sm:$0xf]
      %v352 = vld [vmem:[#allocation2 + $0xc] sm:$0xff]
      %v353 = vld [vmem:[#allocation2 + $0x14] sm:$0xf]
      %v358 = vunpack.c.l.b16 %v350
      %v359 = vunpack.c.h.b16 %v350
      %v360 = vunpack.c.l.b16 %v351
      %v361 = vunpack.c.l.b16 %v352
      %v362 = vunpack.c.h.b16 %v352
      %v363 = vunpack.c.l.b16 %v353
      %v364 = vpack.c.b16 %v361, %v358
      %v365 = vpack.c.b16 %v362, %v359
      %v366 = vpack.c.b16 %v363, %v360
      %v373 = vunpack.c.l.b16 %v346
      %v374 = vunpack.c.h.b16 %v346
      %v375 = vunpack.c.l.b16 %v347
      %v376 = vunpack.c.l.b16 %v348
      %v377 = vunpack.c.h.b16 %v348
      %v378 = vunpack.c.l.b16 %v349
      %v379 = vpack.c.b16 %v376, %v373
      %v380 = vpack.c.b16 %v377, %v374
      %v381 = vpack.c.b16 %v378, %v375
      %vm384 = vcmask 523264
      %v386 = vsel %vm384, %v366, 0
      %v389 = vsel %vm384, %v381, 0
      %391 = vmatprep.subr.bf16.mxu0 0
      %392 = vmatpush1.bf16.xpose.msra.mxu0 0
      %393 = vmatprep.subr.bf16.mxu0 0
      %394 = vmatpush1.bf16.xpose.msra.mxu0 0
      %395 = vmatprep.subr.bf16.mxu0 0
      %396 = vmatpush1.bf16.xpose.msra.mxu0 0
      %397 = vmatprep.subr.bf16.mxu0 0
      %398 = vmatpush1.bf16.xpose.msra.mxu0 0
      %399 = vmatprep.subr.bf16.mxu0 0
      %400 = vmatpush1.bf16.xpose.msra.mxu0 0
      %401 = vmatprep.subr.bf16.mxu0 0
      %402 = vmatpush1.bf16.xpose.msra.mxu0 0
      %403 = vmatprep.subr.bf16.mxu0 0
      %404 = vmatpush1.bf16.xpose.msra.mxu0 0
      %405 = vmatprep.subr.bf16.mxu0 %v380
      %406 = vmatpush1.bf16.xpose.msra.mxu0 %v379
      %407 = vmatprep.subr.bf16.mxu0 0
      %408 = vmatpush2.bf16.xpose.msra.mxu0 0
      %409 = vmatprep.subr.bf16.mxu0 0
      %410 = vmatpush2.bf16.xpose.msra.mxu0 0
      %411 = vmatprep.subr.bf16.mxu0 0
      %412 = vmatpush2.bf16.xpose.msra.mxu0 0
      %413 = vmatprep.subr.bf16.mxu0 0
      %414 = vmatpush2.bf16.xpose.msra.mxu0 0
      %415 = vmatprep.subr.bf16.mxu0 0
      %416 = vmatpush2.bf16.xpose.msra.mxu0 0
      %417 = vmatprep.subr.bf16.mxu0 0
      %418 = vmatpush2.bf16.xpose.msra.mxu0 0
      %419 = vmatprep.subr.bf16.mxu0 0
      %420 = vmatpush2.bf16.xpose.msra.mxu0 0
      %421 = vmatprep.subr.bf16.mxu0 0
      %422 = vmatpush2.bf16.xpose.msra.mxu0 0
      %423 = vmatprep.mubr.bf16.mxu0 %v365
      %424 = vmatmul.mubr.bf16.gmra.mxu0 %v364
      %v425 = vpop.f32.mrf.mxu0
      %v426 = vadd.f32 0.0, %v425
      %v427 = vpop.f32.mrf.mxu0
      %v428 = vpop.f32.mrf.mxu0
      %v429 = vadd.f32 0.0, %v428
      %v430 = vpop.f32.mrf.mxu0
      %431 = vdwg.mxu0
      %432 = vmatprep.subr.bf16.mxu0 0
      %433 = vmatpush1.bf16.xpose.msra.mxu0 0
      %434 = vmatprep.subr.bf16.mxu0 0
      %435 = vmatpush1.bf16.xpose.msra.mxu0 0
      %436 = vmatprep.subr.bf16.mxu0 0
      %437 = vmatpush1.bf16.xpose.msra.mxu0 0
      %438 = vmatprep.subr.bf16.mxu0 0
      %439 = vmatpush1.bf16.xpose.msra.mxu0 0
      %440 = vmatprep.subr.bf16.mxu0 0
      %441 = vmatpush1.bf16.xpose.msra.mxu0 0
      %442 = vmatprep.subr.bf16.mxu0 0
      %443 = vmatpush1.bf16.xpose.msra.mxu0 0
      %444 = vmatprep.subr.bf16.mxu0 0
      %445 = vmatpush1.bf16.xpose.msra.mxu0 0
      %446 = vmatprep.subr.bf16.mxu0 0
      %447 = vmatpush1.bf16.xpose.msra.mxu0 %v389
      %448 = vmatprep.subr.bf16.mxu0 0
      %449 = vmatpush2.bf16.xpose.msra.mxu0 0
      %450 = vmatprep.subr.bf16.mxu0 0
      %451 = vmatpush2.bf16.xpose.msra.mxu0 0
      %452 = vmatprep.subr.bf16.mxu0 0
      %453 = vmatpush2.bf16.xpose.msra.mxu0 0
      %454 = vmatprep.subr.bf16.mxu0 0
      %455 = vmatpush2.bf16.xpose.msra.mxu0 0
      %456 = vmatprep.subr.bf16.mxu0 0
      %457 = vmatpush2.bf16.xpose.msra.mxu0 0
      %458 = vmatprep.subr.bf16.mxu0 0
      %459 = vmatpush2.bf16.xpose.msra.mxu0 0
      %460 = vmatprep.subr.bf16.mxu0 0
      %461 = vmatpush2.bf16.xpose.msra.mxu0 0
      %462 = vmatprep.subr.bf16.mxu0 0
      %463 = vmatpush2.bf16.xpose.msra.mxu0 0
      %464 = vmatprep.mubr.bf16.mxu0 0
      %465 = vmatmul.mubr.bf16.gmra.mxu0 %v386
      %v466 = vpop.f32.mrf.mxu0
      %v467 = vadd.f32 %v426, %v466
      %v468 = vpop.f32.mrf.mxu0
      %v469 = vpop.f32.mrf.mxu0
      %v470 = vadd.f32 %v429, %v469
      %v471 = vpop.f32.mrf.mxu0
      %472 = vdwg.mxu0
      %v473 = vld [vmem:[#allocation3] sm:$0xff]
      %v474 = vld [vmem:[#allocation3 + $0x8] sm:$0xff]
      %vm475 = vcmask 130048
      %v476 = vsel %vm475, %v467, -inf
      %477 = vmax.xlane.f32.xlu0 %v476
      %v478 = vpop.xlane.xlu0 %477
      %v479 = vsel %vm475, %v470, -inf
      %480 = vmax.xlane.f32.xlu0 %v479
      %v481 = vpop.xlane.xlu0 %480
      %v482 = vmax.f32 %v473, %v478
      %v483 = vmax.f32 %v474, %v481
      %v484 = vsub.f32 %v473, %v482
      %v485 = vsub.f32 %v474, %v483
      %v486 = vmul.f32 %v484, 1.442695
      %v487 = vpow.pop %v486
      %v488 = vmul.f32 %v485, 1.442695
      %v489 = vpow.pop %v488
      %491 = vset.pattern.permute.xlu0 0
      %492 = vperm.xlu0 %491, %v482
      %v493 = vpop.permute.xlu0 %492
      %496 = vset.pattern.permute.xlu0 0
      %497 = vperm.xlu0 %496, %v483
      %v498 = vpop.permute.xlu0 %497
      %v500 = vsub.f32 %v467, %v493
      %v501 = vsub.f32 %v470, %v498
      %v502 = vmul.f32 %v500, 1.442695
      %v503 = vpow.pop %v502
      %v504 = vmul.f32 %v501, 1.442695
      %v505 = vpow.pop %v504
      %v506 = vld [vmem:[#allocation4] sm:$0xff]
      %v507 = vld [vmem:[#allocation4 + $0x8] sm:$0xff]
      %v508 = vmul.f32 %v487, %v506
      %v509 = vmul.f32 %v489, %v507
      %v510 = vsel %vm475, %v503, 0.0
      %511 = vadd.xlane.f32.xlu0 %v510
      %v512 = vpop.xlane.xlu0 %511
      %v513 = vsel %vm475, %v505, 0.0
      %514 = vadd.xlane.f32.xlu0 %v513
      %v515 = vpop.xlane.xlu0 %514
      %v516 = vadd.f32 %v508, %v512
      %v517 = vadd.f32 %v509, %v515
      %vm518 = vcmask 7168
      %519 = vst.msk [vmem:[#allocation4] sm:$0xff] %vm518, %v516
      %520 = vst.msk [vmem:[#allocation4 + $0x8] sm:$0xff] %vm518, %v517
      %v521 = vld [vmem:[#allocation5] sm:$0xff]
      %v522 = vld [vmem:[#allocation5 + $0x8] sm:$0xff]
      %v523 = vld [vmem:[#allocation5 + $0x10] sm:$0xff]
      %v524 = vld [vmem:[#allocation5 + $0x18] sm:$0xff]
      %v525 = vld [vmem:[#allocation5 + $0x20] sm:$0xff]
      %v526 = vld [vmem:[#allocation5 + $0x28] sm:$0xff]
      %528 = vset.pattern.permute.xlu0 0
      %529 = vperm.xlu0 %528, %v487
      %v530 = vpop.permute.xlu0 %529
      %533 = vset.pattern.permute.xlu0 0
      %534 = vperm.xlu0 %533, %v489
      %v535 = vpop.permute.xlu0 %534
      %v537 = vmul.f32 %v530, %v521
      %v538 = vmul.f32 %v530, %v522
      %v539 = vmul.f32 %v530, %v523
      %v540 = vmul.f32 %v535, %v524
      %v541 = vmul.f32 %v535, %v525
      %v542 = vmul.f32 %v535, %v526
      %v543 = vpack.c.bf16 %v505, %v503
      %v546 = vsel %vm475, %v543, 0
      %548 = vmatprep.subr.bf16.mxu0 0
      %549 = vmatpush1.bf16.msra.mxu0 0
      %550 = vmatprep.subr.bf16.mxu0 0
      %551 = vmatpush1.bf16.msra.mxu0 0
      %552 = vmatprep.subr.bf16.mxu0 0
      %553 = vmatpush1.bf16.msra.mxu0 0
      %554 = vmatprep.subr.bf16.mxu0 0
      %555 = vmatpush1.bf16.msra.mxu0 0
      %556 = vmatprep.subr.bf16.mxu0 0
      %557 = vmatpush1.bf16.msra.mxu0 0
      %558 = vmatprep.subr.bf16.mxu0 0
      %559 = vmatpush1.bf16.msra.mxu0 0
      %560 = vmatprep.subr.bf16.mxu0 0
      %561 = vmatpush1.bf16.msra.mxu0 0
      %562 = vmatprep.subr.bf16.mxu0 %v380
      %563 = vmatpush1.bf16.msra.mxu0 %v379
      %564 = vmatprep.subr.bf16.mxu0 0
      %565 = vmatpush2.bf16.msra.mxu0 0
      %566 = vmatprep.subr.bf16.mxu0 0
      %567 = vmatpush2.bf16.msra.mxu0 0
      %568 = vmatprep.subr.bf16.mxu0 0
      %569 = vmatpush2.bf16.msra.mxu0 0
      %570 = vmatprep.subr.bf16.mxu0 0
      %571 = vmatpush2.bf16.msra.mxu0 0
      %572 = vmatprep.subr.bf16.mxu0 0
      %573 = vmatpush2.bf16.msra.mxu0 0
      %574 = vmatprep.subr.bf16.mxu0 0
      %575 = vmatpush2.bf16.msra.mxu0 0
      %576 = vmatprep.subr.bf16.mxu0 0
      %577 = vmatpush2.bf16.msra.mxu0 0
      %578 = vmatprep.subr.bf16.mxu0 0
      %579 = vmatpush2.bf16.msra.mxu0 0
      %580 = vmatprep.mubr.bf16.mxu0 0
      %581 = vmatmul.mubr.bf16.gmra.mxu0 %v546
      %v582 = vpop.f32.mrf.mxu0
      %v583 = vadd.f32 0.0, %v582
      %v584 = vpop.f32.mrf.mxu0
      %v585 = vadd.f32 0.0, %v584
      %v586 = vpop.f32.mrf.mxu0
      %v587 = vadd.f32 0.0, %v586
      %v588 = vpop.f32.mrf.mxu0
      %v589 = vadd.f32 0.0, %v588
      %590 = vdwg.mxu0
      %591 = vmatprep.subr.bf16.mxu0 0
      %592 = vmatpush1.bf16.msra.mxu0 0
      %593 = vmatprep.subr.bf16.mxu0 0
      %594 = vmatpush1.bf16.msra.mxu0 0
      %595 = vmatprep.subr.bf16.mxu0 0
      %596 = vmatpush1.bf16.msra.mxu0 0
      %597 = vmatprep.subr.bf16.mxu0 0
      %598 = vmatpush1.bf16.msra.mxu0 0
      %599 = vmatprep.subr.bf16.mxu0 0
      %600 = vmatpush1.bf16.msra.mxu0 0
      %601 = vmatprep.subr.bf16.mxu0 0
      %602 = vmatpush1.bf16.msra.mxu0 0
      %603 = vmatprep.subr.bf16.mxu0 0
      %604 = vmatpush1.bf16.msra.mxu0 0
      %605 = vmatprep.subr.bf16.mxu0 0
      %606 = vmatpush1.bf16.msra.mxu0 %v381
      %607 = vmatprep.subr.bf16.mxu0 0
      %608 = vmatpush2.bf16.msra.mxu0 0
      %609 = vmatprep.subr.bf16.mxu0 0
      %610 = vmatpush2.bf16.msra.mxu0 0
      %611 = vmatprep.subr.bf16.mxu0 0
      %612 = vmatpush2.bf16.msra.mxu0 0
      %613 = vmatprep.subr.bf16.mxu0 0
      %614 = vmatpush2.bf16.msra.mxu0 0
      %615 = vmatprep.subr.bf16.mxu0 0
      %616 = vmatpush2.bf16.msra.mxu0 0
      %617 = vmatprep.subr.bf16.mxu0 0
      %618 = vmatpush2.bf16.msra.mxu0 0
      %619 = vmatprep.subr.bf16.mxu0 0
      %620 = vmatpush2.bf16.msra.mxu0 0
      %621 = vmatprep.subr.bf16.mxu0 0
      %622 = vmatpush2.bf16.msra.mxu0 0
      %623 = vmatprep.mubr.bf16.mxu0 0
      %624 = vmatmul.mubr.bf16.gmra.mxu0 %v546
      %v625 = vpop.f32.mrf.mxu0
      %v626 = vadd.f32 0.0, %v625
      %v627 = vpop.f32.mrf.mxu0
      %v628 = vpop.f32.mrf.mxu0
      %v629 = vadd.f32 0.0, %v628
      %v630 = vpop.f32.mrf.mxu0
      %631 = vdwg.mxu0
      %v632 = vadd.f32 %v537, %v583
      %v633 = vadd.f32 %v538, %v585
      %v634 = vadd.f32 %v539, %v626
      %v635 = vadd.f32 %v540, %v587
      %v636 = vadd.f32 %v541, %v589
      %v637 = vadd.f32 %v542, %v629
      %638 = vst [vmem:[#allocation5] sm:$0xff] %v632
      %639 = vst [vmem:[#allocation5 + $0x8] sm:$0xff] %v633
      %640 = vst.msk [vmem:[#allocation5 + $0x10] sm:$0xff] %vm384, %v634
      %641 = vst [vmem:[#allocation5 + $0x18] sm:$0xff] %v635
      %642 = vst [vmem:[#allocation5 + $0x20] sm:$0xff] %v636
      %643 = vst.msk [vmem:[#allocation5 + $0x28] sm:$0xff] %vm384, %v637
      %644 = vst.msk [vmem:[#allocation3] sm:$0xff] %vm518, %v482
      %645 = vst.msk [vmem:[#allocation3 + $0x8] sm:$0xff] %vm518, %v483
      // Predicated region
      $region45: #{forward.24} parent=39 // pred_check
        %p646 = pneg %p317
      $region46: #{forward.24} parent=39 // pred_check_branch
        %648 = sbr.rel (%p646) target = $region48
      $region47: #{forward.24} parent=39 // pred_region
        %v649 = vld [vmem:[#allocation4] sm:$0xff]
        %v650 = vld [vmem:[#allocation4 + $0x8] sm:$0xff]
        %v651 = vrcp.pop %v649
        %v652 = vrcp.pop %v650
        %v653 = vld [vmem:[#allocation5] sm:$0xff]
        %v654 = vld [vmem:[#allocation5 + $0x8] sm:$0xff]
        %v655 = vld [vmem:[#allocation5 + $0x10] sm:$0xff]
        %v656 = vld [vmem:[#allocation5 + $0x18] sm:$0xff]
        %v657 = vld [vmem:[#allocation5 + $0x20] sm:$0xff]
        %v658 = vld [vmem:[#allocation5 + $0x28] sm:$0xff]
        %660 = vset.pattern.permute.xlu0 0
        %661 = vperm.xlu0 %660, %v651
        %v662 = vpop.permute.xlu0 %661
        %665 = vset.pattern.permute.xlu0 0
        %666 = vperm.xlu0 %665, %v652
        %v667 = vpop.permute.xlu0 %666
        %v669 = vmul.f32 %v653, %v662
        %v670 = vmul.f32 %v654, %v662
        %v671 = vmul.f32 %v655, %v662
        %v672 = vmul.f32 %v656, %v667
        %v673 = vmul.f32 %v657, %v667
        %v674 = vmul.f32 %v658, %v667
        %v675 = vpack.c.bf16 %v672, %v669
        %v676 = vpack.c.bf16 %v673, %v670
        %v677 = vpack.c.bf16 %v674, %v671
        %v678 = vld [vmem:[%s291] sm:$0xff]
        %v679 = vld [vmem:[%s291 + $0x8] sm:$0xf]
        %v680 = vld [vmem:[%s291 + $0xc] sm:$0xff]
        %v681 = vld [vmem:[%s291 + $0x14] sm:$0xf]
        %v682 = vld [vmem:[%s2] sm:$0xff]
        %v683 = vld [vmem:[%s2 + $0x8] sm:$0xff]
        %v684 = vld [vmem:[%s2 + $0x10] sm:$0xff]
        %v685 = vld [vmem:[%s2 + $0x18] sm:$0xff]
        %v686 = vld [vmem:[%s2 + $0x20] sm:$0xff]
        %v687 = vld [vmem:[%s2 + $0x28] sm:$0xff]
        %v688 = vld [vmem:[%s2 + $0x30] sm:$0xff]
        %v689 = vld [vmem:[%s2 + $0x38] sm:$0xff]
        %v690 = vld [vmem:[%s2 + $0x40] sm:$0xff]
        %v691 = vld [vmem:[%s2 + $0x48] sm:$0xff]
        %v692 = vld [vmem:[%s2 + $0x50] sm:$0xff]
        %v693 = vld [vmem:[%s2 + $0x58] sm:$0xff]
        %v694 = vld [vmem:[%s2 + $0x60] sm:$0xff]
        %v695 = vld [vmem:[%s2 + $0x68] sm:$0xff]
        %v696 = vld [vmem:[%s2 + $0x70] sm:$0xff]
        %v697 = vld [vmem:[%s2 + $0x78] sm:$0xff]
        %v698 = vld [vmem:[%s2 + $0x80] sm:$0xff]
        %v699 = vld [vmem:[%s2 + $0x88] sm:$0xff]
        %v700 = vld [vmem:[%s2 + $0x90] sm:$0xff]
        %v701 = vld [vmem:[%s2 + $0x98] sm:$0xff]
        %v702 = vld [vmem:[%s2 + $0xa0] sm:$0xff]
        %v703 = vld [vmem:[%s2 + $0xa8] sm:$0xff]
        %v704 = vld [vmem:[%s2 + $0xb0] sm:$0xff]
        %v705 = vld [vmem:[%s2 + $0xb8] sm:$0xff]
        %v706 = vld [vmem:[%s2 + $0xc0] sm:$0xff]
        %v707 = vld [vmem:[%s2 + $0xc8] sm:$0xff]
        %v708 = vld [vmem:[%s2 + $0xd0] sm:$0xff]
        %v709 = vld [vmem:[%s2 + $0xd8] sm:$0xff]
        %v710 = vld [vmem:[%s2 + $0xe0] sm:$0xff]
        %v711 = vld [vmem:[%s2 + $0xe8] sm:$0xff]
        %v712 = vld [vmem:[%s2 + $0xf0] sm:$0xff]
        %v713 = vld [vmem:[%s2 + $0xf8] sm:$0xff]
        %v714 = vld [vmem:[%s2 + $0x100] sm:$0xff]
        %v715 = vld [vmem:[%s2 + $0x108] sm:$0xff]
        %v716 = vld [vmem:[%s2 + $0x110] sm:$0xff]
        %v717 = vld [vmem:[%s2 + $0x118] sm:$0xff]
        %v718 = vld [vmem:[%s2 + $0x120] sm:$0xff]
        %v719 = vld [vmem:[%s2 + $0x128] sm:$0xff]
        %v720 = vld [vmem:[%s2 + $0x130] sm:$0xff]
        %v721 = vld [vmem:[%s2 + $0x138] sm:$0xff]
        %v722 = vld [vmem:[%s3] sm:$0xff]
        %v723 = vld [vmem:[%s3 + $0x8] sm:$0xff]
        %v724 = vld [vmem:[%s3 + $0x10] sm:$0xff]
        %v725 = vld [vmem:[%s3 + $0x18] sm:$0xff]
        %v726 = vld [vmem:[%s3 + $0x20] sm:$0xff]
        %v727 = vld [vmem:[%s3 + $0x28] sm:$0xff]
        %v728 = vld [vmem:[%s3 + $0x30] sm:$0xff]
        %v729 = vld [vmem:[%s3 + $0x38] sm:$0xff]
        %v730 = vld [vmem:[%s3 + $0x40] sm:$0xff]
        %v731 = vld [vmem:[%s3 + $0x48] sm:$0xff]
        %v732 = vld [vmem:[%s3 + $0x50] sm:$0xff]
        %v733 = vld [vmem:[%s3 + $0x58] sm:$0xff]
        %v734 = vld [vmem:[%s3 + $0x60] sm:$0xff]
        %v735 = vld [vmem:[%s3 + $0x68] sm:$0xff]
        %v736 = vld [vmem:[%s3 + $0x70] sm:$0xff]
        %v737 = vld [vmem:[%s3 + $0x78] sm:$0xff]
        %v738 = vld [vmem:[%s3 + $0x80] sm:$0xff]
        %v739 = vld [vmem:[%s3 + $0x88] sm:$0xff]
        %v740 = vld [vmem:[%s3 + $0x90] sm:$0xff]
        %v741 = vld [vmem:[%s3 + $0x98] sm:$0xff]
        %v742 = vld [vmem:[%s3 + $0xa0] sm:$0xff]
        %v743 = vld [vmem:[%s3 + $0xa8] sm:$0xff]
        %v744 = vld [vmem:[%s3 + $0xb0] sm:$0xff]
        %v745 = vld [vmem:[%s3 + $0xb8] sm:$0xff]
        %v746 = vld [vmem:[%s3 + $0xc0] sm:$0xff]
        %v747 = vld [vmem:[%s3 + $0xc8] sm:$0xff]
        %v748 = vld [vmem:[%s3 + $0xd0] sm:$0xff]
        %v749 = vld [vmem:[%s3 + $0xd8] sm:$0xff]
        %v750 = vld [vmem:[%s3 + $0xe0] sm:$0xff]
        %v751 = vld [vmem:[%s3 + $0xe8] sm:$0xff]
        %v752 = vld [vmem:[%s3 + $0xf0] sm:$0xff]
        %v753 = vld [vmem:[%s3 + $0xf8] sm:$0xff]
        %v754 = vld [vmem:[%s3 + $0x100] sm:$0xff]
        %v755 = vld [vmem:[%s3 + $0x108] sm:$0xff]
        %v756 = vld [vmem:[%s3 + $0x110] sm:$0xff]
        %v757 = vld [vmem:[%s3 + $0x118] sm:$0xff]
        %v758 = vld [vmem:[%s3 + $0x120] sm:$0xff]
        %v759 = vld [vmem:[%s3 + $0x128] sm:$0xff]
        %v760 = vld [vmem:[%s3 + $0x130] sm:$0xff]
        %v761 = vld [vmem:[%s3 + $0x138] sm:$0xff]
        %v802 = vunpack.c.l.b16 %v722
        %v803 = vunpack.c.h.b16 %v722
        %v804 = vunpack.c.l.b16 %v723
        %v805 = vunpack.c.h.b16 %v723
        %v806 = vunpack.c.l.b16 %v724
        %v807 = vunpack.c.h.b16 %v724
        %v808 = vunpack.c.l.b16 %v725
        %v809 = vunpack.c.h.b16 %v725
        %v810 = vunpack.c.l.b16 %v726
        %v811 = vunpack.c.h.b16 %v726
        %v812 = vunpack.c.l.b16 %v727
        %v813 = vunpack.c.h.b16 %v727
        %v814 = vunpack.c.l.b16 %v728
        %v815 = vunpack.c.h.b16 %v728
        %v816 = vunpack.c.l.b16 %v729
        %v817 = vunpack.c.h.b16 %v729
        %v818 = vunpack.c.l.b16 %v730
        %v819 = vunpack.c.h.b16 %v730
        %v820 = vunpack.c.l.b16 %v731
        %v821 = vunpack.c.h.b16 %v731
        %v822 = vunpack.c.l.b16 %v732
        %v823 = vunpack.c.h.b16 %v732
        %v824 = vunpack.c.l.b16 %v733
        %v825 = vunpack.c.h.b16 %v733
        %v826 = vunpack.c.l.b16 %v734
        %v827 = vunpack.c.h.b16 %v734
        %v828 = vunpack.c.l.b16 %v735
        %v829 = vunpack.c.h.b16 %v735
        %v830 = vunpack.c.l.b16 %v736
        %v831 = vunpack.c.h.b16 %v736
        %v832 = vunpack.c.l.b16 %v737
        %v833 = vunpack.c.h.b16 %v737
        %v834 = vunpack.c.l.b16 %v738
        %v835 = vunpack.c.h.b16 %v738
        %v836 = vunpack.c.l.b16 %v739
        %v837 = vunpack.c.h.b16 %v739
        %v838 = vunpack.c.l.b16 %v740
        %v839 = vunpack.c.h.b16 %v740
        %v840 = vunpack.c.l.b16 %v741
        %v841 = vunpack.c.h.b16 %v741
        %v842 = vunpack.c.l.b16 %v742
        %v843 = vunpack.c.h.b16 %v742
        %v844 = vunpack.c.l.b16 %v743
        %v845 = vunpack.c.h.b16 %v743
        %v846 = vunpack.c.l.b16 %v744
        %v847 = vunpack.c.h.b16 %v744
        %v848 = vunpack.c.l.b16 %v745
        %v849 = vunpack.c.h.b16 %v745
        %v850 = vunpack.c.l.b16 %v746
        %v851 = vunpack.c.h.b16 %v746
        %v852 = vunpack.c.l.b16 %v747
        %v853 = vunpack.c.h.b16 %v747
        %v854 = vunpack.c.l.b16 %v748
        %v855 = vunpack.c.h.b16 %v748
        %v856 = vunpack.c.l.b16 %v749
        %v857 = vunpack.c.h.b16 %v749
        %v858 = vunpack.c.l.b16 %v750
        %v859 = vunpack.c.h.b16 %v750
        %v860 = vunpack.c.l.b16 %v751
        %v861 = vunpack.c.h.b16 %v751
        %v862 = vunpack.c.l.b16 %v752
        %v863 = vunpack.c.h.b16 %v752
        %v864 = vunpack.c.l.b16 %v753
        %v865 = vunpack.c.h.b16 %v753
        %v866 = vunpack.c.l.b16 %v754
        %v867 = vunpack.c.h.b16 %v754
        %v868 = vunpack.c.l.b16 %v755
        %v869 = vunpack.c.h.b16 %v755
        %v870 = vunpack.c.l.b16 %v756
        %v871 = vunpack.c.h.b16 %v756
        %v872 = vunpack.c.l.b16 %v757
        %v873 = vunpack.c.h.b16 %v757
        %v874 = vunpack.c.l.b16 %v758
        %v875 = vunpack.c.h.b16 %v758
        %v876 = vunpack.c.l.b16 %v759
        %v877 = vunpack.c.h.b16 %v759
        %v878 = vunpack.c.l.b16 %v760
        %v879 = vunpack.c.h.b16 %v760
        %v880 = vunpack.c.l.b16 %v761
        %v881 = vunpack.c.h.b16 %v761
        %v882 = vpack.c.b16 %v804, %v802
        %v883 = vpack.c.b16 %v805, %v803
        %v884 = vpack.c.b16 %v808, %v806
        %v885 = vpack.c.b16 %v809, %v807
        %v886 = vpack.c.b16 %v812, %v810
        %v887 = vpack.c.b16 %v813, %v811
        %v888 = vpack.c.b16 %v816, %v814
        %v889 = vpack.c.b16 %v817, %v815
        %v890 = vpack.c.b16 %v820, %v818
        %v891 = vpack.c.b16 %v821, %v819
        %v892 = vpack.c.b16 %v824, %v822
        %v893 = vpack.c.b16 %v825, %v823
        %v894 = vpack.c.b16 %v828, %v826
        %v895 = vpack.c.b16 %v829, %v827
        %v896 = vpack.c.b16 %v832, %v830
        %v897 = vpack.c.b16 %v833, %v831
        %v898 = vpack.c.b16 %v836, %v834
        %v899 = vpack.c.b16 %v837, %v835
        %v900 = vpack.c.b16 %v840, %v838
        %v901 = vpack.c.b16 %v841, %v839
        %v902 = vpack.c.b16 %v844, %v842
        %v903 = vpack.c.b16 %v845, %v843
        %v904 = vpack.c.b16 %v848, %v846
        %v905 = vpack.c.b16 %v849, %v847
        %v906 = vpack.c.b16 %v852, %v850
        %v907 = vpack.c.b16 %v853, %v851
        %v908 = vpack.c.b16 %v856, %v854
        %v909 = vpack.c.b16 %v857, %v855
        %v910 = vpack.c.b16 %v860, %v858
        %v911 = vpack.c.b16 %v861, %v859
        %v912 = vpack.c.b16 %v864, %v862
        %v913 = vpack.c.b16 %v865, %v863
        %v914 = vpack.c.b16 %v868, %v866
        %v915 = vpack.c.b16 %v869, %v867
        %v916 = vpack.c.b16 %v872, %v870
        %v917 = vpack.c.b16 %v873, %v871
        %v918 = vpack.c.b16 %v876, %v874
        %v919 = vpack.c.b16 %v877, %v875
        %v920 = vpack.c.b16 %v880, %v878
        %v921 = vpack.c.b16 %v881, %v879
        %v963 = vsel %vm384, %v677, 0
        %965 = vmatprep.subr.bf16.mxu0 %v897
        %966 = vmatpush1.bf16.msra.mxu0 %v896
        %967 = vmatprep.subr.bf16.mxu0 %v895
        %968 = vmatpush1.bf16.msra.mxu0 %v894
        %969 = vmatprep.subr.bf16.mxu0 %v893
        %970 = vmatpush1.bf16.msra.mxu0 %v892
        %971 = vmatprep.subr.bf16.mxu0 %v891
        %972 = vmatpush1.bf16.msra.mxu0 %v890
        %973 = vmatprep.subr.bf16.mxu0 %v889
        %974 = vmatpush1.bf16.msra.mxu0 %v888
        %975 = vmatprep.subr.bf16.mxu0 %v887
        %976 = vmatpush1.bf16.msra.mxu0 %v886
        %977 = vmatprep.subr.bf16.mxu0 %v885
        %978 = vmatpush1.bf16.msra.mxu0 %v884
        %979 = vmatprep.subr.bf16.mxu0 %v883
        %980 = vmatpush1.bf16.msra.mxu0 %v882
        %981 = vmatprep.subr.bf16.mxu0 %v913
        %982 = vmatpush2.bf16.msra.mxu0 %v912
        %983 = vmatprep.subr.bf16.mxu0 %v911
        %984 = vmatpush2.bf16.msra.mxu0 %v910
        %985 = vmatprep.subr.bf16.mxu0 %v909
        %986 = vmatpush2.bf16.msra.mxu0 %v908
        %987 = vmatprep.subr.bf16.mxu0 %v907
        %988 = vmatpush2.bf16.msra.mxu0 %v906
        %989 = vmatprep.subr.bf16.mxu0 %v905
        %990 = vmatpush2.bf16.msra.mxu0 %v904
        %991 = vmatprep.subr.bf16.mxu0 %v903
        %992 = vmatpush2.bf16.msra.mxu0 %v902
        %993 = vmatprep.subr.bf16.mxu0 %v901
        %994 = vmatpush2.bf16.msra.mxu0 %v900
        %995 = vmatprep.subr.bf16.mxu0 %v899
        %996 = vmatpush2.bf16.msra.mxu0 %v898
        %997 = vmatprep.mubr.bf16.mxu0 %v676
        %998 = vmatmul.mubr.bf16.gmra.mxu0 %v675
        %v999 = vpop.f32.mrf.mxu0
        %v1000 = vadd.f32 0.0, %v999
        %v1001 = vpop.f32.mrf.mxu0
        %v1002 = vadd.f32 0.0, %v1001
        %v1003 = vpop.f32.mrf.mxu0
        %v1004 = vadd.f32 0.0, %v1003
        %v1005 = vpop.f32.mrf.mxu0
        %v1006 = vadd.f32 0.0, %v1005
        %1007 = vdwg.mxu0
        %1008 = vmatprep.subr.bf16.mxu0 0
        %1009 = vmatpush1.bf16.msra.mxu0 0
        %1010 = vmatprep.subr.bf16.mxu0 0
        %1011 = vmatpush1.bf16.msra.mxu0 0
        %1012 = vmatprep.subr.bf16.mxu0 0
        %1013 = vmatpush1.bf16.msra.mxu0 0
        %1014 = vmatprep.subr.bf16.mxu0 0
        %1015 = vmatpush1.bf16.msra.mxu0 0
        %1016 = vmatprep.subr.bf16.mxu0 %v921
        %1017 = vmatpush1.bf16.msra.mxu0 %v920
        %1018 = vmatprep.subr.bf16.mxu0 %v919
        %1019 = vmatpush1.bf16.msra.mxu0 %v918
        %1020 = vmatprep.subr.bf16.mxu0 %v917
        %1021 = vmatpush1.bf16.msra.mxu0 %v916
        %1022 = vmatprep.subr.bf16.mxu0 %v915
        %1023 = vmatpush1.bf16.msra.mxu0 %v914
        %1024 = vmatprep.subr.bf16.mxu0 0
        %1025 = vmatpush2.bf16.msra.mxu0 0
        %1026 = vmatprep.subr.bf16.mxu0 0
        %1027 = vmatpush2.bf16.msra.mxu0 0
        %1028 = vmatprep.subr.bf16.mxu0 0
        %1029 = vmatpush2.bf16.msra.mxu0 0
        %1030 = vmatprep.subr.bf16.mxu0 0
        %1031 = vmatpush2.bf16.msra.mxu0 0
        %1032 = vmatprep.subr.bf16.mxu0 0
        %1033 = vmatpush2.bf16.msra.mxu0 0
        %1034 = vmatprep.subr.bf16.mxu0 0
        %1035 = vmatpush2.bf16.msra.mxu0 0
        %1036 = vmatprep.subr.bf16.mxu0 0
        %1037 = vmatpush2.bf16.msra.mxu0 0
        %1038 = vmatprep.subr.bf16.mxu0 0
        %1039 = vmatpush2.bf16.msra.mxu0 0
        %1040 = vmatprep.mubr.bf16.mxu0 0
        %1041 = vmatmul.mubr.bf16.gmra.mxu0 %v963
        %v1042 = vpop.f32.mrf.mxu0
        %v1043 = vadd.f32 %v1000, %v1042
        %v1044 = vpop.f32.mrf.mxu0
        %v1045 = vadd.f32 %v1002, %v1044
        %v1046 = vpop.f32.mrf.mxu0
        %v1047 = vadd.f32 %v1004, %v1046
        %v1048 = vpop.f32.mrf.mxu0
        %v1049 = vadd.f32 %v1006, %v1048
        %1050 = vdwg.mxu0
        %v1055 = vunpack.c.l.b16 %v678
        %v1056 = vunpack.c.h.b16 %v678
        %v1057 = vunpack.c.l.b16 %v679
        %v1058 = vunpack.c.l.b16 %v680
        %v1059 = vunpack.c.h.b16 %v680
        %v1060 = vunpack.c.l.b16 %v681
        %v1061 = vpack.c.b16 %v1058, %v1055
        %v1062 = vpack.c.b16 %v1059, %v1056
        %v1063 = vpack.c.b16 %v1060, %v1057
        %v1106 = vunpack.c.l.b16 %v682
        %v1107 = vunpack.c.h.b16 %v682
        %v1108 = vunpack.c.l.b16 %v683
        %v1109 = vunpack.c.h.b16 %v683
        %v1110 = vunpack.c.l.b16 %v684
        %v1111 = vunpack.c.h.b16 %v684
        %v1112 = vunpack.c.l.b16 %v685
        %v1113 = vunpack.c.h.b16 %v685
        %v1114 = vunpack.c.l.b16 %v686
        %v1115 = vunpack.c.h.b16 %v686
        %v1116 = vunpack.c.l.b16 %v687
        %v1117 = vunpack.c.h.b16 %v687
        %v1118 = vunpack.c.l.b16 %v688
        %v1119 = vunpack.c.h.b16 %v688
        %v1120 = vunpack.c.l.b16 %v689
        %v1121 = vunpack.c.h.b16 %v689
        %v1122 = vunpack.c.l.b16 %v690
        %v1123 = vunpack.c.h.b16 %v690
        %v1124 = vunpack.c.l.b16 %v691
        %v1125 = vunpack.c.h.b16 %v691
        %v1126 = vunpack.c.l.b16 %v692
        %v1127 = vunpack.c.h.b16 %v692
        %v1128 = vunpack.c.l.b16 %v693
        %v1129 = vunpack.c.h.b16 %v693
        %v1130 = vunpack.c.l.b16 %v694
        %v1131 = vunpack.c.h.b16 %v694
        %v1132 = vunpack.c.l.b16 %v695
        %v1133 = vunpack.c.h.b16 %v695
        %v1134 = vunpack.c.l.b16 %v696
        %v1135 = vunpack.c.h.b16 %v696
        %v1136 = vunpack.c.l.b16 %v697
        %v1137 = vunpack.c.h.b16 %v697
        %v1138 = vunpack.c.l.b16 %v698
        %v1139 = vunpack.c.h.b16 %v698
        %v1140 = vunpack.c.l.b16 %v699
        %v1141 = vunpack.c.h.b16 %v699
        %v1142 = vunpack.c.l.b16 %v700
        %v1143 = vunpack.c.h.b16 %v700
        %v1144 = vunpack.c.l.b16 %v701
        %v1145 = vunpack.c.h.b16 %v701
        %v1146 = vunpack.c.l.b16 %v702
        %v1147 = vunpack.c.h.b16 %v702
        %v1148 = vunpack.c.l.b16 %v703
        %v1149 = vunpack.c.h.b16 %v703
        %v1150 = vunpack.c.l.b16 %v704
        %v1151 = vunpack.c.h.b16 %v704
        %v1152 = vunpack.c.l.b16 %v705
        %v1153 = vunpack.c.h.b16 %v705
        %v1154 = vunpack.c.l.b16 %v706
        %v1155 = vunpack.c.h.b16 %v706
        %v1156 = vunpack.c.l.b16 %v707
        %v1157 = vunpack.c.h.b16 %v707
        %v1158 = vunpack.c.l.b16 %v708
        %v1159 = vunpack.c.h.b16 %v708
        %v1160 = vunpack.c.l.b16 %v709
        %v1161 = vunpack.c.h.b16 %v709
        %v1162 = vunpack.c.l.b16 %v710
        %v1163 = vunpack.c.h.b16 %v710
        %v1164 = vunpack.c.l.b16 %v711
        %v1165 = vunpack.c.h.b16 %v711
        %v1166 = vunpack.c.l.b16 %v712
        %v1167 = vunpack.c.h.b16 %v712
        %v1168 = vunpack.c.l.b16 %v713
        %v1169 = vunpack.c.h.b16 %v713
        %v1170 = vunpack.c.l.b16 %v714
        %v1171 = vunpack.c.h.b16 %v714
        %v1172 = vunpack.c.l.b16 %v715
        %v1173 = vunpack.c.h.b16 %v715
        %v1174 = vunpack.c.l.b16 %v716
        %v1175 = vunpack.c.h.b16 %v716
        %v1176 = vunpack.c.l.b16 %v717
        %v1177 = vunpack.c.h.b16 %v717
        %v1178 = vunpack.c.l.b16 %v718
        %v1179 = vunpack.c.h.b16 %v718
        %v1180 = vunpack.c.l.b16 %v719
        %v1181 = vunpack.c.h.b16 %v719
        %v1182 = vunpack.c.l.b16 %v720
        %v1183 = vunpack.c.h.b16 %v720
        %v1184 = vunpack.c.l.b16 %v721
        %v1185 = vunpack.c.h.b16 %v721
        %v1186 = vpack.c.b16 %v1108, %v1106
        %v1187 = vpack.c.b16 %v1109, %v1107
        %v1188 = vpack.c.b16 %v1112, %v1110
        %v1189 = vpack.c.b16 %v1113, %v1111
        %v1190 = vpack.c.b16 %v1116, %v1114
        %v1191 = vpack.c.b16 %v1117, %v1115
        %v1192 = vpack.c.b16 %v1120, %v1118
        %v1193 = vpack.c.b16 %v1121, %v1119
        %v1194 = vpack.c.b16 %v1124, %v1122
        %v1195 = vpack.c.b16 %v1125, %v1123
        %v1196 = vpack.c.b16 %v1128, %v1126
        %v1197 = vpack.c.b16 %v1129, %v1127
        %v1198 = vpack.c.b16 %v1132, %v1130
        %v1199 = vpack.c.b16 %v1133, %v1131
        %v1200 = vpack.c.b16 %v1136, %v1134
        %v1201 = vpack.c.b16 %v1137, %v1135
        %v1202 = vpack.c.b16 %v1140, %v1138
        %v1203 = vpack.c.b16 %v1141, %v1139
        %v1204 = vpack.c.b16 %v1144, %v1142
        %v1205 = vpack.c.b16 %v1145, %v1143
        %v1206 = vpack.c.b16 %v1148, %v1146
        %v1207 = vpack.c.b16 %v1149, %v1147
        %v1208 = vpack.c.b16 %v1152, %v1150
        %v1209 = vpack.c.b16 %v1153, %v1151
        %v1210 = vpack.c.b16 %v1156, %v1154
        %v1211 = vpack.c.b16 %v1157, %v1155
        %v1212 = vpack.c.b16 %v1160, %v1158
        %v1213 = vpack.c.b16 %v1161, %v1159
        %v1214 = vpack.c.b16 %v1164, %v1162
        %v1215 = vpack.c.b16 %v1165, %v1163
        %v1216 = vpack.c.b16 %v1168, %v1166
        %v1217 = vpack.c.b16 %v1169, %v1167
        %v1218 = vpack.c.b16 %v1172, %v1170
        %v1219 = vpack.c.b16 %v1173, %v1171
        %v1220 = vpack.c.b16 %v1176, %v1174
        %v1221 = vpack.c.b16 %v1177, %v1175
        %v1222 = vpack.c.b16 %v1180, %v1178
        %v1223 = vpack.c.b16 %v1181, %v1179
        %v1224 = vpack.c.b16 %v1184, %v1182
        %v1225 = vpack.c.b16 %v1185, %v1183
        %v1267 = vsel %vm384, %v1063, 0
        %1269 = vmatprep.subr.bf16.mxu0 %v1201
        %1270 = vmatpush1.bf16.msra.mxu0 %v1200
        %1271 = vmatprep.subr.bf16.mxu0 %v1199
        %1272 = vmatpush1.bf16.msra.mxu0 %v1198
        %1273 = vmatprep.subr.bf16.mxu0 %v1197
        %1274 = vmatpush1.bf16.msra.mxu0 %v1196
        %1275 = vmatprep.subr.bf16.mxu0 %v1195
        %1276 = vmatpush1.bf16.msra.mxu0 %v1194
        %1277 = vmatprep.subr.bf16.mxu0 %v1193
        %1278 = vmatpush1.bf16.msra.mxu0 %v1192
        %1279 = vmatprep.subr.bf16.mxu0 %v1191
        %1280 = vmatpush1.bf16.msra.mxu0 %v1190
        %1281 = vmatprep.subr.bf16.mxu0 %v1189
        %1282 = vmatpush1.bf16.msra.mxu0 %v1188
        %1283 = vmatprep.subr.bf16.mxu0 %v1187
        %1284 = vmatpush1.bf16.msra.mxu0 %v1186
        %1285 = vmatprep.subr.bf16.mxu0 %v1217
        %1286 = vmatpush2.bf16.msra.mxu0 %v1216
        %1287 = vmatprep.subr.bf16.mxu0 %v1215
        %1288 = vmatpush2.bf16.msra.mxu0 %v1214
        %1289 = vmatprep.subr.bf16.mxu0 %v1213
        %1290 = vmatpush2.bf16.msra.mxu0 %v1212
        %1291 = vmatprep.subr.bf16.mxu0 %v1211
        %1292 = vmatpush2.bf16.msra.mxu0 %v1210
        %1293 = vmatprep.subr.bf16.mxu0 %v1209
        %1294 = vmatpush2.bf16.msra.mxu0 %v1208
        %1295 = vmatprep.subr.bf16.mxu0 %v1207
        %1296 = vmatpush2.bf16.msra.mxu0 %v1206
        %1297 = vmatprep.subr.bf16.mxu0 %v1205
        %1298 = vmatpush2.bf16.msra.mxu0 %v1204
        %1299 = vmatprep.subr.bf16.mxu0 %v1203
        %1300 = vmatpush2.bf16.msra.mxu0 %v1202
        %1301 = vmatprep.mubr.bf16.mxu0 %v1062
        %1302 = vmatmul.mubr.bf16.gmra.mxu0 %v1061
        %v1303 = vpop.f32.mrf.mxu0
        %v1304 = vadd.f32 %v1043, %v1303
        %v1305 = vpop.f32.mrf.mxu0
        %v1306 = vadd.f32 %v1045, %v1305
        %v1307 = vpop.f32.mrf.mxu0
        %v1308 = vadd.f32 %v1047, %v1307
        %v1309 = vpop.f32.mrf.mxu0
        %v1310 = vadd.f32 %v1049, %v1309
        %1311 = vdwg.mxu0
        %1312 = vmatprep.subr.bf16.mxu0 0
        %1313 = vmatpush1.bf16.msra.mxu0 0
        %1314 = vmatprep.subr.bf16.mxu0 0
        %1315 = vmatpush1.bf16.msra.mxu0 0
        %1316 = vmatprep.subr.bf16.mxu0 0
        %1317 = vmatpush1.bf16.msra.mxu0 0
        %1318 = vmatprep.subr.bf16.mxu0 0
        %1319 = vmatpush1.bf16.msra.mxu0 0
        %1320 = vmatprep.subr.bf16.mxu0 %v1225
        %1321 = vmatpush1.bf16.msra.mxu0 %v1224
        %1322 = vmatprep.subr.bf16.mxu0 %v1223
        %1323 = vmatpush1.bf16.msra.mxu0 %v1222
        %1324 = vmatprep.subr.bf16.mxu0 %v1221
        %1325 = vmatpush1.bf16.msra.mxu0 %v1220
        %1326 = vmatprep.subr.bf16.mxu0 %v1219
        %1327 = vmatpush1.bf16.msra.mxu0 %v1218
        %1328 = vmatprep.subr.bf16.mxu0 0
        %1329 = vmatpush2.bf16.msra.mxu0 0
        %1330 = vmatprep.subr.bf16.mxu0 0
        %1331 = vmatpush2.bf16.msra.mxu0 0
        %1332 = vmatprep.subr.bf16.mxu0 0
        %1333 = vmatpush2.bf16.msra.mxu0 0
        %1334 = vmatprep.subr.bf16.mxu0 0
        %1335 = vmatpush2.bf16.msra.mxu0 0
        %1336 = vmatprep.subr.bf16.mxu0 0
        %1337 = vmatpush2.bf16.msra.mxu0 0
        %1338 = vmatprep.subr.bf16.mxu0 0
        %1339 = vmatpush2.bf16.msra.mxu0 0
        %1340 = vmatprep.subr.bf16.mxu0 0
        %1341 = vmatpush2.bf16.msra.mxu0 0
        %1342 = vmatprep.subr.bf16.mxu0 0
        %1343 = vmatpush2.bf16.msra.mxu0 0
        %1344 = vmatprep.mubr.bf16.mxu0 0
        %1345 = vmatmul.mubr.bf16.gmra.mxu0 %v1267
        %v1346 = vpop.f32.mrf.mxu0
        %v1347 = vadd.f32 %v1304, %v1346
        %v1348 = vpop.f32.mrf.mxu0
        %v1349 = vadd.f32 %v1306, %v1348
        %v1350 = vpop.f32.mrf.mxu0
        %v1351 = vadd.f32 %v1308, %v1350
        %v1352 = vpop.f32.mrf.mxu0
        %v1353 = vadd.f32 %v1310, %v1352
        %1354 = vdwg.mxu0
        %v1355 = vld [vmem:[%s4] sm:$0x3]
        %v1357 = vlaneseq
        %v1358 = vshrl.u32 %v1357, 7
        %v1359 = vsub.s32 0, %v1358
        %v1360 = vrot.slane %v1355, %v1359
        %v1361 = vlaneseq
        %v1362 = vshrl.u32 %v1361, 7
        %v1363 = vsub.s32 1, %v1362
        %v1364 = vrot.slane %v1355, %v1363
        %v1367 = vadd.f32 %v1347, %v1360
        %v1368 = vadd.f32 %v1349, %v1364
        %v1369 = vadd.f32 %v1351, %v1360
        %v1370 = vadd.f32 %v1353, %v1364
        %v1371 = vpack.c.bf16 %v1369, %v1367
        %v1372 = vpack.c.bf16 %v1370, %v1368
        %v1375 = vunpack.c.l.b16 %v1371
        %v1376 = vunpack.c.l.b16 %v1372
        %v1377 = vunpack.c.h.b16 %v1371
        %v1378 = vunpack.c.h.b16 %v1372
        %v1379 = vpack.c.b16 %v1376, %v1375
        %v1380 = vpack.c.b16 %v1378, %v1377
        %1383 = vst [vmem:[%s313] sm:$0xff] %v1379
        %1384 = vst [vmem:[%s313 + $0x8] sm:$0xff] %v1380
      $region48: #{forward.24} parent=39 // pred_fallthru
        _
      %s1385 = smul.u32 2, %s22
      %p1386 = scmp.lt.s32.totalorder %s21, 1
      %s1387 = scalar_select %p1386, %s21, 1
      %p1388 = scmp.lt.s32.totalorder %s1385, 1
      %s1389 = scalar_select %p1388, %s1385, 1
      %s1390 = smul.addr %s1389, 2
      %s1391 = smul.addr %s1387, 4
      %s1392 = sadd.s32 %s1390, %s1391
      %s1393 = smul.addr %s1392, 4
      %s1394 = scalar_lea.vmem %s5, %s1393
      // Predicated region
      $region49: #{forward.24} parent=39 // pred_check
        %p1395 = pneg %p174
      $region50: #{forward.24} parent=39 // pred_check_branch
        %1397 = sbr.rel (%p1395) target = $region52
      $region51: #{forward.24} parent=39 // pred_region
        %s1398 = smul.u32 2, %s22
      $region52: #{forward.24} parent=39 // pred_fallthru
        _
    $region40: #{forward.24} parent=5 // pred_fallthru
      _
    %p1399 = scmp.le.s32.totalorder 2, %s11
    // Predicated region
    $region53: #{forward.24} parent=5 // pred_check
      %p1400 = pneg %p1399
    $region54: #{forward.24} parent=5 // pred_check_branch
      %1402 = sbr.rel (%p1400) target = $region56
    $region55: #{forward.24} parent=5 // pred_region
      %s1403 = ssub.s32 %s11, 2
      // Predicated region
      $region57: #{forward.24} parent=55 // pred_check
        %p1404 = pneg %p180
      $region58: #{forward.24} parent=55 // pred_check_branch
        %1406 = sbr.rel (%p1404) target = $region60
      $region59: #{forward.24} parent=55 // pred_region
        %s1407 = smul.u32 2, %s25
        %p1408 = scmp.lt.s32.totalorder %s24, 1
        %s1409 = scalar_select %p1408, %s24, 1
        %p1410 = scmp.lt.s32.totalorder %s1407, 1
        %s1411 = scalar_select %p1410, %s1407, 1
        %s1412 = smul.addr %s1411, 2
        %s1413 = smul.addr %s1409, 4
        %s1414 = sadd.s32 %s1412, %s1413
        %s1415 = smul.addr %s1414, 4
        %s1416 = scalar_lea.vmem %s5, %s1415
      $region60: #{forward.24} parent=55 // pred_fallthru
        _
    $region56: #{forward.24} parent=5 // pred_fallthru
      _
  $region6: #{forward.24} parent=0 // loop_footer
    %s15 = sadd.s32 1, %s11
  $region7: #{forward.24} parent=0 // loop_footer_branch
    %10 = sbr.rel target = $region3
  $region8: #{forward.24} parent=0 // loop_exit
    _

// kernel: forward.18
$region0: #{forward.18}
  #allocation0 [shape = 'u32[]', space=smem, size = 0x4, offset = 0x4, fixed_abs, tag = 'smem constant byte address 0x4 - core index']
  #allocation1 [shape = 'u32[144,128]{1,0:T(1,128)}', space=vmem, size = 0x12000, scoped, tag = 'internal scratch']
  #allocation2 [shape = 'bf16[16,320]{1,0:T(8,128)(2,1)}', space=vmem, size = 0x3000, scoped, tag = 'scratch operand']
  #allocation3 [shape = 'f32[16,1]{1,0:T(8,128)}', space=vmem, size = 0x2000, scoped, tag = 'scratch operand']
  #allocation4 [shape = 'f32[16,1]{1,0:T(8,128)}', space=vmem, size = 0x2000, scoped, tag = 'scratch operand']
  #allocation5 [shape = 'f32[16,320]{1,0:T(8,128)}', space=vmem, size = 0x6000, scoped, tag = 'scratch operand']
  %s0 = inlined_call_operand.vmem [shape: bf16[2,16,320], index: 0, kind: input, shape index: {}]
  %s1 = inlined_call_operand.vmem [shape: bf16[2,16,320], index: 1, kind: input, shape index: {}]
  %s2 = inlined_call_operand.vmem [shape: bf16[2,16,320], index: 2, kind: input, shape index: {}]
  %s3 = inlined_call_operand.vmem [shape: bf16[320,320], index: 3, kind: input, shape index: {}]
  %s4 = inlined_call_operand.vmem [shape: f32[1,320], index: 4, kind: input, shape index: {}]
  %s5 = inlined_call_operand.vmem [shape: bf16[320,320], index: 5, kind: input, shape index: {}]
  %s6 = inlined_call_operand.vmem [shape: f32[1,320], index: 6, kind: input, shape index: {}]
  %s7 = inlined_call_operand.vmem [shape: bf16[2,16,320], index: 7, kind: output, shape index: {}]
  %s8 = sld [smem:[#allocation0]]
  $region69: #{forward.18} parent=0
    _
  %s10 = ssub.s32 1, %s8
  %s11 = scalar_select 0, %s10, %s8
  loop: start=0, step=1, limit=4
  $region2: #{forward.18} parent=0 // loop_pre_header
    _
  $region3: #{forward.18} parent=0 // loop_header
    %s13 = sphi 0, %s17
    %p14 = scmp.ge.s32.totalorder %s13, 4
    %s20 = sphi 0, %s39
    %s21 = sphi 0, %s35
    %s22 = sphi 0, %s31
    %s23 = sphi 0, %s20
    %s24 = sphi 0, %s21
    %s25 = sphi 0, %s22
    %s26 = sphi 0, %s23
    %s27 = sphi 0, %s24
    %s28 = sphi 0, %s25
    %s44 = sphi 0, %s46
    %s47 = sphi 0, %s44
    %s48 = sphi 0, %s47
    %s64 = sphi 0, %s48
    %s72 = sphi 0, %s74
    %s75 = sphi 0, %s72
    %s76 = sphi 0, %s75
    %s92 = sphi 0, %s76
    %s100 = sphi 0, %s102
    %s103 = sphi 0, %s100
    %s104 = sphi 0, %s103
    %s120 = sphi 0, %s104
    %s124 = sphi 0, %s124
    %s126 = sphi 0, %s124
    %s127 = sphi 0, %s126
    %s141 = sphi 0, %s127
    %s145 = sphi 0, %s145
    %s147 = sphi 0, %s145
    %s148 = sphi 0, %s147
    %s162 = sphi 0, %s148
    %s166 = sphi 0, %s166
    %s168 = sphi 0, %s166
    %s169 = sphi 0, %s168
    %s183 = sphi 0, %s169
    %s187 = sphi 0, %s187
    %s189 = sphi 0, %s187
    %s190 = sphi 0, %s189
    %s204 = sphi 0, %s190
    %s212 = sphi 0, %s214
    %s215 = sphi 0, %s212
    %s216 = sphi 0, %s215
    %s232 = sphi 0, %s216
  $region4: #{forward.18} parent=0 // loop_header_branch
    %16 = sbr.rel (%p14) target = $region8
  $region5: #{forward.18} parent=0 // loop_body
    %s18 = ssub.s32 %s13, 1
    %s19 = ssub.s32 %s13, 2
    %s29 = sadd.s32 1, %s22
    %p30 = scmp.ge.s32.totalorder %s29, 1
    %s31 = scalar_select %p30, 0, %s29
    %s32 = sadd.s32 1, %s21
    %s33 = scalar_select %p30, %s32, %s21
    %p34 = scmp.ge.s32.totalorder %s33, 1
    %s35 = scalar_select %p34, 0, %s33
    %s36 = sadd.s32 1, %s20
    %s37 = scalar_select %p34, %s36, %s20
    %p38 = scmp.ge.s32.totalorder %s37, 2
    %s39 = scalar_select %p38, 0, %s37
    %s40 = ssub.s32 %s20, %s39
    %s41 = ssub.s32 %s21, %s35
    %s42 = sor.u32 %s40, %s41
    %p43 = scmp.eq.s32.totalorder %s42, 0
    %s45 = sadd.s32 %s44, 1
    %s46 = scalar_select %p43, %s44, %s45
    %p49 = pneg %p43
    %p50 = scmp.eq.s32.totalorder %s13, 1
    %p51 = por %p49, %p50
    %p52 = scmp.ne.s32.totalorder %s44, %s47
    %p53 = scmp.eq.s32.totalorder %s13, 0
    %p54 = por %p52, %p53
    %p55 = scmp.ne.s32.totalorder %s44, %s47
    %p56 = scmp.eq.s32.totalorder %s18, 1
    %p57 = por %p55, %p56
    %p58 = scmp.ne.s32.totalorder %s47, %s48
    %p59 = scmp.eq.s32.totalorder %s18, 0
    %p60 = por %p58, %p59
    %p61 = scmp.ne.s32.totalorder %s47, %s48
    %p62 = scmp.eq.s32.totalorder %s19, 1
    %p63 = por %p61, %p62
    %p65 = scmp.ne.s32.totalorder %s48, %s64
    %p66 = scmp.eq.s32.totalorder %s19, 0
    %p67 = por %p65, %p66
    %s68 = ssub.s32 %s20, %s39
    %s69 = ssub.s32 %s22, %s31
    %s70 = sor.u32 %s68, %s69
    %p71 = scmp.eq.s32.totalorder %s70, 0
    %s73 = sadd.s32 %s72, 1
    %s74 = scalar_select %p71, %s72, %s73
    %p77 = pneg %p71
    %p78 = scmp.eq.s32.totalorder %s13, 1
    %p79 = por %p77, %p78
    %p80 = scmp.ne.s32.totalorder %s72, %s75
    %p81 = scmp.eq.s32.totalorder %s13, 0
    %p82 = por %p80, %p81
    %p83 = scmp.ne.s32.totalorder %s72, %s75
    %p84 = scmp.eq.s32.totalorder %s18, 1
    %p85 = por %p83, %p84
    %p86 = scmp.ne.s32.totalorder %s75, %s76
    %p87 = scmp.eq.s32.totalorder %s18, 0
    %p88 = por %p86, %p87
    %p89 = scmp.ne.s32.totalorder %s75, %s76
    %p90 = scmp.eq.s32.totalorder %s19, 1
    %p91 = por %p89, %p90
    %p93 = scmp.ne.s32.totalorder %s76, %s92
    %p94 = scmp.eq.s32.totalorder %s19, 0
    %p95 = por %p93, %p94
    %s96 = ssub.s32 %s20, %s39
    %s97 = ssub.s32 %s22, %s31
    %s98 = sor.u32 %s96, %s97
    %p99 = scmp.eq.s32.totalorder %s98, 0
    %s101 = sadd.s32 %s100, 1
    %s102 = scalar_select %p99, %s100, %s101
    %p105 = pneg %p99
    %p106 = scmp.eq.s32.totalorder %s13, 1
    %p107 = por %p105, %p106
    %p108 = scmp.ne.s32.totalorder %s100, %s103
    %p109 = scmp.eq.s32.totalorder %s13, 0
    %p110 = por %p108, %p109
    %p111 = scmp.ne.s32.totalorder %s100, %s103
    %p112 = scmp.eq.s32.totalorder %s18, 1
    %p113 = por %p111, %p112
    %p114 = scmp.ne.s32.totalorder %s103, %s104
    %p115 = scmp.eq.s32.totalorder %s18, 0
    %p116 = por %p114, %p115
    %p117 = scmp.ne.s32.totalorder %s103, %s104
    %p118 = scmp.eq.s32.totalorder %s19, 1
    %p119 = por %p117, %p118
    %p121 = scmp.ne.s32.totalorder %s104, %s120
    %p122 = scmp.eq.s32.totalorder %s19, 0
    %p123 = por %p121, %p122
    %s125 = sadd.s32 %s124, 1
    %p128 = scmp.eq.s32.totalorder %s13, 1
    %p129 = scmp.ne.s32.totalorder %s124, %s126
    %p130 = scmp.eq.s32.totalorder %s13, 0
    %p131 = por %p129, %p130
    %p132 = scmp.ne.s32.totalorder %s124, %s126
    %p133 = scmp.eq.s32.totalorder %s18, 1
    %p134 = por %p132, %p133
    %p135 = scmp.ne.s32.totalorder %s126, %s127
    %p136 = scmp.eq.s32.totalorder %s18, 0
    %p137 = por %p135, %p136
    %p138 = scmp.ne.s32.totalorder %s126, %s127
    %p139 = scmp.eq.s32.totalorder %s19, 1
    %p140 = por %p138, %p139
    %p142 = scmp.ne.s32.totalorder %s127, %s141
    %p143 = scmp.eq.s32.totalorder %s19, 0
    %p144 = por %p142, %p143
    %s146 = sadd.s32 %s145, 1
    %p149 = scmp.eq.s32.totalorder %s13, 1
    %p150 = scmp.ne.s32.totalorder %s145, %s147
    %p151 = scmp.eq.s32.totalorder %s13, 0
    %p152 = por %p150, %p151
    %p153 = scmp.ne.s32.totalorder %s145, %s147
    %p154 = scmp.eq.s32.totalorder %s18, 1
    %p155 = por %p153, %p154
    %p156 = scmp.ne.s32.totalorder %s147, %s148
    %p157 = scmp.eq.s32.totalorder %s18, 0
    %p158 = por %p156, %p157
    %p159 = scmp.ne.s32.totalorder %s147, %s148
    %p160 = scmp.eq.s32.totalorder %s19, 1
    %p161 = por %p159, %p160
    %p163 = scmp.ne.s32.totalorder %s148, %s162
    %p164 = scmp.eq.s32.totalorder %s19, 0
    %p165 = por %p163, %p164
    %s167 = sadd.s32 %s166, 1
    %p170 = scmp.eq.s32.totalorder %s13, 1
    %p171 = scmp.ne.s32.totalorder %s166, %s168
    %p172 = scmp.eq.s32.totalorder %s13, 0
    %p173 = por %p171, %p172
    %p174 = scmp.ne.s32.totalorder %s166, %s168
    %p175 = scmp.eq.s32.totalorder %s18, 1
    %p176 = por %p174, %p175
    %p177 = scmp.ne.s32.totalorder %s168, %s169
    %p178 = scmp.eq.s32.totalorder %s18, 0
    %p179 = por %p177, %p178
    %p180 = scmp.ne.s32.totalorder %s168, %s169
    %p181 = scmp.eq.s32.totalorder %s19, 1
    %p182 = por %p180, %p181
    %p184 = scmp.ne.s32.totalorder %s169, %s183
    %p185 = scmp.eq.s32.totalorder %s19, 0
    %p186 = por %p184, %p185
    %s188 = sadd.s32 %s187, 1
    %p191 = scmp.eq.s32.totalorder %s13, 1
    %p192 = scmp.ne.s32.totalorder %s187, %s189
    %p193 = scmp.eq.s32.totalorder %s13, 0
    %p194 = por %p192, %p193
    %p195 = scmp.ne.s32.totalorder %s187, %s189
    %p196 = scmp.eq.s32.totalorder %s18, 1
    %p197 = por %p195, %p196
    %p198 = scmp.ne.s32.totalorder %s189, %s190
    %p199 = scmp.eq.s32.totalorder %s18, 0
    %p200 = por %p198, %p199
    %p201 = scmp.ne.s32.totalorder %s189, %s190
    %p202 = scmp.eq.s32.totalorder %s19, 1
    %p203 = por %p201, %p202
    %p205 = scmp.ne.s32.totalorder %s190, %s204
    %p206 = scmp.eq.s32.totalorder %s19, 0
    %p207 = por %p205, %p206
    %s208 = ssub.s32 %s20, %s39
    %s209 = ssub.s32 %s21, %s35
    %s210 = sor.u32 %s208, %s209
    %p211 = scmp.eq.s32.totalorder %s210, 0
    %s213 = sadd.s32 %s212, 1
    %s214 = scalar_select %p211, %s212, %s213
    %p217 = pneg %p211
    %p218 = scmp.eq.s32.totalorder %s13, 1
    %p219 = por %p217, %p218
    %p220 = scmp.ne.s32.totalorder %s212, %s215
    %p221 = scmp.eq.s32.totalorder %s13, 0
    %p222 = por %p220, %p221
    %p223 = scmp.ne.s32.totalorder %s212, %s215
    %p224 = scmp.eq.s32.totalorder %s18, 1
    %p225 = por %p223, %p224
    %p226 = scmp.ne.s32.totalorder %s215, %s216
    %p227 = scmp.eq.s32.totalorder %s18, 0
    %p228 = por %p226, %p227
    %p229 = scmp.ne.s32.totalorder %s215, %s216
    %p230 = scmp.eq.s32.totalorder %s19, 1
    %p231 = por %p229, %p230
    %p233 = scmp.ne.s32.totalorder %s216, %s232
    %p234 = scmp.eq.s32.totalorder %s19, 0
    %p235 = por %p233, %p234
    %p236 = scmp.le.s32.totalorder 1, %s13
    %p237 = scmp.lt.s32.totalorder %s13, 3
    %p238 = pnand %p236, %p237
    %p239 = pneg %p238
    // Predicated region
    $region9: #{forward.18} parent=5 // pred_check
      _
    $region10: #{forward.18} parent=5 // pred_check_branch
      %241 = sbr.rel (%p238) target = $region12
    $region11: #{forward.18} parent=5 // pred_region
      %s242 = ssub.s32 %s13, 1
      // Predicated region
      $region13: #{forward.18} parent=11 // pred_check
        %p243 = pneg %p137
      $region14: #{forward.18} parent=11 // pred_check_branch
        %245 = sbr.rel (%p243) target = $region16
      $region15: #{forward.18} parent=11 // pred_region
        _
      $region16: #{forward.18} parent=11 // pred_fallthru
        _
      // Predicated region
      $region17: #{forward.18} parent=11 // pred_check
        %p246 = pneg %p158
      $region18: #{forward.18} parent=11 // pred_check_branch
        %248 = sbr.rel (%p246) target = $region20
      $region19: #{forward.18} parent=11 // pred_region
        _
      $region20: #{forward.18} parent=11 // pred_fallthru
        _
      // Predicated region
      $region21: #{forward.18} parent=11 // pred_check
        %p249 = pneg %p179
      $region22: #{forward.18} parent=11 // pred_check_branch
        %251 = sbr.rel (%p249) target = $region24
      $region23: #{forward.18} parent=11 // pred_region
        _
      $region24: #{forward.18} parent=11 // pred_fallthru
        _
      // Predicated region
      $region25: #{forward.18} parent=11 // pred_check
        %p252 = pneg %p200
      $region26: #{forward.18} parent=11 // pred_check_branch
        %254 = sbr.rel (%p252) target = $region28
      $region27: #{forward.18} parent=11 // pred_region
        _
      $region28: #{forward.18} parent=11 // pred_fallthru
        _
    $region12: #{forward.18} parent=5 // pred_fallthru
      _
    %p255 = scmp.lt.s32.totalorder %s13, 2
    // Predicated region
    $region29: #{forward.18} parent=5 // pred_check
      %p256 = pneg %p255
    $region30: #{forward.18} parent=5 // pred_check_branch
      %258 = sbr.rel (%p256) target = $region32
    $region31: #{forward.18} parent=5 // pred_region
      // Predicated region
      $region33: #{forward.18} parent=31 // pred_check
        %p259 = pneg %p54
      $region34: #{forward.18} parent=31 // pred_check_branch
        %261 = sbr.rel (%p259) target = $region36
      $region35: #{forward.18} parent=31 // pred_region
        %s262 = smul.u32 2, %s21
        %p263 = scmp.lt.s32.totalorder %s20, 1
        %s264 = scalar_select %p263, %s20, 1
        %p265 = scmp.lt.s32.totalorder %s262, 1
        %s266 = scalar_select %p265, %s262, 1
        %s267 = smul.addr %s266, 3
        %s268 = smul.addr %s264, 6
        %s269 = sadd.s32 %s267, %s268
        %s270 = smul.addr %s269, 4
        %s271 = scalar_lea.vmem %s0, %s270
        %s272 = smul.u32 2, %s21
      $region36: #{forward.18} parent=31 // pred_fallthru
        _
      // Predicated region
      $region37: #{forward.18} parent=31 // pred_check
        %p273 = pneg %p82
      $region38: #{forward.18} parent=31 // pred_check_branch
        %275 = sbr.rel (%p273) target = $region40
      $region39: #{forward.18} parent=31 // pred_region
        %s276 = smul.u32 2, %s22
        %p277 = scmp.lt.s32.totalorder %s20, 1
        %s278 = scalar_select %p277, %s20, 1
        %p279 = scmp.lt.s32.totalorder %s276, 1
        %s280 = scalar_select %p279, %s276, 1
        %s281 = smul.addr %s280, 3
        %s282 = smul.addr %s278, 6
        %s283 = sadd.s32 %s281, %s282
        %s284 = smul.addr %s283, 4
        %s285 = scalar_lea.vmem %s1, %s284
        %s286 = smul.u32 2, %s22
      $region40: #{forward.18} parent=31 // pred_fallthru
        _
      // Predicated region
      $region41: #{forward.18} parent=31 // pred_check
        %p287 = pneg %p110
      $region42: #{forward.18} parent=31 // pred_check_branch
        %289 = sbr.rel (%p287) target = $region44
      $region43: #{forward.18} parent=31 // pred_region
        %s290 = smul.u32 2, %s22
        %p291 = scmp.lt.s32.totalorder %s20, 1
        %s292 = scalar_select %p291, %s20, 1
        %p293 = scmp.lt.s32.totalorder %s290, 1
        %s294 = scalar_select %p293, %s290, 1
        %s295 = smul.addr %s294, 3
        %s296 = smul.addr %s292, 6
        %s297 = sadd.s32 %s295, %s296
        %s298 = smul.addr %s297, 4
        %s299 = scalar_lea.vmem %s2, %s298
        %s300 = smul.u32 2, %s22
      $region44: #{forward.18} parent=31 // pred_fallthru
        _
    $region32: #{forward.18} parent=5 // pred_fallthru
      _
    %p301 = scmp.le.s32.totalorder 1, %s13
    %p302 = scmp.lt.s32.totalorder %s13, 3
    %p303 = pnand %p301, %p302
    %p304 = pneg %p303
    // Predicated region
    $region45: #{forward.18} parent=5 // pred_check
      _
    $region46: #{forward.18} parent=5 // pred_check_branch
      %306 = sbr.rel (%p303) target = $region48
    $region47: #{forward.18} parent=5 // pred_region
      %s307 = ssub.s32 %s13, 1
      %s308 = smul.u32 2, %s24
      %p309 = scmp.lt.s32.totalorder %s23, 1
      %s310 = scalar_select %p309, %s23, 1
      %p311 = scmp.lt.s32.totalorder %s308, 1
      %s312 = scalar_select %p311, %s308, 1
      %s313 = smul.addr %s312, 3
      %s314 = smul.addr %s310, 6
      %s315 = sadd.s32 %s313, %s314
      %s316 = smul.addr %s315, 4
      %s317 = scalar_lea.vmem %s0, %s316
      %p318 = pneg %p60
      %p319 = pneg %p57
      %s320 = smul.u32 2, %s25
      %p321 = scmp.lt.s32.totalorder %s23, 1
      %s322 = scalar_select %p321, %s23, 1
      %p323 = scmp.lt.s32.totalorder %s320, 1
      %s324 = scalar_select %p323, %s320, 1
      %s325 = smul.addr %s324, 3
      %s326 = smul.addr %s322, 6
      %s327 = sadd.s32 %s325, %s326
      %s328 = smul.addr %s327, 4
      %s329 = scalar_lea.vmem %s1, %s328
      %p330 = pneg %p88
      %p331 = pneg %p85
      %s332 = smul.u32 2, %s25
      %p333 = scmp.lt.s32.totalorder %s23, 1
      %s334 = scalar_select %p333, %s23, 1
      %p335 = scmp.lt.s32.totalorder %s332, 1
      %s336 = scalar_select %p335, %s332, 1
      %s337 = smul.addr %s336, 3
      %s338 = smul.addr %s334, 6
      %s339 = sadd.s32 %s337, %s338
      %s340 = smul.addr %s339, 4
      %s341 = scalar_lea.vmem %s2, %s340
      %p342 = pneg %p116
      %p343 = pneg %p113
      %p344 = pneg %p137
      %p345 = pneg %p134
      %p346 = pneg %p158
      %p347 = pneg %p155
      %p348 = pneg %p179
      %p349 = pneg %p176
      %p350 = pneg %p200
      %p351 = pneg %p197
      %p352 = pneg %p228
      %p353 = pneg %p225
      %s354 = smul.u32 2, %s24
      %p355 = scmp.lt.s32.totalorder %s23, 1
      %s356 = scalar_select %p355, %s23, 1
      %p357 = scmp.lt.s32.totalorder %s354, 1
      %s358 = scalar_select %p357, %s354, 1
      %s359 = smul.addr %s358, 3
      %s360 = smul.addr %s356, 6
      %s361 = sadd.s32 %s359, %s360
      %s362 = smul.addr %s361, 4
      %s363 = scalar_lea.vmem %s7, %s362
      %s364 = smul.u32 2, %s24
      %p365 = scmp.lt.s32.totalorder %s23, 1
      %s366 = scalar_select %p365, %s23, 1
      %p367 = scmp.lt.s32.totalorder %s364, 1
      %s368 = scalar_select %p367, %s364, 1
      %s369 = smul.addr %s368, 3
      %s370 = smul.addr %s366, 6
      %s371 = sadd.s32 %s369, %s370
      %s372 = smul.addr %s371, 4
      %s373 = scalar_lea.vmem %s0, %s372
      %s374 = smul.u32 2, %s24
      %s375 = smul.u32 2, %s25
      %p376 = scmp.lt.s32.totalorder %s23, 1
      %s377 = scalar_select %p376, %s23, 1
      %p378 = scmp.lt.s32.totalorder %s375, 1
      %s379 = scalar_select %p378, %s375, 1
      %s380 = smul.addr %s379, 3
      %s381 = smul.addr %s377, 6
      %s382 = sadd.s32 %s380, %s381
      %s383 = smul.addr %s382, 4
      %s384 = scalar_lea.vmem %s1, %s383
      %s385 = smul.u32 2, %s25
      %s386 = smul.u32 2, %s25
      %p387 = scmp.lt.s32.totalorder %s23, 1
      %s388 = scalar_select %p387, %s23, 1
      %p389 = scmp.lt.s32.totalorder %s386, 1
      %s390 = scalar_select %p389, %s386, 1
      %s391 = smul.addr %s390, 3
      %s392 = smul.addr %s388, 6
      %s393 = sadd.s32 %s391, %s392
      %s394 = smul.addr %s393, 4
      %s395 = scalar_lea.vmem %s2, %s394
      %s396 = smul.u32 2, %s25
      %s397 = smul.u32 2, %s24
      %p398 = scmp.lt.s32.totalorder %s23, 1
      %s399 = scalar_select %p398, %s23, 1
      %p400 = scmp.lt.s32.totalorder %s397, 1
      %s401 = scalar_select %p400, %s397, 1
      %s402 = smul.addr %s401, 3
      %s403 = smul.addr %s399, 6
      %s404 = sadd.s32 %s402, %s403
      %s405 = smul.addr %s404, 4
      %s406 = scalar_lea.vmem %s7, %s405
      %s407 = smul.u32 2, %s24
      %p409 = scmp.eq.s32.totalorder %s25, 0
      // Predicated region
      $region49: #{forward.18} parent=47 // pred_check
        %p410 = pneg %p409
      $region50: #{forward.18} parent=47 // pred_check_branch
        %412 = sbr.rel (%p410) target = $region52
      $region51: #{forward.18} parent=47 // pred_region
        %v413 = vld [vmem:[%s373] sm:$0xff]
        %v414 = vld [vmem:[%s373 + $0x8] sm:$0xf]
        %v415 = vld [vmem:[%s373 + $0xc] sm:$0xff]
        %v416 = vld [vmem:[%s373 + $0x14] sm:$0xf]
        %v417 = vld [vmem:[%s3] sm:$0xff]
        %v418 = vld [vmem:[%s3 + $0x8] sm:$0xf]
        %v419 = vld [vmem:[%s3 + $0xc] sm:$0xff]
        %v420 = vld [vmem:[%s3 + $0x14] sm:$0xf]
        %v421 = vld [vmem:[%s3 + $0x18] sm:$0xff]
        %v422 = vld [vmem:[%s3 + $0x20] sm:$0xf]
        %v423 = vld [vmem:[%s3 + $0x24] sm:$0xff]
        %v424 = vld [vmem:[%s3 + $0x2c] sm:$0xf]
        %v425 = vld [vmem:[%s3 + $0x30] sm:$0xff]
        %v426 = vld [vmem:[%s3 + $0x38] sm:$0xf]
        %v427 = vld [vmem:[%s3 + $0x3c] sm:$0xff]
        %v428 = vld [vmem:[%s3 + $0x44] sm:$0xf]
        %v429 = vld [vmem:[%s3 + $0x48] sm:$0xff]
        %v430 = vld [vmem:[%s3 + $0x50] sm:$0xf]
        %v431 = vld [vmem:[%s3 + $0x54] sm:$0xff]
        %v432 = vld [vmem:[%s3 + $0x5c] sm:$0xf]
        %v433 = vld [vmem:[%s3 + $0x60] sm:$0xff]
        %v434 = vld [vmem:[%s3 + $0x68] sm:$0xf]
        %v435 = vld [vmem:[%s3 + $0x6c] sm:$0xff]
        %v436 = vld [vmem:[%s3 + $0x74] sm:$0xf]
        %v437 = vld [vmem:[%s3 + $0x78] sm:$0xff]
        %v438 = vld [vmem:[%s3 + $0x80] sm:$0xf]
        %v439 = vld [vmem:[%s3 + $0x84] sm:$0xff]
        %v440 = vld [vmem:[%s3 + $0x8c] sm:$0xf]
        %v441 = vld [vmem:[%s3 + $0x90] sm:$0xff]
        %v442 = vld [vmem:[%s3 + $0x98] sm:$0xf]
        %v443 = vld [vmem:[%s3 + $0x9c] sm:$0xff]
        %v444 = vld [vmem:[%s3 + $0xa4] sm:$0xf]
        %v445 = vld [vmem:[%s3 + $0xa8] sm:$0xff]
        %v446 = vld [vmem:[%s3 + $0xb0] sm:$0xf]
        %v447 = vld [vmem:[%s3 + $0xb4] sm:$0xff]
        %v448 = vld [vmem:[%s3 + $0xbc] sm:$0xf]
        %v449 = vld [vmem:[%s3 + $0xc0] sm:$0xff]
        %v450 = vld [vmem:[%s3 + $0xc8] sm:$0xf]
        %v451 = vld [vmem:[%s3 + $0xcc] sm:$0xff]
        %v452 = vld [vmem:[%s3 + $0xd4] sm:$0xf]
        %v453 = vld [vmem:[%s3 + $0xd8] sm:$0xff]
        %v454 = vld [vmem:[%s3 + $0xe0] sm:$0xf]
        %v455 = vld [vmem:[%s3 + $0xe4] sm:$0xff]
        %v456 = vld [vmem:[%s3 + $0xec] sm:$0xf]
        %v457 = vld [vmem:[%s3 + $0xf0] sm:$0xff]
        %v458 = vld [vmem:[%s3 + $0xf8] sm:$0xf]
        %v459 = vld [vmem:[%s3 + $0xfc] sm:$0xff]
        %v460 = vld [vmem:[%s3 + $0x104] sm:$0xf]
        %v461 = vld [vmem:[%s3 + $0x108] sm:$0xff]
        %v462 = vld [vmem:[%s3 + $0x110] sm:$0xf]
        %v463 = vld [vmem:[%s3 + $0x114] sm:$0xff]
        %v464 = vld [vmem:[%s3 + $0x11c] sm:$0xf]
        %v465 = vld [vmem:[%s3 + $0x120] sm:$0xff]
        %v466 = vld [vmem:[%s3 + $0x128] sm:$0xf]
        %v467 = vld [vmem:[%s3 + $0x12c] sm:$0xff]
        %v468 = vld [vmem:[%s3 + $0x134] sm:$0xf]
        %v469 = vld [vmem:[%s3 + $0x138] sm:$0xff]
        %v470 = vld [vmem:[%s3 + $0x140] sm:$0xf]
        %v471 = vld [vmem:[%s3 + $0x144] sm:$0xff]
        %v472 = vld [vmem:[%s3 + $0x14c] sm:$0xf]
        %v473 = vld [vmem:[%s3 + $0x150] sm:$0xff]
        %v474 = vld [vmem:[%s3 + $0x158] sm:$0xf]
        %v475 = vld [vmem:[%s3 + $0x15c] sm:$0xff]
        %v476 = vld [vmem:[%s3 + $0x164] sm:$0xf]
        %v477 = vld [vmem:[%s3 + $0x168] sm:$0xff]
        %v478 = vld [vmem:[%s3 + $0x170] sm:$0xf]
        %v479 = vld [vmem:[%s3 + $0x174] sm:$0xff]
        %v480 = vld [vmem:[%s3 + $0x17c] sm:$0xf]
        %v481 = vld [vmem:[%s3 + $0x180] sm:$0xff]
        %v482 = vld [vmem:[%s3 + $0x188] sm:$0xf]
        %v483 = vld [vmem:[%s3 + $0x18c] sm:$0xff]
        %v484 = vld [vmem:[%s3 + $0x194] sm:$0xf]
        %v485 = vld [vmem:[%s3 + $0x198] sm:$0xff]
        %v486 = vld [vmem:[%s3 + $0x1a0] sm:$0xf]
        %v487 = vld [vmem:[%s3 + $0x1a4] sm:$0xff]
        %v488 = vld [vmem:[%s3 + $0x1ac] sm:$0xf]
        %v489 = vld [vmem:[%s3 + $0x1b0] sm:$0xff]
        %v490 = vld [vmem:[%s3 + $0x1b8] sm:$0xf]
        %v491 = vld [vmem:[%s3 + $0x1bc] sm:$0xff]
        %v492 = vld [vmem:[%s3 + $0x1c4] sm:$0xf]
        %v493 = vld [vmem:[%s3 + $0x1c8] sm:$0xff]
        %v494 = vld [vmem:[%s3 + $0x1d0] sm:$0xf]
        %v495 = vld [vmem:[%s3 + $0x1d4] sm:$0xff]
        %v496 = vld [vmem:[%s3 + $0x1dc] sm:$0xf]
        %v497 = vld [vmem:[%s4] sm:$0x7]
        %v499 = vlaneseq
        %v500 = vshrl.u32 %v499, 7
        %v501 = vsub.s32 0, %v500
        %v502 = vrot.slane %v497, %v501
        %v503 = vlaneseq
        %v504 = vshrl.u32 %v503, 7
        %v505 = vsub.s32 1, %v504
        %v506 = vrot.slane %v497, %v505
        %v507 = vlaneseq
        %v508 = vshrl.u32 %v507, 7
        %v509 = vsub.s32 2, %v508
        %v510 = vrot.slane %v497, %v509
        %v518 = vunpack.c.l.b16 %v413
        %v519 = vunpack.c.h.b16 %v413
        %v520 = vunpack.c.l.b16 %v414
        %v521 = vunpack.c.l.b16 %v415
        %v522 = vunpack.c.h.b16 %v415
        %v523 = vunpack.c.l.b16 %v416
        %v524 = vpack.c.b16 %v521, %v518
        %v525 = vpack.c.b16 %v522, %v519
        %v526 = vpack.c.b16 %v523, %v520
        %v609 = vunpack.c.l.b16 %v417
        %v610 = vunpack.c.h.b16 %v417
        %v611 = vunpack.c.l.b16 %v418
        %v612 = vunpack.c.l.b16 %v419
        %v613 = vunpack.c.h.b16 %v419
        %v614 = vunpack.c.l.b16 %v420
        %v615 = vunpack.c.l.b16 %v421
        %v616 = vunpack.c.h.b16 %v421
        %v617 = vunpack.c.l.b16 %v422
        %v618 = vunpack.c.l.b16 %v423
        %v619 = vunpack.c.h.b16 %v423
        %v620 = vunpack.c.l.b16 %v424
        %v621 = vunpack.c.l.b16 %v425
        %v622 = vunpack.c.h.b16 %v425
        %v623 = vunpack.c.l.b16 %v426
        %v624 = vunpack.c.l.b16 %v427
        %v625 = vunpack.c.h.b16 %v427
        %v626 = vunpack.c.l.b16 %v428
        %v627 = vunpack.c.l.b16 %v429
        %v628 = vunpack.c.h.b16 %v429
        %v629 = vunpack.c.l.b16 %v430
        %v630 = vunpack.c.l.b16 %v431
        %v631 = vunpack.c.h.b16 %v431
        %v632 = vunpack.c.l.b16 %v432
        %v633 = vunpack.c.l.b16 %v433
        %v634 = vunpack.c.h.b16 %v433
        %v635 = vunpack.c.l.b16 %v434
        %v636 = vunpack.c.l.b16 %v435
        %v637 = vunpack.c.h.b16 %v435
        %v638 = vunpack.c.l.b16 %v436
        %v639 = vunpack.c.l.b16 %v437
        %v640 = vunpack.c.h.b16 %v437
        %v641 = vunpack.c.l.b16 %v438
        %v642 = vunpack.c.l.b16 %v439
        %v643 = vunpack.c.h.b16 %v439
        %v644 = vunpack.c.l.b16 %v440
        %v645 = vunpack.c.l.b16 %v441
        %v646 = vunpack.c.h.b16 %v441
        %v647 = vunpack.c.l.b16 %v442
        %v648 = vunpack.c.l.b16 %v443
        %v649 = vunpack.c.h.b16 %v443
        %v650 = vunpack.c.l.b16 %v444
        %v651 = vunpack.c.l.b16 %v445
        %v652 = vunpack.c.h.b16 %v445
        %v653 = vunpack.c.l.b16 %v446
        %v654 = vunpack.c.l.b16 %v447
        %v655 = vunpack.c.h.b16 %v447
        %v656 = vunpack.c.l.b16 %v448
        %v657 = vunpack.c.l.b16 %v449
        %v658 = vunpack.c.h.b16 %v449
        %v659 = vunpack.c.l.b16 %v450
        %v660 = vunpack.c.l.b16 %v451
        %v661 = vunpack.c.h.b16 %v451
        %v662 = vunpack.c.l.b16 %v452
        %v663 = vunpack.c.l.b16 %v453
        %v664 = vunpack.c.h.b16 %v453
        %v665 = vunpack.c.l.b16 %v454
        %v666 = vunpack.c.l.b16 %v455
        %v667 = vunpack.c.h.b16 %v455
        %v668 = vunpack.c.l.b16 %v456
        %v669 = vunpack.c.l.b16 %v457
        %v670 = vunpack.c.h.b16 %v457
        %v671 = vunpack.c.l.b16 %v458
        %v672 = vunpack.c.l.b16 %v459
        %v673 = vunpack.c.h.b16 %v459
        %v674 = vunpack.c.l.b16 %v460
        %v675 = vunpack.c.l.b16 %v461
        %v676 = vunpack.c.h.b16 %v461
        %v677 = vunpack.c.l.b16 %v462
        %v678 = vunpack.c.l.b16 %v463
        %v679 = vunpack.c.h.b16 %v463
        %v680 = vunpack.c.l.b16 %v464
        %v681 = vunpack.c.l.b16 %v465
        %v682 = vunpack.c.h.b16 %v465
        %v683 = vunpack.c.l.b16 %v466
        %v684 = vunpack.c.l.b16 %v467
        %v685 = vunpack.c.h.b16 %v467
        %v686 = vunpack.c.l.b16 %v468
        %v687 = vunpack.c.l.b16 %v469
        %v688 = vunpack.c.h.b16 %v469
        %v689 = vunpack.c.l.b16 %v470
        %v690 = vunpack.c.l.b16 %v471
        %v691 = vunpack.c.h.b16 %v471
        %v692 = vunpack.c.l.b16 %v472
        %v693 = vunpack.c.l.b16 %v473
        %v694 = vunpack.c.h.b16 %v473
        %v695 = vunpack.c.l.b16 %v474
        %v696 = vunpack.c.l.b16 %v475
        %v697 = vunpack.c.h.b16 %v475
        %v698 = vunpack.c.l.b16 %v476
        %v699 = vunpack.c.l.b16 %v477
        %v700 = vunpack.c.h.b16 %v477
        %v701 = vunpack.c.l.b16 %v478
        %v702 = vunpack.c.l.b16 %v479
        %v703 = vunpack.c.h.b16 %v479
        %v704 = vunpack.c.l.b16 %v480
        %v705 = vunpack.c.l.b16 %v481
        %v706 = vunpack.c.h.b16 %v481
        %v707 = vunpack.c.l.b16 %v482
        %v708 = vunpack.c.l.b16 %v483
        %v709 = vunpack.c.h.b16 %v483
        %v710 = vunpack.c.l.b16 %v484
        %v711 = vunpack.c.l.b16 %v485
        %v712 = vunpack.c.h.b16 %v485
        %v713 = vunpack.c.l.b16 %v486
        %v714 = vunpack.c.l.b16 %v487
        %v715 = vunpack.c.h.b16 %v487
        %v716 = vunpack.c.l.b16 %v488
        %v717 = vunpack.c.l.b16 %v489
        %v718 = vunpack.c.h.b16 %v489
        %v719 = vunpack.c.l.b16 %v490
        %v720 = vunpack.c.l.b16 %v491
        %v721 = vunpack.c.h.b16 %v491
        %v722 = vunpack.c.l.b16 %v492
        %v723 = vunpack.c.l.b16 %v493
        %v724 = vunpack.c.h.b16 %v493
        %v725 = vunpack.c.l.b16 %v494
        %v726 = vunpack.c.l.b16 %v495
        %v727 = vunpack.c.h.b16 %v495
        %v728 = vunpack.c.l.b16 %v496
        %v729 = vpack.c.b16 %v612, %v609
        %v730 = vpack.c.b16 %v613, %v610
        %v731 = vpack.c.b16 %v614, %v611
        %v732 = vpack.c.b16 %v618, %v615
        %v733 = vpack.c.b16 %v619, %v616
        %v734 = vpack.c.b16 %v620, %v617
        %v735 = vpack.c.b16 %v624, %v621
        %v736 = vpack.c.b16 %v625, %v622
        %v737 = vpack.c.b16 %v626, %v623
        %v738 = vpack.c.b16 %v630, %v627
        %v739 = vpack.c.b16 %v631, %v628
        %v740 = vpack.c.b16 %v632, %v629
        %v741 = vpack.c.b16 %v636, %v633
        %v742 = vpack.c.b16 %v637, %v634
        %v743 = vpack.c.b16 %v638, %v635
        %v744 = vpack.c.b16 %v642, %v639
        %v745 = vpack.c.b16 %v643, %v640
        %v746 = vpack.c.b16 %v644, %v641
        %v747 = vpack.c.b16 %v648, %v645
        %v748 = vpack.c.b16 %v649, %v646
        %v749 = vpack.c.b16 %v650, %v647
        %v750 = vpack.c.b16 %v654, %v651
        %v751 = vpack.c.b16 %v655, %v652
        %v752 = vpack.c.b16 %v656, %v653
        %v753 = vpack.c.b16 %v660, %v657
        %v754 = vpack.c.b16 %v661, %v658
        %v755 = vpack.c.b16 %v662, %v659
        %v756 = vpack.c.b16 %v666, %v663
        %v757 = vpack.c.b16 %v667, %v664
        %v758 = vpack.c.b16 %v668, %v665
        %v759 = vpack.c.b16 %v672, %v669
        %v760 = vpack.c.b16 %v673, %v670
        %v761 = vpack.c.b16 %v674, %v671
        %v762 = vpack.c.b16 %v678, %v675
        %v763 = vpack.c.b16 %v679, %v676
        %v764 = vpack.c.b16 %v680, %v677
        %v765 = vpack.c.b16 %v684, %v681
        %v766 = vpack.c.b16 %v685, %v682
        %v767 = vpack.c.b16 %v686, %v683
        %v768 = vpack.c.b16 %v690, %v687
        %v769 = vpack.c.b16 %v691, %v688
        %v770 = vpack.c.b16 %v692, %v689
        %v771 = vpack.c.b16 %v696, %v693
        %v772 = vpack.c.b16 %v697, %v694
        %v773 = vpack.c.b16 %v698, %v695
        %v774 = vpack.c.b16 %v702, %v699
        %v775 = vpack.c.b16 %v703, %v700
        %v776 = vpack.c.b16 %v704, %v701
        %v777 = vpack.c.b16 %v708, %v705
        %v778 = vpack.c.b16 %v709, %v706
        %v779 = vpack.c.b16 %v710, %v707
        %v780 = vpack.c.b16 %v714, %v711
        %v781 = vpack.c.b16 %v715, %v712
        %v782 = vpack.c.b16 %v716, %v713
        %v783 = vpack.c.b16 %v720, %v717
        %v784 = vpack.c.b16 %v721, %v718
        %v785 = vpack.c.b16 %v722, %v719
        %v786 = vpack.c.b16 %v726, %v723
        %v787 = vpack.c.b16 %v727, %v724
        %v788 = vpack.c.b16 %v728, %v725
        %vm849 = vcmask 523264
        %v851 = vsel %vm849, %v526, 0
        %853 = vmatprep.subr.bf16.mxu0 %v751
        %854 = vmatpush1.bf16.msra.mxu0 %v750
        %855 = vmatprep.subr.bf16.mxu0 %v748
        %856 = vmatpush1.bf16.msra.mxu0 %v747
        %857 = vmatprep.subr.bf16.mxu0 %v745
        %858 = vmatpush1.bf16.msra.mxu0 %v744
        %859 = vmatprep.subr.bf16.mxu0 %v742
        %860 = vmatpush1.bf16.msra.mxu0 %v741
        %861 = vmatprep.subr.bf16.mxu0 %v739
        %862 = vmatpush1.bf16.msra.mxu0 %v738
        %863 = vmatprep.subr.bf16.mxu0 %v736
        %864 = vmatpush1.bf16.msra.mxu0 %v735
        %865 = vmatprep.subr.bf16.mxu0 %v733
        %866 = vmatpush1.bf16.msra.mxu0 %v732
        %867 = vmatprep.subr.bf16.mxu0 %v730
        %868 = vmatpush1.bf16.msra.mxu0 %v729
        %869 = vmatprep.subr.bf16.mxu0 %v775
        %870 = vmatpush2.bf16.msra.mxu0 %v774
        %871 = vmatprep.subr.bf16.mxu0 %v772
        %872 = vmatpush2.bf16.msra.mxu0 %v771
        %873 = vmatprep.subr.bf16.mxu0 %v769
        %874 = vmatpush2.bf16.msra.mxu0 %v768
        %875 = vmatprep.subr.bf16.mxu0 %v766
        %876 = vmatpush2.bf16.msra.mxu0 %v765
        %877 = vmatprep.subr.bf16.mxu0 %v763
        %878 = vmatpush2.bf16.msra.mxu0 %v762
        %879 = vmatprep.subr.bf16.mxu0 %v760
        %880 = vmatpush2.bf16.msra.mxu0 %v759
        %881 = vmatprep.subr.bf16.mxu0 %v757
        %882 = vmatpush2.bf16.msra.mxu0 %v756
        %883 = vmatprep.subr.bf16.mxu0 %v754
        %884 = vmatpush2.bf16.msra.mxu0 %v753
        %885 = vmatprep.mubr.bf16.mxu0 %v525
        %886 = vmatmul.mubr.bf16.gmra.mxu0 %v524
        %v887 = vpop.f32.mrf.mxu0
        %v888 = vadd.f32 %v502, %v887
        %v889 = vpop.f32.mrf.mxu0
        %v890 = vadd.f32 %v506, %v889
        %v891 = vpop.f32.mrf.mxu0
        %v892 = vadd.f32 %v502, %v891
        %v893 = vpop.f32.mrf.mxu0
        %v894 = vadd.f32 %v506, %v893
        %895 = vdwg.mxu0
        %896 = vmatprep.subr.bf16.mxu0 0
        %897 = vmatpush1.bf16.msra.mxu0 0
        %898 = vmatprep.subr.bf16.mxu0 0
        %899 = vmatpush1.bf16.msra.mxu0 0
        %900 = vmatprep.subr.bf16.mxu0 0
        %901 = vmatpush1.bf16.msra.mxu0 0
        %902 = vmatprep.subr.bf16.mxu0 0
        %903 = vmatpush1.bf16.msra.mxu0 0
        %904 = vmatprep.subr.bf16.mxu0 %v787
        %905 = vmatpush1.bf16.msra.mxu0 %v786
        %906 = vmatprep.subr.bf16.mxu0 %v784
        %907 = vmatpush1.bf16.msra.mxu0 %v783
        %908 = vmatprep.subr.bf16.mxu0 %v781
        %909 = vmatpush1.bf16.msra.mxu0 %v780
        %910 = vmatprep.subr.bf16.mxu0 %v778
        %911 = vmatpush1.bf16.msra.mxu0 %v777
        %912 = vmatprep.subr.bf16.mxu0 0
        %913 = vmatpush2.bf16.msra.mxu0 0
        %914 = vmatprep.subr.bf16.mxu0 0
        %915 = vmatpush2.bf16.msra.mxu0 0
        %916 = vmatprep.subr.bf16.mxu0 0
        %917 = vmatpush2.bf16.msra.mxu0 0
        %918 = vmatprep.subr.bf16.mxu0 0
        %919 = vmatpush2.bf16.msra.mxu0 0
        %920 = vmatprep.subr.bf16.mxu0 0
        %921 = vmatpush2.bf16.msra.mxu0 0
        %922 = vmatprep.subr.bf16.mxu0 0
        %923 = vmatpush2.bf16.msra.mxu0 0
        %924 = vmatprep.subr.bf16.mxu0 0
        %925 = vmatpush2.bf16.msra.mxu0 0
        %926 = vmatprep.subr.bf16.mxu0 0
        %927 = vmatpush2.bf16.msra.mxu0 0
        %928 = vmatprep.mubr.bf16.mxu0 0
        %929 = vmatmul.mubr.bf16.gmra.mxu0 %v851
        %v930 = vpop.f32.mrf.mxu0
        %v931 = vadd.f32 %v888, %v930
        %v932 = vpop.f32.mrf.mxu0
        %v933 = vadd.f32 %v890, %v932
        %v934 = vpop.f32.mrf.mxu0
        %v935 = vadd.f32 %v892, %v934
        %v936 = vpop.f32.mrf.mxu0
        %v937 = vadd.f32 %v894, %v936
        %938 = vdwg.mxu0
        %939 = vmatprep.subr.bf16.mxu0 0
        %940 = vmatpush1.bf16.msra.mxu0 %v752
        %941 = vmatprep.subr.bf16.mxu0 0
        %942 = vmatpush1.bf16.msra.mxu0 %v749
        %943 = vmatprep.subr.bf16.mxu0 0
        %944 = vmatpush1.bf16.msra.mxu0 %v746
        %945 = vmatprep.subr.bf16.mxu0 0
        %946 = vmatpush1.bf16.msra.mxu0 %v743
        %947 = vmatprep.subr.bf16.mxu0 0
        %948 = vmatpush1.bf16.msra.mxu0 %v740
        %949 = vmatprep.subr.bf16.mxu0 0
        %950 = vmatpush1.bf16.msra.mxu0 %v737
        %951 = vmatprep.subr.bf16.mxu0 0
        %952 = vmatpush1.bf16.msra.mxu0 %v734
        %953 = vmatprep.subr.bf16.mxu0 0
        %954 = vmatpush1.bf16.msra.mxu0 %v731
        %955 = vmatprep.subr.bf16.mxu0 0
        %956 = vmatpush2.bf16.msra.mxu0 %v776
        %957 = vmatprep.subr.bf16.mxu0 0
        %958 = vmatpush2.bf16.msra.mxu0 %v773
        %959 = vmatprep.subr.bf16.mxu0 0
        %960 = vmatpush2.bf16.msra.mxu0 %v770
        %961 = vmatprep.subr.bf16.mxu0 0
        %962 = vmatpush2.bf16.msra.mxu0 %v767
        %963 = vmatprep.subr.bf16.mxu0 0
        %964 = vmatpush2.bf16.msra.mxu0 %v764
        %965 = vmatprep.subr.bf16.mxu0 0
        %966 = vmatpush2.bf16.msra.mxu0 %v761
        %967 = vmatprep.subr.bf16.mxu0 0
        %968 = vmatpush2.bf16.msra.mxu0 %v758
        %969 = vmatprep.subr.bf16.mxu0 0
        %970 = vmatpush2.bf16.msra.mxu0 %v755
        %971 = vmatprep.mubr.bf16.mxu0 %v525
        %972 = vmatmul.mubr.bf16.gmra.mxu0 %v524
        %v973 = vpop.f32.mrf.mxu0
        %v974 = vadd.f32 %v510, %v973
        %v975 = vpop.f32.mrf.mxu0
        %v976 = vpop.f32.mrf.mxu0
        %v977 = vadd.f32 %v510, %v976
        %v978 = vpop.f32.mrf.mxu0
        %979 = vdwg.mxu0
        %980 = vmatprep.subr.bf16.mxu0 0
        %981 = vmatpush1.bf16.msra.mxu0 0
        %982 = vmatprep.subr.bf16.mxu0 0
        %983 = vmatpush1.bf16.msra.mxu0 0
        %984 = vmatprep.subr.bf16.mxu0 0
        %985 = vmatpush1.bf16.msra.mxu0 0
        %986 = vmatprep.subr.bf16.mxu0 0
        %987 = vmatpush1.bf16.msra.mxu0 0
        %988 = vmatprep.subr.bf16.mxu0 0
        %989 = vmatpush1.bf16.msra.mxu0 %v788
        %990 = vmatprep.subr.bf16.mxu0 0
        %991 = vmatpush1.bf16.msra.mxu0 %v785
        %992 = vmatprep.subr.bf16.mxu0 0
        %993 = vmatpush1.bf16.msra.mxu0 %v782
        %994 = vmatprep.subr.bf16.mxu0 0
        %995 = vmatpush1.bf16.msra.mxu0 %v779
        %996 = vmatprep.subr.bf16.mxu0 0
        %997 = vmatpush2.bf16.msra.mxu0 0
        %998 = vmatprep.subr.bf16.mxu0 0
        %999 = vmatpush2.bf16.msra.mxu0 0
        %1000 = vmatprep.subr.bf16.mxu0 0
        %1001 = vmatpush2.bf16.msra.mxu0 0
        %1002 = vmatprep.subr.bf16.mxu0 0
        %1003 = vmatpush2.bf16.msra.mxu0 0
        %1004 = vmatprep.subr.bf16.mxu0 0
        %1005 = vmatpush2.bf16.msra.mxu0 0
        %1006 = vmatprep.subr.bf16.mxu0 0
        %1007 = vmatpush2.bf16.msra.mxu0 0
        %1008 = vmatprep.subr.bf16.mxu0 0
        %1009 = vmatpush2.bf16.msra.mxu0 0
        %1010 = vmatprep.subr.bf16.mxu0 0
        %1011 = vmatpush2.bf16.msra.mxu0 0
        %1012 = vmatprep.mubr.bf16.mxu0 0
        %1013 = vmatmul.mubr.bf16.gmra.mxu0 %v851
        %v1014 = vpop.f32.mrf.mxu0
        %v1015 = vadd.f32 %v974, %v1014
        %v1016 = vpop.f32.mrf.mxu0
        %v1017 = vpop.f32.mrf.mxu0
        %v1018 = vadd.f32 %v977, %v1017
        %v1019 = vpop.f32.mrf.mxu0
        %1020 = vdwg.mxu0
        %v1021 = vpack.c.bf16 %v935, %v931
        %v1022 = vpack.c.bf16 %v937, %v933
        %v1023 = vpack.c.bf16 %v1018, %v1015
        %v1027 = vunpack.c.l.b16 %v1021
        %v1028 = vunpack.c.l.b16 %v1022
        %v1029 = vunpack.c.l.b16 %v1023
        %v1030 = vunpack.c.h.b16 %v1021
        %v1031 = vunpack.c.h.b16 %v1022
        %v1032 = vunpack.c.h.b16 %v1023
        %v1033 = vpack.c.b16 %v1028, %v1027
        %v1034 = vpack.c.b16 %v1029, %v1029
        %v1035 = vpack.c.b16 %v1031, %v1030
        %v1036 = vpack.c.b16 %v1032, %v1032
        %1041 = vst [vmem:[#allocation2] sm:$0xff] %v1033
        %vm1042 = vcmask 519168
        %1043 = vst.msk [vmem:[#allocation2 + $0x8] sm:$0xf] %vm1042, %v1034
        %1044 = vst [vmem:[#allocation2 + $0xc] sm:$0xff] %v1035
        %1045 = vst.msk [vmem:[#allocation2 + $0x14] sm:$0xf] %vm1042, %v1036
        %vm1046 = vcmask 7168
        %1047 = vst.msk [vmem:[#allocation3] sm:$0xff] %vm1046, -inf
        %1048 = vst.msk [vmem:[#allocation3 + $0x8] sm:$0xff] %vm1046, -inf
        %1049 = vst.msk [vmem:[#allocation4] sm:$0xff] %vm1046, 0.0
        %1050 = vst.msk [vmem:[#allocation4 + $0x8] sm:$0xff] %vm1046, 0.0
        %1051 = vst [vmem:[#allocation5] sm:$0xff] 0.0
        %1052 = vst [vmem:[#allocation5 + $0x8] sm:$0xff] 0.0
        %1053 = vst.msk [vmem:[#allocation5 + $0x10] sm:$0xff] %vm849, 0.0
        %1054 = vst [vmem:[#allocation5 + $0x18] sm:$0xff] 0.0
        %1055 = vst [vmem:[#allocation5 + $0x20] sm:$0xff] 0.0
        %1056 = vst.msk [vmem:[#allocation5 + $0x28] sm:$0xff] %vm849, 0.0
      $region52: #{forward.18} parent=47 // pred_fallthru
        _
      %v1057 = vld [vmem:[#allocation2] sm:$0xff]
      %v1058 = vld [vmem:[#allocation2 + $0x8] sm:$0xf]
      %v1059 = vld [vmem:[#allocation2 + $0xc] sm:$0xff]
      %v1060 = vld [vmem:[#allocation2 + $0x14] sm:$0xf]
      %v1061 = vld [vmem:[%s384] sm:$0xff]
      %v1062 = vld [vmem:[%s384 + $0x8] sm:$0xf]
      %v1063 = vld [vmem:[%s384 + $0xc] sm:$0xff]
      %v1064 = vld [vmem:[%s384 + $0x14] sm:$0xf]
      %v1065 = vld [vmem:[%s395] sm:$0xff]
      %v1066 = vld [vmem:[%s395 + $0x8] sm:$0xf]
      %v1067 = vld [vmem:[%s395 + $0xc] sm:$0xff]
      %v1068 = vld [vmem:[%s395 + $0x14] sm:$0xf]
      %v1073 = vunpack.c.l.b16 %v1057
      %v1074 = vunpack.c.h.b16 %v1057
      %v1075 = vunpack.c.l.b16 %v1058
      %v1076 = vunpack.c.l.b16 %v1059
      %v1077 = vunpack.c.h.b16 %v1059
      %v1078 = vunpack.c.l.b16 %v1060
      %v1079 = vpack.c.b16 %v1076, %v1073
      %v1080 = vpack.c.b16 %v1077, %v1074
      %v1081 = vpack.c.b16 %v1078, %v1075
      %v1088 = vunpack.c.l.b16 %v1061
      %v1089 = vunpack.c.h.b16 %v1061
      %v1090 = vunpack.c.l.b16 %v1062
      %v1091 = vunpack.c.l.b16 %v1063
      %v1092 = vunpack.c.h.b16 %v1063
      %v1093 = vunpack.c.l.b16 %v1064
      %v1094 = vpack.c.b16 %v1091, %v1088
      %v1095 = vpack.c.b16 %v1092, %v1089
      %v1096 = vpack.c.b16 %v1093, %v1090
      %vm1099 = vcmask 523264
      %v1101 = vsel %vm1099, %v1081, 0
      %v1104 = vsel %vm1099, %v1096, 0
      %1106 = vmatprep.subr.bf16.mxu0 0
      %1107 = vmatpush1.bf16.xpose.msra.mxu0 0
      %1108 = vmatprep.subr.bf16.mxu0 0
      %1109 = vmatpush1.bf16.xpose.msra.mxu0 0
      %1110 = vmatprep.subr.bf16.mxu0 0
      %1111 = vmatpush1.bf16.xpose.msra.mxu0 0
      %1112 = vmatprep.subr.bf16.mxu0 0
      %1113 = vmatpush1.bf16.xpose.msra.mxu0 0
      %1114 = vmatprep.subr.bf16.mxu0 0
      %1115 = vmatpush1.bf16.xpose.msra.mxu0 0
      %1116 = vmatprep.subr.bf16.mxu0 0
      %1117 = vmatpush1.bf16.xpose.msra.mxu0 0
      %1118 = vmatprep.subr.bf16.mxu0 0
      %1119 = vmatpush1.bf16.xpose.msra.mxu0 0
      %1120 = vmatprep.subr.bf16.mxu0 %v1095
      %1121 = vmatpush1.bf16.xpose.msra.mxu0 %v1094
      %1122 = vmatprep.subr.bf16.mxu0 0
      %1123 = vmatpush2.bf16.xpose.msra.mxu0 0
      %1124 = vmatprep.subr.bf16.mxu0 0
      %1125 = vmatpush2.bf16.xpose.msra.mxu0 0
      %1126 = vmatprep.subr.bf16.mxu0 0
      %1127 = vmatpush2.bf16.xpose.msra.mxu0 0
      %1128 = vmatprep.subr.bf16.mxu0 0
      %1129 = vmatpush2.bf16.xpose.msra.mxu0 0
      %1130 = vmatprep.subr.bf16.mxu0 0
      %1131 = vmatpush2.bf16.xpose.msra.mxu0 0
      %1132 = vmatprep.subr.bf16.mxu0 0
      %1133 = vmatpush2.bf16.xpose.msra.mxu0 0
      %1134 = vmatprep.subr.bf16.mxu0 0
      %1135 = vmatpush2.bf16.xpose.msra.mxu0 0
      %1136 = vmatprep.subr.bf16.mxu0 0
      %1137 = vmatpush2.bf16.xpose.msra.mxu0 0
      %1138 = vmatprep.mubr.bf16.mxu0 %v1080
      %1139 = vmatmul.mubr.bf16.gmra.mxu0 %v1079
      %v1140 = vpop.f32.mrf.mxu0
      %v1141 = vadd.f32 0.0, %v1140
      %v1142 = vpop.f32.mrf.mxu0
      %v1143 = vpop.f32.mrf.mxu0
      %v1144 = vadd.f32 0.0, %v1143
      %v1145 = vpop.f32.mrf.mxu0
      %1146 = vdwg.mxu0
      %1147 = vmatprep.subr.bf16.mxu0 0
      %1148 = vmatpush1.bf16.xpose.msra.mxu0 0
      %1149 = vmatprep.subr.bf16.mxu0 0
      %1150 = vmatpush1.bf16.xpose.msra.mxu0 0
      %1151 = vmatprep.subr.bf16.mxu0 0
      %1152 = vmatpush1.bf16.xpose.msra.mxu0 0
      %1153 = vmatprep.subr.bf16.mxu0 0
      %1154 = vmatpush1.bf16.xpose.msra.mxu0 0
      %1155 = vmatprep.subr.bf16.mxu0 0
      %1156 = vmatpush1.bf16.xpose.msra.mxu0 0
      %1157 = vmatprep.subr.bf16.mxu0 0
      %1158 = vmatpush1.bf16.xpose.msra.mxu0 0
      %1159 = vmatprep.subr.bf16.mxu0 0
      %1160 = vmatpush1.bf16.xpose.msra.mxu0 0
      %1161 = vmatprep.subr.bf16.mxu0 0
      %1162 = vmatpush1.bf16.xpose.msra.mxu0 %v1104
      %1163 = vmatprep.subr.bf16.mxu0 0
      %1164 = vmatpush2.bf16.xpose.msra.mxu0 0
      %1165 = vmatprep.subr.bf16.mxu0 0
      %1166 = vmatpush2.bf16.xpose.msra.mxu0 0
      %1167 = vmatprep.subr.bf16.mxu0 0
      %1168 = vmatpush2.bf16.xpose.msra.mxu0 0
      %1169 = vmatprep.subr.bf16.mxu0 0
      %1170 = vmatpush2.bf16.xpose.msra.mxu0 0
      %1171 = vmatprep.subr.bf16.mxu0 0
      %1172 = vmatpush2.bf16.xpose.msra.mxu0 0
      %1173 = vmatprep.subr.bf16.mxu0 0
      %1174 = vmatpush2.bf16.xpose.msra.mxu0 0
      %1175 = vmatprep.subr.bf16.mxu0 0
      %1176 = vmatpush2.bf16.xpose.msra.mxu0 0
      %1177 = vmatprep.subr.bf16.mxu0 0
      %1178 = vmatpush2.bf16.xpose.msra.mxu0 0
      %1179 = vmatprep.mubr.bf16.mxu0 0
      %1180 = vmatmul.mubr.bf16.gmra.mxu0 %v1101
      %v1181 = vpop.f32.mrf.mxu0
      %v1182 = vadd.f32 %v1141, %v1181
      %v1183 = vpop.f32.mrf.mxu0
      %v1184 = vpop.f32.mrf.mxu0
      %v1185 = vadd.f32 %v1144, %v1184
      %v1186 = vpop.f32.mrf.mxu0
      %1187 = vdwg.mxu0
      %v1188 = vld [vmem:[#allocation3] sm:$0xff]
      %v1189 = vld [vmem:[#allocation3 + $0x8] sm:$0xff]
      %vm1190 = vcmask 130048
      %v1191 = vsel %vm1190, %v1182, -inf
      %1192 = vmax.xlane.f32.xlu0 %v1191
      %v1193 = vpop.xlane.xlu0 %1192
      %v1194 = vsel %vm1190, %v1185, -inf
      %1195 = vmax.xlane.f32.xlu0 %v1194
      %v1196 = vpop.xlane.xlu0 %1195
      %v1197 = vmax.f32 %v1188, %v1193
      %v1198 = vmax.f32 %v1189, %v1196
      %v1199 = vsub.f32 %v1188, %v1197
      %v1200 = vsub.f32 %v1189, %v1198
      %v1201 = vmul.f32 %v1199, 1.442695
      %v1202 = vpow.pop %v1201
      %v1203 = vmul.f32 %v1200, 1.442695
      %v1204 = vpow.pop %v1203
      %1206 = vset.pattern.permute.xlu0 0
      %1207 = vperm.xlu0 %1206, %v1197
      %v1208 = vpop.permute.xlu0 %1207
      %1211 = vset.pattern.permute.xlu0 0
      %1212 = vperm.xlu0 %1211, %v1198
      %v1213 = vpop.permute.xlu0 %1212
      %v1215 = vsub.f32 %v1182, %v1208
      %v1216 = vsub.f32 %v1185, %v1213
      %v1217 = vmul.f32 %v1215, 1.442695
      %v1218 = vpow.pop %v1217
      %v1219 = vmul.f32 %v1216, 1.442695
      %v1220 = vpow.pop %v1219
      %v1221 = vld [vmem:[#allocation4] sm:$0xff]
      %v1222 = vld [vmem:[#allocation4 + $0x8] sm:$0xff]
      %v1223 = vmul.f32 %v1202, %v1221
      %v1224 = vmul.f32 %v1204, %v1222
      %v1225 = vsel %vm1190, %v1218, 0.0
      %1226 = vadd.xlane.f32.xlu0 %v1225
      %v1227 = vpop.xlane.xlu0 %1226
      %v1228 = vsel %vm1190, %v1220, 0.0
      %1229 = vadd.xlane.f32.xlu0 %v1228
      %v1230 = vpop.xlane.xlu0 %1229
      %v1231 = vadd.f32 %v1223, %v1227
      %v1232 = vadd.f32 %v1224, %v1230
      %vm1233 = vcmask 7168
      %1234 = vst.msk [vmem:[#allocation4] sm:$0xff] %vm1233, %v1231
      %1235 = vst.msk [vmem:[#allocation4 + $0x8] sm:$0xff] %vm1233, %v1232
      %v1236 = vld [vmem:[#allocation5] sm:$0xff]
      %v1237 = vld [vmem:[#allocation5 + $0x8] sm:$0xff]
      %v1238 = vld [vmem:[#allocation5 + $0x10] sm:$0xff]
      %v1239 = vld [vmem:[#allocation5 + $0x18] sm:$0xff]
      %v1240 = vld [vmem:[#allocation5 + $0x20] sm:$0xff]
      %v1241 = vld [vmem:[#allocation5 + $0x28] sm:$0xff]
      %1243 = vset.pattern.permute.xlu0 0
      %1244 = vperm.xlu0 %1243, %v1202
      %v1245 = vpop.permute.xlu0 %1244
      %1248 = vset.pattern.permute.xlu0 0
      %1249 = vperm.xlu0 %1248, %v1204
      %v1250 = vpop.permute.xlu0 %1249
      %v1252 = vmul.f32 %v1245, %v1236
      %v1253 = vmul.f32 %v1245, %v1237
      %v1254 = vmul.f32 %v1245, %v1238
      %v1255 = vmul.f32 %v1250, %v1239
      %v1256 = vmul.f32 %v1250, %v1240
      %v1257 = vmul.f32 %v1250, %v1241
      %v1258 = vpack.c.bf16 %v1220, %v1218
      %v1263 = vunpack.c.l.b16 %v1065
      %v1264 = vunpack.c.h.b16 %v1065
      %v1265 = vunpack.c.l.b16 %v1066
      %v1266 = vunpack.c.l.b16 %v1067
      %v1267 = vunpack.c.h.b16 %v1067
      %v1268 = vunpack.c.l.b16 %v1068
      %v1269 = vpack.c.b16 %v1266, %v1263
      %v1270 = vpack.c.b16 %v1267, %v1264
      %v1271 = vpack.c.b16 %v1268, %v1265
      %v1276 = vsel %vm1190, %v1258, 0
      %1278 = vmatprep.subr.bf16.mxu0 0
      %1279 = vmatpush1.bf16.msra.mxu0 0
      %1280 = vmatprep.subr.bf16.mxu0 0
      %1281 = vmatpush1.bf16.msra.mxu0 0
      %1282 = vmatprep.subr.bf16.mxu0 0
      %1283 = vmatpush1.bf16.msra.mxu0 0
      %1284 = vmatprep.subr.bf16.mxu0 0
      %1285 = vmatpush1.bf16.msra.mxu0 0
      %1286 = vmatprep.subr.bf16.mxu0 0
      %1287 = vmatpush1.bf16.msra.mxu0 0
      %1288 = vmatprep.subr.bf16.mxu0 0
      %1289 = vmatpush1.bf16.msra.mxu0 0
      %1290 = vmatprep.subr.bf16.mxu0 0
      %1291 = vmatpush1.bf16.msra.mxu0 0
      %1292 = vmatprep.subr.bf16.mxu0 %v1270
      %1293 = vmatpush1.bf16.msra.mxu0 %v1269
      %1294 = vmatprep.subr.bf16.mxu0 0
      %1295 = vmatpush2.bf16.msra.mxu0 0
      %1296 = vmatprep.subr.bf16.mxu0 0
      %1297 = vmatpush2.bf16.msra.mxu0 0
      %1298 = vmatprep.subr.bf16.mxu0 0
      %1299 = vmatpush2.bf16.msra.mxu0 0
      %1300 = vmatprep.subr.bf16.mxu0 0
      %1301 = vmatpush2.bf16.msra.mxu0 0
      %1302 = vmatprep.subr.bf16.mxu0 0
      %1303 = vmatpush2.bf16.msra.mxu0 0
      %1304 = vmatprep.subr.bf16.mxu0 0
      %1305 = vmatpush2.bf16.msra.mxu0 0
      %1306 = vmatprep.subr.bf16.mxu0 0
      %1307 = vmatpush2.bf16.msra.mxu0 0
      %1308 = vmatprep.subr.bf16.mxu0 0
      %1309 = vmatpush2.bf16.msra.mxu0 0
      %1310 = vmatprep.mubr.bf16.mxu0 0
      %1311 = vmatmul.mubr.bf16.gmra.mxu0 %v1276
      %v1312 = vpop.f32.mrf.mxu0
      %v1313 = vadd.f32 0.0, %v1312
      %v1314 = vpop.f32.mrf.mxu0
      %v1315 = vadd.f32 0.0, %v1314
      %v1316 = vpop.f32.mrf.mxu0
      %v1317 = vadd.f32 0.0, %v1316
      %v1318 = vpop.f32.mrf.mxu0
      %v1319 = vadd.f32 0.0, %v1318
      %1320 = vdwg.mxu0
      %1321 = vmatprep.subr.bf16.mxu0 0
      %1322 = vmatpush1.bf16.msra.mxu0 0
      %1323 = vmatprep.subr.bf16.mxu0 0
      %1324 = vmatpush1.bf16.msra.mxu0 0
      %1325 = vmatprep.subr.bf16.mxu0 0
      %1326 = vmatpush1.bf16.msra.mxu0 0
      %1327 = vmatprep.subr.bf16.mxu0 0
      %1328 = vmatpush1.bf16.msra.mxu0 0
      %1329 = vmatprep.subr.bf16.mxu0 0
      %1330 = vmatpush1.bf16.msra.mxu0 0
      %1331 = vmatprep.subr.bf16.mxu0 0
      %1332 = vmatpush1.bf16.msra.mxu0 0
      %1333 = vmatprep.subr.bf16.mxu0 0
      %1334 = vmatpush1.bf16.msra.mxu0 0
      %1335 = vmatprep.subr.bf16.mxu0 0
      %1336 = vmatpush1.bf16.msra.mxu0 %v1271
      %1337 = vmatprep.subr.bf16.mxu0 0
      %1338 = vmatpush2.bf16.msra.mxu0 0
      %1339 = vmatprep.subr.bf16.mxu0 0
      %1340 = vmatpush2.bf16.msra.mxu0 0
      %1341 = vmatprep.subr.bf16.mxu0 0
      %1342 = vmatpush2.bf16.msra.mxu0 0
      %1343 = vmatprep.subr.bf16.mxu0 0
      %1344 = vmatpush2.bf16.msra.mxu0 0
      %1345 = vmatprep.subr.bf16.mxu0 0
      %1346 = vmatpush2.bf16.msra.mxu0 0
      %1347 = vmatprep.subr.bf16.mxu0 0
      %1348 = vmatpush2.bf16.msra.mxu0 0
      %1349 = vmatprep.subr.bf16.mxu0 0
      %1350 = vmatpush2.bf16.msra.mxu0 0
      %1351 = vmatprep.subr.bf16.mxu0 0
      %1352 = vmatpush2.bf16.msra.mxu0 0
      %1353 = vmatprep.mubr.bf16.mxu0 0
      %1354 = vmatmul.mubr.bf16.gmra.mxu0 %v1276
      %v1355 = vpop.f32.mrf.mxu0
      %v1356 = vadd.f32 0.0, %v1355
      %v1357 = vpop.f32.mrf.mxu0
      %v1358 = vpop.f32.mrf.mxu0
      %v1359 = vadd.f32 0.0, %v1358
      %v1360 = vpop.f32.mrf.mxu0
      %1361 = vdwg.mxu0
      %v1362 = vadd.f32 %v1252, %v1313
      %v1363 = vadd.f32 %v1253, %v1315
      %v1364 = vadd.f32 %v1254, %v1356
      %v1365 = vadd.f32 %v1255, %v1317
      %v1366 = vadd.f32 %v1256, %v1319
      %v1367 = vadd.f32 %v1257, %v1359
      %1368 = vst [vmem:[#allocation5] sm:$0xff] %v1362
      %1369 = vst [vmem:[#allocation5 + $0x8] sm:$0xff] %v1363
      %1370 = vst.msk [vmem:[#allocation5 + $0x10] sm:$0xff] %vm1099, %v1364
      %1371 = vst [vmem:[#allocation5 + $0x18] sm:$0xff] %v1365
      %1372 = vst [vmem:[#allocation5 + $0x20] sm:$0xff] %v1366
      %1373 = vst.msk [vmem:[#allocation5 + $0x28] sm:$0xff] %vm1099, %v1367
      %1374 = vst.msk [vmem:[#allocation3] sm:$0xff] %vm1233, %v1197
      %1375 = vst.msk [vmem:[#allocation3 + $0x8] sm:$0xff] %vm1233, %v1198
      // Predicated region
      $region53: #{forward.18} parent=47 // pred_check
        %p1376 = pneg %p409
      $region54: #{forward.18} parent=47 // pred_check_branch
        %1378 = sbr.rel (%p1376) target = $region56
      $region55: #{forward.18} parent=47 // pred_region
        %v1379 = vld [vmem:[#allocation4] sm:$0xff]
        %v1380 = vld [vmem:[#allocation4 + $0x8] sm:$0xff]
        %v1381 = vrcp.pop %v1379
        %v1382 = vrcp.pop %v1380
        %v1383 = vld [vmem:[#allocation5] sm:$0xff]
        %v1384 = vld [vmem:[#allocation5 + $0x8] sm:$0xff]
        %v1385 = vld [vmem:[#allocation5 + $0x10] sm:$0xff]
        %v1386 = vld [vmem:[#allocation5 + $0x18] sm:$0xff]
        %v1387 = vld [vmem:[#allocation5 + $0x20] sm:$0xff]
        %v1388 = vld [vmem:[#allocation5 + $0x28] sm:$0xff]
        %1390 = vset.pattern.permute.xlu0 0
        %1391 = vperm.xlu0 %1390, %v1381
        %v1392 = vpop.permute.xlu0 %1391
        %1395 = vset.pattern.permute.xlu0 0
        %1396 = vperm.xlu0 %1395, %v1382
        %v1397 = vpop.permute.xlu0 %1396
        %v1399 = vmul.f32 %v1383, %v1392
        %v1400 = vmul.f32 %v1384, %v1392
        %v1401 = vmul.f32 %v1385, %v1392
        %v1402 = vmul.f32 %v1386, %v1397
        %v1403 = vmul.f32 %v1387, %v1397
        %v1404 = vmul.f32 %v1388, %v1397
        %v1405 = vpack.c.bf16 %v1402, %v1399
        %v1406 = vpack.c.bf16 %v1403, %v1400
        %v1407 = vpack.c.bf16 %v1404, %v1401
        %v1408 = vld [vmem:[%s5] sm:$0xff]
        %v1409 = vld [vmem:[%s5 + $0x8] sm:$0xf]
        %v1410 = vld [vmem:[%s5 + $0xc] sm:$0xff]
        %v1411 = vld [vmem:[%s5 + $0x14] sm:$0xf]
        %v1412 = vld [vmem:[%s5 + $0x18] sm:$0xff]
        %v1413 = vld [vmem:[%s5 + $0x20] sm:$0xf]
        %v1414 = vld [vmem:[%s5 + $0x24] sm:$0xff]
        %v1415 = vld [vmem:[%s5 + $0x2c] sm:$0xf]
        %v1416 = vld [vmem:[%s5 + $0x30] sm:$0xff]
        %v1417 = vld [vmem:[%s5 + $0x38] sm:$0xf]
        %v1418 = vld [vmem:[%s5 + $0x3c] sm:$0xff]
        %v1419 = vld [vmem:[%s5 + $0x44] sm:$0xf]
        %v1420 = vld [vmem:[%s5 + $0x48] sm:$0xff]
        %v1421 = vld [vmem:[%s5 + $0x50] sm:$0xf]
        %v1422 = vld [vmem:[%s5 + $0x54] sm:$0xff]
        %v1423 = vld [vmem:[%s5 + $0x5c] sm:$0xf]
        %v1424 = vld [vmem:[%s5 + $0x60] sm:$0xff]
        %v1425 = vld [vmem:[%s5 + $0x68] sm:$0xf]
        %v1426 = vld [vmem:[%s5 + $0x6c] sm:$0xff]
        %v1427 = vld [vmem:[%s5 + $0x74] sm:$0xf]
        %v1428 = vld [vmem:[%s5 + $0x78] sm:$0xff]
        %v1429 = vld [vmem:[%s5 + $0x80] sm:$0xf]
        %v1430 = vld [vmem:[%s5 + $0x84] sm:$0xff]
        %v1431 = vld [vmem:[%s5 + $0x8c] sm:$0xf]
        %v1432 = vld [vmem:[%s5 + $0x90] sm:$0xff]
        %v1433 = vld [vmem:[%s5 + $0x98] sm:$0xf]
        %v1434 = vld [vmem:[%s5 + $0x9c] sm:$0xff]
        %v1435 = vld [vmem:[%s5 + $0xa4] sm:$0xf]
        %v1436 = vld [vmem:[%s5 + $0xa8] sm:$0xff]
        %v1437 = vld [vmem:[%s5 + $0xb0] sm:$0xf]
        %v1438 = vld [vmem:[%s5 + $0xb4] sm:$0xff]
        %v1439 = vld [vmem:[%s5 + $0xbc] sm:$0xf]
        %v1440 = vld [vmem:[%s5 + $0xc0] sm:$0xff]
        %v1441 = vld [vmem:[%s5 + $0xc8] sm:$0xf]
        %v1442 = vld [vmem:[%s5 + $0xcc] sm:$0xff]
        %v1443 = vld [vmem:[%s5 + $0xd4] sm:$0xf]
        %v1444 = vld [vmem:[%s5 + $0xd8] sm:$0xff]
        %v1445 = vld [vmem:[%s5 + $0xe0] sm:$0xf]
        %v1446 = vld [vmem:[%s5 + $0xe4] sm:$0xff]
        %v1447 = vld [vmem:[%s5 + $0xec] sm:$0xf]
        %v1448 = vld [vmem:[%s5 + $0xf0] sm:$0xff]
        %v1449 = vld [vmem:[%s5 + $0xf8] sm:$0xf]
        %v1450 = vld [vmem:[%s5 + $0xfc] sm:$0xff]
        %v1451 = vld [vmem:[%s5 + $0x104] sm:$0xf]
        %v1452 = vld [vmem:[%s5 + $0x108] sm:$0xff]
        %v1453 = vld [vmem:[%s5 + $0x110] sm:$0xf]
        %v1454 = vld [vmem:[%s5 + $0x114] sm:$0xff]
        %v1455 = vld [vmem:[%s5 + $0x11c] sm:$0xf]
        %v1456 = vld [vmem:[%s5 + $0x120] sm:$0xff]
        %v1457 = vld [vmem:[%s5 + $0x128] sm:$0xf]
        %v1458 = vld [vmem:[%s5 + $0x12c] sm:$0xff]
        %v1459 = vld [vmem:[%s5 + $0x134] sm:$0xf]
        %v1460 = vld [vmem:[%s5 + $0x138] sm:$0xff]
        %v1461 = vld [vmem:[%s5 + $0x140] sm:$0xf]
        %v1462 = vld [vmem:[%s5 + $0x144] sm:$0xff]
        %v1463 = vld [vmem:[%s5 + $0x14c] sm:$0xf]
        %v1464 = vld [vmem:[%s5 + $0x150] sm:$0xff]
        %v1465 = vld [vmem:[%s5 + $0x158] sm:$0xf]
        %v1466 = vld [vmem:[%s5 + $0x15c] sm:$0xff]
        %v1467 = vld [vmem:[%s5 + $0x164] sm:$0xf]
        %v1468 = vld [vmem:[%s5 + $0x168] sm:$0xff]
        %v1469 = vld [vmem:[%s5 + $0x170] sm:$0xf]
        %v1470 = vld [vmem:[%s5 + $0x174] sm:$0xff]
        %v1471 = vld [vmem:[%s5 + $0x17c] sm:$0xf]
        %v1472 = vld [vmem:[%s5 + $0x180] sm:$0xff]
        %v1473 = vld [vmem:[%s5 + $0x188] sm:$0xf]
        %v1474 = vld [vmem:[%s5 + $0x18c] sm:$0xff]
        %v1475 = vld [vmem:[%s5 + $0x194] sm:$0xf]
        %v1476 = vld [vmem:[%s5 + $0x198] sm:$0xff]
        %v1477 = vld [vmem:[%s5 + $0x1a0] sm:$0xf]
        %v1478 = vld [vmem:[%s5 + $0x1a4] sm:$0xff]
        %v1479 = vld [vmem:[%s5 + $0x1ac] sm:$0xf]
        %v1480 = vld [vmem:[%s5 + $0x1b0] sm:$0xff]
        %v1481 = vld [vmem:[%s5 + $0x1b8] sm:$0xf]
        %v1482 = vld [vmem:[%s5 + $0x1bc] sm:$0xff]
        %v1483 = vld [vmem:[%s5 + $0x1c4] sm:$0xf]
        %v1484 = vld [vmem:[%s5 + $0x1c8] sm:$0xff]
        %v1485 = vld [vmem:[%s5 + $0x1d0] sm:$0xf]
        %v1486 = vld [vmem:[%s5 + $0x1d4] sm:$0xff]
        %v1487 = vld [vmem:[%s5 + $0x1dc] sm:$0xf]
        %v1488 = vld [vmem:[%s6] sm:$0x7]
        %v1490 = vlaneseq
        %v1491 = vshrl.u32 %v1490, 7
        %v1492 = vsub.s32 0, %v1491
        %v1493 = vrot.slane %v1488, %v1492
        %v1494 = vlaneseq
        %v1495 = vshrl.u32 %v1494, 7
        %v1496 = vsub.s32 1, %v1495
        %v1497 = vrot.slane %v1488, %v1496
        %v1498 = vlaneseq
        %v1499 = vshrl.u32 %v1498, 7
        %v1500 = vsub.s32 2, %v1499
        %v1501 = vrot.slane %v1488, %v1500
        %v1585 = vunpack.c.l.b16 %v1408
        %v1586 = vunpack.c.h.b16 %v1408
        %v1587 = vunpack.c.l.b16 %v1409
        %v1588 = vunpack.c.l.b16 %v1410
        %v1589 = vunpack.c.h.b16 %v1410
        %v1590 = vunpack.c.l.b16 %v1411
        %v1591 = vunpack.c.l.b16 %v1412
        %v1592 = vunpack.c.h.b16 %v1412
        %v1593 = vunpack.c.l.b16 %v1413
        %v1594 = vunpack.c.l.b16 %v1414
        %v1595 = vunpack.c.h.b16 %v1414
        %v1596 = vunpack.c.l.b16 %v1415
        %v1597 = vunpack.c.l.b16 %v1416
        %v1598 = vunpack.c.h.b16 %v1416
        %v1599 = vunpack.c.l.b16 %v1417
        %v1600 = vunpack.c.l.b16 %v1418
        %v1601 = vunpack.c.h.b16 %v1418
        %v1602 = vunpack.c.l.b16 %v1419
        %v1603 = vunpack.c.l.b16 %v1420
        %v1604 = vunpack.c.h.b16 %v1420
        %v1605 = vunpack.c.l.b16 %v1421
        %v1606 = vunpack.c.l.b16 %v1422
        %v1607 = vunpack.c.h.b16 %v1422
        %v1608 = vunpack.c.l.b16 %v1423
        %v1609 = vunpack.c.l.b16 %v1424
        %v1610 = vunpack.c.h.b16 %v1424
        %v1611 = vunpack.c.l.b16 %v1425
        %v1612 = vunpack.c.l.b16 %v1426
        %v1613 = vunpack.c.h.b16 %v1426
        %v1614 = vunpack.c.l.b16 %v1427
        %v1615 = vunpack.c.l.b16 %v1428
        %v1616 = vunpack.c.h.b16 %v1428
        %v1617 = vunpack.c.l.b16 %v1429
        %v1618 = vunpack.c.l.b16 %v1430
        %v1619 = vunpack.c.h.b16 %v1430
        %v1620 = vunpack.c.l.b16 %v1431
        %v1621 = vunpack.c.l.b16 %v1432
        %v1622 = vunpack.c.h.b16 %v1432
        %v1623 = vunpack.c.l.b16 %v1433
        %v1624 = vunpack.c.l.b16 %v1434
        %v1625 = vunpack.c.h.b16 %v1434
        %v1626 = vunpack.c.l.b16 %v1435
        %v1627 = vunpack.c.l.b16 %v1436
        %v1628 = vunpack.c.h.b16 %v1436
        %v1629 = vunpack.c.l.b16 %v1437
        %v1630 = vunpack.c.l.b16 %v1438
        %v1631 = vunpack.c.h.b16 %v1438
        %v1632 = vunpack.c.l.b16 %v1439
        %v1633 = vunpack.c.l.b16 %v1440
        %v1634 = vunpack.c.h.b16 %v1440
        %v1635 = vunpack.c.l.b16 %v1441
        %v1636 = vunpack.c.l.b16 %v1442
        %v1637 = vunpack.c.h.b16 %v1442
        %v1638 = vunpack.c.l.b16 %v1443
        %v1639 = vunpack.c.l.b16 %v1444
        %v1640 = vunpack.c.h.b16 %v1444
        %v1641 = vunpack.c.l.b16 %v1445
        %v1642 = vunpack.c.l.b16 %v1446
        %v1643 = vunpack.c.h.b16 %v1446
        %v1644 = vunpack.c.l.b16 %v1447
        %v1645 = vunpack.c.l.b16 %v1448
        %v1646 = vunpack.c.h.b16 %v1448
        %v1647 = vunpack.c.l.b16 %v1449
        %v1648 = vunpack.c.l.b16 %v1450
        %v1649 = vunpack.c.h.b16 %v1450
        %v1650 = vunpack.c.l.b16 %v1451
        %v1651 = vunpack.c.l.b16 %v1452
        %v1652 = vunpack.c.h.b16 %v1452
        %v1653 = vunpack.c.l.b16 %v1453
        %v1654 = vunpack.c.l.b16 %v1454
        %v1655 = vunpack.c.h.b16 %v1454
        %v1656 = vunpack.c.l.b16 %v1455
        %v1657 = vunpack.c.l.b16 %v1456
        %v1658 = vunpack.c.h.b16 %v1456
        %v1659 = vunpack.c.l.b16 %v1457
        %v1660 = vunpack.c.l.b16 %v1458
        %v1661 = vunpack.c.h.b16 %v1458
        %v1662 = vunpack.c.l.b16 %v1459
        %v1663 = vunpack.c.l.b16 %v1460
        %v1664 = vunpack.c.h.b16 %v1460
        %v1665 = vunpack.c.l.b16 %v1461
        %v1666 = vunpack.c.l.b16 %v1462
        %v1667 = vunpack.c.h.b16 %v1462
        %v1668 = vunpack.c.l.b16 %v1463
        %v1669 = vunpack.c.l.b16 %v1464
        %v1670 = vunpack.c.h.b16 %v1464
        %v1671 = vunpack.c.l.b16 %v1465
        %v1672 = vunpack.c.l.b16 %v1466
        %v1673 = vunpack.c.h.b16 %v1466
        %v1674 = vunpack.c.l.b16 %v1467
        %v1675 = vunpack.c.l.b16 %v1468
        %v1676 = vunpack.c.h.b16 %v1468
        %v1677 = vunpack.c.l.b16 %v1469
        %v1678 = vunpack.c.l.b16 %v1470
        %v1679 = vunpack.c.h.b16 %v1470
        %v1680 = vunpack.c.l.b16 %v1471
        %v1681 = vunpack.c.l.b16 %v1472
        %v1682 = vunpack.c.h.b16 %v1472
        %v1683 = vunpack.c.l.b16 %v1473
        %v1684 = vunpack.c.l.b16 %v1474
        %v1685 = vunpack.c.h.b16 %v1474
        %v1686 = vunpack.c.l.b16 %v1475
        %v1687 = vunpack.c.l.b16 %v1476
        %v1688 = vunpack.c.h.b16 %v1476
        %v1689 = vunpack.c.l.b16 %v1477
        %v1690 = vunpack.c.l.b16 %v1478
        %v1691 = vunpack.c.h.b16 %v1478
        %v1692 = vunpack.c.l.b16 %v1479
        %v1693 = vunpack.c.l.b16 %v1480
        %v1694 = vunpack.c.h.b16 %v1480
        %v1695 = vunpack.c.l.b16 %v1481
        %v1696 = vunpack.c.l.b16 %v1482
        %v1697 = vunpack.c.h.b16 %v1482
        %v1698 = vunpack.c.l.b16 %v1483
        %v1699 = vunpack.c.l.b16 %v1484
        %v1700 = vunpack.c.h.b16 %v1484
        %v1701 = vunpack.c.l.b16 %v1485
        %v1702 = vunpack.c.l.b16 %v1486
        %v1703 = vunpack.c.h.b16 %v1486
        %v1704 = vunpack.c.l.b16 %v1487
        %v1705 = vpack.c.b16 %v1588, %v1585
        %v1706 = vpack.c.b16 %v1589, %v1586
        %v1707 = vpack.c.b16 %v1590, %v1587
        %v1708 = vpack.c.b16 %v1594, %v1591
        %v1709 = vpack.c.b16 %v1595, %v1592
        %v1710 = vpack.c.b16 %v1596, %v1593
        %v1711 = vpack.c.b16 %v1600, %v1597
        %v1712 = vpack.c.b16 %v1601, %v1598
        %v1713 = vpack.c.b16 %v1602, %v1599
        %v1714 = vpack.c.b16 %v1606, %v1603
        %v1715 = vpack.c.b16 %v1607, %v1604
        %v1716 = vpack.c.b16 %v1608, %v1605
        %v1717 = vpack.c.b16 %v1612, %v1609
        %v1718 = vpack.c.b16 %v1613, %v1610
        %v1719 = vpack.c.b16 %v1614, %v1611
        %v1720 = vpack.c.b16 %v1618, %v1615
        %v1721 = vpack.c.b16 %v1619, %v1616
        %v1722 = vpack.c.b16 %v1620, %v1617
        %v1723 = vpack.c.b16 %v1624, %v1621
        %v1724 = vpack.c.b16 %v1625, %v1622
        %v1725 = vpack.c.b16 %v1626, %v1623
        %v1726 = vpack.c.b16 %v1630, %v1627
        %v1727 = vpack.c.b16 %v1631, %v1628
        %v1728 = vpack.c.b16 %v1632, %v1629
        %v1729 = vpack.c.b16 %v1636, %v1633
        %v1730 = vpack.c.b16 %v1637, %v1634
        %v1731 = vpack.c.b16 %v1638, %v1635
        %v1732 = vpack.c.b16 %v1642, %v1639
        %v1733 = vpack.c.b16 %v1643, %v1640
        %v1734 = vpack.c.b16 %v1644, %v1641
        %v1735 = vpack.c.b16 %v1648, %v1645
        %v1736 = vpack.c.b16 %v1649, %v1646
        %v1737 = vpack.c.b16 %v1650, %v1647
        %v1738 = vpack.c.b16 %v1654, %v1651
        %v1739 = vpack.c.b16 %v1655, %v1652
        %v1740 = vpack.c.b16 %v1656, %v1653
        %v1741 = vpack.c.b16 %v1660, %v1657
        %v1742 = vpack.c.b16 %v1661, %v1658
        %v1743 = vpack.c.b16 %v1662, %v1659
        %v1744 = vpack.c.b16 %v1666, %v1663
        %v1745 = vpack.c.b16 %v1667, %v1664
        %v1746 = vpack.c.b16 %v1668, %v1665
        %v1747 = vpack.c.b16 %v1672, %v1669
        %v1748 = vpack.c.b16 %v1673, %v1670
        %v1749 = vpack.c.b16 %v1674, %v1671
        %v1750 = vpack.c.b16 %v1678, %v1675
        %v1751 = vpack.c.b16 %v1679, %v1676
        %v1752 = vpack.c.b16 %v1680, %v1677
        %v1753 = vpack.c.b16 %v1684, %v1681
        %v1754 = vpack.c.b16 %v1685, %v1682
        %v1755 = vpack.c.b16 %v1686, %v1683
        %v1756 = vpack.c.b16 %v1690, %v1687
        %v1757 = vpack.c.b16 %v1691, %v1688
        %v1758 = vpack.c.b16 %v1692, %v1689
        %v1759 = vpack.c.b16 %v1696, %v1693
        %v1760 = vpack.c.b16 %v1697, %v1694
        %v1761 = vpack.c.b16 %v1698, %v1695
        %v1762 = vpack.c.b16 %v1702, %v1699
        %v1763 = vpack.c.b16 %v1703, %v1700
        %v1764 = vpack.c.b16 %v1704, %v1701
        %v1826 = vsel %vm1099, %v1407, 0
        %1828 = vmatprep.subr.bf16.mxu0 %v1727
        %1829 = vmatpush1.bf16.msra.mxu0 %v1726
        %1830 = vmatprep.subr.bf16.mxu0 %v1724
        %1831 = vmatpush1.bf16.msra.mxu0 %v1723
        %1832 = vmatprep.subr.bf16.mxu0 %v1721
        %1833 = vmatpush1.bf16.msra.mxu0 %v1720
        %1834 = vmatprep.subr.bf16.mxu0 %v1718
        %1835 = vmatpush1.bf16.msra.mxu0 %v1717
        %1836 = vmatprep.subr.bf16.mxu0 %v1715
        %1837 = vmatpush1.bf16.msra.mxu0 %v1714
        %1838 = vmatprep.subr.bf16.mxu0 %v1712
        %1839 = vmatpush1.bf16.msra.mxu0 %v1711
        %1840 = vmatprep.subr.bf16.mxu0 %v1709
        %1841 = vmatpush1.bf16.msra.mxu0 %v1708
        %1842 = vmatprep.subr.bf16.mxu0 %v1706
        %1843 = vmatpush1.bf16.msra.mxu0 %v1705
        %1844 = vmatprep.subr.bf16.mxu0 %v1751
        %1845 = vmatpush2.bf16.msra.mxu0 %v1750
        %1846 = vmatprep.subr.bf16.mxu0 %v1748
        %1847 = vmatpush2.bf16.msra.mxu0 %v1747
        %1848 = vmatprep.subr.bf16.mxu0 %v1745
        %1849 = vmatpush2.bf16.msra.mxu0 %v1744
        %1850 = vmatprep.subr.bf16.mxu0 %v1742
        %1851 = vmatpush2.bf16.msra.mxu0 %v1741
        %1852 = vmatprep.subr.bf16.mxu0 %v1739
        %1853 = vmatpush2.bf16.msra.mxu0 %v1738
        %1854 = vmatprep.subr.bf16.mxu0 %v1736
        %1855 = vmatpush2.bf16.msra.mxu0 %v1735
        %1856 = vmatprep.subr.bf16.mxu0 %v1733
        %1857 = vmatpush2.bf16.msra.mxu0 %v1732
        %1858 = vmatprep.subr.bf16.mxu0 %v1730
        %1859 = vmatpush2.bf16.msra.mxu0 %v1729
        %1860 = vmatprep.mubr.bf16.mxu0 %v1406
        %1861 = vmatmul.mubr.bf16.gmra.mxu0 %v1405
        %v1862 = vpop.f32.mrf.mxu0
        %v1863 = vadd.f32 %v1493, %v1862
        %v1864 = vpop.f32.mrf.mxu0
        %v1865 = vadd.f32 %v1497, %v1864
        %v1866 = vpop.f32.mrf.mxu0
        %v1867 = vadd.f32 %v1493, %v1866
        %v1868 = vpop.f32.mrf.mxu0
        %v1869 = vadd.f32 %v1497, %v1868
        %1870 = vdwg.mxu0
        %1871 = vmatprep.subr.bf16.mxu0 0
        %1872 = vmatpush1.bf16.msra.mxu0 0
        %1873 = vmatprep.subr.bf16.mxu0 0
        %1874 = vmatpush1.bf16.msra.mxu0 0
        %1875 = vmatprep.subr.bf16.mxu0 0
        %1876 = vmatpush1.bf16.msra.mxu0 0
        %1877 = vmatprep.subr.bf16.mxu0 0
        %1878 = vmatpush1.bf16.msra.mxu0 0
        %1879 = vmatprep.subr.bf16.mxu0 %v1763
        %1880 = vmatpush1.bf16.msra.mxu0 %v1762
        %1881 = vmatprep.subr.bf16.mxu0 %v1760
        %1882 = vmatpush1.bf16.msra.mxu0 %v1759
        %1883 = vmatprep.subr.bf16.mxu0 %v1757
        %1884 = vmatpush1.bf16.msra.mxu0 %v1756
        %1885 = vmatprep.subr.bf16.mxu0 %v1754
        %1886 = vmatpush1.bf16.msra.mxu0 %v1753
        %1887 = vmatprep.subr.bf16.mxu0 0
        %1888 = vmatpush2.bf16.msra.mxu0 0
        %1889 = vmatprep.subr.bf16.mxu0 0
        %1890 = vmatpush2.bf16.msra.mxu0 0
        %1891 = vmatprep.subr.bf16.mxu0 0
        %1892 = vmatpush2.bf16.msra.mxu0 0
        %1893 = vmatprep.subr.bf16.mxu0 0
        %1894 = vmatpush2.bf16.msra.mxu0 0
        %1895 = vmatprep.subr.bf16.mxu0 0
        %1896 = vmatpush2.bf16.msra.mxu0 0
        %1897 = vmatprep.subr.bf16.mxu0 0
        %1898 = vmatpush2.bf16.msra.mxu0 0
        %1899 = vmatprep.subr.bf16.mxu0 0
        %1900 = vmatpush2.bf16.msra.mxu0 0
        %1901 = vmatprep.subr.bf16.mxu0 0
        %1902 = vmatpush2.bf16.msra.mxu0 0
        %1903 = vmatprep.mubr.bf16.mxu0 0
        %1904 = vmatmul.mubr.bf16.gmra.mxu0 %v1826
        %v1905 = vpop.f32.mrf.mxu0
        %v1906 = vadd.f32 %v1863, %v1905
        %v1907 = vpop.f32.mrf.mxu0
        %v1908 = vadd.f32 %v1865, %v1907
        %v1909 = vpop.f32.mrf.mxu0
        %v1910 = vadd.f32 %v1867, %v1909
        %v1911 = vpop.f32.mrf.mxu0
        %v1912 = vadd.f32 %v1869, %v1911
        %1913 = vdwg.mxu0
        %1914 = vmatprep.subr.bf16.mxu0 0
        %1915 = vmatpush1.bf16.msra.mxu0 %v1728
        %1916 = vmatprep.subr.bf16.mxu0 0
        %1917 = vmatpush1.bf16.msra.mxu0 %v1725
        %1918 = vmatprep.subr.bf16.mxu0 0
        %1919 = vmatpush1.bf16.msra.mxu0 %v1722
        %1920 = vmatprep.subr.bf16.mxu0 0
        %1921 = vmatpush1.bf16.msra.mxu0 %v1719
        %1922 = vmatprep.subr.bf16.mxu0 0
        %1923 = vmatpush1.bf16.msra.mxu0 %v1716
        %1924 = vmatprep.subr.bf16.mxu0 0
        %1925 = vmatpush1.bf16.msra.mxu0 %v1713
        %1926 = vmatprep.subr.bf16.mxu0 0
        %1927 = vmatpush1.bf16.msra.mxu0 %v1710
        %1928 = vmatprep.subr.bf16.mxu0 0
        %1929 = vmatpush1.bf16.msra.mxu0 %v1707
        %1930 = vmatprep.subr.bf16.mxu0 0
        %1931 = vmatpush2.bf16.msra.mxu0 %v1752
        %1932 = vmatprep.subr.bf16.mxu0 0
        %1933 = vmatpush2.bf16.msra.mxu0 %v1749
        %1934 = vmatprep.subr.bf16.mxu0 0
        %1935 = vmatpush2.bf16.msra.mxu0 %v1746
        %1936 = vmatprep.subr.bf16.mxu0 0
        %1937 = vmatpush2.bf16.msra.mxu0 %v1743
        %1938 = vmatprep.subr.bf16.mxu0 0
        %1939 = vmatpush2.bf16.msra.mxu0 %v1740
        %1940 = vmatprep.subr.bf16.mxu0 0
        %1941 = vmatpush2.bf16.msra.mxu0 %v1737
        %1942 = vmatprep.subr.bf16.mxu0 0
        %1943 = vmatpush2.bf16.msra.mxu0 %v1734
        %1944 = vmatprep.subr.bf16.mxu0 0
        %1945 = vmatpush2.bf16.msra.mxu0 %v1731
        %1946 = vmatprep.mubr.bf16.mxu0 %v1406
        %1947 = vmatmul.mubr.bf16.gmra.mxu0 %v1405
        %v1948 = vpop.f32.mrf.mxu0
        %v1949 = vadd.f32 %v1501, %v1948
        %v1950 = vpop.f32.mrf.mxu0
        %v1951 = vpop.f32.mrf.mxu0
        %v1952 = vadd.f32 %v1501, %v1951
        %v1953 = vpop.f32.mrf.mxu0
        %1954 = vdwg.mxu0
        %1955 = vmatprep.subr.bf16.mxu0 0
        %1956 = vmatpush1.bf16.msra.mxu0 0
        %1957 = vmatprep.subr.bf16.mxu0 0
        %1958 = vmatpush1.bf16.msra.mxu0 0
        %1959 = vmatprep.subr.bf16.mxu0 0
        %1960 = vmatpush1.bf16.msra.mxu0 0
        %1961 = vmatprep.subr.bf16.mxu0 0
        %1962 = vmatpush1.bf16.msra.mxu0 0
        %1963 = vmatprep.subr.bf16.mxu0 0
        %1964 = vmatpush1.bf16.msra.mxu0 %v1764
        %1965 = vmatprep.subr.bf16.mxu0 0
        %1966 = vmatpush1.bf16.msra.mxu0 %v1761
        %1967 = vmatprep.subr.bf16.mxu0 0
        %1968 = vmatpush1.bf16.msra.mxu0 %v1758
        %1969 = vmatprep.subr.bf16.mxu0 0
        %1970 = vmatpush1.bf16.msra.mxu0 %v1755
        %1971 = vmatprep.subr.bf16.mxu0 0
        %1972 = vmatpush2.bf16.msra.mxu0 0
        %1973 = vmatprep.subr.bf16.mxu0 0
        %1974 = vmatpush2.bf16.msra.mxu0 0
        %1975 = vmatprep.subr.bf16.mxu0 0
        %1976 = vmatpush2.bf16.msra.mxu0 0
        %1977 = vmatprep.subr.bf16.mxu0 0
        %1978 = vmatpush2.bf16.msra.mxu0 0
        %1979 = vmatprep.subr.bf16.mxu0 0
        %1980 = vmatpush2.bf16.msra.mxu0 0
        %1981 = vmatprep.subr.bf16.mxu0 0
        %1982 = vmatpush2.bf16.msra.mxu0 0
        %1983 = vmatprep.subr.bf16.mxu0 0
        %1984 = vmatpush2.bf16.msra.mxu0 0
        %1985 = vmatprep.subr.bf16.mxu0 0
        %1986 = vmatpush2.bf16.msra.mxu0 0
        %1987 = vmatprep.mubr.bf16.mxu0 0
        %1988 = vmatmul.mubr.bf16.gmra.mxu0 %v1826
        %v1989 = vpop.f32.mrf.mxu0
        %v1990 = vadd.f32 %v1949, %v1989
        %v1991 = vpop.f32.mrf.mxu0
        %v1992 = vpop.f32.mrf.mxu0
        %v1993 = vadd.f32 %v1952, %v1992
        %v1994 = vpop.f32.mrf.mxu0
        %1995 = vdwg.mxu0
        %v1996 = vld [vmem:[%s373] sm:$0xff]
        %v1997 = vld [vmem:[%s373 + $0x8] sm:$0xf]
        %v1998 = vld [vmem:[%s373 + $0xc] sm:$0xff]
        %v1999 = vld [vmem:[%s373 + $0x14] sm:$0xf]
        %v2000 = vunpack.c.l.bf16 %v1996
        %v2001 = vunpack.c.h.bf16 %v1996
        %v2002 = vunpack.c.l.bf16 %v1997
        %v2003 = vunpack.c.l.bf16 %v1998
        %v2004 = vunpack.c.h.bf16 %v1998
        %v2005 = vunpack.c.l.bf16 %v1999
        %v2006 = vadd.f32 %v1906, %v2000
        %v2007 = vadd.f32 %v1908, %v2001
        %v2008 = vadd.f32 %v1990, %v2002
        %v2009 = vadd.f32 %v1910, %v2003
        %v2010 = vadd.f32 %v1912, %v2004
        %v2011 = vadd.f32 %v1993, %v2005
        %v2012 = vpack.c.bf16 %v2009, %v2006
        %v2013 = vpack.c.bf16 %v2010, %v2007
        %v2014 = vpack.c.bf16 %v2011, %v2008
        %v2018 = vunpack.c.l.b16 %v2012
        %v2019 = vunpack.c.l.b16 %v2013
        %v2020 = vunpack.c.l.b16 %v2014
        %v2021 = vunpack.c.h.b16 %v2012
        %v2022 = vunpack.c.h.b16 %v2013
        %v2023 = vunpack.c.h.b16 %v2014
        %v2024 = vpack.c.b16 %v2019, %v2018
        %v2025 = vpack.c.b16 %v2020, %v2020
        %v2026 = vpack.c.b16 %v2022, %v2021
        %v2027 = vpack.c.b16 %v2023, %v2023
        %2032 = vst [vmem:[%s406] sm:$0xff] %v2024
        %vm2033 = vcmask 519168
        %2034 = vst.msk [vmem:[%s406 + $0x8] sm:$0xf] %vm2033, %v2025
        %2035 = vst [vmem:[%s406 + $0xc] sm:$0xff] %v2026
        %2036 = vst.msk [vmem:[%s406 + $0x14] sm:$0xf] %vm2033, %v2027
      $region56: #{forward.18} parent=47 // pred_fallthru
        _
      %s2037 = smul.u32 2, %s24
      %p2038 = scmp.lt.s32.totalorder %s23, 1
      %s2039 = scalar_select %p2038, %s23, 1
      %p2040 = scmp.lt.s32.totalorder %s2037, 1
      %s2041 = scalar_select %p2040, %s2037, 1
      %s2042 = smul.addr %s2041, 3
      %s2043 = smul.addr %s2039, 6
      %s2044 = sadd.s32 %s2042, %s2043
      %s2045 = smul.addr %s2044, 4
      %s2046 = scalar_lea.vmem %s7, %s2045
      // Predicated region
      $region57: #{forward.18} parent=47 // pred_check
        %p2047 = pneg %p225
      $region58: #{forward.18} parent=47 // pred_check_branch
        %2049 = sbr.rel (%p2047) target = $region60
      $region59: #{forward.18} parent=47 // pred_region
        %s2050 = smul.u32 2, %s24
      $region60: #{forward.18} parent=47 // pred_fallthru
        _
    $region48: #{forward.18} parent=5 // pred_fallthru
      _
    %p2051 = scmp.le.s32.totalorder 2, %s13
    // Predicated region
    $region61: #{forward.18} parent=5 // pred_check
      %p2052 = pneg %p2051
    $region62: #{forward.18} parent=5 // pred_check_branch
      %2054 = sbr.rel (%p2052) target = $region64
    $region63: #{forward.18} parent=5 // pred_region
      %s2055 = ssub.s32 %s13, 2
      // Predicated region
      $region65: #{forward.18} parent=63 // pred_check
        %p2056 = pneg %p231
      $region66: #{forward.18} parent=63 // pred_check_branch
        %2058 = sbr.rel (%p2056) target = $region68
      $region67: #{forward.18} parent=63 // pred_region
        %s2059 = smul.u32 2, %s27
        %p2060 = scmp.lt.s32.totalorder %s26, 1
        %s2061 = scalar_select %p2060, %s26, 1
        %p2062 = scmp.lt.s32.totalorder %s2059, 1
        %s2063 = scalar_select %p2062, %s2059, 1
        %s2064 = smul.addr %s2063, 3
        %s2065 = smul.addr %s2061, 6
        %s2066 = sadd.s32 %s2064, %s2065
        %s2067 = smul.addr %s2066, 4
        %s2068 = scalar_lea.vmem %s7, %s2067
      $region68: #{forward.18} parent=63 // pred_fallthru
        _
    $region64: #{forward.18} parent=5 // pred_fallthru
      _
  $region6: #{forward.18} parent=0 // loop_footer
    %s17 = sadd.s32 1, %s13
  $region7: #{forward.18} parent=0 // loop_footer_branch
    %12 = sbr.rel target = $region3
  $region8: #{forward.18} parent=0 // loop_exit
    _

// kernel: forward.23
$region0: #{forward.23}
  #allocation0 [shape = 'u32[]', space=smem, size = 0x4, offset = 0x4, fixed_abs, tag = 'smem constant byte address 0x4 - core index']
  #allocation1 [shape = 'u32[144,128]{1,0:T(1,128)}', space=vmem, size = 0x12000, scoped, tag = 'internal scratch']
  %s0 = inlined_call_operand.vmem [shape: bf16[2,16,320], index: 0, kind: input, shape index: {}]
  %s1 = inlined_call_operand.vmem [shape: bf16[320,192], index: 1, kind: input, shape index: {}]
  %s2 = inlined_call_operand.vmem [shape: f32[1,192], index: 2, kind: input, shape index: {}]
  %s3 = inlined_call_operand.vmem [shape: bf16[2,16,192], index: 3, kind: output, shape index: {}]
  %s4 = sld [smem:[#allocation0]]
  $region45: #{forward.23} parent=0
    _
  %s6 = ssub.s32 1, %s4
  %s7 = scalar_select 0, %s6, %s4
  loop: start=0, step=1, limit=4
  $region2: #{forward.23} parent=0 // loop_pre_header
    _
  $region3: #{forward.23} parent=0 // loop_header
    %s9 = sphi 0, %s13
    %p10 = scmp.ge.s32.totalorder %s9, 4
    %s16 = sphi 0, %s28
    %s17 = sphi 0, %s24
    %s18 = sphi 0, %s16
    %s19 = sphi 0, %s17
    %s20 = sphi 0, %s18
    %s21 = sphi 0, %s19
    %s33 = sphi 0, %s35
    %s36 = sphi 0, %s33
    %s37 = sphi 0, %s36
    %s53 = sphi 0, %s37
    %s57 = sphi 0, %s57
    %s59 = sphi 0, %s57
    %s60 = sphi 0, %s59
    %s74 = sphi 0, %s60
    %s78 = sphi 0, %s78
    %s80 = sphi 0, %s78
    %s81 = sphi 0, %s80
    %s95 = sphi 0, %s81
    %s103 = sphi 0, %s105
    %s106 = sphi 0, %s103
    %s107 = sphi 0, %s106
    %s123 = sphi 0, %s107
  $region4: #{forward.23} parent=0 // loop_header_branch
    %12 = sbr.rel (%p10) target = $region8
  $region5: #{forward.23} parent=0 // loop_body
    %s14 = ssub.s32 %s9, 1
    %s15 = ssub.s32 %s9, 2
    %s22 = sadd.s32 1, %s17
    %p23 = scmp.ge.s32.totalorder %s22, 1
    %s24 = scalar_select %p23, 0, %s22
    %s25 = sadd.s32 1, %s16
    %s26 = scalar_select %p23, %s25, %s16
    %p27 = scmp.ge.s32.totalorder %s26, 2
    %s28 = scalar_select %p27, 0, %s26
    %s29 = ssub.s32 %s16, %s28
    %s30 = ssub.s32 %s17, %s24
    %s31 = sor.u32 %s29, %s30
    %p32 = scmp.eq.s32.totalorder %s31, 0
    %s34 = sadd.s32 %s33, 1
    %s35 = scalar_select %p32, %s33, %s34
    %p38 = pneg %p32
    %p39 = scmp.eq.s32.totalorder %s9, 1
    %p40 = por %p38, %p39
    %p41 = scmp.ne.s32.totalorder %s33, %s36
    %p42 = scmp.eq.s32.totalorder %s9, 0
    %p43 = por %p41, %p42
    %p44 = scmp.ne.s32.totalorder %s33, %s36
    %p45 = scmp.eq.s32.totalorder %s14, 1
    %p46 = por %p44, %p45
    %p47 = scmp.ne.s32.totalorder %s36, %s37
    %p48 = scmp.eq.s32.totalorder %s14, 0
    %p49 = por %p47, %p48
    %p50 = scmp.ne.s32.totalorder %s36, %s37
    %p51 = scmp.eq.s32.totalorder %s15, 1
    %p52 = por %p50, %p51
    %p54 = scmp.ne.s32.totalorder %s37, %s53
    %p55 = scmp.eq.s32.totalorder %s15, 0
    %p56 = por %p54, %p55
    %s58 = sadd.s32 %s57, 1
    %p61 = scmp.eq.s32.totalorder %s9, 1
    %p62 = scmp.ne.s32.totalorder %s57, %s59
    %p63 = scmp.eq.s32.totalorder %s9, 0
    %p64 = por %p62, %p63
    %p65 = scmp.ne.s32.totalorder %s57, %s59
    %p66 = scmp.eq.s32.totalorder %s14, 1
    %p67 = por %p65, %p66
    %p68 = scmp.ne.s32.totalorder %s59, %s60
    %p69 = scmp.eq.s32.totalorder %s14, 0
    %p70 = por %p68, %p69
    %p71 = scmp.ne.s32.totalorder %s59, %s60
    %p72 = scmp.eq.s32.totalorder %s15, 1
    %p73 = por %p71, %p72
    %p75 = scmp.ne.s32.totalorder %s60, %s74
    %p76 = scmp.eq.s32.totalorder %s15, 0
    %p77 = por %p75, %p76
    %s79 = sadd.s32 %s78, 1
    %p82 = scmp.eq.s32.totalorder %s9, 1
    %p83 = scmp.ne.s32.totalorder %s78, %s80
    %p84 = scmp.eq.s32.totalorder %s9, 0
    %p85 = por %p83, %p84
    %p86 = scmp.ne.s32.totalorder %s78, %s80
    %p87 = scmp.eq.s32.totalorder %s14, 1
    %p88 = por %p86, %p87
    %p89 = scmp.ne.s32.totalorder %s80, %s81
    %p90 = scmp.eq.s32.totalorder %s14, 0
    %p91 = por %p89, %p90
    %p92 = scmp.ne.s32.totalorder %s80, %s81
    %p93 = scmp.eq.s32.totalorder %s15, 1
    %p94 = por %p92, %p93
    %p96 = scmp.ne.s32.totalorder %s81, %s95
    %p97 = scmp.eq.s32.totalorder %s15, 0
    %p98 = por %p96, %p97
    %s99 = ssub.s32 %s16, %s28
    %s100 = ssub.s32 %s17, %s24
    %s101 = sor.u32 %s99, %s100
    %p102 = scmp.eq.s32.totalorder %s101, 0
    %s104 = sadd.s32 %s103, 1
    %s105 = scalar_select %p102, %s103, %s104
    %p108 = pneg %p102
    %p109 = scmp.eq.s32.totalorder %s9, 1
    %p110 = por %p108, %p109
    %p111 = scmp.ne.s32.totalorder %s103, %s106
    %p112 = scmp.eq.s32.totalorder %s9, 0
    %p113 = por %p111, %p112
    %p114 = scmp.ne.s32.totalorder %s103, %s106
    %p115 = scmp.eq.s32.totalorder %s14, 1
    %p116 = por %p114, %p115
    %p117 = scmp.ne.s32.totalorder %s106, %s107
    %p118 = scmp.eq.s32.totalorder %s14, 0
    %p119 = por %p117, %p118
    %p120 = scmp.ne.s32.totalorder %s106, %s107
    %p121 = scmp.eq.s32.totalorder %s15, 1
    %p122 = por %p120, %p121
    %p124 = scmp.ne.s32.totalorder %s107, %s123
    %p125 = scmp.eq.s32.totalorder %s15, 0
    %p126 = por %p124, %p125
    %p127 = scmp.le.s32.totalorder 1, %s9
    %p128 = scmp.lt.s32.totalorder %s9, 3
    %p129 = pnand %p127, %p128
    %p130 = pneg %p129
    // Predicated region
    $region9: #{forward.23} parent=5 // pred_check
      _
    $region10: #{forward.23} parent=5 // pred_check_branch
      %132 = sbr.rel (%p129) target = $region12
    $region11: #{forward.23} parent=5 // pred_region
      %s133 = ssub.s32 %s9, 1
      // Predicated region
      $region13: #{forward.23} parent=11 // pred_check
        %p134 = pneg %p70
      $region14: #{forward.23} parent=11 // pred_check_branch
        %136 = sbr.rel (%p134) target = $region16
      $region15: #{forward.23} parent=11 // pred_region
        _
      $region16: #{forward.23} parent=11 // pred_fallthru
        _
      // Predicated region
      $region17: #{forward.23} parent=11 // pred_check
        %p137 = pneg %p91
      $region18: #{forward.23} parent=11 // pred_check_branch
        %139 = sbr.rel (%p137) target = $region20
      $region19: #{forward.23} parent=11 // pred_region
        _
      $region20: #{forward.23} parent=11 // pred_fallthru
        _
    $region12: #{forward.23} parent=5 // pred_fallthru
      _
    %p140 = scmp.lt.s32.totalorder %s9, 2
    // Predicated region
    $region21: #{forward.23} parent=5 // pred_check
      %p141 = pneg %p140
    $region22: #{forward.23} parent=5 // pred_check_branch
      %143 = sbr.rel (%p141) target = $region24
    $region23: #{forward.23} parent=5 // pred_region
      // Predicated region
      $region25: #{forward.23} parent=23 // pred_check
        %p144 = pneg %p43
      $region26: #{forward.23} parent=23 // pred_check_branch
        %146 = sbr.rel (%p144) target = $region28
      $region27: #{forward.23} parent=23 // pred_region
        %s147 = smul.u32 2, %s17
        %p148 = scmp.lt.s32.totalorder %s16, 1
        %s149 = scalar_select %p148, %s16, 1
        %p150 = scmp.lt.s32.totalorder %s147, 1
        %s151 = scalar_select %p150, %s147, 1
        %s152 = smul.addr %s151, 3
        %s153 = smul.addr %s149, 6
        %s154 = sadd.s32 %s152, %s153
        %s155 = smul.addr %s154, 4
        %s156 = scalar_lea.vmem %s0, %s155
        %s157 = smul.u32 2, %s17
      $region28: #{forward.23} parent=23 // pred_fallthru
        _
    $region24: #{forward.23} parent=5 // pred_fallthru
      _
    %p158 = scmp.le.s32.totalorder 1, %s9
    %p159 = scmp.lt.s32.totalorder %s9, 3
    %p160 = pnand %p158, %p159
    %p161 = pneg %p160
    // Predicated region
    $region29: #{forward.23} parent=5 // pred_check
      _
    $region30: #{forward.23} parent=5 // pred_check_branch
      %163 = sbr.rel (%p160) target = $region32
    $region31: #{forward.23} parent=5 // pred_region
      %s164 = ssub.s32 %s9, 1
      %s165 = smul.u32 2, %s19
      %p166 = scmp.lt.s32.totalorder %s18, 1
      %s167 = scalar_select %p166, %s18, 1
      %p168 = scmp.lt.s32.totalorder %s165, 1
      %s169 = scalar_select %p168, %s165, 1
      %s170 = smul.addr %s169, 3
      %s171 = smul.addr %s167, 6
      %s172 = sadd.s32 %s170, %s171
      %s173 = smul.addr %s172, 4
      %s174 = scalar_lea.vmem %s0, %s173
      %p175 = pneg %p49
      %p176 = pneg %p46
      %p177 = pneg %p70
      %p178 = pneg %p67
      %p179 = pneg %p91
      %p180 = pneg %p88
      %p181 = pneg %p119
      %p182 = pneg %p116
      %s183 = smul.u32 2, %s19
      %p184 = scmp.lt.s32.totalorder %s18, 1
      %s185 = scalar_select %p184, %s18, 1
      %p186 = scmp.lt.s32.totalorder %s183, 1
      %s187 = scalar_select %p186, %s183, 1
      %s188 = smul.addr %s187, 2
      %s189 = smul.addr %s185, 4
      %s190 = sadd.s32 %s188, %s189
      %s191 = smul.addr %s190, 4
      %s192 = scalar_lea.vmem %s3, %s191
      %s193 = smul.u32 2, %s19
      %p194 = scmp.lt.s32.totalorder %s18, 1
      %s195 = scalar_select %p194, %s18, 1
      %p196 = scmp.lt.s32.totalorder %s193, 1
      %s197 = scalar_select %p196, %s193, 1
      %s198 = smul.addr %s197, 3
      %s199 = smul.addr %s195, 6
      %s200 = sadd.s32 %s198, %s199
      %s201 = smul.addr %s200, 4
      %s202 = scalar_lea.vmem %s0, %s201
      %s203 = smul.u32 2, %s19
      %s204 = smul.u32 2, %s19
      %p205 = scmp.lt.s32.totalorder %s18, 1
      %s206 = scalar_select %p205, %s18, 1
      %p207 = scmp.lt.s32.totalorder %s204, 1
      %s208 = scalar_select %p207, %s204, 1
      %s209 = smul.addr %s208, 2
      %s210 = smul.addr %s206, 4
      %s211 = sadd.s32 %s209, %s210
      %s212 = smul.addr %s211, 4
      %s213 = scalar_lea.vmem %s3, %s212
      %s214 = smul.u32 2, %s19
      %v216 = vld [vmem:[%s202] sm:$0xff]
      %v217 = vld [vmem:[%s202 + $0x8] sm:$0xf]
      %v218 = vld [vmem:[%s202 + $0xc] sm:$0xff]
      %v219 = vld [vmem:[%s202 + $0x14] sm:$0xf]
      %v220 = vld [vmem:[%s1] sm:$0xff]
      %v221 = vld [vmem:[%s1 + $0x8] sm:$0xff]
      %v222 = vld [vmem:[%s1 + $0x10] sm:$0xff]
      %v223 = vld [vmem:[%s1 + $0x18] sm:$0xff]
      %v224 = vld [vmem:[%s1 + $0x20] sm:$0xff]
      %v225 = vld [vmem:[%s1 + $0x28] sm:$0xff]
      %v226 = vld [vmem:[%s1 + $0x30] sm:$0xff]
      %v227 = vld [vmem:[%s1 + $0x38] sm:$0xff]
      %v228 = vld [vmem:[%s1 + $0x40] sm:$0xff]
      %v229 = vld [vmem:[%s1 + $0x48] sm:$0xff]
      %v230 = vld [vmem:[%s1 + $0x50] sm:$0xff]
      %v231 = vld [vmem:[%s1 + $0x58] sm:$0xff]
      %v232 = vld [vmem:[%s1 + $0x60] sm:$0xff]
      %v233 = vld [vmem:[%s1 + $0x68] sm:$0xff]
      %v234 = vld [vmem:[%s1 + $0x70] sm:$0xff]
      %v235 = vld [vmem:[%s1 + $0x78] sm:$0xff]
      %v236 = vld [vmem:[%s1 + $0x80] sm:$0xff]
      %v237 = vld [vmem:[%s1 + $0x88] sm:$0xff]
      %v238 = vld [vmem:[%s1 + $0x90] sm:$0xff]
      %v239 = vld [vmem:[%s1 + $0x98] sm:$0xff]
      %v240 = vld [vmem:[%s1 + $0xa0] sm:$0xff]
      %v241 = vld [vmem:[%s1 + $0xa8] sm:$0xff]
      %v242 = vld [vmem:[%s1 + $0xb0] sm:$0xff]
      %v243 = vld [vmem:[%s1 + $0xb8] sm:$0xff]
      %v244 = vld [vmem:[%s1 + $0xc0] sm:$0xff]
      %v245 = vld [vmem:[%s1 + $0xc8] sm:$0xff]
      %v246 = vld [vmem:[%s1 + $0xd0] sm:$0xff]
      %v247 = vld [vmem:[%s1 + $0xd8] sm:$0xff]
      %v248 = vld [vmem:[%s1 + $0xe0] sm:$0xff]
      %v249 = vld [vmem:[%s1 + $0xe8] sm:$0xff]
      %v250 = vld [vmem:[%s1 + $0xf0] sm:$0xff]
      %v251 = vld [vmem:[%s1 + $0xf8] sm:$0xff]
      %v252 = vld [vmem:[%s1 + $0x100] sm:$0xff]
      %v253 = vld [vmem:[%s1 + $0x108] sm:$0xff]
      %v254 = vld [vmem:[%s1 + $0x110] sm:$0xff]
      %v255 = vld [vmem:[%s1 + $0x118] sm:$0xff]
      %v256 = vld [vmem:[%s1 + $0x120] sm:$0xff]
      %v257 = vld [vmem:[%s1 + $0x128] sm:$0xff]
      %v258 = vld [vmem:[%s1 + $0x130] sm:$0xff]
      %v259 = vld [vmem:[%s1 + $0x138] sm:$0xff]
      %v260 = vld [vmem:[%s2] sm:$0x3]
      %v262 = vlaneseq
      %v263 = vshrl.u32 %v262, 7
      %v264 = vsub.s32 0, %v263
      %v265 = vrot.slane %v260, %v264
      %v266 = vlaneseq
      %v267 = vshrl.u32 %v266, 7
      %v268 = vsub.s32 1, %v267
      %v269 = vrot.slane %v260, %v268
      %v276 = vunpack.c.l.b16 %v216
      %v277 = vunpack.c.h.b16 %v216
      %v278 = vunpack.c.l.b16 %v217
      %v279 = vunpack.c.l.b16 %v218
      %v280 = vunpack.c.h.b16 %v218
      %v281 = vunpack.c.l.b16 %v219
      %v282 = vpack.c.b16 %v279, %v276
      %v283 = vpack.c.b16 %v280, %v277
      %v284 = vpack.c.b16 %v281, %v278
      %v327 = vunpack.c.l.b16 %v220
      %v328 = vunpack.c.h.b16 %v220
      %v329 = vunpack.c.l.b16 %v221
      %v330 = vunpack.c.h.b16 %v221
      %v331 = vunpack.c.l.b16 %v222
      %v332 = vunpack.c.h.b16 %v222
      %v333 = vunpack.c.l.b16 %v223
      %v334 = vunpack.c.h.b16 %v223
      %v335 = vunpack.c.l.b16 %v224
      %v336 = vunpack.c.h.b16 %v224
      %v337 = vunpack.c.l.b16 %v225
      %v338 = vunpack.c.h.b16 %v225
      %v339 = vunpack.c.l.b16 %v226
      %v340 = vunpack.c.h.b16 %v226
      %v341 = vunpack.c.l.b16 %v227
      %v342 = vunpack.c.h.b16 %v227
      %v343 = vunpack.c.l.b16 %v228
      %v344 = vunpack.c.h.b16 %v228
      %v345 = vunpack.c.l.b16 %v229
      %v346 = vunpack.c.h.b16 %v229
      %v347 = vunpack.c.l.b16 %v230
      %v348 = vunpack.c.h.b16 %v230
      %v349 = vunpack.c.l.b16 %v231
      %v350 = vunpack.c.h.b16 %v231
      %v351 = vunpack.c.l.b16 %v232
      %v352 = vunpack.c.h.b16 %v232
      %v353 = vunpack.c.l.b16 %v233
      %v354 = vunpack.c.h.b16 %v233
      %v355 = vunpack.c.l.b16 %v234
      %v356 = vunpack.c.h.b16 %v234
      %v357 = vunpack.c.l.b16 %v235
      %v358 = vunpack.c.h.b16 %v235
      %v359 = vunpack.c.l.b16 %v236
      %v360 = vunpack.c.h.b16 %v236
      %v361 = vunpack.c.l.b16 %v237
      %v362 = vunpack.c.h.b16 %v237
      %v363 = vunpack.c.l.b16 %v238
      %v364 = vunpack.c.h.b16 %v238
      %v365 = vunpack.c.l.b16 %v239
      %v366 = vunpack.c.h.b16 %v239
      %v367 = vunpack.c.l.b16 %v240
      %v368 = vunpack.c.h.b16 %v240
      %v369 = vunpack.c.l.b16 %v241
      %v370 = vunpack.c.h.b16 %v241
      %v371 = vunpack.c.l.b16 %v242
      %v372 = vunpack.c.h.b16 %v242
      %v373 = vunpack.c.l.b16 %v243
      %v374 = vunpack.c.h.b16 %v243
      %v375 = vunpack.c.l.b16 %v244
      %v376 = vunpack.c.h.b16 %v244
      %v377 = vunpack.c.l.b16 %v245
      %v378 = vunpack.c.h.b16 %v245
      %v379 = vunpack.c.l.b16 %v246
      %v380 = vunpack.c.h.b16 %v246
      %v381 = vunpack.c.l.b16 %v247
      %v382 = vunpack.c.h.b16 %v247
      %v383 = vunpack.c.l.b16 %v248
      %v384 = vunpack.c.h.b16 %v248
      %v385 = vunpack.c.l.b16 %v249
      %v386 = vunpack.c.h.b16 %v249
      %v387 = vunpack.c.l.b16 %v250
      %v388 = vunpack.c.h.b16 %v250
      %v389 = vunpack.c.l.b16 %v251
      %v390 = vunpack.c.h.b16 %v251
      %v391 = vunpack.c.l.b16 %v252
      %v392 = vunpack.c.h.b16 %v252
      %v393 = vunpack.c.l.b16 %v253
      %v394 = vunpack.c.h.b16 %v253
      %v395 = vunpack.c.l.b16 %v254
      %v396 = vunpack.c.h.b16 %v254
      %v397 = vunpack.c.l.b16 %v255
      %v398 = vunpack.c.h.b16 %v255
      %v399 = vunpack.c.l.b16 %v256
      %v400 = vunpack.c.h.b16 %v256
      %v401 = vunpack.c.l.b16 %v257
      %v402 = vunpack.c.h.b16 %v257
      %v403 = vunpack.c.l.b16 %v258
      %v404 = vunpack.c.h.b16 %v258
      %v405 = vunpack.c.l.b16 %v259
      %v406 = vunpack.c.h.b16 %v259
      %v407 = vpack.c.b16 %v329, %v327
      %v408 = vpack.c.b16 %v330, %v328
      %v409 = vpack.c.b16 %v333, %v331
      %v410 = vpack.c.b16 %v334, %v332
      %v411 = vpack.c.b16 %v337, %v335
      %v412 = vpack.c.b16 %v338, %v336
      %v413 = vpack.c.b16 %v341, %v339
      %v414 = vpack.c.b16 %v342, %v340
      %v415 = vpack.c.b16 %v345, %v343
      %v416 = vpack.c.b16 %v346, %v344
      %v417 = vpack.c.b16 %v349, %v347
      %v418 = vpack.c.b16 %v350, %v348
      %v419 = vpack.c.b16 %v353, %v351
      %v420 = vpack.c.b16 %v354, %v352
      %v421 = vpack.c.b16 %v357, %v355
      %v422 = vpack.c.b16 %v358, %v356
      %v423 = vpack.c.b16 %v361, %v359
      %v424 = vpack.c.b16 %v362, %v360
      %v425 = vpack.c.b16 %v365, %v363
      %v426 = vpack.c.b16 %v366, %v364
      %v427 = vpack.c.b16 %v369, %v367
      %v428 = vpack.c.b16 %v370, %v368
      %v429 = vpack.c.b16 %v373, %v371
      %v430 = vpack.c.b16 %v374, %v372
      %v431 = vpack.c.b16 %v377, %v375
      %v432 = vpack.c.b16 %v378, %v376
      %v433 = vpack.c.b16 %v381, %v379
      %v434 = vpack.c.b16 %v382, %v380
      %v435 = vpack.c.b16 %v385, %v383
      %v436 = vpack.c.b16 %v386, %v384
      %v437 = vpack.c.b16 %v389, %v387
      %v438 = vpack.c.b16 %v390, %v388
      %v439 = vpack.c.b16 %v393, %v391
      %v440 = vpack.c.b16 %v394, %v392
      %v441 = vpack.c.b16 %v397, %v395
      %v442 = vpack.c.b16 %v398, %v396
      %v443 = vpack.c.b16 %v401, %v399
      %v444 = vpack.c.b16 %v402, %v400
      %v445 = vpack.c.b16 %v405, %v403
      %v446 = vpack.c.b16 %v406, %v404
      %vm487 = vcmask 523264
      %v489 = vsel %vm487, %v284, 0
      %491 = vmatprep.subr.bf16.mxu0 %v422
      %492 = vmatpush1.bf16.msra.mxu0 %v421
      %493 = vmatprep.subr.bf16.mxu0 %v420
      %494 = vmatpush1.bf16.msra.mxu0 %v419
      %495 = vmatprep.subr.bf16.mxu0 %v418
      %496 = vmatpush1.bf16.msra.mxu0 %v417
      %497 = vmatprep.subr.bf16.mxu0 %v416
      %498 = vmatpush1.bf16.msra.mxu0 %v415
      %499 = vmatprep.subr.bf16.mxu0 %v414
      %500 = vmatpush1.bf16.msra.mxu0 %v413
      %501 = vmatprep.subr.bf16.mxu0 %v412
      %502 = vmatpush1.bf16.msra.mxu0 %v411
      %503 = vmatprep.subr.bf16.mxu0 %v410
      %504 = vmatpush1.bf16.msra.mxu0 %v409
      %505 = vmatprep.subr.bf16.mxu0 %v408
      %506 = vmatpush1.bf16.msra.mxu0 %v407
      %507 = vmatprep.subr.bf16.mxu0 %v438
      %508 = vmatpush2.bf16.msra.mxu0 %v437
      %509 = vmatprep.subr.bf16.mxu0 %v436
      %510 = vmatpush2.bf16.msra.mxu0 %v435
      %511 = vmatprep.subr.bf16.mxu0 %v434
      %512 = vmatpush2.bf16.msra.mxu0 %v433
      %513 = vmatprep.subr.bf16.mxu0 %v432
      %514 = vmatpush2.bf16.msra.mxu0 %v431
      %515 = vmatprep.subr.bf16.mxu0 %v430
      %516 = vmatpush2.bf16.msra.mxu0 %v429
      %517 = vmatprep.subr.bf16.mxu0 %v428
      %518 = vmatpush2.bf16.msra.mxu0 %v427
      %519 = vmatprep.subr.bf16.mxu0 %v426
      %520 = vmatpush2.bf16.msra.mxu0 %v425
      %521 = vmatprep.subr.bf16.mxu0 %v424
      %522 = vmatpush2.bf16.msra.mxu0 %v423
      %523 = vmatprep.mubr.bf16.mxu0 %v283
      %524 = vmatmul.mubr.bf16.gmra.mxu0 %v282
      %v525 = vpop.f32.mrf.mxu0
      %v526 = vadd.f32 %v265, %v525
      %v527 = vpop.f32.mrf.mxu0
      %v528 = vadd.f32 %v269, %v527
      %v529 = vpop.f32.mrf.mxu0
      %v530 = vadd.f32 %v265, %v529
      %v531 = vpop.f32.mrf.mxu0
      %v532 = vadd.f32 %v269, %v531
      %533 = vdwg.mxu0
      %534 = vmatprep.subr.bf16.mxu0 0
      %535 = vmatpush1.bf16.msra.mxu0 0
      %536 = vmatprep.subr.bf16.mxu0 0
      %537 = vmatpush1.bf16.msra.mxu0 0
      %538 = vmatprep.subr.bf16.mxu0 0
      %539 = vmatpush1.bf16.msra.mxu0 0
      %540 = vmatprep.subr.bf16.mxu0 0
      %541 = vmatpush1.bf16.msra.mxu0 0
      %542 = vmatprep.subr.bf16.mxu0 %v446
      %543 = vmatpush1.bf16.msra.mxu0 %v445
      %544 = vmatprep.subr.bf16.mxu0 %v444
      %545 = vmatpush1.bf16.msra.mxu0 %v443
      %546 = vmatprep.subr.bf16.mxu0 %v442
      %547 = vmatpush1.bf16.msra.mxu0 %v441
      %548 = vmatprep.subr.bf16.mxu0 %v440
      %549 = vmatpush1.bf16.msra.mxu0 %v439
      %550 = vmatprep.subr.bf16.mxu0 0
      %551 = vmatpush2.bf16.msra.mxu0 0
      %552 = vmatprep.subr.bf16.mxu0 0
      %553 = vmatpush2.bf16.msra.mxu0 0
      %554 = vmatprep.subr.bf16.mxu0 0
      %555 = vmatpush2.bf16.msra.mxu0 0
      %556 = vmatprep.subr.bf16.mxu0 0
      %557 = vmatpush2.bf16.msra.mxu0 0
      %558 = vmatprep.subr.bf16.mxu0 0
      %559 = vmatpush2.bf16.msra.mxu0 0
      %560 = vmatprep.subr.bf16.mxu0 0
      %561 = vmatpush2.bf16.msra.mxu0 0
      %562 = vmatprep.subr.bf16.mxu0 0
      %563 = vmatpush2.bf16.msra.mxu0 0
      %564 = vmatprep.subr.bf16.mxu0 0
      %565 = vmatpush2.bf16.msra.mxu0 0
      %566 = vmatprep.mubr.bf16.mxu0 0
      %567 = vmatmul.mubr.bf16.gmra.mxu0 %v489
      %v568 = vpop.f32.mrf.mxu0
      %v569 = vadd.f32 %v526, %v568
      %v570 = vpop.f32.mrf.mxu0
      %v571 = vadd.f32 %v528, %v570
      %v572 = vpop.f32.mrf.mxu0
      %v573 = vadd.f32 %v530, %v572
      %v574 = vpop.f32.mrf.mxu0
      %v575 = vadd.f32 %v532, %v574
      %576 = vdwg.mxu0
      %v577 = vpack.c.bf16 %v573, %v569
      %v578 = vpack.c.bf16 %v575, %v571
      %v581 = vunpack.c.l.b16 %v577
      %v582 = vunpack.c.l.b16 %v578
      %v583 = vunpack.c.h.b16 %v577
      %v584 = vunpack.c.h.b16 %v578
      %v585 = vpack.c.b16 %v582, %v581
      %v586 = vpack.c.b16 %v584, %v583
      %vm589 = vcmask 1043456
      %vm590 = vcmask 523268
      %vm591 = vmor %vm590, %vm589
      %592 = vst.msk [vmem:[%s213] sm:$0xff] %vm591, %v585
      %593 = vst.msk [vmem:[%s213 + $0x8] sm:$0xff] %vm591, %v586
      %s594 = smul.u32 2, %s19
      %p595 = scmp.lt.s32.totalorder %s18, 1
      %s596 = scalar_select %p595, %s18, 1
      %p597 = scmp.lt.s32.totalorder %s594, 1
      %s598 = scalar_select %p597, %s594, 1
      %s599 = smul.addr %s598, 2
      %s600 = smul.addr %s596, 4
      %s601 = sadd.s32 %s599, %s600
      %s602 = smul.addr %s601, 4
      %s603 = scalar_lea.vmem %s3, %s602
      // Predicated region
      $region33: #{forward.23} parent=31 // pred_check
        %p604 = pneg %p116
      $region34: #{forward.23} parent=31 // pred_check_branch
        %606 = sbr.rel (%p604) target = $region36
      $region35: #{forward.23} parent=31 // pred_region
        %s607 = smul.u32 2, %s19
      $region36: #{forward.23} parent=31 // pred_fallthru
        _
    $region32: #{forward.23} parent=5 // pred_fallthru
      _
    %p608 = scmp.le.s32.totalorder 2, %s9
    // Predicated region
    $region37: #{forward.23} parent=5 // pred_check
      %p609 = pneg %p608
    $region38: #{forward.23} parent=5 // pred_check_branch
      %611 = sbr.rel (%p609) target = $region40
    $region39: #{forward.23} parent=5 // pred_region
      %s612 = ssub.s32 %s9, 2
      // Predicated region
      $region41: #{forward.23} parent=39 // pred_check
        %p613 = pneg %p122
      $region42: #{forward.23} parent=39 // pred_check_branch
        %615 = sbr.rel (%p613) target = $region44
      $region43: #{forward.23} parent=39 // pred_region
        %s616 = smul.u32 2, %s21
        %p617 = scmp.lt.s32.totalorder %s20, 1
        %s618 = scalar_select %p617, %s20, 1
        %p619 = scmp.lt.s32.totalorder %s616, 1
        %s620 = scalar_select %p619, %s616, 1
        %s621 = smul.addr %s620, 2
        %s622 = smul.addr %s618, 4
        %s623 = sadd.s32 %s621, %s622
        %s624 = smul.addr %s623, 4
        %s625 = scalar_lea.vmem %s3, %s624
      $region44: #{forward.23} parent=39 // pred_fallthru
        _
    $region40: #{forward.23} parent=5 // pred_fallthru
      _
  $region6: #{forward.23} parent=0 // loop_footer
    %s13 = sadd.s32 1, %s9
  $region7: #{forward.23} parent=0 // loop_footer_branch
    %8 = sbr.rel target = $region3
  $region8: #{forward.23} parent=0 // loop_exit
    _

// kernel: forward.25
$region0: #{forward.25}
  #allocation0 [shape = 'u32[]', space=smem, size = 0x4, offset = 0x4, fixed_abs, tag = 'smem constant byte address 0x4 - core index']
  #allocation1 [shape = 'u32[144,128]{1,0:T(1,128)}', space=vmem, size = 0x12000, scoped, tag = 'internal scratch']
  #allocation2 [shape = 'f32[1,1]{1,0:T(1,128)}', space=vmem, size = 0x200, scoped, tag = 'scratch operand']
  #allocation3 [shape = 'f32[1,1]{1,0:T(1,128)}', space=vmem, size = 0x200, scoped, tag = 'scratch operand']
  #allocation4 [shape = 'f32[1,1]{1,0:T(1,128)}', space=vmem, size = 0x200, scoped, tag = 'scratch operand']
  #allocation5 [shape = 'f32[1,1]{1,0:T(1,128)}', space=vmem, size = 0x200, scoped, tag = 'scratch operand']
  #allocation6 [shape = 'f32[1,1]{1,0:T(1,128)}', space=vmem, size = 0x200, scoped, tag = 'scratch operand']
  %s0 = inlined_call_operand.vmem [shape: f32[2,3,32,32], index: 0, kind: input, shape index: {}]
  %s1 = inlined_call_operand.vmem [shape: bf16[2,3,32,32], index: 1, kind: input, shape index: {}]
  %s2 = inlined_call_operand.vmem [shape: bf16[2,3,32,32], index: 2, kind: input, shape index: {}]
  %s3 = inlined_call_operand.vmem [shape: f32[2,32,32], index: 3, kind: input, shape index: {}]
  %s4 = inlined_call_operand.vmem [shape: f32[2,32,32], index: 4, kind: input, shape index: {}]
  %s5 = inlined_call_operand.vmem [shape: f32[2,1,128], index: 5, kind: output, shape index: {}]
  %s6 = sld [smem:[#allocation0]]
  $region61: #{forward.25} parent=0
    _
  %s8 = ssub.s32 1, %s6
  %s9 = scalar_select 0, %s8, %s6
  loop: start=0, step=1, limit=4
  $region2: #{forward.25} parent=0 // loop_pre_header
    _
  $region3: #{forward.25} parent=0 // loop_header
    %s11 = sphi 0, %s15
    %p12 = scmp.ge.s32.totalorder %s11, 4
    %s18 = sphi 0, %s30
    %s19 = sphi 0, %s26
    %s20 = sphi 0, %s18
    %s21 = sphi 0, %s19
    %s22 = sphi 0, %s20
    %s23 = sphi 0, %s21
    %s35 = sphi 0, %s37
    %s38 = sphi 0, %s35
    %s39 = sphi 0, %s38
    %s55 = sphi 0, %s39
    %s63 = sphi 0, %s65
    %s66 = sphi 0, %s63
    %s67 = sphi 0, %s66
    %s83 = sphi 0, %s67
    %s91 = sphi 0, %s93
    %s94 = sphi 0, %s91
    %s95 = sphi 0, %s94
    %s111 = sphi 0, %s95
    %s119 = sphi 0, %s121
    %s122 = sphi 0, %s119
    %s123 = sphi 0, %s122
    %s139 = sphi 0, %s123
    %s147 = sphi 0, %s149
    %s150 = sphi 0, %s147
    %s151 = sphi 0, %s150
    %s167 = sphi 0, %s151
    %s173 = sphi 0, %s175
    %s176 = sphi 0, %s173
    %s177 = sphi 0, %s176
    %s193 = sphi 0, %s177
  $region4: #{forward.25} parent=0 // loop_header_branch
    %14 = sbr.rel (%p12) target = $region8
  $region5: #{forward.25} parent=0 // loop_body
    %s16 = ssub.s32 %s11, 1
    %s17 = ssub.s32 %s11, 2
    %s24 = sadd.s32 1, %s19
    %p25 = scmp.ge.s32.totalorder %s24, 1
    %s26 = scalar_select %p25, 0, %s24
    %s27 = sadd.s32 1, %s18
    %s28 = scalar_select %p25, %s27, %s18
    %p29 = scmp.ge.s32.totalorder %s28, 2
    %s30 = scalar_select %p29, 0, %s28
    %s31 = ssub.s32 %s18, %s30
    %s32 = ssub.s32 %s19, %s26
    %s33 = sor.u32 %s31, %s32
    %p34 = scmp.eq.s32.totalorder %s33, 0
    %s36 = sadd.s32 %s35, 1
    %s37 = scalar_select %p34, %s35, %s36
    %p40 = pneg %p34
    %p41 = scmp.eq.s32.totalorder %s11, 1
    %p42 = por %p40, %p41
    %p43 = scmp.ne.s32.totalorder %s35, %s38
    %p44 = scmp.eq.s32.totalorder %s11, 0
    %p45 = por %p43, %p44
    %p46 = scmp.ne.s32.totalorder %s35, %s38
    %p47 = scmp.eq.s32.totalorder %s16, 1
    %p48 = por %p46, %p47
    %p49 = scmp.ne.s32.totalorder %s38, %s39
    %p50 = scmp.eq.s32.totalorder %s16, 0
    %p51 = por %p49, %p50
    %p52 = scmp.ne.s32.totalorder %s38, %s39
    %p53 = scmp.eq.s32.totalorder %s17, 1
    %p54 = por %p52, %p53
    %p56 = scmp.ne.s32.totalorder %s39, %s55
    %p57 = scmp.eq.s32.totalorder %s17, 0
    %p58 = por %p56, %p57
    %s59 = ssub.s32 %s18, %s30
    %s60 = ssub.s32 %s19, %s26
    %s61 = sor.u32 %s59, %s60
    %p62 = scmp.eq.s32.totalorder %s61, 0
    %s64 = sadd.s32 %s63, 1
    %s65 = scalar_select %p62, %s63, %s64
    %p68 = pneg %p62
    %p69 = scmp.eq.s32.totalorder %s11, 1
    %p70 = por %p68, %p69
    %p71 = scmp.ne.s32.totalorder %s63, %s66
    %p72 = scmp.eq.s32.totalorder %s11, 0
    %p73 = por %p71, %p72
    %p74 = scmp.ne.s32.totalorder %s63, %s66
    %p75 = scmp.eq.s32.totalorder %s16, 1
    %p76 = por %p74, %p75
    %p77 = scmp.ne.s32.totalorder %s66, %s67
    %p78 = scmp.eq.s32.totalorder %s16, 0
    %p79 = por %p77, %p78
    %p80 = scmp.ne.s32.totalorder %s66, %s67
    %p81 = scmp.eq.s32.totalorder %s17, 1
    %p82 = por %p80, %p81
    %p84 = scmp.ne.s32.totalorder %s67, %s83
    %p85 = scmp.eq.s32.totalorder %s17, 0
    %p86 = por %p84, %p85
    %s87 = ssub.s32 %s18, %s30
    %s88 = ssub.s32 %s19, %s26
    %s89 = sor.u32 %s87, %s88
    %p90 = scmp.eq.s32.totalorder %s89, 0
    %s92 = sadd.s32 %s91, 1
    %s93 = scalar_select %p90, %s91, %s92
    %p96 = pneg %p90
    %p97 = scmp.eq.s32.totalorder %s11, 1
    %p98 = por %p96, %p97
    %p99 = scmp.ne.s32.totalorder %s91, %s94
    %p100 = scmp.eq.s32.totalorder %s11, 0
    %p101 = por %p99, %p100
    %p102 = scmp.ne.s32.totalorder %s91, %s94
    %p103 = scmp.eq.s32.totalorder %s16, 1
    %p104 = por %p102, %p103
    %p105 = scmp.ne.s32.totalorder %s94, %s95
    %p106 = scmp.eq.s32.totalorder %s16, 0
    %p107 = por %p105, %p106
    %p108 = scmp.ne.s32.totalorder %s94, %s95
    %p109 = scmp.eq.s32.totalorder %s17, 1
    %p110 = por %p108, %p109
    %p112 = scmp.ne.s32.totalorder %s95, %s111
    %p113 = scmp.eq.s32.totalorder %s17, 0
    %p114 = por %p112, %p113
    %s115 = ssub.s32 %s18, %s30
    %s116 = ssub.s32 %s19, %s26
    %s117 = sor.u32 %s115, %s116
    %p118 = scmp.eq.s32.totalorder %s117, 0
    %s120 = sadd.s32 %s119, 1
    %s121 = scalar_select %p118, %s119, %s120
    %p124 = pneg %p118
    %p125 = scmp.eq.s32.totalorder %s11, 1
    %p126 = por %p124, %p125
    %p127 = scmp.ne.s32.totalorder %s119, %s122
    %p128 = scmp.eq.s32.totalorder %s11, 0
    %p129 = por %p127, %p128
    %p130 = scmp.ne.s32.totalorder %s119, %s122
    %p131 = scmp.eq.s32.totalorder %s16, 1
    %p132 = por %p130, %p131
    %p133 = scmp.ne.s32.totalorder %s122, %s123
    %p134 = scmp.eq.s32.totalorder %s16, 0
    %p135 = por %p133, %p134
    %p136 = scmp.ne.s32.totalorder %s122, %s123
    %p137 = scmp.eq.s32.totalorder %s17, 1
    %p138 = por %p136, %p137
    %p140 = scmp.ne.s32.totalorder %s123, %s139
    %p141 = scmp.eq.s32.totalorder %s17, 0
    %p142 = por %p140, %p141
    %s143 = ssub.s32 %s18, %s30
    %s144 = ssub.s32 %s19, %s26
    %s145 = sor.u32 %s143, %s144
    %p146 = scmp.eq.s32.totalorder %s145, 0
    %s148 = sadd.s32 %s147, 1
    %s149 = scalar_select %p146, %s147, %s148
    %p152 = pneg %p146
    %p153 = scmp.eq.s32.totalorder %s11, 1
    %p154 = por %p152, %p153
    %p155 = scmp.ne.s32.totalorder %s147, %s150
    %p156 = scmp.eq.s32.totalorder %s11, 0
    %p157 = por %p155, %p156
    %p158 = scmp.ne.s32.totalorder %s147, %s150
    %p159 = scmp.eq.s32.totalorder %s16, 1
    %p160 = por %p158, %p159
    %p161 = scmp.ne.s32.totalorder %s150, %s151
    %p162 = scmp.eq.s32.totalorder %s16, 0
    %p163 = por %p161, %p162
    %p164 = scmp.ne.s32.totalorder %s150, %s151
    %p165 = scmp.eq.s32.totalorder %s17, 1
    %p166 = por %p164, %p165
    %p168 = scmp.ne.s32.totalorder %s151, %s167
    %p169 = scmp.eq.s32.totalorder %s17, 0
    %p170 = por %p168, %p169
    %s171 = ssub.s32 %s18, %s30
    %p172 = scmp.eq.s32.totalorder %s171, 0
    %s174 = sadd.s32 %s173, 1
    %s175 = scalar_select %p172, %s173, %s174
    %p178 = pneg %p172
    %p179 = scmp.eq.s32.totalorder %s11, 1
    %p180 = por %p178, %p179
    %p181 = scmp.ne.s32.totalorder %s173, %s176
    %p182 = scmp.eq.s32.totalorder %s11, 0
    %p183 = por %p181, %p182
    %p184 = scmp.ne.s32.totalorder %s173, %s176
    %p185 = scmp.eq.s32.totalorder %s16, 1
    %p186 = por %p184, %p185
    %p187 = scmp.ne.s32.totalorder %s176, %s177
    %p188 = scmp.eq.s32.totalorder %s16, 0
    %p189 = por %p187, %p188
    %p190 = scmp.ne.s32.totalorder %s176, %s177
    %p191 = scmp.eq.s32.totalorder %s17, 1
    %p192 = por %p190, %p191
    %p194 = scmp.ne.s32.totalorder %s177, %s193
    %p195 = scmp.eq.s32.totalorder %s17, 0
    %p196 = por %p194, %p195
    %p197 = scmp.le.s32.totalorder 1, %s11
    %p198 = scmp.lt.s32.totalorder %s11, 3
    %p199 = pnand %p197, %p198
    %p200 = pneg %p199
    // Predicated region
    $region9: #{forward.25} parent=5 // pred_check
      _
    $region10: #{forward.25} parent=5 // pred_check_branch
      %202 = sbr.rel (%p199) target = $region12
    $region11: #{forward.25} parent=5 // pred_region
      %s203 = ssub.s32 %s11, 1
    $region12: #{forward.25} parent=5 // pred_fallthru
      _
    %p204 = scmp.lt.s32.totalorder %s11, 2
    // Predicated region
    $region13: #{forward.25} parent=5 // pred_check
      %p205 = pneg %p204
    $region14: #{forward.25} parent=5 // pred_check_branch
      %207 = sbr.rel (%p205) target = $region16
    $region15: #{forward.25} parent=5 // pred_region
      // Predicated region
      $region17: #{forward.25} parent=15 // pred_check
        %p208 = pneg %p45
      $region18: #{forward.25} parent=15 // pred_check_branch
        %210 = sbr.rel (%p208) target = $region20
      $region19: #{forward.25} parent=15 // pred_region
        %s211 = smul.u32 4, %s19
        %p212 = scmp.lt.s32.totalorder %s18, 1
        %s213 = scalar_select %p212, %s18, 1
        %p214 = scmp.lt.s32.totalorder %s211, 3
        %s215 = scalar_select %p214, %s211, 3
        %s216 = smul.addr %s213, 12
        %s217 = sadd.s32 %s215, %s216
        %s218 = smul.addr %s217, 8
        %s219 = scalar_lea.vmem %s0, %s218
        %s220 = smul.u32 4, %s19
      $region20: #{forward.25} parent=15 // pred_fallthru
        _
      // Predicated region
      $region21: #{forward.25} parent=15 // pred_check
        %p221 = pneg %p73
      $region22: #{forward.25} parent=15 // pred_check_branch
        %223 = sbr.rel (%p221) target = $region24
      $region23: #{forward.25} parent=15 // pred_region
        %s224 = smul.u32 4, %s19
        %p225 = scmp.lt.s32.totalorder %s18, 1
        %s226 = scalar_select %p225, %s18, 1
        %p227 = scmp.lt.s32.totalorder %s224, 3
        %s228 = scalar_select %p227, %s224, 3
        %s229 = smul.addr %s226, 12
        %s230 = sadd.s32 %s228, %s229
        %s231 = smul.addr %s230, 4
        %s232 = scalar_lea.vmem %s1, %s231
        %s233 = smul.u32 4, %s19
      $region24: #{forward.25} parent=15 // pred_fallthru
        _
      // Predicated region
      $region25: #{forward.25} parent=15 // pred_check
        %p234 = pneg %p101
      $region26: #{forward.25} parent=15 // pred_check_branch
        %236 = sbr.rel (%p234) target = $region28
      $region27: #{forward.25} parent=15 // pred_region
        %s237 = smul.u32 4, %s19
        %p238 = scmp.lt.s32.totalorder %s18, 1
        %s239 = scalar_select %p238, %s18, 1
        %p240 = scmp.lt.s32.totalorder %s237, 3
        %s241 = scalar_select %p240, %s237, 3
        %s242 = smul.addr %s239, 12
        %s243 = sadd.s32 %s241, %s242
        %s244 = smul.addr %s243, 4
        %s245 = scalar_lea.vmem %s2, %s244
        %s246 = smul.u32 4, %s19
      $region28: #{forward.25} parent=15 // pred_fallthru
        _
      // Predicated region
      $region29: #{forward.25} parent=15 // pred_check
        %p247 = pneg %p129
      $region30: #{forward.25} parent=15 // pred_check_branch
        %249 = sbr.rel (%p247) target = $region32
      $region31: #{forward.25} parent=15 // pred_region
        %s250 = smul.u32 4, %s19
        %p251 = scmp.lt.s32.totalorder %s18, 1
        %s252 = scalar_select %p251, %s18, 1
        %p253 = scmp.lt.s32.totalorder %s250, 3
        %s254 = scalar_select %p253, %s250, 3
        %s255 = smul.addr %s252, 4
        %s256 = sadd.s32 %s254, %s255
        %s257 = smul.addr %s256, 8
        %s258 = scalar_lea.vmem %s3, %s257
        %s259 = smul.u32 4, %s19
      $region32: #{forward.25} parent=15 // pred_fallthru
        _
      // Predicated region
      $region33: #{forward.25} parent=15 // pred_check
        %p260 = pneg %p157
      $region34: #{forward.25} parent=15 // pred_check_branch
        %262 = sbr.rel (%p260) target = $region36
      $region35: #{forward.25} parent=15 // pred_region
        %s263 = smul.u32 4, %s19
        %p264 = scmp.lt.s32.totalorder %s18, 1
        %s265 = scalar_select %p264, %s18, 1
        %p266 = scmp.lt.s32.totalorder %s263, 3
        %s267 = scalar_select %p266, %s263, 3
        %s268 = smul.addr %s265, 4
        %s269 = sadd.s32 %s267, %s268
        %s270 = smul.addr %s269, 8
        %s271 = scalar_lea.vmem %s4, %s270
        %s272 = smul.u32 4, %s19
      $region36: #{forward.25} parent=15 // pred_fallthru
        _
    $region16: #{forward.25} parent=5 // pred_fallthru
      _
    %p273 = scmp.le.s32.totalorder 1, %s11
    %p274 = scmp.lt.s32.totalorder %s11, 3
    %p275 = pnand %p273, %p274
    %p276 = pneg %p275
    // Predicated region
    $region37: #{forward.25} parent=5 // pred_check
      _
    $region38: #{forward.25} parent=5 // pred_check_branch
      %278 = sbr.rel (%p275) target = $region40
    $region39: #{forward.25} parent=5 // pred_region
      %s279 = ssub.s32 %s11, 1
      %s280 = smul.u32 4, %s21
      %p281 = scmp.lt.s32.totalorder %s20, 1
      %s282 = scalar_select %p281, %s20, 1
      %p283 = scmp.lt.s32.totalorder %s280, 3
      %s284 = scalar_select %p283, %s280, 3
      %s285 = smul.addr %s282, 12
      %s286 = sadd.s32 %s284, %s285
      %s287 = smul.addr %s286, 8
      %s288 = scalar_lea.vmem %s0, %s287
      %p289 = pneg %p51
      %p290 = pneg %p48
      %s291 = smul.u32 4, %s21
      %p292 = scmp.lt.s32.totalorder %s20, 1
      %s293 = scalar_select %p292, %s20, 1
      %p294 = scmp.lt.s32.totalorder %s291, 3
      %s295 = scalar_select %p294, %s291, 3
      %s296 = smul.addr %s293, 12
      %s297 = sadd.s32 %s295, %s296
      %s298 = smul.addr %s297, 4
      %s299 = scalar_lea.vmem %s1, %s298
      %p300 = pneg %p79
      %p301 = pneg %p76
      %s302 = smul.u32 4, %s21
      %p303 = scmp.lt.s32.totalorder %s20, 1
      %s304 = scalar_select %p303, %s20, 1
      %p305 = scmp.lt.s32.totalorder %s302, 3
      %s306 = scalar_select %p305, %s302, 3
      %s307 = smul.addr %s304, 12
      %s308 = sadd.s32 %s306, %s307
      %s309 = smul.addr %s308, 4
      %s310 = scalar_lea.vmem %s2, %s309
      %p311 = pneg %p107
      %p312 = pneg %p104
      %s313 = smul.u32 4, %s21
      %p314 = scmp.lt.s32.totalorder %s20, 1
      %s315 = scalar_select %p314, %s20, 1
      %p316 = scmp.lt.s32.totalorder %s313, 3
      %s317 = scalar_select %p316, %s313, 3
      %s318 = smul.addr %s315, 4
      %s319 = sadd.s32 %s317, %s318
      %s320 = smul.addr %s319, 8
      %s321 = scalar_lea.vmem %s3, %s320
      %p322 = pneg %p135
      %p323 = pneg %p132
      %s324 = smul.u32 4, %s21
      %p325 = scmp.lt.s32.totalorder %s20, 1
      %s326 = scalar_select %p325, %s20, 1
      %p327 = scmp.lt.s32.totalorder %s324, 3
      %s328 = scalar_select %p327, %s324, 3
      %s329 = smul.addr %s326, 4
      %s330 = sadd.s32 %s328, %s329
      %s331 = smul.addr %s330, 8
      %s332 = scalar_lea.vmem %s4, %s331
      %p333 = pneg %p163
      %p334 = pneg %p160
      %p335 = pneg %p189
      %p336 = pneg %p186
      %p337 = scmp.lt.s32.totalorder %s20, 1
      %s338 = scalar_select %p337, %s20, 1
      %s339 = scalar_lea.vmem %s5, %s338
      %s340 = smul.u32 4, %s21
      %p341 = scmp.lt.s32.totalorder %s20, 1
      %s342 = scalar_select %p341, %s20, 1
      %p343 = scmp.lt.s32.totalorder %s340, 3
      %s344 = scalar_select %p343, %s340, 3
      %s345 = smul.addr %s342, 12
      %s346 = sadd.s32 %s344, %s345
      %s347 = smul.addr %s346, 8
      %s348 = scalar_lea.vmem %s0, %s347
      %s349 = smul.u32 4, %s21
      %s350 = smul.u32 4, %s21
      %p351 = scmp.lt.s32.totalorder %s20, 1
      %s352 = scalar_select %p351, %s20, 1
      %p353 = scmp.lt.s32.totalorder %s350, 3
      %s354 = scalar_select %p353, %s350, 3
      %s355 = smul.addr %s352, 12
      %s356 = sadd.s32 %s354, %s355
      %s357 = smul.addr %s356, 4
      %s358 = scalar_lea.vmem %s1, %s357
      %s359 = smul.u32 4, %s21
      %s360 = smul.u32 4, %s21
      %p361 = scmp.lt.s32.totalorder %s20, 1
      %s362 = scalar_select %p361, %s20, 1
      %p363 = scmp.lt.s32.totalorder %s360, 3
      %s364 = scalar_select %p363, %s360, 3
      %s365 = smul.addr %s362, 12
      %s366 = sadd.s32 %s364, %s365
      %s367 = smul.addr %s366, 4
      %s368 = scalar_lea.vmem %s2, %s367
      %s369 = smul.u32 4, %s21
      %s370 = smul.u32 4, %s21
      %p371 = scmp.lt.s32.totalorder %s20, 1
      %s372 = scalar_select %p371, %s20, 1
      %p373 = scmp.lt.s32.totalorder %s370, 3
      %s374 = scalar_select %p373, %s370, 3
      %s375 = smul.addr %s372, 4
      %s376 = sadd.s32 %s374, %s375
      %s377 = smul.addr %s376, 8
      %s378 = scalar_lea.vmem %s3, %s377
      %s379 = smul.u32 4, %s21
      %s380 = smul.u32 4, %s21
      %p381 = scmp.lt.s32.totalorder %s20, 1
      %s382 = scalar_select %p381, %s20, 1
      %p383 = scmp.lt.s32.totalorder %s380, 3
      %s384 = scalar_select %p383, %s380, 3
      %s385 = smul.addr %s382, 4
      %s386 = sadd.s32 %s384, %s385
      %s387 = smul.addr %s386, 8
      %s388 = scalar_lea.vmem %s4, %s387
      %s389 = smul.u32 4, %s21
      %p390 = scmp.lt.s32.totalorder %s20, 1
      %s391 = scalar_select %p390, %s20, 1
      %s392 = scalar_lea.vmem %s5, %s391
      %p393 = scmp.eq.s32.totalorder %s21, 0
      // Predicated region
      $region41: #{forward.25} parent=39 // pred_check
        %p394 = pneg %p393
      $region42: #{forward.25} parent=39 // pred_check_branch
        %396 = sbr.rel (%p394) target = $region44
      $region43: #{forward.25} parent=39 // pred_region
        %vm397 = vcmask 0
        %398 = vst.msk [vmem:[#allocation2] sm:$0x1] %vm397, 0.0
        %399 = vst.msk [vmem:[#allocation3] sm:$0x1] %vm397, 0.0
        %400 = vst.msk [vmem:[#allocation4] sm:$0x1] %vm397, 0.0
        %401 = vst.msk [vmem:[#allocation5] sm:$0x1] %vm397, 0.0
        %402 = vst.msk [vmem:[#allocation6] sm:$0x1] %vm397, 0.0
      $region44: #{forward.25} parent=39 // pred_fallthru
        _
      %v403 = vld [vmem:[%s348] sm:$0xff]
      %v404 = vld [vmem:[%s348 + $0x8] sm:$0xff]
      %v405 = vld [vmem:[%s348 + $0x10] sm:$0xff]
      %v406 = vld [vmem:[%s348 + $0x18] sm:$0xff]
      %v407 = vld [vmem:[%s348 + $0x20] sm:$0xff]
      %v408 = vld [vmem:[%s348 + $0x28] sm:$0xff]
      %v409 = vld [vmem:[%s348 + $0x30] sm:$0xff]
      %v410 = vld [vmem:[%s348 + $0x38] sm:$0xff]
      %v411 = vld [vmem:[%s348 + $0x40] sm:$0xff]
      %v412 = vld [vmem:[%s348 + $0x48] sm:$0xff]
      %v413 = vld [vmem:[%s348 + $0x50] sm:$0xff]
      %v414 = vld [vmem:[%s348 + $0x58] sm:$0xff]
      %v415 = vld [vmem:[%s358] sm:$0xf]
      %v416 = vld [vmem:[%s358 + $0x4] sm:$0xf]
      %v417 = vld [vmem:[%s358 + $0x8] sm:$0xf]
      %v418 = vld [vmem:[%s358 + $0xc] sm:$0xf]
      %v419 = vld [vmem:[%s358 + $0x10] sm:$0xf]
      %v420 = vld [vmem:[%s358 + $0x14] sm:$0xf]
      %v421 = vld [vmem:[%s358 + $0x18] sm:$0xf]
      %v422 = vld [vmem:[%s358 + $0x1c] sm:$0xf]
      %v423 = vld [vmem:[%s358 + $0x20] sm:$0xf]
      %v424 = vld [vmem:[%s358 + $0x24] sm:$0xf]
      %v425 = vld [vmem:[%s358 + $0x28] sm:$0xf]
      %v426 = vld [vmem:[%s358 + $0x2c] sm:$0xf]
      %v427 = vunpack.c.l.bf16 %v415
      %v428 = vunpack.c.l.bf16 %v416
      %v429 = vunpack.c.l.bf16 %v417
      %v430 = vunpack.c.l.bf16 %v418
      %v431 = vunpack.c.l.bf16 %v419
      %v432 = vunpack.c.l.bf16 %v420
      %v433 = vunpack.c.l.bf16 %v421
      %v434 = vunpack.c.l.bf16 %v422
      %v435 = vunpack.c.l.bf16 %v423
      %v436 = vunpack.c.l.bf16 %v424
      %v437 = vunpack.c.l.bf16 %v425
      %v438 = vunpack.c.l.bf16 %v426
      %v439 = vld [vmem:[%s368] sm:$0xf]
      %v440 = vld [vmem:[%s368 + $0x4] sm:$0xf]
      %v441 = vld [vmem:[%s368 + $0x8] sm:$0xf]
      %v442 = vld [vmem:[%s368 + $0xc] sm:$0xf]
      %v443 = vld [vmem:[%s368 + $0x10] sm:$0xf]
      %v444 = vld [vmem:[%s368 + $0x14] sm:$0xf]
      %v445 = vld [vmem:[%s368 + $0x18] sm:$0xf]
      %v446 = vld [vmem:[%s368 + $0x1c] sm:$0xf]
      %v447 = vld [vmem:[%s368 + $0x20] sm:$0xf]
      %v448 = vld [vmem:[%s368 + $0x24] sm:$0xf]
      %v449 = vld [vmem:[%s368 + $0x28] sm:$0xf]
      %v450 = vld [vmem:[%s368 + $0x2c] sm:$0xf]
      %v451 = vunpack.c.l.bf16 %v439
      %v452 = vunpack.c.l.bf16 %v440
      %v453 = vunpack.c.l.bf16 %v441
      %v454 = vunpack.c.l.bf16 %v442
      %v455 = vunpack.c.l.bf16 %v443
      %v456 = vunpack.c.l.bf16 %v444
      %v457 = vunpack.c.l.bf16 %v445
      %v458 = vunpack.c.l.bf16 %v446
      %v459 = vunpack.c.l.bf16 %v447
      %v460 = vunpack.c.l.bf16 %v448
      %v461 = vunpack.c.l.bf16 %v449
      %v462 = vunpack.c.l.bf16 %v450
      %v463 = vld [vmem:[%s378] sm:$0xff]
      %v464 = vld [vmem:[%s378 + $0x8] sm:$0xff]
      %v465 = vld [vmem:[%s378 + $0x10] sm:$0xff]
      %v466 = vld [vmem:[%s378 + $0x18] sm:$0xff]
      %v467 = vld [vmem:[%s388] sm:$0xff]
      %v468 = vld [vmem:[%s388 + $0x8] sm:$0xff]
      %v469 = vld [vmem:[%s388 + $0x10] sm:$0xff]
      %v470 = vld [vmem:[%s388 + $0x18] sm:$0xff]
      %v471 = vsub.f32 %v403, %v427
      %v472 = vsub.f32 %v404, %v428
      %v473 = vsub.f32 %v405, %v429
      %v474 = vsub.f32 %v406, %v430
      %v475 = vsub.f32 %v407, %v431
      %v476 = vsub.f32 %v408, %v432
      %v477 = vsub.f32 %v409, %v433
      %v478 = vsub.f32 %v410, %v434
      %v479 = vsub.f32 %v411, %v435
      %v480 = vsub.f32 %v412, %v436
      %v481 = vsub.f32 %v413, %v437
      %v482 = vsub.f32 %v414, %v438
      %v483 = vand.u32 2147483647, %v471
      %v484 = vand.u32 2147483647, %v472
      %v485 = vand.u32 2147483647, %v473
      %v486 = vand.u32 2147483647, %v474
      %v487 = vand.u32 2147483647, %v475
      %v488 = vand.u32 2147483647, %v476
      %v489 = vand.u32 2147483647, %v477
      %v490 = vand.u32 2147483647, %v478
      %v491 = vand.u32 2147483647, %v479
      %v492 = vand.u32 2147483647, %v480
      %v493 = vand.u32 2147483647, %v481
      %v494 = vand.u32 2147483647, %v482
      %vm495 = vcmask 261120
      %v496 = vsel %vm495, %v483, 0.0
      %v497 = vsel %vm495, %v487, 0.0
      %v498 = vadd.f32 %v496, %v497
      %v499 = vsel %vm495, %v491, 0.0
      %v500 = vadd.f32 %v498, %v499
      %v501 = vsel %vm495, %v484, 0.0
      %v502 = vsel %vm495, %v488, 0.0
      %v503 = vadd.f32 %v501, %v502
      %v504 = vsel %vm495, %v492, 0.0
      %v505 = vadd.f32 %v503, %v504
      %v506 = vsel %vm495, %v485, 0.0
      %v507 = vsel %vm495, %v489, 0.0
      %v508 = vadd.f32 %v506, %v507
      %v509 = vsel %vm495, %v493, 0.0
      %v510 = vadd.f32 %v508, %v509
      %v511 = vsel %vm495, %v486, 0.0
      %v512 = vsel %vm495, %v490, 0.0
      %v513 = vadd.f32 %v511, %v512
      %v514 = vsel %vm495, %v494, 0.0
      %v515 = vadd.f32 %v513, %v514
      %v516 = vsub.f32 %v403, %v451
      %v517 = vsub.f32 %v404, %v452
      %v518 = vsub.f32 %v405, %v453
      %v519 = vsub.f32 %v406, %v454
      %v520 = vsub.f32 %v407, %v455
      %v521 = vsub.f32 %v408, %v456
      %v522 = vsub.f32 %v409, %v457
      %v523 = vsub.f32 %v410, %v458
      %v524 = vsub.f32 %v411, %v459
      %v525 = vsub.f32 %v412, %v460
      %v526 = vsub.f32 %v413, %v461
      %v527 = vsub.f32 %v414, %v462
      %v528 = vand.u32 2147483647, %v516
      %v529 = vand.u32 2147483647, %v517
      %v530 = vand.u32 2147483647, %v518
      %v531 = vand.u32 2147483647, %v519
      %v532 = vand.u32 2147483647, %v520
      %v533 = vand.u32 2147483647, %v521
      %v534 = vand.u32 2147483647, %v522
      %v535 = vand.u32 2147483647, %v523
      %v536 = vand.u32 2147483647, %v524
      %v537 = vand.u32 2147483647, %v525
      %v538 = vand.u32 2147483647, %v526
      %v539 = vand.u32 2147483647, %v527
      %v540 = vsel %vm495, %v528, 0.0
      %v541 = vsel %vm495, %v532, 0.0
      %v542 = vadd.f32 %v540, %v541
      %v543 = vsel %vm495, %v536, 0.0
      %v544 = vadd.f32 %v542, %v543
      %v545 = vsel %vm495, %v529, 0.0
      %v546 = vsel %vm495, %v533, 0.0
      %v547 = vadd.f32 %v545, %v546
      %v548 = vsel %vm495, %v537, 0.0
      %v549 = vadd.f32 %v547, %v548
      %v550 = vsel %vm495, %v530, 0.0
      %v551 = vsel %vm495, %v534, 0.0
      %v552 = vadd.f32 %v550, %v551
      %v553 = vsel %vm495, %v538, 0.0
      %v554 = vadd.f32 %v552, %v553
      %v555 = vsel %vm495, %v531, 0.0
      %v556 = vsel %vm495, %v535, 0.0
      %v557 = vadd.f32 %v555, %v556
      %v558 = vsel %vm495, %v539, 0.0
      %v559 = vadd.f32 %v557, %v558
      %v560 = vld [vmem:[#allocation2] sm:$0x1]
      %v561 = vmul.f32 %v500, %v463
      %v562 = vmul.f32 %v505, %v464
      %v563 = vmul.f32 %v510, %v465
      %v564 = vmul.f32 %v515, %v466
      %v565 = vsel %vm495, %v561, 0.0
      %v566 = vsel %vm495, %v562, 0.0
      %v567 = vadd.f32 %v565, %v566
      %v568 = vsel %vm495, %v563, 0.0
      %v569 = vadd.f32 %v567, %v568
      %v570 = vsel %vm495, %v564, 0.0
      %v571 = vadd.f32 %v569, %v570
      %572 = vadd.xlane.f32.xlu0 %v571
      %v573 = vpop.xlane.xlu0 %572
      %v574 = vrot.slane %v573, 4
      %v575 = vadd.f32 %v573, %v574
      %v576 = vrot.slane %v575, 2
      %v577 = vadd.f32 %v575, %v576
      %v578 = vrot.slane %v577, 1
      %v579 = vadd.f32 %v577, %v578
      %s580 = vtos %v579
      %v581 = vstv %s580
      %v582 = vadd.f32 %v560, %v581
      %vm583 = vcmask 0
      %584 = vst.msk [vmem:[#allocation2] sm:$0x1] %vm583, %v582
      %v585 = vld [vmem:[#allocation3] sm:$0x1]
      %v586 = vsel %vm495, %v463, 0.0
      %v587 = vsel %vm495, %v464, 0.0
      %v588 = vadd.f32 %v586, %v587
      %v589 = vsel %vm495, %v465, 0.0
      %v590 = vadd.f32 %v588, %v589
      %v591 = vsel %vm495, %v466, 0.0
      %v592 = vadd.f32 %v590, %v591
      %593 = vadd.xlane.f32.xlu0 %v592
      %v594 = vpop.xlane.xlu0 %593
      %v595 = vrot.slane %v594, 4
      %v596 = vadd.f32 %v594, %v595
      %v597 = vrot.slane %v596, 2
      %v598 = vadd.f32 %v596, %v597
      %v599 = vrot.slane %v598, 1
      %v600 = vadd.f32 %v598, %v599
      %s601 = vtos %v600
      %v602 = vstv %s601
      %v603 = vadd.f32 %v585, %v602
      %604 = vst.msk [vmem:[#allocation3] sm:$0x1] %vm583, %v603
      %v605 = vld [vmem:[#allocation4] sm:$0x1]
      %v606 = vmul.f32 %v500, %v467
      %v607 = vmul.f32 %v505, %v468
      %v608 = vmul.f32 %v510, %v469
      %v609 = vmul.f32 %v515, %v470
      %v610 = vsel %vm495, %v606, 0.0
      %v611 = vsel %vm495, %v607, 0.0
      %v612 = vadd.f32 %v610, %v611
      %v613 = vsel %vm495, %v608, 0.0
      %v614 = vadd.f32 %v612, %v613
      %v615 = vsel %vm495, %v609, 0.0
      %v616 = vadd.f32 %v614, %v615
      %617 = vadd.xlane.f32.xlu0 %v616
      %v618 = vpop.xlane.xlu0 %617
      %v619 = vrot.slane %v618, 4
      %v620 = vadd.f32 %v618, %v619
      %v621 = vrot.slane %v620, 2
      %v622 = vadd.f32 %v620, %v621
      %v623 = vrot.slane %v622, 1
      %v624 = vadd.f32 %v622, %v623
      %s625 = vtos %v624
      %v626 = vstv %s625
      %v627 = vadd.f32 %v605, %v626
      %628 = vst.msk [vmem:[#allocation4] sm:$0x1] %vm583, %v627
      %v629 = vld [vmem:[#allocation5] sm:$0x1]
      %v630 = vsel %vm495, %v467, 0.0
      %v631 = vsel %vm495, %v468, 0.0
      %v632 = vadd.f32 %v630, %v631
      %v633 = vsel %vm495, %v469, 0.0
      %v634 = vadd.f32 %v632, %v633
      %v635 = vsel %vm495, %v470, 0.0
      %v636 = vadd.f32 %v634, %v635
      %637 = vadd.xlane.f32.xlu0 %v636
      %v638 = vpop.xlane.xlu0 %637
      %v639 = vrot.slane %v638, 4
      %v640 = vadd.f32 %v638, %v639
      %v641 = vrot.slane %v640, 2
      %v642 = vadd.f32 %v640, %v641
      %v643 = vrot.slane %v642, 1
      %v644 = vadd.f32 %v642, %v643
      %s645 = vtos %v644
      %v646 = vstv %s645
      %v647 = vadd.f32 %v629, %v646
      %648 = vst.msk [vmem:[#allocation5] sm:$0x1] %vm583, %v647
      %v649 = vld [vmem:[#allocation6] sm:$0x1]
      %v650 = vmul.f32 %v544, %v463
      %v651 = vmul.f32 %v549, %v464
      %v652 = vmul.f32 %v554, %v465
      %v653 = vmul.f32 %v559, %v466
      %v654 = vsel %vm495, %v650, 0.0
      %v655 = vsel %vm495, %v651, 0.0
      %v656 = vadd.f32 %v654, %v655
      %v657 = vsel %vm495, %v652, 0.0
      %v658 = vadd.f32 %v656, %v657
      %v659 = vsel %vm495, %v653, 0.0
      %v660 = vadd.f32 %v658, %v659
      %661 = vadd.xlane.f32.xlu0 %v660
      %v662 = vpop.xlane.xlu0 %661
      %v663 = vrot.slane %v662, 4
      %v664 = vadd.f32 %v662, %v663
      %v665 = vrot.slane %v664, 2
      %v666 = vadd.f32 %v664, %v665
      %v667 = vrot.slane %v666, 1
      %v668 = vadd.f32 %v666, %v667
      %s669 = vtos %v668
      %v670 = vstv %s669
      %v671 = vadd.f32 %v649, %v670
      %672 = vst.msk [vmem:[#allocation6] sm:$0x1] %vm583, %v671
      // Predicated region
      $region45: #{forward.25} parent=39 // pred_check
        %p673 = pneg %p393
      $region46: #{forward.25} parent=39 // pred_check_branch
        %675 = sbr.rel (%p673) target = $region48
      $region47: #{forward.25} parent=39 // pred_region
        %v676 = vlaneseq
        %v677 = vand.u32 %v676, 127
        %vm678 = vcmp.eq.s32.totalorder %v677, 0
        %v679 = vld [vmem:[#allocation2] sm:$0x1]
        %681 = vset.pattern.permute.xlu0 0
        %682 = vperm.xlu0 %681, %v679
        %v683 = vpop.permute.xlu0 %682
        %v685 = vlaneseq
        %v686 = vshrl.u32 %v685, 7
        %v687 = vsub.s32 0, %v686
        %v688 = vrot.slane %v683, %v687
        %v689 = vsel %vm678, %v688, 0.0
        %vm690 = vcmp.eq.s32.totalorder %v677, 1
        %v691 = vld [vmem:[#allocation3] sm:$0x1]
        %693 = vset.pattern.permute.xlu0 0
        %694 = vperm.xlu0 %693, %v691
        %v695 = vpop.permute.xlu0 %694
        %v697 = vlaneseq
        %v698 = vshrl.u32 %v697, 7
        %v699 = vsub.s32 0, %v698
        %v700 = vrot.slane %v695, %v699
        %v701 = vsel %vm690, %v700, 0.0
        %v702 = vadd.f32 %v689, %v701
        %vm703 = vcmp.eq.s32.totalorder %v677, 2
        %v704 = vld [vmem:[#allocation4] sm:$0x1]
        %706 = vset.pattern.permute.xlu0 0
        %707 = vperm.xlu0 %706, %v704
        %v708 = vpop.permute.xlu0 %707
        %v710 = vlaneseq
        %v711 = vshrl.u32 %v710, 7
        %v712 = vsub.s32 0, %v711
        %v713 = vrot.slane %v708, %v712
        %v714 = vsel %vm703, %v713, 0.0
        %v715 = vadd.f32 %v702, %v714
        %vm716 = vcmp.eq.s32.totalorder %v677, 3
        %v717 = vld [vmem:[#allocation5] sm:$0x1]
        %719 = vset.pattern.permute.xlu0 0
        %720 = vperm.xlu0 %719, %v717
        %v721 = vpop.permute.xlu0 %720
        %v723 = vlaneseq
        %v724 = vshrl.u32 %v723, 7
        %v725 = vsub.s32 0, %v724
        %v726 = vrot.slane %v721, %v725
        %v727 = vsel %vm716, %v726, 0.0
        %v728 = vadd.f32 %v715, %v727
        %vm729 = vcmp.eq.s32.totalorder %v677, 4
        %v730 = vld [vmem:[#allocation6] sm:$0x1]
        %732 = vset.pattern.permute.xlu0 0
        %733 = vperm.xlu0 %732, %v730
        %v734 = vpop.permute.xlu0 %733
        %v736 = vlaneseq
        %v737 = vshrl.u32 %v736, 7
        %v738 = vsub.s32 0, %v737
        %v739 = vrot.slane %v734, %v738
        %v740 = vsel %vm729, %v739, 0.0
        %v741 = vadd.f32 %v728, %v740
        %742 = vst [vmem:[%s392] sm:$0x1] %v741
      $region48: #{forward.25} parent=39 // pred_fallthru
        _
      %p743 = scmp.lt.s32.totalorder %s20, 1
      %s744 = scalar_select %p743, %s20, 1
      %s745 = scalar_lea.vmem %s5, %s744
      // Predicated region
      $region49: #{forward.25} parent=39 // pred_check
        %p746 = pneg %p186
      $region50: #{forward.25} parent=39 // pred_check_branch
        %748 = sbr.rel (%p746) target = $region52
      $region51: #{forward.25} parent=39 // pred_region
        _
      $region52: #{forward.25} parent=39 // pred_fallthru
        _
    $region40: #{forward.25} parent=5 // pred_fallthru
      _
    %p749 = scmp.le.s32.totalorder 2, %s11
    // Predicated region
    $region53: #{forward.25} parent=5 // pred_check
      %p750 = pneg %p749
    $region54: #{forward.25} parent=5 // pred_check_branch
      %752 = sbr.rel (%p750) target = $region56
    $region55: #{forward.25} parent=5 // pred_region
      %s753 = ssub.s32 %s11, 2
      // Predicated region
      $region57: #{forward.25} parent=55 // pred_check
        %p754 = pneg %p192
      $region58: #{forward.25} parent=55 // pred_check_branch
        %756 = sbr.rel (%p754) target = $region60
      $region59: #{forward.25} parent=55 // pred_region
        %p757 = scmp.lt.s32.totalorder %s22, 1
        %s758 = scalar_select %p757, %s22, 1
        %s759 = scalar_lea.vmem %s5, %s758
      $region60: #{forward.25} parent=55 // pred_fallthru
        _
    $region56: #{forward.25} parent=5 // pred_fallthru
      _
  $region6: #{forward.25} parent=0 // loop_footer
    %s15 = sadd.s32 1, %s11
  $region7: #{forward.25} parent=0 // loop_footer_branch
    %10 = sbr.rel target = $region3
  $region8: #{forward.25} parent=0 // loop_exit
    _

</llo_original>
